<compile_context>
chip_gen: v7x
topology: tpu7x:2x2x1
jax: 0.10.0
libtpu: 0.0.40
codegen_flags: <defaults>
</compile_context>

<pallas_src>
import jax
import jax.numpy as jnp
import numpy as np
from jax.experimental import pallas as pl
from jax.experimental.pallas import tpu as pltpu


# ----------------------------------------------------------------------------
# Fused Pallas kernel: one grid step == one batch element, both time offsets.
#   SocialComponent (embedding part; GNN / user part precomputed outside):
#       h      = tanh(embs @ W1e[t] + social_bias[b])     social_bias = uo@W1u + b1
#       offset = (h @ W2[t] + b2[t]) * vocab_mask
#   computed for t = times[b] ("now") and t = relu(times[b]-1) ("last"),
#   plus the fused residual input_embs = embs + offset_now.
# ----------------------------------------------------------------------------
def fused_social_offset_kernel(
    t_ref,                            # SMEM scalar prefetch: (B,) int32
    embs_ref,                         # (1, SEQ, H)  f32
    mask_ref,                         # (1, SEQ, 1)  f32
    bias_now_ref,                     # (1, 1, H)    f32
    bias_last_ref,                    # (1, 1, H)    f32
    w1e_ref,                          # (T, H, H)    bf16  (VMEM resident)
    w2_ref,                           # (T, H, H)    bf16  (VMEM resident)
    b2_ref,                           # (T, 1, H)    f32   (VMEM resident)
    off_last_ref,                     # (1, SEQ, H)  f32
    off_now_ref,                      # (1, SEQ, H)  f32
    inp_ref,                          # (1, SEQ, H)  f32
):
    f32 = jnp.float32
    b = pl.program_id(0)
    t_now = t_ref[b]
    t_last = jnp.maximum(t_now - 1, 0)            # F.relu(times - 1)

    e_f32 = embs_ref[0]                           # (SEQ, H) f32
    e = e_f32.astype(jnp.bfloat16)                # MXU operand
    m = mask_ref[0]                               # (SEQ, 1) f32

    def one_offset(t, bias):                      # bias: (1, H), broadcasts over SEQ
        pre = jnp.dot(e, w1e_ref[t], preferred_element_type=f32) + bias
        h = jnp.tanh(pre).astype(jnp.bfloat16)    # dropout = eval identity
        off = jnp.dot(h, w2_ref[t], preferred_element_type=f32) + b2_ref[t]
        return off * m                            # vocab-filter mask

    off_now = one_offset(t_now, bias_now_ref[0])
    off_last = one_offset(t_last, bias_last_ref[0])

    off_now_ref[0] = off_now
    off_last_ref[0] = off_last
    # fused residual in f32: input_embs = bert_embs + offset_now
    inp_ref[0] = e_f32 + off_now


def fused_social_offsets(w1e_bf16, w2_bf16, b2, embs_f32, mask,
                         bias_now, bias_last, times_now):
    """Returns (offset_last, offset_now, input_embs), each (B, SEQ, H) f32."""
    B, SEQ, H = embs_f32.shape
    T = w1e_bf16.shape[0]

    per_batch = lambda b, t: (b, 0, 0)        # activations: one block per element
    resident = lambda b, t: (0, 0, 0)         # weights: same block every step

    grid_spec = pltpu.PrefetchScalarGridSpec(
        num_scalar_prefetch=1,
        grid=(B,),
        in_specs=[
            pl.BlockSpec((1, SEQ, H), per_batch),   # embs (f32)
            pl.BlockSpec((1, SEQ, 1), per_batch),   # vocab mask (f32)
            pl.BlockSpec((1, 1, H), per_batch),     # social bias "now" (f32)
            pl.BlockSpec((1, 1, H), per_batch),     # social bias "last" (f32)
            pl.BlockSpec((T, H, H), resident),      # W1e stacked (bf16)
            pl.BlockSpec((T, H, H), resident),      # W2 stacked (bf16)
            pl.BlockSpec((T, 1, H), resident),      # b2 stacked (f32)
        ],
        out_specs=[
            pl.BlockSpec((1, SEQ, H), per_batch),   # offset_last
            pl.BlockSpec((1, SEQ, H), per_batch),   # offset_now
            pl.BlockSpec((1, SEQ, H), per_batch),   # input_embs
        ],
    )

    out_shapes = (
        jax.ShapeDtypeStruct((B, SEQ, H), jnp.float32),
        jax.ShapeDtypeStruct((B, SEQ, H), jnp.float32),
        jax.ShapeDtypeStruct((B, SEQ, H), jnp.float32),
    )

    return pl.pallas_call(
        fused_social_offset_kernel,
        out_shape=out_shapes,
        grid_spec=grid_spec,
        compiler_params=pltpu.CompilerParams(
            dimension_semantics=("parallel",),      # no cross-step accumulation
            vmem_limit_bytes=40 << 20,              # ~15 MiB actually used; v7x-safe
        ),
    )(
        times_now,
        embs_f32, mask, bias_now, bias_last,
        w1e_bf16, w2_bf16, b2,
    )


# ----------------------------------------------------------------------------
# GNNComponent (gnn=None linear branch) hoisted to plain XLA:
#   h1 = tanh(x[users] @ gW1[t] + gb1[t]);  uo = tanh(h1 @ gW2[t] + gb2[t])
#   social_bias = uo @ W1u[t] + b1[t]        (the user part of linear_1 + bias)
# These are tiny (50-dim, lane-misaligned) matmuls — not worth MXU tiles.
# ----------------------------------------------------------------------------
def gnn_social_bias(params, user_feats, t_idx):
    gw1 = params["gw1"][t_idx]            # (B, S, S)
    gb1 = params["gb1"][t_idx][:, 0]      # (B, S)
    gw2 = params["gw2"][t_idx]            # (B, S, S)
    gb2 = params["gb2"][t_idx][:, 0]      # (B, S)
    w1u = params["w1u"][t_idx]            # (B, S, H)
    b1 = params["b1"][t_idx][:, 0]        # (B, H)

    h1 = jnp.tanh(jnp.einsum("bs,bst->bt", user_feats, gw1) + gb1)
    uo = jnp.tanh(jnp.einsum("bs,bst->bt", h1, gw2) + gb2)
    bias = jnp.einsum("bs,bsh->bh", uo, w1u) + b1
    return bias[:, None, :]               # (B, 1, H)


# ----------------------------------------------------------------------------
# Full MLMModel forward (glue in plain JAX, hot path in the fused Pallas kernel).
# ----------------------------------------------------------------------------
def mlm_model_forward(params, reviews, users, graph_x, times, vocab_filter):
    # bert_emb_layer: embedding lookup (glue).
    bert_embs = params["emb_table"][reviews]                       # (B, SEQ, H) f32

    # isin(reviews, vocab_filter) mask -> (B, SEQ, 1)
    mask = jnp.isin(reviews, vocab_filter).astype(jnp.float32)[..., None]

    # graph_data.x[users] gather (glue).
    user_feats = graph_x[users]                                    # (B, S)

    times_now = times.astype(jnp.int32)
    times_last = jnp.maximum(times_now - 1, 0)                     # F.relu(times - 1)

    # GNN part + user-dependent bias of linear_1, precomputed per time index.
    bias_now = gnn_social_bias(params, user_feats, times_now)      # (B, 1, H)
    bias_last = gnn_social_bias(params, user_feats, times_last)    # (B, 1, H)

    # bf16 weights for the MXU path (f32 accumulation in-kernel).
    w1e_bf16 = params["w1e"].astype(jnp.bfloat16)
    w2_bf16 = params["w2"].astype(jnp.bfloat16)

    offset_last, offset_now, input_embs = fused_social_offsets(
        w1e_bf16, w2_bf16, params["b2"], bert_embs, mask,
        bias_now, bias_last, times_now)

    # TODO(synk): self.bert(inputs_embeds=input_embs, ...) MLM head not implemented.
    return offset_last, offset_now, bert_embs, input_embs


# Pure-JAX reference of one SocialComponent offset (for correctness check).
def ref_social_offset(params, embs_b, user_feat, mask_b, j):
    h1 = jnp.tanh(user_feat @ params["gw1"][j] + params["gb1"][j, 0])
    uo = jnp.tanh(h1 @ params["gw2"][j] + params["gb2"][j, 0])
    h = jnp.tanh(embs_b @ params["w1e"][j] + uo @ params["w1u"][j] + params["b1"][j, 0])
    off = h @ params["w2"][j] + params["b2"][j, 0]
    return off * mask_b


def init_params(key, n_times, social_dim, hidden, vocab, n_nodes):
    ks = jax.random.split(key, 12)
    sc = 0.05
    T, S, H = n_times, social_dim, hidden
    return {
        "emb_table": sc * jax.random.normal(ks[0], (vocab, H), jnp.float32),
        "gw1": sc * jax.random.normal(ks[1], (T, S, S), jnp.float32),
        "gb1": sc * jax.random.normal(ks[2], (T, 1, S), jnp.float32),
        "gw2": sc * jax.random.normal(ks[3], (T, S, S), jnp.float32),
        "gb2": sc * jax.random.normal(ks[4], (T, 1, S), jnp.float32),
        "w1e": sc * jax.random.normal(ks[5], (T, H, H), jnp.float32),
        "w1u": sc * jax.random.normal(ks[6], (T, S, H), jnp.float32),
        "b1": sc * jax.random.normal(ks[7], (T, 1, H), jnp.float32),
        "w2": sc * jax.random.normal(ks[8], (T, H, H), jnp.float32),
        "b2": sc * jax.random.normal(ks[9], (T, 1, H), jnp.float32),
    }


if __name__ == "__main__":
    B, SEQ, H, S, T = 2, 8, 768, 50, 3
    VOCAB, N_NODES = 1000, 16

    root = jax.random.PRNGKey(0)
    kp, kr, ku, kg = jax.random.split(root, 4)

    params = init_params(kp, n_times=T, social_dim=S, hidden=H,
                         vocab=VOCAB, n_nodes=N_NODES)

    reviews = jax.random.randint(kr, (B, SEQ), 0, VOCAB, dtype=jnp.int32)
    users = jax.random.randint(ku, (B,), 0, N_NODES, dtype=jnp.int32)
    graph_x = 0.1 * jax.random.normal(kg, (N_NODES, S), jnp.float32)
    times = jnp.array([0, 2], dtype=jnp.int32)
    vocab_filter = jnp.arange(0, VOCAB, 3, dtype=jnp.int32)   # synthetic word-type filter

    fwd = jax.jit(mlm_model_forward)
    offset_last, offset_now, bert_embs, input_embs = jax.block_until_ready(
        fwd(params, reviews, users, graph_x, times, vocab_filter)
    )

    # Correctness check against a pure-f32 JAX reference (bf16 MXU path => loose tol).
    mask = jnp.isin(reviews, vocab_filter).astype(jnp.float32)[..., None]
    user_feats_flat = graph_x[users]
    for b in range(B):
        ref_now = ref_social_offset(params, bert_embs[b], user_feats_flat[b],
                                    mask[b], int(times[b]))
        ref_last = ref_social_offset(params, bert_embs[b], user_feats_flat[b],
                                     mask[b], int(max(int(times[b]) - 1, 0)))
        np.testing.assert_allclose(np.asarray(offset_now[b]), np.asarray(ref_now),
                                   rtol=2e-2, atol=2e-2)
        np.testing.assert_allclose(np.asarray(offset_last[b]), np.asarray(ref_last),
                                   rtol=2e-2, atol=2e-2)
    # Residual fused in-kernel uses the same f32 embs + f32 offset => near-exact.
    np.testing.assert_allclose(np.asarray(input_embs),
                               np.asarray(bert_embs + offset_now),
                               rtol=0, atol=1e-6)

    print("KERNEL_OK")
</pallas_src>

<mosaic_0001>
module attributes {stable_mosaic.version = 11 : i64} {
  func.func @fused_social_offset_kernel(%arg0: i32, %arg1: memref<2xi32, #tpu.memory_space<smem>>, %arg2: memref<1x8x768xf32, #tpu.memory_space<vmem>>, %arg3: memref<1x8x1xf32, #tpu.memory_space<vmem>>, %arg4: memref<1x1x768xf32, #tpu.memory_space<vmem>>, %arg5: memref<1x1x768xf32, #tpu.memory_space<vmem>>, %arg6: memref<3x768x768xbf16, #tpu.memory_space<vmem>>, %arg7: memref<3x768x768xbf16, #tpu.memory_space<vmem>>, %arg8: memref<3x1x768xf32, #tpu.memory_space<vmem>>, %arg9: memref<1x8x768xf32, #tpu.memory_space<vmem>>, %arg10: memref<1x8x768xf32, #tpu.memory_space<vmem>>, %arg11: memref<1x8x768xf32, #tpu.memory_space<vmem>>) attributes {dimension_semantics = [#tpu.dimension_semantics<parallel>], iteration_bounds = array<i64: 2>, scalar_prefetch = 1 : i64, scratch_operands = 0 : i64, tpu.core_type = #tpu.core_type<tc>, window_params = [{transform_indices = @transform_0, window_bounds = array<i64: 1, 8, 768>}, {transform_indices = @transform_1, window_bounds = array<i64: 1, 8, 1>}, {transform_indices = @transform_2, window_bounds = array<i64: 1, 1, 768>}, {transform_indices = @transform_3, window_bounds = array<i64: 1, 1, 768>}, {pipeline_mode = #tpu.pipeline_mode<synchronous>, transform_indices = @transform_4, window_bounds = array<i64: 3, 768, 768>}, {pipeline_mode = #tpu.pipeline_mode<synchronous>, transform_indices = @transform_5, window_bounds = array<i64: 3, 768, 768>}, {pipeline_mode = #tpu.pipeline_mode<synchronous>, transform_indices = @transform_6, window_bounds = array<i64: 3, 1, 768>}, {transform_indices = @transform_7, window_bounds = array<i64: 1, 8, 768>}, {transform_indices = @transform_8, window_bounds = array<i64: 1, 8, 768>}, {transform_indices = @transform_9, window_bounds = array<i64: 1, 8, 768>}]} {
    %0 = arith.index_cast %arg0 : i32 to index
    %1 = memref.load %arg1[%0] : memref<2xi32, #tpu.memory_space<smem>>
    %c1_i32 = arith.constant 1 : i32
    %2 = arith.subi %1, %c1_i32 : i32
    %c0_i32 = arith.constant 0 : i32
    %3 = arith.maxsi %2, %c0_i32 : i32
    %c0 = arith.constant 0 : index
    %c0_0 = arith.constant 0 : index
    %c0_1 = arith.constant 0 : index
    %4 = vector.load %arg2[%c0, %c0_0, %c0_1] : memref<1x8x768xf32, #tpu.memory_space<vmem>>, vector<1x8x768xf32>
    %5 = vector.shape_cast %4 : vector<1x8x768xf32> to vector<8x768xf32>
    %6 = arith.truncf %5 : vector<8x768xf32> to vector<8x768xbf16>
    %c0_2 = arith.constant 0 : index
    %c0_3 = arith.constant 0 : index
    %c0_4 = arith.constant 0 : index
    %7 = vector.load %arg3[%c0_2, %c0_3, %c0_4] : memref<1x8x1xf32, #tpu.memory_space<vmem>>, vector<1x8x1xf32>
    %8 = vector.shape_cast %7 : vector<1x8x1xf32> to vector<8x1xf32>
    %c0_5 = arith.constant 0 : index
    %c0_6 = arith.constant 0 : index
    %c0_7 = arith.constant 0 : index
    %9 = vector.load %arg4[%c0_5, %c0_6, %c0_7] : memref<1x1x768xf32, #tpu.memory_space<vmem>>, vector<1x1x768xf32>
    %10 = vector.shape_cast %9 : vector<1x1x768xf32> to vector<1x768xf32>
    %11 = arith.index_cast %1 : i32 to index
    %c0_8 = arith.constant 0 : index
    %c0_9 = arith.constant 0 : index
    %12 = vector.load %arg6[%11, %c0_8, %c0_9] : memref<3x768x768xbf16, #tpu.memory_space<vmem>>, vector<1x768x768xbf16>
    %13 = vector.shape_cast %12 : vector<1x768x768xbf16> to vector<768x768xbf16>
    %cst = arith.constant dense<0.000000e+00> : vector<8x768xf32>
    %14 = tpu.matmul %6, %13, %cst {dimension_numbers = #tpu.dot_dimension_numbers<[1], [0], [0], [1], [0, 0, 1, 1], [], []>} : vector<8x768xbf16>, vector<768x768xbf16>, vector<8x768xf32> -> vector<8x768xf32>
    %15 = vector.broadcast %10 : vector<1x768xf32> to vector<8x768xf32>
    %16 = arith.addf %14, %15 : vector<8x768xf32>
    %17 = math.tanh %16 : vector<8x768xf32>
    %18 = arith.truncf %17 : vector<8x768xf32> to vector<8x768xbf16>
    %19 = arith.index_cast %1 : i32 to index
    %c0_10 = arith.constant 0 : index
    %c0_11 = arith.constant 0 : index
    %20 = vector.load %arg7[%19, %c0_10, %c0_11] : memref<3x768x768xbf16, #tpu.memory_space<vmem>>, vector<1x768x768xbf16>
    %21 = vector.shape_cast %20 : vector<1x768x768xbf16> to vector<768x768xbf16>
    %cst_12 = arith.constant dense<0.000000e+00> : vector<8x768xf32>
    %22 = tpu.matmul %18, %21, %cst_12 {dimension_numbers = #tpu.dot_dimension_numbers<[1], [0], [0], [1], [0, 0, 1, 1], [], []>} : vector<8x768xbf16>, vector<768x768xbf16>, vector<8x768xf32> -> vector<8x768xf32>
    %23 = arith.index_cast %1 : i32 to index
    %c0_13 = arith.constant 0 : index
    %c0_14 = arith.constant 0 : index
    %24 = vector.load %arg8[%23, %c0_13, %c0_14] : memref<3x1x768xf32, #tpu.memory_space<vmem>>, vector<1x1x768xf32>
    %25 = vector.shape_cast %24 : vector<1x1x768xf32> to vector<1x768xf32>
    %26 = vector.broadcast %25 : vector<1x768xf32> to vector<8x768xf32>
    %27 = arith.addf %22, %26 : vector<8x768xf32>
    %28 = vector.broadcast %8 : vector<8x1xf32> to vector<8x768xf32>
    %29 = arith.mulf %27, %28 : vector<8x768xf32>
    %c0_15 = arith.constant 0 : index
    %c0_16 = arith.constant 0 : index
    %c0_17 = arith.constant 0 : index
    %30 = vector.load %arg5[%c0_15, %c0_16, %c0_17] : memref<1x1x768xf32, #tpu.memory_space<vmem>>, vector<1x1x768xf32>
    %31 = vector.shape_cast %30 : vector<1x1x768xf32> to vector<1x768xf32>
    %32 = arith.index_cast %3 : i32 to index
    %c0_18 = arith.constant 0 : index
    %c0_19 = arith.constant 0 : index
    %33 = vector.load %arg6[%32, %c0_18, %c0_19] : memref<3x768x768xbf16, #tpu.memory_space<vmem>>, vector<1x768x768xbf16>
    %34 = vector.shape_cast %33 : vector<1x768x768xbf16> to vector<768x768xbf16>
    %cst_20 = arith.constant dense<0.000000e+00> : vector<8x768xf32>
    %35 = tpu.matmul %6, %34, %cst_20 {dimension_numbers = #tpu.dot_dimension_numbers<[1], [0], [0], [1], [0, 0, 1, 1], [], []>} : vector<8x768xbf16>, vector<768x768xbf16>, vector<8x768xf32> -> vector<8x768xf32>
    %36 = vector.broadcast %31 : vector<1x768xf32> to vector<8x768xf32>
    %37 = arith.addf %35, %36 : vector<8x768xf32>
    %38 = math.tanh %37 : vector<8x768xf32>
    %39 = arith.truncf %38 : vector<8x768xf32> to vector<8x768xbf16>
    %40 = arith.index_cast %3 : i32 to index
    %c0_21 = arith.constant 0 : index
    %c0_22 = arith.constant 0 : index
    %41 = vector.load %arg7[%40, %c0_21, %c0_22] : memref<3x768x768xbf16, #tpu.memory_space<vmem>>, vector<1x768x768xbf16>
    %42 = vector.shape_cast %41 : vector<1x768x768xbf16> to vector<768x768xbf16>
    %cst_23 = arith.constant dense<0.000000e+00> : vector<8x768xf32>
    %43 = tpu.matmul %39, %42, %cst_23 {dimension_numbers = #tpu.dot_dimension_numbers<[1], [0], [0], [1], [0, 0, 1, 1], [], []>} : vector<8x768xbf16>, vector<768x768xbf16>, vector<8x768xf32> -> vector<8x768xf32>
    %44 = arith.index_cast %3 : i32 to index
    %c0_24 = arith.constant 0 : index
    %c0_25 = arith.constant 0 : index
    %45 = vector.load %arg8[%44, %c0_24, %c0_25] : memref<3x1x768xf32, #tpu.memory_space<vmem>>, vector<1x1x768xf32>
    %46 = vector.shape_cast %45 : vector<1x1x768xf32> to vector<1x768xf32>
    %47 = vector.broadcast %46 : vector<1x768xf32> to vector<8x768xf32>
    %48 = arith.addf %43, %47 : vector<8x768xf32>
    %49 = vector.broadcast %8 : vector<8x1xf32> to vector<8x768xf32>
    %50 = arith.mulf %48, %49 : vector<8x768xf32>
    %c0_26 = arith.constant 0 : index
    %c0_27 = arith.constant 0 : index
    %c0_28 = arith.constant 0 : index
    %51 = vector.load %arg10[%c0_26, %c0_27, %c0_28] : memref<1x8x768xf32, #tpu.memory_space<vmem>>, vector<1x8x768xf32>
    %52 = vector.shape_cast %51 : vector<1x8x768xf32> to vector<8x768xf32>
    %53 = vector.shape_cast %29 : vector<8x768xf32> to vector<1x8x768xf32>
    tpu.vector_store %arg10[%c0_26, %c0_27, %c0_28], %53 {strides = array<i32>} : memref<1x8x768xf32, #tpu.memory_space<vmem>>, vector<1x8x768xf32>,
    %c0_29 = arith.constant 0 : index
    %c0_30 = arith.constant 0 : index
    %c0_31 = arith.constant 0 : index
    %54 = vector.load %arg9[%c0_29, %c0_30, %c0_31] : memref<1x8x768xf32, #tpu.memory_space<vmem>>, vector<1x8x768xf32>
    %55 = vector.shape_cast %54 : vector<1x8x768xf32> to vector<8x768xf32>
    %56 = vector.shape_cast %50 : vector<8x768xf32> to vector<1x8x768xf32>
    tpu.vector_store %arg9[%c0_29, %c0_30, %c0_31], %56 {strides = array<i32>} : memref<1x8x768xf32, #tpu.memory_space<vmem>>, vector<1x8x768xf32>,
    %57 = arith.addf %5, %29 : vector<8x768xf32>
    %c0_32 = arith.constant 0 : index
    %c0_33 = arith.constant 0 : index
    %c0_34 = arith.constant 0 : index
    %58 = vector.load %arg11[%c0_32, %c0_33, %c0_34] : memref<1x8x768xf32, #tpu.memory_space<vmem>>, vector<1x8x768xf32>
    %59 = vector.shape_cast %58 : vector<1x8x768xf32> to vector<8x768xf32>
    %60 = vector.shape_cast %57 : vector<8x768xf32> to vector<1x8x768xf32>
    tpu.vector_store %arg11[%c0_32, %c0_33, %c0_34], %60 {strides = array<i32>} : memref<1x8x768xf32, #tpu.memory_space<vmem>>, vector<1x8x768xf32>,
    return
  }
  func.func @transform_0(%arg0: i32, %arg1: memref<2xi32, #tpu.memory_space<smem>>) -> (i32, i32, i32) {
    %c0_i32 = arith.constant 0 : i32
    %c0_i32_0 = arith.constant 0 : i32
    %c0_i32_1 = arith.constant 0 : i32
    return %arg0, %c0_i32, %c0_i32_0 : i32, i32, i32
  }
  func.func @transform_1(%arg0: i32, %arg1: memref<2xi32, #tpu.memory_space<smem>>) -> (i32, i32, i32) {
    %c0_i32 = arith.constant 0 : i32
    %c0_i32_0 = arith.constant 0 : i32
    %c0_i32_1 = arith.constant 0 : i32
    return %arg0, %c0_i32, %c0_i32_0 : i32, i32, i32
  }
  func.func @transform_2(%arg0: i32, %arg1: memref<2xi32, #tpu.memory_space<smem>>) -> (i32, i32, i32) {
    %c0_i32 = arith.constant 0 : i32
    %c0_i32_0 = arith.constant 0 : i32
    %c0_i32_1 = arith.constant 0 : i32
    return %arg0, %c0_i32, %c0_i32_0 : i32, i32, i32
  }
  func.func @transform_3(%arg0: i32, %arg1: memref<2xi32, #tpu.memory_space<smem>>) -> (i32, i32, i32) {
    %c0_i32 = arith.constant 0 : i32
    %c0_i32_0 = arith.constant 0 : i32
    %c0_i32_1 = arith.constant 0 : i32
    return %arg0, %c0_i32, %c0_i32_0 : i32, i32, i32
  }
  func.func @transform_4(%arg0: i32, %arg1: memref<2xi32, #tpu.memory_space<smem>>) -> (i32, i32, i32) {
    %c0_i32 = arith.constant 0 : i32
    %c0_i32_0 = arith.constant 0 : i32
    %c0_i32_1 = arith.constant 0 : i32
    %c0_i32_2 = arith.constant 0 : i32
    return %c0_i32, %c0_i32_0, %c0_i32_1 : i32, i32, i32
  }
  func.func @transform_5(%arg0: i32, %arg1: memref<2xi32, #tpu.memory_space<smem>>) -> (i32, i32, i32) {
    %c0_i32 = arith.constant 0 : i32
    %c0_i32_0 = arith.constant 0 : i32
    %c0_i32_1 = arith.constant 0 : i32
    %c0_i32_2 = arith.constant 0 : i32
    return %c0_i32, %c0_i32_0, %c0_i32_1 : i32, i32, i32
  }
  func.func @transform_6(%arg0: i32, %arg1: memref<2xi32, #tpu.memory_space<smem>>) -> (i32, i32, i32) {
    %c0_i32 = arith.constant 0 : i32
    %c0_i32_0 = arith.constant 0 : i32
    %c0_i32_1 = arith.constant 0 : i32
    %c0_i32_2 = arith.constant 0 : i32
    return %c0_i32, %c0_i32_0, %c0_i32_1 : i32, i32, i32
  }
  func.func @transform_7(%arg0: i32, %arg1: memref<2xi32, #tpu.memory_space<smem>>) -> (i32, i32, i32) {
    %c0_i32 = arith.constant 0 : i32
    %c0_i32_0 = arith.constant 0 : i32
    %c0_i32_1 = arith.constant 0 : i32
    return %arg0, %c0_i32, %c0_i32_0 : i32, i32, i32
  }
  func.func @transform_8(%arg0: i32, %arg1: memref<2xi32, #tpu.memory_space<smem>>) -> (i32, i32, i32) {
    %c0_i32 = arith.constant 0 : i32
    %c0_i32_0 = arith.constant 0 : i32
    %c0_i32_1 = arith.constant 0 : i32
    return %arg0, %c0_i32, %c0_i32_0 : i32, i32, i32
  }
  func.func @transform_9(%arg0: i32, %arg1: memref<2xi32, #tpu.memory_space<smem>>) -> (i32, i32, i32) {
    %c0_i32 = arith.constant 0 : i32
    %c0_i32_0 = arith.constant 0 : i32
    %c0_i32_1 = arith.constant 0 : i32
    return %arg0, %c0_i32, %c0_i32_0 : i32, i32, i32
  }
}

</mosaic_0001>

<llo_original>
// kernel: eq.1
$region0: #{eq.1}
  %s0 = inlined_call_operand.hbm [shape: s32[2,8], index: 0, kind: input, shape index: {}]
  %s1 = inlined_call_operand.vmem [shape: s32[16], index: 1, kind: output, shape index: {}]
  $region1: #{eq.1} parent=0
    #allocation0 [shape = 'u8[1024]{0}', space=vmem, size = 0x400, scoped, tag = 'operand span for operand 0']
    #allocation1 [shape = 's32[1]{0}', space=sflag, size = 0x4, scoped, tag = 'scoped memory for eq.1']
    #allocation2 [shape = 'u8[4096]{0}', space=vmem, size = 0x1000, scoped, tag = 'scoped mem for output reshape']
    #allocation3 [shape = 'u8[4096]{0}', space=vmem, size = 0x1000, scoped, tag = 'scoped mem for input reshape']
    %2 = vsyncpa [#allocation1], 0
    %s4 = ssub.s32 32, 32
    %5 = vsyncadd [#allocation1], %s4
    %s7 = sshll.u32 [#allocation0], 4
    %s8 = int_to_ptr.vmem [resolvable:$true] %s7
    %10 = dma.hbm_to_vmem [thread:$0]  %s0, 32, %s8, [#allocation1]
    %11 = dma.done [#allocation1], 32
    %s13 = sshllo.u32 0, 2
    %v14 = vld [vmem:[#allocation0] sm:%s13]
    %15 = vst [vmem:[#allocation3] sm:%s13] %v14
    %v16 = vld [vmem:[#allocation3] sm:$0x1]
    %vm17 = vcmask 64512
    %18 = vst.msk [vmem:[#allocation2] sm:$0x1] %vm17, %v16
    %s19 = scalar_lea.vmem [#allocation3], 1
    %v20 = vld [vmem:[%s19] sm:$0x1]
    %21 = vrot.lane.b32.xlu0 %v20, 8
    %v22 = vpop.permute.xlu0 %21
    %vm23 = vcmask 130112
    %24 = vst.msk [vmem:[#allocation2] sm:$0x1] %vm23, %v22
    %s26 = sshllo.u32 0, 1
    %v28 = vld [vmem:[#allocation2] sm:%s26]
    %s29 = sshllo.u32 0, 1
    %30 = vst [vmem:[%s1] sm:%s29] %v28
    %31 = vsyncpa [#allocation1], 1

// kernel: mlm_model_forward.1
$region0: #{mlm_model_forward.1}
  #allocation0 [shape = 'u32[]', space=smem, size = 0x4, offset = 0x4, fixed_abs, tag = 'smem constant byte address 0x4 - core index']
  #allocation1 [shape = 'u32[144,128]{1,0:T(1,128)}', space=vmem, size = 0x12000, scoped, tag = 'internal scratch']
  #allocation2 [shape = 's32[1]{0}', space=sflag, size = 0x4, scoped, tag = 'scoped memory for mlm_model_forward.1']
  #allocation3 [shape = 'u8[512]{0}', space=smem, size = 0x200, scoped, tag = 'prefetched SMEM operand 0']
  %s0 = inlined_call_operand.vmem [shape: s32[2], index: 0, kind: input, shape index: {}]
  %s1 = inlined_call_operand.vmem [shape: f32[2,8,768], index: 1, kind: input, shape index: {}]
  %s2 = inlined_call_operand.vmem [shape: f32[2,8,1], index: 2, kind: input, shape index: {}]
  %s3 = inlined_call_operand.vmem [shape: f32[2,1,768], index: 3, kind: input, shape index: {}]
  %s4 = inlined_call_operand.vmem [shape: f32[2,1,768], index: 4, kind: input, shape index: {}]
  %s5 = inlined_call_operand.vmem [shape: bf16[3,768,768], index: 5, kind: input, shape index: {}]
  %s6 = inlined_call_operand.vmem [shape: bf16[3,768,768], index: 6, kind: input, shape index: {}]
  %s7 = inlined_call_operand.vmem [shape: f32[3,1,768], index: 7, kind: input, shape index: {}]
  %s8 = inlined_call_operand.hbm [shape: f32[2,8,768], index: 8, kind: output, shape index: {0}]
  %s9 = inlined_call_operand.hbm [shape: f32[2,8,768], index: 9, kind: output, shape index: {1}]
  %s10 = inlined_call_operand.hbm [shape: f32[2,8,768], index: 10, kind: output, shape index: {2}]
  %11 = xla_tuple %s8, %s9, %s10
  %s12 = sld [smem:[#allocation0]]
  $region77: #{mlm_model_forward.1} parent=0
    _
  %s14 = ssub.s32 1, %s12
  %s15 = scalar_select 0, %s14, %s12
  %s16 = sshll.u32 %s0, 4
  %s17 = int_to_ptr.vmem [resolvable:$true] %s16
  %19 = dma.vmem_to_smem %s17, 16, [#allocation3], [#allocation2]
  %20 = dma.done [#allocation2], 16
  %21 = sfence
  $region1: #{mlm_model_forward.1} parent=0
    #allocation4 [shape = 'u8[49152]{0}', space=vmem, size = 0xc000, scoped, tag = 'output window, operand 0']
    #allocation5 [shape = 's32[2]{0}', space=sflag, size = 0x8, scoped, tag = 'scoped memory for mlm_model_forward.1']
    #allocation6 [shape = 'u8[49152]{0}', space=vmem, size = 0xc000, scoped, tag = 'output window, operand 1']
    #allocation7 [shape = 's32[2]{0}', space=sflag, size = 0x8, scoped, tag = 'scoped memory for mlm_model_forward.1']
    #allocation8 [shape = 'u8[49152]{0}', space=vmem, size = 0xc000, scoped, tag = 'output window, operand 2']
    %22 = vsyncpa [#allocation5], 0
    %s23 = scalar_lea.sflag [#allocation5], 1
    %24 = vsyncpa %s23, 0
    %25 = vsyncpa [#allocation7], 0
    %s26 = scalar_lea.sflag [#allocation7], 1
    %27 = vsyncpa %s26, 0
    loop: start=0, step=1, limit=4
    $region2: #{mlm_model_forward.1} parent=1 // loop_pre_header
      _
    $region3: #{mlm_model_forward.1} parent=1 // loop_header
      %s29 = sphi 0, %s33
      %p30 = scmp.ge.s32.totalorder %s29, 4
      %s39 = sphi 0, %s41
      %s42 = sphi 0, %s39
      %s43 = sphi 0, %s42
      %s59 = sphi 0, %s43
      %s65 = sphi 0, %s67
      %s68 = sphi 0, %s65
      %s69 = sphi 0, %s68
      %s85 = sphi 0, %s69
      %s91 = sphi 0, %s93
      %s94 = sphi 0, %s91
      %s95 = sphi 0, %s94
      %s111 = sphi 0, %s95
      %s117 = sphi 0, %s119
      %s120 = sphi 0, %s117
      %s121 = sphi 0, %s120
      %s137 = sphi 0, %s121
      %s141 = sphi 0, %s141
      %s143 = sphi 0, %s141
      %s144 = sphi 0, %s143
      %s158 = sphi 0, %s144
      %s162 = sphi 0, %s162
      %s164 = sphi 0, %s162
      %s165 = sphi 0, %s164
      %s179 = sphi 0, %s165
      %s183 = sphi 0, %s183
      %s185 = sphi 0, %s183
      %s186 = sphi 0, %s185
      %s200 = sphi 0, %s186
      %s206 = sphi 0, %s208
      %s209 = sphi 0, %s206
      %s210 = sphi 0, %s209
      %s226 = sphi 0, %s210
      %s232 = sphi 0, %s234
      %s235 = sphi 0, %s232
      %s236 = sphi 0, %s235
      %s252 = sphi 0, %s236
      %s258 = sphi 0, %s260
      %s261 = sphi 0, %s258
      %s262 = sphi 0, %s261
      %s278 = sphi 0, %s262
    $region4: #{mlm_model_forward.1} parent=1 // loop_header_branch
      %32 = sbr.rel (%p30) target = $region8
    $region5: #{mlm_model_forward.1} parent=1 // loop_body
      %s34 = ssub.s32 %s29, 1
      %s35 = ssub.s32 %s29, 2
      %s36 = sadd.s32 %s29, 1
      %s37 = ssub.s32 %s29, %s36
      %p38 = scmp.eq.s32.totalorder %s37, 0
      %s40 = sadd.s32 %s39, 1
      %s41 = scalar_select %p38, %s39, %s40
      %p44 = pneg %p38
      %p45 = scmp.eq.s32.totalorder %s29, 1
      %p46 = por %p44, %p45
      %p47 = scmp.ne.s32.totalorder %s39, %s42
      %p48 = scmp.eq.s32.totalorder %s29, 0
      %p49 = por %p47, %p48
      %p50 = scmp.ne.s32.totalorder %s39, %s42
      %p51 = scmp.eq.s32.totalorder %s34, 1
      %p52 = por %p50, %p51
      %p53 = scmp.ne.s32.totalorder %s42, %s43
      %p54 = scmp.eq.s32.totalorder %s34, 0
      %p55 = por %p53, %p54
      %p56 = scmp.ne.s32.totalorder %s42, %s43
      %p57 = scmp.eq.s32.totalorder %s35, 1
      %p58 = por %p56, %p57
      %p60 = scmp.ne.s32.totalorder %s43, %s59
      %p61 = scmp.eq.s32.totalorder %s35, 0
      %p62 = por %p60, %p61
      %s63 = ssub.s32 %s29, %s36
      %p64 = scmp.eq.s32.totalorder %s63, 0
      %s66 = sadd.s32 %s65, 1
      %s67 = scalar_select %p64, %s65, %s66
      %p70 = pneg %p64
      %p71 = scmp.eq.s32.totalorder %s29, 1
      %p72 = por %p70, %p71
      %p73 = scmp.ne.s32.totalorder %s65, %s68
      %p74 = scmp.eq.s32.totalorder %s29, 0
      %p75 = por %p73, %p74
      %p76 = scmp.ne.s32.totalorder %s65, %s68
      %p77 = scmp.eq.s32.totalorder %s34, 1
      %p78 = por %p76, %p77
      %p79 = scmp.ne.s32.totalorder %s68, %s69
      %p80 = scmp.eq.s32.totalorder %s34, 0
      %p81 = por %p79, %p80
      %p82 = scmp.ne.s32.totalorder %s68, %s69
      %p83 = scmp.eq.s32.totalorder %s35, 1
      %p84 = por %p82, %p83
      %p86 = scmp.ne.s32.totalorder %s69, %s85
      %p87 = scmp.eq.s32.totalorder %s35, 0
      %p88 = por %p86, %p87
      %s89 = ssub.s32 %s29, %s36
      %p90 = scmp.eq.s32.totalorder %s89, 0
      %s92 = sadd.s32 %s91, 1
      %s93 = scalar_select %p90, %s91, %s92
      %p96 = pneg %p90
      %p97 = scmp.eq.s32.totalorder %s29, 1
      %p98 = por %p96, %p97
      %p99 = scmp.ne.s32.totalorder %s91, %s94
      %p100 = scmp.eq.s32.totalorder %s29, 0
      %p101 = por %p99, %p100
      %p102 = scmp.ne.s32.totalorder %s91, %s94
      %p103 = scmp.eq.s32.totalorder %s34, 1
      %p104 = por %p102, %p103
      %p105 = scmp.ne.s32.totalorder %s94, %s95
      %p106 = scmp.eq.s32.totalorder %s34, 0
      %p107 = por %p105, %p106
      %p108 = scmp.ne.s32.totalorder %s94, %s95
      %p109 = scmp.eq.s32.totalorder %s35, 1
      %p110 = por %p108, %p109
      %p112 = scmp.ne.s32.totalorder %s95, %s111
      %p113 = scmp.eq.s32.totalorder %s35, 0
      %p114 = por %p112, %p113
      %s115 = ssub.s32 %s29, %s36
      %p116 = scmp.eq.s32.totalorder %s115, 0
      %s118 = sadd.s32 %s117, 1
      %s119 = scalar_select %p116, %s117, %s118
      %p122 = pneg %p116
      %p123 = scmp.eq.s32.totalorder %s29, 1
      %p124 = por %p122, %p123
      %p125 = scmp.ne.s32.totalorder %s117, %s120
      %p126 = scmp.eq.s32.totalorder %s29, 0
      %p127 = por %p125, %p126
      %p128 = scmp.ne.s32.totalorder %s117, %s120
      %p129 = scmp.eq.s32.totalorder %s34, 1
      %p130 = por %p128, %p129
      %p131 = scmp.ne.s32.totalorder %s120, %s121
      %p132 = scmp.eq.s32.totalorder %s34, 0
      %p133 = por %p131, %p132
      %p134 = scmp.ne.s32.totalorder %s120, %s121
      %p135 = scmp.eq.s32.totalorder %s35, 1
      %p136 = por %p134, %p135
      %p138 = scmp.ne.s32.totalorder %s121, %s137
      %p139 = scmp.eq.s32.totalorder %s35, 0
      %p140 = por %p138, %p139
      %s142 = sadd.s32 %s141, 1
      %p145 = scmp.eq.s32.totalorder %s29, 1
      %p146 = scmp.ne.s32.totalorder %s141, %s143
      %p147 = scmp.eq.s32.totalorder %s29, 0
      %p148 = por %p146, %p147
      %p149 = scmp.ne.s32.totalorder %s141, %s143
      %p150 = scmp.eq.s32.totalorder %s34, 1
      %p151 = por %p149, %p150
      %p152 = scmp.ne.s32.totalorder %s143, %s144
      %p153 = scmp.eq.s32.totalorder %s34, 0
      %p154 = por %p152, %p153
      %p155 = scmp.ne.s32.totalorder %s143, %s144
      %p156 = scmp.eq.s32.totalorder %s35, 1
      %p157 = por %p155, %p156
      %p159 = scmp.ne.s32.totalorder %s144, %s158
      %p160 = scmp.eq.s32.totalorder %s35, 0
      %p161 = por %p159, %p160
      %s163 = sadd.s32 %s162, 1
      %p166 = scmp.eq.s32.totalorder %s29, 1
      %p167 = scmp.ne.s32.totalorder %s162, %s164
      %p168 = scmp.eq.s32.totalorder %s29, 0
      %p169 = por %p167, %p168
      %p170 = scmp.ne.s32.totalorder %s162, %s164
      %p171 = scmp.eq.s32.totalorder %s34, 1
      %p172 = por %p170, %p171
      %p173 = scmp.ne.s32.totalorder %s164, %s165
      %p174 = scmp.eq.s32.totalorder %s34, 0
      %p175 = por %p173, %p174
      %p176 = scmp.ne.s32.totalorder %s164, %s165
      %p177 = scmp.eq.s32.totalorder %s35, 1
      %p178 = por %p176, %p177
      %p180 = scmp.ne.s32.totalorder %s165, %s179
      %p181 = scmp.eq.s32.totalorder %s35, 0
      %p182 = por %p180, %p181
      %s184 = sadd.s32 %s183, 1
      %p187 = scmp.eq.s32.totalorder %s29, 1
      %p188 = scmp.ne.s32.totalorder %s183, %s185
      %p189 = scmp.eq.s32.totalorder %s29, 0
      %p190 = por %p188, %p189
      %p191 = scmp.ne.s32.totalorder %s183, %s185
      %p192 = scmp.eq.s32.totalorder %s34, 1
      %p193 = por %p191, %p192
      %p194 = scmp.ne.s32.totalorder %s185, %s186
      %p195 = scmp.eq.s32.totalorder %s34, 0
      %p196 = por %p194, %p195
      %p197 = scmp.ne.s32.totalorder %s185, %s186
      %p198 = scmp.eq.s32.totalorder %s35, 1
      %p199 = por %p197, %p198
      %p201 = scmp.ne.s32.totalorder %s186, %s200
      %p202 = scmp.eq.s32.totalorder %s35, 0
      %p203 = por %p201, %p202
      %s204 = ssub.s32 %s29, %s36
      %p205 = scmp.eq.s32.totalorder %s204, 0
      %s207 = sadd.s32 %s206, 1
      %s208 = scalar_select %p205, %s206, %s207
      %p211 = pneg %p205
      %p212 = scmp.eq.s32.totalorder %s29, 1
      %p213 = por %p211, %p212
      %p214 = scmp.ne.s32.totalorder %s206, %s209
      %p215 = scmp.eq.s32.totalorder %s29, 0
      %p216 = por %p214, %p215
      %p217 = scmp.ne.s32.totalorder %s206, %s209
      %p218 = scmp.eq.s32.totalorder %s34, 1
      %p219 = por %p217, %p218
      %p220 = scmp.ne.s32.totalorder %s209, %s210
      %p221 = scmp.eq.s32.totalorder %s34, 0
      %p222 = por %p220, %p221
      %p223 = scmp.ne.s32.totalorder %s209, %s210
      %p224 = scmp.eq.s32.totalorder %s35, 1
      %p225 = por %p223, %p224
      %p227 = scmp.ne.s32.totalorder %s210, %s226
      %p228 = scmp.eq.s32.totalorder %s35, 0
      %p229 = por %p227, %p228
      %s230 = ssub.s32 %s29, %s36
      %p231 = scmp.eq.s32.totalorder %s230, 0
      %s233 = sadd.s32 %s232, 1
      %s234 = scalar_select %p231, %s232, %s233
      %p237 = pneg %p231
      %p238 = scmp.eq.s32.totalorder %s29, 1
      %p239 = por %p237, %p238
      %p240 = scmp.ne.s32.totalorder %s232, %s235
      %p241 = scmp.eq.s32.totalorder %s29, 0
      %p242 = por %p240, %p241
      %p243 = scmp.ne.s32.totalorder %s232, %s235
      %p244 = scmp.eq.s32.totalorder %s34, 1
      %p245 = por %p243, %p244
      %p246 = scmp.ne.s32.totalorder %s235, %s236
      %p247 = scmp.eq.s32.totalorder %s34, 0
      %p248 = por %p246, %p247
      %p249 = scmp.ne.s32.totalorder %s235, %s236
      %p250 = scmp.eq.s32.totalorder %s35, 1
      %p251 = por %p249, %p250
      %p253 = scmp.ne.s32.totalorder %s236, %s252
      %p254 = scmp.eq.s32.totalorder %s35, 0
      %p255 = por %p253, %p254
      %s256 = ssub.s32 %s29, %s36
      %p257 = scmp.eq.s32.totalorder %s256, 0
      %s259 = sadd.s32 %s258, 1
      %s260 = scalar_select %p257, %s258, %s259
      %p263 = pneg %p257
      %p264 = scmp.eq.s32.totalorder %s29, 1
      %p265 = por %p263, %p264
      %p266 = scmp.ne.s32.totalorder %s258, %s261
      %p267 = scmp.eq.s32.totalorder %s29, 0
      %p268 = por %p266, %p267
      %p269 = scmp.ne.s32.totalorder %s258, %s261
      %p270 = scmp.eq.s32.totalorder %s34, 1
      %p271 = por %p269, %p270
      %p272 = scmp.ne.s32.totalorder %s261, %s262
      %p273 = scmp.eq.s32.totalorder %s34, 0
      %p274 = por %p272, %p273
      %p275 = scmp.ne.s32.totalorder %s261, %s262
      %p276 = scmp.eq.s32.totalorder %s35, 1
      %p277 = por %p275, %p276
      %p279 = scmp.ne.s32.totalorder %s262, %s278
      %p280 = scmp.eq.s32.totalorder %s35, 0
      %p281 = por %p279, %p280
      %p282 = scmp.le.s32.totalorder 1, %s29
      %p283 = scmp.lt.s32.totalorder %s29, 3
      %p284 = pnand %p282, %p283
      %p285 = pneg %p284
      // Predicated region
      $region9: #{mlm_model_forward.1} parent=5 // pred_check
        _
      $region10: #{mlm_model_forward.1} parent=5 // pred_check_branch
        %287 = sbr.rel (%p284) target = $region12
      $region11: #{mlm_model_forward.1} parent=5 // pred_region
        %s288 = ssub.s32 %s29, 1
        // Predicated region
        $region13: #{mlm_model_forward.1} parent=11 // pred_check
          %p289 = pneg %p154
        $region14: #{mlm_model_forward.1} parent=11 // pred_check_branch
          %291 = sbr.rel (%p289) target = $region16
        $region15: #{mlm_model_forward.1} parent=11 // pred_region
          _
        $region16: #{mlm_model_forward.1} parent=11 // pred_fallthru
          _
        // Predicated region
        $region17: #{mlm_model_forward.1} parent=11 // pred_check
          %p292 = pneg %p175
        $region18: #{mlm_model_forward.1} parent=11 // pred_check_branch
          %294 = sbr.rel (%p292) target = $region20
        $region19: #{mlm_model_forward.1} parent=11 // pred_region
          _
        $region20: #{mlm_model_forward.1} parent=11 // pred_fallthru
          _
        // Predicated region
        $region21: #{mlm_model_forward.1} parent=11 // pred_check
          %p295 = pneg %p196
        $region22: #{mlm_model_forward.1} parent=11 // pred_check_branch
          %297 = sbr.rel (%p295) target = $region24
        $region23: #{mlm_model_forward.1} parent=11 // pred_region
          _
        $region24: #{mlm_model_forward.1} parent=11 // pred_fallthru
          _
      $region12: #{mlm_model_forward.1} parent=5 // pred_fallthru
        _
      %p298 = scmp.lt.s32.totalorder %s29, 2
      // Predicated region
      $region25: #{mlm_model_forward.1} parent=5 // pred_check
        %p299 = pneg %p298
      $region26: #{mlm_model_forward.1} parent=5 // pred_check_branch
        %301 = sbr.rel (%p299) target = $region28
      $region27: #{mlm_model_forward.1} parent=5 // pred_region
        // Predicated region
        $region29: #{mlm_model_forward.1} parent=27 // pred_check
          %p302 = pneg %p49
        $region30: #{mlm_model_forward.1} parent=27 // pred_check_branch
          %304 = sbr.rel (%p302) target = $region32
        $region31: #{mlm_model_forward.1} parent=27 // pred_region
          %p305 = scmp.lt.s32.totalorder %s29, 1
          %s306 = scalar_select %p305, %s29, 1
          %s307 = smul.addr %s306, 6
          %s308 = smul.addr %s307, 8
          %s309 = scalar_lea.vmem %s1, %s308
        $region32: #{mlm_model_forward.1} parent=27 // pred_fallthru
          _
        // Predicated region
        $region33: #{mlm_model_forward.1} parent=27 // pred_check
          %p310 = pneg %p75
        $region34: #{mlm_model_forward.1} parent=27 // pred_check_branch
          %312 = sbr.rel (%p310) target = $region36
        $region35: #{mlm_model_forward.1} parent=27 // pred_region
          %p313 = scmp.lt.s32.totalorder %s29, 1
          %s314 = scalar_select %p313, %s29, 1
          %s315 = smul.addr %s314, 8
          %s316 = scalar_lea.vmem %s2, %s315
        $region36: #{mlm_model_forward.1} parent=27 // pred_fallthru
          _
        // Predicated region
        $region37: #{mlm_model_forward.1} parent=27 // pred_check
          %p317 = pneg %p101
        $region38: #{mlm_model_forward.1} parent=27 // pred_check_branch
          %319 = sbr.rel (%p317) target = $region40
        $region39: #{mlm_model_forward.1} parent=27 // pred_region
          %p320 = scmp.lt.s32.totalorder %s29, 1
          %s321 = scalar_select %p320, %s29, 1
          %s322 = smul.addr %s321, 6
          %s323 = scalar_lea.vmem %s3, %s322
        $region40: #{mlm_model_forward.1} parent=27 // pred_fallthru
          _
        // Predicated region
        $region41: #{mlm_model_forward.1} parent=27 // pred_check
          %p324 = pneg %p127
        $region42: #{mlm_model_forward.1} parent=27 // pred_check_branch
          %326 = sbr.rel (%p324) target = $region44
        $region43: #{mlm_model_forward.1} parent=27 // pred_region
          %p327 = scmp.lt.s32.totalorder %s29, 1
          %s328 = scalar_select %p327, %s29, 1
          %s329 = smul.addr %s328, 6
          %s330 = scalar_lea.vmem %s4, %s329
        $region44: #{mlm_model_forward.1} parent=27 // pred_fallthru
          _
      $region28: #{mlm_model_forward.1} parent=5 // pred_fallthru
        _
      %p331 = scmp.le.s32.totalorder 1, %s29
      %p332 = scmp.lt.s32.totalorder %s29, 3
      %p333 = pnand %p331, %p332
      %p334 = pneg %p333
      // Predicated region
      $region45: #{mlm_model_forward.1} parent=5 // pred_check
        _
      $region46: #{mlm_model_forward.1} parent=5 // pred_check_branch
        %336 = sbr.rel (%p333) target = $region48
      $region47: #{mlm_model_forward.1} parent=5 // pred_region
        %s337 = ssub.s32 %s29, 1
        %p338 = scmp.lt.s32.totalorder %s34, 1
        %s339 = scalar_select %p338, %s34, 1
        %s340 = smul.addr %s339, 6
        %s341 = smul.addr %s340, 8
        %s342 = scalar_lea.vmem %s1, %s341
        %p343 = pneg %p55
        %p344 = pneg %p52
        %p345 = scmp.lt.s32.totalorder %s34, 1
        %s346 = scalar_select %p345, %s34, 1
        %s347 = smul.addr %s346, 8
        %s348 = scalar_lea.vmem %s2, %s347
        %p349 = pneg %p81
        %p350 = pneg %p78
        %p351 = scmp.lt.s32.totalorder %s34, 1
        %s352 = scalar_select %p351, %s34, 1
        %s353 = smul.addr %s352, 6
        %s354 = scalar_lea.vmem %s3, %s353
        %p355 = pneg %p107
        %p356 = pneg %p104
        %p357 = scmp.lt.s32.totalorder %s34, 1
        %s358 = scalar_select %p357, %s34, 1
        %s359 = smul.addr %s358, 6
        %s360 = scalar_lea.vmem %s4, %s359
        %p361 = pneg %p133
        %p362 = pneg %p130
        %p363 = pneg %p154
        %p364 = pneg %p151
        %p365 = pneg %p175
        %p366 = pneg %p172
        %p367 = pneg %p196
        %p368 = pneg %p193
        %p369 = pneg %p222
        %p370 = pneg %p219
        %s371 = sand.u32 %s209, 1
        %s372 = scalar_lea.sflag [#allocation5], %s371
        %s373 = sand.u32 %s209, 1
        %s374 = smul.addr %s373, 48
        %s375 = scalar_lea.vmem [#allocation4], %s374
        %p376 = pneg %p248
        %p377 = pneg %p245
        %s378 = sand.u32 %s34, 1
        %s379 = scalar_lea.sflag [#allocation7], %s378
        %s380 = sand.u32 %s235, 1
        %s381 = smul.addr %s380, 48
        %s382 = scalar_lea.vmem [#allocation6], %s381
        %p383 = pneg %p274
        %p384 = pneg %p271
        %s385 = sand.u32 %s34, 1
        %s386 = scalar_lea.sflag [#allocation7], %s385
        %s387 = sand.u32 %s261, 1
        %s388 = smul.addr %s387, 48
        %s389 = scalar_lea.vmem [#allocation8], %s388
        %p390 = scmp.lt.s32.totalorder %s34, 1
        %s391 = scalar_select %p390, %s34, 1
        %s392 = smul.addr %s391, 6
        %s393 = smul.addr %s392, 8
        %s394 = scalar_lea.vmem %s1, %s393
        %p395 = scmp.lt.s32.totalorder %s34, 1
        %s396 = scalar_select %p395, %s34, 1
        %s397 = smul.addr %s396, 8
        %s398 = scalar_lea.vmem %s2, %s397
        %p399 = scmp.lt.s32.totalorder %s34, 1
        %s400 = scalar_select %p399, %s34, 1
        %s401 = smul.addr %s400, 6
        %s402 = scalar_lea.vmem %s3, %s401
        %p403 = scmp.lt.s32.totalorder %s34, 1
        %s404 = scalar_select %p403, %s34, 1
        %s405 = smul.addr %s404, 6
        %s406 = scalar_lea.vmem %s4, %s405
        %s407 = sld [smem:[#allocation3 + %s34]]
        %s408 = ssub.s32 %s407, 1
        %p409 = scmp.gt.s32.totalorder %s408, 0
        %s410 = scalar_select %p409, %s408, 0
        %v411 = vld [vmem:[%s394] sm:$0xff]
        %v412 = vld [vmem:[%s394 + $0x8] sm:$0xff]
        %v413 = vld [vmem:[%s394 + $0x10] sm:$0xff]
        %v414 = vld [vmem:[%s394 + $0x18] sm:$0xff]
        %v415 = vld [vmem:[%s394 + $0x20] sm:$0xff]
        %v416 = vld [vmem:[%s394 + $0x28] sm:$0xff]
        %v417 = vpack.c.bf16 %v411, %v411
        %v418 = vpack.c.bf16 %v412, %v412
        %v419 = vpack.c.bf16 %v413, %v413
        %v420 = vpack.c.bf16 %v414, %v414
        %v421 = vpack.c.bf16 %v415, %v415
        %v422 = vpack.c.bf16 %v416, %v416
        %v423 = vld [vmem:[%s398] sm:$0xff]
        %v424 = vld [vmem:[%s402] sm:$0x3f]
        %s425 = smul.u32 %s407, 576
        %s426 = smul.addr %s425, 4
        %s427 = scalar_lea.vmem %s5, %s426
        %v428 = vld [vmem:[%s427] sm:$0xff]
        %v429 = vld [vmem:[%s427 + $0x8] sm:$0xff]
        %v430 = vld [vmem:[%s427 + $0x10] sm:$0xff]
        %v431 = vld [vmem:[%s427 + $0x18] sm:$0xff]
        %v432 = vld [vmem:[%s427 + $0x20] sm:$0xff]
        %v433 = vld [vmem:[%s427 + $0x28] sm:$0xff]
        %v434 = vld [vmem:[%s427 + $0x30] sm:$0xff]
        %v435 = vld [vmem:[%s427 + $0x38] sm:$0xff]
        %v436 = vld [vmem:[%s427 + $0x40] sm:$0xff]
        %v437 = vld [vmem:[%s427 + $0x48] sm:$0xff]
        %v438 = vld [vmem:[%s427 + $0x50] sm:$0xff]
        %v439 = vld [vmem:[%s427 + $0x58] sm:$0xff]
        %v440 = vld [vmem:[%s427 + $0x60] sm:$0xff]
        %v441 = vld [vmem:[%s427 + $0x68] sm:$0xff]
        %v442 = vld [vmem:[%s427 + $0x70] sm:$0xff]
        %v443 = vld [vmem:[%s427 + $0x78] sm:$0xff]
        %v444 = vld [vmem:[%s427 + $0x80] sm:$0xff]
        %v445 = vld [vmem:[%s427 + $0x88] sm:$0xff]
        %v446 = vld [vmem:[%s427 + $0x90] sm:$0xff]
        %v447 = vld [vmem:[%s427 + $0x98] sm:$0xff]
        %v448 = vld [vmem:[%s427 + $0xa0] sm:$0xff]
        %v449 = vld [vmem:[%s427 + $0xa8] sm:$0xff]
        %v450 = vld [vmem:[%s427 + $0xb0] sm:$0xff]
        %v451 = vld [vmem:[%s427 + $0xb8] sm:$0xff]
        %v452 = vld [vmem:[%s427 + $0xc0] sm:$0xff]
        %v453 = vld [vmem:[%s427 + $0xc8] sm:$0xff]
        %v454 = vld [vmem:[%s427 + $0xd0] sm:$0xff]
        %v455 = vld [vmem:[%s427 + $0xd8] sm:$0xff]
        %v456 = vld [vmem:[%s427 + $0xe0] sm:$0xff]
        %v457 = vld [vmem:[%s427 + $0xe8] sm:$0xff]
        %v458 = vld [vmem:[%s427 + $0xf0] sm:$0xff]
        %v459 = vld [vmem:[%s427 + $0xf8] sm:$0xff]
        %v460 = vld [vmem:[%s427 + $0x100] sm:$0xff]
        %v461 = vld [vmem:[%s427 + $0x108] sm:$0xff]
        %v462 = vld [vmem:[%s427 + $0x110] sm:$0xff]
        %v463 = vld [vmem:[%s427 + $0x118] sm:$0xff]
        %v464 = vld [vmem:[%s427 + $0x120] sm:$0xff]
        %v465 = vld [vmem:[%s427 + $0x128] sm:$0xff]
        %v466 = vld [vmem:[%s427 + $0x130] sm:$0xff]
        %v467 = vld [vmem:[%s427 + $0x138] sm:$0xff]
        %v468 = vld [vmem:[%s427 + $0x140] sm:$0xff]
        %v469 = vld [vmem:[%s427 + $0x148] sm:$0xff]
        %v470 = vld [vmem:[%s427 + $0x150] sm:$0xff]
        %v471 = vld [vmem:[%s427 + $0x158] sm:$0xff]
        %v472 = vld [vmem:[%s427 + $0x160] sm:$0xff]
        %v473 = vld [vmem:[%s427 + $0x168] sm:$0xff]
        %v474 = vld [vmem:[%s427 + $0x170] sm:$0xff]
        %v475 = vld [vmem:[%s427 + $0x178] sm:$0xff]
        %v476 = vld [vmem:[%s427 + $0x180] sm:$0xff]
        %v477 = vld [vmem:[%s427 + $0x188] sm:$0xff]
        %v478 = vld [vmem:[%s427 + $0x190] sm:$0xff]
        %v479 = vld [vmem:[%s427 + $0x198] sm:$0xff]
        %v480 = vld [vmem:[%s427 + $0x1a0] sm:$0xff]
        %v481 = vld [vmem:[%s427 + $0x1a8] sm:$0xff]
        %v482 = vld [vmem:[%s427 + $0x1b0] sm:$0xff]
        %v483 = vld [vmem:[%s427 + $0x1b8] sm:$0xff]
        %v484 = vld [vmem:[%s427 + $0x1c0] sm:$0xff]
        %v485 = vld [vmem:[%s427 + $0x1c8] sm:$0xff]
        %v486 = vld [vmem:[%s427 + $0x1d0] sm:$0xff]
        %v487 = vld [vmem:[%s427 + $0x1d8] sm:$0xff]
        %v488 = vld [vmem:[%s427 + $0x1e0] sm:$0xff]
        %v489 = vld [vmem:[%s427 + $0x1e8] sm:$0xff]
        %v490 = vld [vmem:[%s427 + $0x1f0] sm:$0xff]
        %v491 = vld [vmem:[%s427 + $0x1f8] sm:$0xff]
        %v492 = vld [vmem:[%s427 + $0x200] sm:$0xff]
        %v493 = vld [vmem:[%s427 + $0x208] sm:$0xff]
        %v494 = vld [vmem:[%s427 + $0x210] sm:$0xff]
        %v495 = vld [vmem:[%s427 + $0x218] sm:$0xff]
        %v496 = vld [vmem:[%s427 + $0x220] sm:$0xff]
        %v497 = vld [vmem:[%s427 + $0x228] sm:$0xff]
        %v498 = vld [vmem:[%s427 + $0x230] sm:$0xff]
        %v499 = vld [vmem:[%s427 + $0x238] sm:$0xff]
        %v500 = vld [vmem:[%s427 + $0x240] sm:$0xff]
        %v501 = vld [vmem:[%s427 + $0x248] sm:$0xff]
        %v502 = vld [vmem:[%s427 + $0x250] sm:$0xff]
        %v503 = vld [vmem:[%s427 + $0x258] sm:$0xff]
        %v504 = vld [vmem:[%s427 + $0x260] sm:$0xff]
        %v505 = vld [vmem:[%s427 + $0x268] sm:$0xff]
        %v506 = vld [vmem:[%s427 + $0x270] sm:$0xff]
        %v507 = vld [vmem:[%s427 + $0x278] sm:$0xff]
        %v508 = vld [vmem:[%s427 + $0x280] sm:$0xff]
        %v509 = vld [vmem:[%s427 + $0x288] sm:$0xff]
        %v510 = vld [vmem:[%s427 + $0x290] sm:$0xff]
        %v511 = vld [vmem:[%s427 + $0x298] sm:$0xff]
        %v512 = vld [vmem:[%s427 + $0x2a0] sm:$0xff]
        %v513 = vld [vmem:[%s427 + $0x2a8] sm:$0xff]
        %v514 = vld [vmem:[%s427 + $0x2b0] sm:$0xff]
        %v515 = vld [vmem:[%s427 + $0x2b8] sm:$0xff]
        %v516 = vld [vmem:[%s427 + $0x2c0] sm:$0xff]
        %v517 = vld [vmem:[%s427 + $0x2c8] sm:$0xff]
        %v518 = vld [vmem:[%s427 + $0x2d0] sm:$0xff]
        %v519 = vld [vmem:[%s427 + $0x2d8] sm:$0xff]
        %v520 = vld [vmem:[%s427 + $0x2e0] sm:$0xff]
        %v521 = vld [vmem:[%s427 + $0x2e8] sm:$0xff]
        %v522 = vld [vmem:[%s427 + $0x2f0] sm:$0xff]
        %v523 = vld [vmem:[%s427 + $0x2f8] sm:$0xff]
        %v524 = vld [vmem:[%s427 + $0x300] sm:$0xff]
        %v525 = vld [vmem:[%s427 + $0x308] sm:$0xff]
        %v526 = vld [vmem:[%s427 + $0x310] sm:$0xff]
        %v527 = vld [vmem:[%s427 + $0x318] sm:$0xff]
        %v528 = vld [vmem:[%s427 + $0x320] sm:$0xff]
        %v529 = vld [vmem:[%s427 + $0x328] sm:$0xff]
        %v530 = vld [vmem:[%s427 + $0x330] sm:$0xff]
        %v531 = vld [vmem:[%s427 + $0x338] sm:$0xff]
        %v532 = vld [vmem:[%s427 + $0x340] sm:$0xff]
        %v533 = vld [vmem:[%s427 + $0x348] sm:$0xff]
        %v534 = vld [vmem:[%s427 + $0x350] sm:$0xff]
        %v535 = vld [vmem:[%s427 + $0x358] sm:$0xff]
        %v536 = vld [vmem:[%s427 + $0x360] sm:$0xff]
        %v537 = vld [vmem:[%s427 + $0x368] sm:$0xff]
        %v538 = vld [vmem:[%s427 + $0x370] sm:$0xff]
        %v539 = vld [vmem:[%s427 + $0x378] sm:$0xff]
        %v540 = vld [vmem:[%s427 + $0x380] sm:$0xff]
        %v541 = vld [vmem:[%s427 + $0x388] sm:$0xff]
        %v542 = vld [vmem:[%s427 + $0x390] sm:$0xff]
        %v543 = vld [vmem:[%s427 + $0x398] sm:$0xff]
        %v544 = vld [vmem:[%s427 + $0x3a0] sm:$0xff]
        %v545 = vld [vmem:[%s427 + $0x3a8] sm:$0xff]
        %v546 = vld [vmem:[%s427 + $0x3b0] sm:$0xff]
        %v547 = vld [vmem:[%s427 + $0x3b8] sm:$0xff]
        %v548 = vld [vmem:[%s427 + $0x3c0] sm:$0xff]
        %v549 = vld [vmem:[%s427 + $0x3c8] sm:$0xff]
        %v550 = vld [vmem:[%s427 + $0x3d0] sm:$0xff]
        %v551 = vld [vmem:[%s427 + $0x3d8] sm:$0xff]
        %v552 = vld [vmem:[%s427 + $0x3e0] sm:$0xff]
        %v553 = vld [vmem:[%s427 + $0x3e8] sm:$0xff]
        %v554 = vld [vmem:[%s427 + $0x3f0] sm:$0xff]
        %v555 = vld [vmem:[%s427 + $0x3f8] sm:$0xff]
        %v556 = vld [vmem:[%s427 + $0x400] sm:$0xff]
        %v557 = vld [vmem:[%s427 + $0x408] sm:$0xff]
        %v558 = vld [vmem:[%s427 + $0x410] sm:$0xff]
        %v559 = vld [vmem:[%s427 + $0x418] sm:$0xff]
        %v560 = vld [vmem:[%s427 + $0x420] sm:$0xff]
        %v561 = vld [vmem:[%s427 + $0x428] sm:$0xff]
        %v562 = vld [vmem:[%s427 + $0x430] sm:$0xff]
        %v563 = vld [vmem:[%s427 + $0x438] sm:$0xff]
        %v564 = vld [vmem:[%s427 + $0x440] sm:$0xff]
        %v565 = vld [vmem:[%s427 + $0x448] sm:$0xff]
        %v566 = vld [vmem:[%s427 + $0x450] sm:$0xff]
        %v567 = vld [vmem:[%s427 + $0x458] sm:$0xff]
        %v568 = vld [vmem:[%s427 + $0x460] sm:$0xff]
        %v569 = vld [vmem:[%s427 + $0x468] sm:$0xff]
        %v570 = vld [vmem:[%s427 + $0x470] sm:$0xff]
        %v571 = vld [vmem:[%s427 + $0x478] sm:$0xff]
        %v572 = vld [vmem:[%s427 + $0x480] sm:$0xff]
        %v573 = vld [vmem:[%s427 + $0x488] sm:$0xff]
        %v574 = vld [vmem:[%s427 + $0x490] sm:$0xff]
        %v575 = vld [vmem:[%s427 + $0x498] sm:$0xff]
        %v576 = vld [vmem:[%s427 + $0x4a0] sm:$0xff]
        %v577 = vld [vmem:[%s427 + $0x4a8] sm:$0xff]
        %v578 = vld [vmem:[%s427 + $0x4b0] sm:$0xff]
        %v579 = vld [vmem:[%s427 + $0x4b8] sm:$0xff]
        %v580 = vld [vmem:[%s427 + $0x4c0] sm:$0xff]
        %v581 = vld [vmem:[%s427 + $0x4c8] sm:$0xff]
        %v582 = vld [vmem:[%s427 + $0x4d0] sm:$0xff]
        %v583 = vld [vmem:[%s427 + $0x4d8] sm:$0xff]
        %v584 = vld [vmem:[%s427 + $0x4e0] sm:$0xff]
        %v585 = vld [vmem:[%s427 + $0x4e8] sm:$0xff]
        %v586 = vld [vmem:[%s427 + $0x4f0] sm:$0xff]
        %v587 = vld [vmem:[%s427 + $0x4f8] sm:$0xff]
        %v588 = vld [vmem:[%s427 + $0x500] sm:$0xff]
        %v589 = vld [vmem:[%s427 + $0x508] sm:$0xff]
        %v590 = vld [vmem:[%s427 + $0x510] sm:$0xff]
        %v591 = vld [vmem:[%s427 + $0x518] sm:$0xff]
        %v592 = vld [vmem:[%s427 + $0x520] sm:$0xff]
        %v593 = vld [vmem:[%s427 + $0x528] sm:$0xff]
        %v594 = vld [vmem:[%s427 + $0x530] sm:$0xff]
        %v595 = vld [vmem:[%s427 + $0x538] sm:$0xff]
        %v596 = vld [vmem:[%s427 + $0x540] sm:$0xff]
        %v597 = vld [vmem:[%s427 + $0x548] sm:$0xff]
        %v598 = vld [vmem:[%s427 + $0x550] sm:$0xff]
        %v599 = vld [vmem:[%s427 + $0x558] sm:$0xff]
        %v600 = vld [vmem:[%s427 + $0x560] sm:$0xff]
        %v601 = vld [vmem:[%s427 + $0x568] sm:$0xff]
        %v602 = vld [vmem:[%s427 + $0x570] sm:$0xff]
        %v603 = vld [vmem:[%s427 + $0x578] sm:$0xff]
        %v604 = vld [vmem:[%s427 + $0x580] sm:$0xff]
        %v605 = vld [vmem:[%s427 + $0x588] sm:$0xff]
        %v606 = vld [vmem:[%s427 + $0x590] sm:$0xff]
        %v607 = vld [vmem:[%s427 + $0x598] sm:$0xff]
        %v608 = vld [vmem:[%s427 + $0x5a0] sm:$0xff]
        %v609 = vld [vmem:[%s427 + $0x5a8] sm:$0xff]
        %v610 = vld [vmem:[%s427 + $0x5b0] sm:$0xff]
        %v611 = vld [vmem:[%s427 + $0x5b8] sm:$0xff]
        %v612 = vld [vmem:[%s427 + $0x5c0] sm:$0xff]
        %v613 = vld [vmem:[%s427 + $0x5c8] sm:$0xff]
        %v614 = vld [vmem:[%s427 + $0x5d0] sm:$0xff]
        %v615 = vld [vmem:[%s427 + $0x5d8] sm:$0xff]
        %v616 = vld [vmem:[%s427 + $0x5e0] sm:$0xff]
        %v617 = vld [vmem:[%s427 + $0x5e8] sm:$0xff]
        %v618 = vld [vmem:[%s427 + $0x5f0] sm:$0xff]
        %v619 = vld [vmem:[%s427 + $0x5f8] sm:$0xff]
        %v620 = vld [vmem:[%s427 + $0x600] sm:$0xff]
        %v621 = vld [vmem:[%s427 + $0x608] sm:$0xff]
        %v622 = vld [vmem:[%s427 + $0x610] sm:$0xff]
        %v623 = vld [vmem:[%s427 + $0x618] sm:$0xff]
        %v624 = vld [vmem:[%s427 + $0x620] sm:$0xff]
        %v625 = vld [vmem:[%s427 + $0x628] sm:$0xff]
        %v626 = vld [vmem:[%s427 + $0x630] sm:$0xff]
        %v627 = vld [vmem:[%s427 + $0x638] sm:$0xff]
        %v628 = vld [vmem:[%s427 + $0x640] sm:$0xff]
        %v629 = vld [vmem:[%s427 + $0x648] sm:$0xff]
        %v630 = vld [vmem:[%s427 + $0x650] sm:$0xff]
        %v631 = vld [vmem:[%s427 + $0x658] sm:$0xff]
        %v632 = vld [vmem:[%s427 + $0x660] sm:$0xff]
        %v633 = vld [vmem:[%s427 + $0x668] sm:$0xff]
        %v634 = vld [vmem:[%s427 + $0x670] sm:$0xff]
        %v635 = vld [vmem:[%s427 + $0x678] sm:$0xff]
        %v636 = vld [vmem:[%s427 + $0x680] sm:$0xff]
        %v637 = vld [vmem:[%s427 + $0x688] sm:$0xff]
        %v638 = vld [vmem:[%s427 + $0x690] sm:$0xff]
        %v639 = vld [vmem:[%s427 + $0x698] sm:$0xff]
        %v640 = vld [vmem:[%s427 + $0x6a0] sm:$0xff]
        %v641 = vld [vmem:[%s427 + $0x6a8] sm:$0xff]
        %v642 = vld [vmem:[%s427 + $0x6b0] sm:$0xff]
        %v643 = vld [vmem:[%s427 + $0x6b8] sm:$0xff]
        %v644 = vld [vmem:[%s427 + $0x6c0] sm:$0xff]
        %v645 = vld [vmem:[%s427 + $0x6c8] sm:$0xff]
        %v646 = vld [vmem:[%s427 + $0x6d0] sm:$0xff]
        %v647 = vld [vmem:[%s427 + $0x6d8] sm:$0xff]
        %v648 = vld [vmem:[%s427 + $0x6e0] sm:$0xff]
        %v649 = vld [vmem:[%s427 + $0x6e8] sm:$0xff]
        %v650 = vld [vmem:[%s427 + $0x6f0] sm:$0xff]
        %v651 = vld [vmem:[%s427 + $0x6f8] sm:$0xff]
        %v652 = vld [vmem:[%s427 + $0x700] sm:$0xff]
        %v653 = vld [vmem:[%s427 + $0x708] sm:$0xff]
        %v654 = vld [vmem:[%s427 + $0x710] sm:$0xff]
        %v655 = vld [vmem:[%s427 + $0x718] sm:$0xff]
        %v656 = vld [vmem:[%s427 + $0x720] sm:$0xff]
        %v657 = vld [vmem:[%s427 + $0x728] sm:$0xff]
        %v658 = vld [vmem:[%s427 + $0x730] sm:$0xff]
        %v659 = vld [vmem:[%s427 + $0x738] sm:$0xff]
        %v660 = vld [vmem:[%s427 + $0x740] sm:$0xff]
        %v661 = vld [vmem:[%s427 + $0x748] sm:$0xff]
        %v662 = vld [vmem:[%s427 + $0x750] sm:$0xff]
        %v663 = vld [vmem:[%s427 + $0x758] sm:$0xff]
        %v664 = vld [vmem:[%s427 + $0x760] sm:$0xff]
        %v665 = vld [vmem:[%s427 + $0x768] sm:$0xff]
        %v666 = vld [vmem:[%s427 + $0x770] sm:$0xff]
        %v667 = vld [vmem:[%s427 + $0x778] sm:$0xff]
        %v668 = vld [vmem:[%s427 + $0x780] sm:$0xff]
        %v669 = vld [vmem:[%s427 + $0x788] sm:$0xff]
        %v670 = vld [vmem:[%s427 + $0x790] sm:$0xff]
        %v671 = vld [vmem:[%s427 + $0x798] sm:$0xff]
        %v672 = vld [vmem:[%s427 + $0x7a0] sm:$0xff]
        %v673 = vld [vmem:[%s427 + $0x7a8] sm:$0xff]
        %v674 = vld [vmem:[%s427 + $0x7b0] sm:$0xff]
        %v675 = vld [vmem:[%s427 + $0x7b8] sm:$0xff]
        %v676 = vld [vmem:[%s427 + $0x7c0] sm:$0xff]
        %v677 = vld [vmem:[%s427 + $0x7c8] sm:$0xff]
        %v678 = vld [vmem:[%s427 + $0x7d0] sm:$0xff]
        %v679 = vld [vmem:[%s427 + $0x7d8] sm:$0xff]
        %v680 = vld [vmem:[%s427 + $0x7e0] sm:$0xff]
        %v681 = vld [vmem:[%s427 + $0x7e8] sm:$0xff]
        %v682 = vld [vmem:[%s427 + $0x7f0] sm:$0xff]
        %v683 = vld [vmem:[%s427 + $0x7f8] sm:$0xff]
        %v684 = vld [vmem:[%s427 + $0x800] sm:$0xff]
        %v685 = vld [vmem:[%s427 + $0x808] sm:$0xff]
        %v686 = vld [vmem:[%s427 + $0x810] sm:$0xff]
        %v687 = vld [vmem:[%s427 + $0x818] sm:$0xff]
        %v688 = vld [vmem:[%s427 + $0x820] sm:$0xff]
        %v689 = vld [vmem:[%s427 + $0x828] sm:$0xff]
        %v690 = vld [vmem:[%s427 + $0x830] sm:$0xff]
        %v691 = vld [vmem:[%s427 + $0x838] sm:$0xff]
        %v692 = vld [vmem:[%s427 + $0x840] sm:$0xff]
        %v693 = vld [vmem:[%s427 + $0x848] sm:$0xff]
        %v694 = vld [vmem:[%s427 + $0x850] sm:$0xff]
        %v695 = vld [vmem:[%s427 + $0x858] sm:$0xff]
        %v696 = vld [vmem:[%s427 + $0x860] sm:$0xff]
        %v697 = vld [vmem:[%s427 + $0x868] sm:$0xff]
        %v698 = vld [vmem:[%s427 + $0x870] sm:$0xff]
        %v699 = vld [vmem:[%s427 + $0x878] sm:$0xff]
        %v700 = vld [vmem:[%s427 + $0x880] sm:$0xff]
        %v701 = vld [vmem:[%s427 + $0x888] sm:$0xff]
        %v702 = vld [vmem:[%s427 + $0x890] sm:$0xff]
        %v703 = vld [vmem:[%s427 + $0x898] sm:$0xff]
        %v704 = vld [vmem:[%s427 + $0x8a0] sm:$0xff]
        %v705 = vld [vmem:[%s427 + $0x8a8] sm:$0xff]
        %v706 = vld [vmem:[%s427 + $0x8b0] sm:$0xff]
        %v707 = vld [vmem:[%s427 + $0x8b8] sm:$0xff]
        %v708 = vld [vmem:[%s427 + $0x8c0] sm:$0xff]
        %v709 = vld [vmem:[%s427 + $0x8c8] sm:$0xff]
        %v710 = vld [vmem:[%s427 + $0x8d0] sm:$0xff]
        %v711 = vld [vmem:[%s427 + $0x8d8] sm:$0xff]
        %v712 = vld [vmem:[%s427 + $0x8e0] sm:$0xff]
        %v713 = vld [vmem:[%s427 + $0x8e8] sm:$0xff]
        %v714 = vld [vmem:[%s427 + $0x8f0] sm:$0xff]
        %v715 = vld [vmem:[%s427 + $0x8f8] sm:$0xff]
        %v717 = vlaneseq
        %v718 = vshrl.u32 %v717, 7
        %v719 = vsub.s32 0, %v718
        %v720 = vrot.slane %v424, %v719
        %v721 = vlaneseq
        %v722 = vshrl.u32 %v721, 7
        %v723 = vsub.s32 1, %v722
        %v724 = vrot.slane %v424, %v723
        %v725 = vlaneseq
        %v726 = vshrl.u32 %v725, 7
        %v727 = vsub.s32 2, %v726
        %v728 = vrot.slane %v424, %v727
        %v729 = vlaneseq
        %v730 = vshrl.u32 %v729, 7
        %v731 = vsub.s32 3, %v730
        %v732 = vrot.slane %v424, %v731
        %v733 = vlaneseq
        %v734 = vshrl.u32 %v733, 7
        %v735 = vsub.s32 4, %v734
        %v736 = vrot.slane %v424, %v735
        %v737 = vlaneseq
        %v738 = vshrl.u32 %v737, 7
        %v739 = vsub.s32 5, %v738
        %v740 = vrot.slane %v424, %v739
        %v1035 = vunpack.c.l.b16 %v428
        %v1036 = vunpack.c.h.b16 %v428
        %v1037 = vunpack.c.l.b16 %v429
        %v1038 = vunpack.c.h.b16 %v429
        %v1039 = vunpack.c.l.b16 %v430
        %v1040 = vunpack.c.h.b16 %v430
        %v1041 = vunpack.c.l.b16 %v431
        %v1042 = vunpack.c.h.b16 %v431
        %v1043 = vunpack.c.l.b16 %v432
        %v1044 = vunpack.c.h.b16 %v432
        %v1045 = vunpack.c.l.b16 %v433
        %v1046 = vunpack.c.h.b16 %v433
        %v1047 = vunpack.c.l.b16 %v434
        %v1048 = vunpack.c.h.b16 %v434
        %v1049 = vunpack.c.l.b16 %v435
        %v1050 = vunpack.c.h.b16 %v435
        %v1051 = vunpack.c.l.b16 %v436
        %v1052 = vunpack.c.h.b16 %v436
        %v1053 = vunpack.c.l.b16 %v437
        %v1054 = vunpack.c.h.b16 %v437
        %v1055 = vunpack.c.l.b16 %v438
        %v1056 = vunpack.c.h.b16 %v438
        %v1057 = vunpack.c.l.b16 %v439
        %v1058 = vunpack.c.h.b16 %v439
        %v1059 = vunpack.c.l.b16 %v440
        %v1060 = vunpack.c.h.b16 %v440
        %v1061 = vunpack.c.l.b16 %v441
        %v1062 = vunpack.c.h.b16 %v441
        %v1063 = vunpack.c.l.b16 %v442
        %v1064 = vunpack.c.h.b16 %v442
        %v1065 = vunpack.c.l.b16 %v443
        %v1066 = vunpack.c.h.b16 %v443
        %v1067 = vunpack.c.l.b16 %v444
        %v1068 = vunpack.c.h.b16 %v444
        %v1069 = vunpack.c.l.b16 %v445
        %v1070 = vunpack.c.h.b16 %v445
        %v1071 = vunpack.c.l.b16 %v446
        %v1072 = vunpack.c.h.b16 %v446
        %v1073 = vunpack.c.l.b16 %v447
        %v1074 = vunpack.c.h.b16 %v447
        %v1075 = vunpack.c.l.b16 %v448
        %v1076 = vunpack.c.h.b16 %v448
        %v1077 = vunpack.c.l.b16 %v449
        %v1078 = vunpack.c.h.b16 %v449
        %v1079 = vunpack.c.l.b16 %v450
        %v1080 = vunpack.c.h.b16 %v450
        %v1081 = vunpack.c.l.b16 %v451
        %v1082 = vunpack.c.h.b16 %v451
        %v1083 = vunpack.c.l.b16 %v452
        %v1084 = vunpack.c.h.b16 %v452
        %v1085 = vunpack.c.l.b16 %v453
        %v1086 = vunpack.c.h.b16 %v453
        %v1087 = vunpack.c.l.b16 %v454
        %v1088 = vunpack.c.h.b16 %v454
        %v1089 = vunpack.c.l.b16 %v455
        %v1090 = vunpack.c.h.b16 %v455
        %v1091 = vunpack.c.l.b16 %v456
        %v1092 = vunpack.c.h.b16 %v456
        %v1093 = vunpack.c.l.b16 %v457
        %v1094 = vunpack.c.h.b16 %v457
        %v1095 = vunpack.c.l.b16 %v458
        %v1096 = vunpack.c.h.b16 %v458
        %v1097 = vunpack.c.l.b16 %v459
        %v1098 = vunpack.c.h.b16 %v459
        %v1099 = vunpack.c.l.b16 %v460
        %v1100 = vunpack.c.h.b16 %v460
        %v1101 = vunpack.c.l.b16 %v461
        %v1102 = vunpack.c.h.b16 %v461
        %v1103 = vunpack.c.l.b16 %v462
        %v1104 = vunpack.c.h.b16 %v462
        %v1105 = vunpack.c.l.b16 %v463
        %v1106 = vunpack.c.h.b16 %v463
        %v1107 = vunpack.c.l.b16 %v464
        %v1108 = vunpack.c.h.b16 %v464
        %v1109 = vunpack.c.l.b16 %v465
        %v1110 = vunpack.c.h.b16 %v465
        %v1111 = vunpack.c.l.b16 %v466
        %v1112 = vunpack.c.h.b16 %v466
        %v1113 = vunpack.c.l.b16 %v467
        %v1114 = vunpack.c.h.b16 %v467
        %v1115 = vunpack.c.l.b16 %v468
        %v1116 = vunpack.c.h.b16 %v468
        %v1117 = vunpack.c.l.b16 %v469
        %v1118 = vunpack.c.h.b16 %v469
        %v1119 = vunpack.c.l.b16 %v470
        %v1120 = vunpack.c.h.b16 %v470
        %v1121 = vunpack.c.l.b16 %v471
        %v1122 = vunpack.c.h.b16 %v471
        %v1123 = vunpack.c.l.b16 %v472
        %v1124 = vunpack.c.h.b16 %v472
        %v1125 = vunpack.c.l.b16 %v473
        %v1126 = vunpack.c.h.b16 %v473
        %v1127 = vunpack.c.l.b16 %v474
        %v1128 = vunpack.c.h.b16 %v474
        %v1129 = vunpack.c.l.b16 %v475
        %v1130 = vunpack.c.h.b16 %v475
        %v1131 = vunpack.c.l.b16 %v476
        %v1132 = vunpack.c.h.b16 %v476
        %v1133 = vunpack.c.l.b16 %v477
        %v1134 = vunpack.c.h.b16 %v477
        %v1135 = vunpack.c.l.b16 %v478
        %v1136 = vunpack.c.h.b16 %v478
        %v1137 = vunpack.c.l.b16 %v479
        %v1138 = vunpack.c.h.b16 %v479
        %v1139 = vunpack.c.l.b16 %v480
        %v1140 = vunpack.c.h.b16 %v480
        %v1141 = vunpack.c.l.b16 %v481
        %v1142 = vunpack.c.h.b16 %v481
        %v1143 = vunpack.c.l.b16 %v482
        %v1144 = vunpack.c.h.b16 %v482
        %v1145 = vunpack.c.l.b16 %v483
        %v1146 = vunpack.c.h.b16 %v483
        %v1147 = vunpack.c.l.b16 %v484
        %v1148 = vunpack.c.h.b16 %v484
        %v1149 = vunpack.c.l.b16 %v485
        %v1150 = vunpack.c.h.b16 %v485
        %v1151 = vunpack.c.l.b16 %v486
        %v1152 = vunpack.c.h.b16 %v486
        %v1153 = vunpack.c.l.b16 %v487
        %v1154 = vunpack.c.h.b16 %v487
        %v1155 = vunpack.c.l.b16 %v488
        %v1156 = vunpack.c.h.b16 %v488
        %v1157 = vunpack.c.l.b16 %v489
        %v1158 = vunpack.c.h.b16 %v489
        %v1159 = vunpack.c.l.b16 %v490
        %v1160 = vunpack.c.h.b16 %v490
        %v1161 = vunpack.c.l.b16 %v491
        %v1162 = vunpack.c.h.b16 %v491
        %v1163 = vunpack.c.l.b16 %v492
        %v1164 = vunpack.c.h.b16 %v492
        %v1165 = vunpack.c.l.b16 %v493
        %v1166 = vunpack.c.h.b16 %v493
        %v1167 = vunpack.c.l.b16 %v494
        %v1168 = vunpack.c.h.b16 %v494
        %v1169 = vunpack.c.l.b16 %v495
        %v1170 = vunpack.c.h.b16 %v495
        %v1171 = vunpack.c.l.b16 %v496
        %v1172 = vunpack.c.h.b16 %v496
        %v1173 = vunpack.c.l.b16 %v497
        %v1174 = vunpack.c.h.b16 %v497
        %v1175 = vunpack.c.l.b16 %v498
        %v1176 = vunpack.c.h.b16 %v498
        %v1177 = vunpack.c.l.b16 %v499
        %v1178 = vunpack.c.h.b16 %v499
        %v1179 = vunpack.c.l.b16 %v500
        %v1180 = vunpack.c.h.b16 %v500
        %v1181 = vunpack.c.l.b16 %v501
        %v1182 = vunpack.c.h.b16 %v501
        %v1183 = vunpack.c.l.b16 %v502
        %v1184 = vunpack.c.h.b16 %v502
        %v1185 = vunpack.c.l.b16 %v503
        %v1186 = vunpack.c.h.b16 %v503
        %v1187 = vunpack.c.l.b16 %v504
        %v1188 = vunpack.c.h.b16 %v504
        %v1189 = vunpack.c.l.b16 %v505
        %v1190 = vunpack.c.h.b16 %v505
        %v1191 = vunpack.c.l.b16 %v506
        %v1192 = vunpack.c.h.b16 %v506
        %v1193 = vunpack.c.l.b16 %v507
        %v1194 = vunpack.c.h.b16 %v507
        %v1195 = vunpack.c.l.b16 %v508
        %v1196 = vunpack.c.h.b16 %v508
        %v1197 = vunpack.c.l.b16 %v509
        %v1198 = vunpack.c.h.b16 %v509
        %v1199 = vunpack.c.l.b16 %v510
        %v1200 = vunpack.c.h.b16 %v510
        %v1201 = vunpack.c.l.b16 %v511
        %v1202 = vunpack.c.h.b16 %v511
        %v1203 = vunpack.c.l.b16 %v512
        %v1204 = vunpack.c.h.b16 %v512
        %v1205 = vunpack.c.l.b16 %v513
        %v1206 = vunpack.c.h.b16 %v513
        %v1207 = vunpack.c.l.b16 %v514
        %v1208 = vunpack.c.h.b16 %v514
        %v1209 = vunpack.c.l.b16 %v515
        %v1210 = vunpack.c.h.b16 %v515
        %v1211 = vunpack.c.l.b16 %v516
        %v1212 = vunpack.c.h.b16 %v516
        %v1213 = vunpack.c.l.b16 %v517
        %v1214 = vunpack.c.h.b16 %v517
        %v1215 = vunpack.c.l.b16 %v518
        %v1216 = vunpack.c.h.b16 %v518
        %v1217 = vunpack.c.l.b16 %v519
        %v1218 = vunpack.c.h.b16 %v519
        %v1219 = vunpack.c.l.b16 %v520
        %v1220 = vunpack.c.h.b16 %v520
        %v1221 = vunpack.c.l.b16 %v521
        %v1222 = vunpack.c.h.b16 %v521
        %v1223 = vunpack.c.l.b16 %v522
        %v1224 = vunpack.c.h.b16 %v522
        %v1225 = vunpack.c.l.b16 %v523
        %v1226 = vunpack.c.h.b16 %v523
        %v1227 = vunpack.c.l.b16 %v524
        %v1228 = vunpack.c.h.b16 %v524
        %v1229 = vunpack.c.l.b16 %v525
        %v1230 = vunpack.c.h.b16 %v525
        %v1231 = vunpack.c.l.b16 %v526
        %v1232 = vunpack.c.h.b16 %v526
        %v1233 = vunpack.c.l.b16 %v527
        %v1234 = vunpack.c.h.b16 %v527
        %v1235 = vunpack.c.l.b16 %v528
        %v1236 = vunpack.c.h.b16 %v528
        %v1237 = vunpack.c.l.b16 %v529
        %v1238 = vunpack.c.h.b16 %v529
        %v1239 = vunpack.c.l.b16 %v530
        %v1240 = vunpack.c.h.b16 %v530
        %v1241 = vunpack.c.l.b16 %v531
        %v1242 = vunpack.c.h.b16 %v531
        %v1243 = vunpack.c.l.b16 %v532
        %v1244 = vunpack.c.h.b16 %v532
        %v1245 = vunpack.c.l.b16 %v533
        %v1246 = vunpack.c.h.b16 %v533
        %v1247 = vunpack.c.l.b16 %v534
        %v1248 = vunpack.c.h.b16 %v534
        %v1249 = vunpack.c.l.b16 %v535
        %v1250 = vunpack.c.h.b16 %v535
        %v1251 = vunpack.c.l.b16 %v536
        %v1252 = vunpack.c.h.b16 %v536
        %v1253 = vunpack.c.l.b16 %v537
        %v1254 = vunpack.c.h.b16 %v537
        %v1255 = vunpack.c.l.b16 %v538
        %v1256 = vunpack.c.h.b16 %v538
        %v1257 = vunpack.c.l.b16 %v539
        %v1258 = vunpack.c.h.b16 %v539
        %v1259 = vunpack.c.l.b16 %v540
        %v1260 = vunpack.c.h.b16 %v540
        %v1261 = vunpack.c.l.b16 %v541
        %v1262 = vunpack.c.h.b16 %v541
        %v1263 = vunpack.c.l.b16 %v542
        %v1264 = vunpack.c.h.b16 %v542
        %v1265 = vunpack.c.l.b16 %v543
        %v1266 = vunpack.c.h.b16 %v543
        %v1267 = vunpack.c.l.b16 %v544
        %v1268 = vunpack.c.h.b16 %v544
        %v1269 = vunpack.c.l.b16 %v545
        %v1270 = vunpack.c.h.b16 %v545
        %v1271 = vunpack.c.l.b16 %v546
        %v1272 = vunpack.c.h.b16 %v546
        %v1273 = vunpack.c.l.b16 %v547
        %v1274 = vunpack.c.h.b16 %v547
        %v1275 = vunpack.c.l.b16 %v548
        %v1276 = vunpack.c.h.b16 %v548
        %v1277 = vunpack.c.l.b16 %v549
        %v1278 = vunpack.c.h.b16 %v549
        %v1279 = vunpack.c.l.b16 %v550
        %v1280 = vunpack.c.h.b16 %v550
        %v1281 = vunpack.c.l.b16 %v551
        %v1282 = vunpack.c.h.b16 %v551
        %v1283 = vunpack.c.l.b16 %v552
        %v1284 = vunpack.c.h.b16 %v552
        %v1285 = vunpack.c.l.b16 %v553
        %v1286 = vunpack.c.h.b16 %v553
        %v1287 = vunpack.c.l.b16 %v554
        %v1288 = vunpack.c.h.b16 %v554
        %v1289 = vunpack.c.l.b16 %v555
        %v1290 = vunpack.c.h.b16 %v555
        %v1291 = vunpack.c.l.b16 %v556
        %v1292 = vunpack.c.h.b16 %v556
        %v1293 = vunpack.c.l.b16 %v557
        %v1294 = vunpack.c.h.b16 %v557
        %v1295 = vunpack.c.l.b16 %v558
        %v1296 = vunpack.c.h.b16 %v558
        %v1297 = vunpack.c.l.b16 %v559
        %v1298 = vunpack.c.h.b16 %v559
        %v1299 = vunpack.c.l.b16 %v560
        %v1300 = vunpack.c.h.b16 %v560
        %v1301 = vunpack.c.l.b16 %v561
        %v1302 = vunpack.c.h.b16 %v561
        %v1303 = vunpack.c.l.b16 %v562
        %v1304 = vunpack.c.h.b16 %v562
        %v1305 = vunpack.c.l.b16 %v563
        %v1306 = vunpack.c.h.b16 %v563
        %v1307 = vunpack.c.l.b16 %v564
        %v1308 = vunpack.c.h.b16 %v564
        %v1309 = vunpack.c.l.b16 %v565
        %v1310 = vunpack.c.h.b16 %v565
        %v1311 = vunpack.c.l.b16 %v566
        %v1312 = vunpack.c.h.b16 %v566
        %v1313 = vunpack.c.l.b16 %v567
        %v1314 = vunpack.c.h.b16 %v567
        %v1315 = vunpack.c.l.b16 %v568
        %v1316 = vunpack.c.h.b16 %v568
        %v1317 = vunpack.c.l.b16 %v569
        %v1318 = vunpack.c.h.b16 %v569
        %v1319 = vunpack.c.l.b16 %v570
        %v1320 = vunpack.c.h.b16 %v570
        %v1321 = vunpack.c.l.b16 %v571
        %v1322 = vunpack.c.h.b16 %v571
        %v1323 = vunpack.c.l.b16 %v572
        %v1324 = vunpack.c.h.b16 %v572
        %v1325 = vunpack.c.l.b16 %v573
        %v1326 = vunpack.c.h.b16 %v573
        %v1327 = vunpack.c.l.b16 %v574
        %v1328 = vunpack.c.h.b16 %v574
        %v1329 = vunpack.c.l.b16 %v575
        %v1330 = vunpack.c.h.b16 %v575
        %v1331 = vunpack.c.l.b16 %v576
        %v1332 = vunpack.c.h.b16 %v576
        %v1333 = vunpack.c.l.b16 %v577
        %v1334 = vunpack.c.h.b16 %v577
        %v1335 = vunpack.c.l.b16 %v578
        %v1336 = vunpack.c.h.b16 %v578
        %v1337 = vunpack.c.l.b16 %v579
        %v1338 = vunpack.c.h.b16 %v579
        %v1339 = vunpack.c.l.b16 %v580
        %v1340 = vunpack.c.h.b16 %v580
        %v1341 = vunpack.c.l.b16 %v581
        %v1342 = vunpack.c.h.b16 %v581
        %v1343 = vunpack.c.l.b16 %v582
        %v1344 = vunpack.c.h.b16 %v582
        %v1345 = vunpack.c.l.b16 %v583
        %v1346 = vunpack.c.h.b16 %v583
        %v1347 = vunpack.c.l.b16 %v584
        %v1348 = vunpack.c.h.b16 %v584
        %v1349 = vunpack.c.l.b16 %v585
        %v1350 = vunpack.c.h.b16 %v585
        %v1351 = vunpack.c.l.b16 %v586
        %v1352 = vunpack.c.h.b16 %v586
        %v1353 = vunpack.c.l.b16 %v587
        %v1354 = vunpack.c.h.b16 %v587
        %v1355 = vunpack.c.l.b16 %v588
        %v1356 = vunpack.c.h.b16 %v588
        %v1357 = vunpack.c.l.b16 %v589
        %v1358 = vunpack.c.h.b16 %v589
        %v1359 = vunpack.c.l.b16 %v590
        %v1360 = vunpack.c.h.b16 %v590
        %v1361 = vunpack.c.l.b16 %v591
        %v1362 = vunpack.c.h.b16 %v591
        %v1363 = vunpack.c.l.b16 %v592
        %v1364 = vunpack.c.h.b16 %v592
        %v1365 = vunpack.c.l.b16 %v593
        %v1366 = vunpack.c.h.b16 %v593
        %v1367 = vunpack.c.l.b16 %v594
        %v1368 = vunpack.c.h.b16 %v594
        %v1369 = vunpack.c.l.b16 %v595
        %v1370 = vunpack.c.h.b16 %v595
        %v1371 = vunpack.c.l.b16 %v596
        %v1372 = vunpack.c.h.b16 %v596
        %v1373 = vunpack.c.l.b16 %v597
        %v1374 = vunpack.c.h.b16 %v597
        %v1375 = vunpack.c.l.b16 %v598
        %v1376 = vunpack.c.h.b16 %v598
        %v1377 = vunpack.c.l.b16 %v599
        %v1378 = vunpack.c.h.b16 %v599
        %v1379 = vunpack.c.l.b16 %v600
        %v1380 = vunpack.c.h.b16 %v600
        %v1381 = vunpack.c.l.b16 %v601
        %v1382 = vunpack.c.h.b16 %v601
        %v1383 = vunpack.c.l.b16 %v602
        %v1384 = vunpack.c.h.b16 %v602
        %v1385 = vunpack.c.l.b16 %v603
        %v1386 = vunpack.c.h.b16 %v603
        %v1387 = vunpack.c.l.b16 %v604
        %v1388 = vunpack.c.h.b16 %v604
        %v1389 = vunpack.c.l.b16 %v605
        %v1390 = vunpack.c.h.b16 %v605
        %v1391 = vunpack.c.l.b16 %v606
        %v1392 = vunpack.c.h.b16 %v606
        %v1393 = vunpack.c.l.b16 %v607
        %v1394 = vunpack.c.h.b16 %v607
        %v1395 = vunpack.c.l.b16 %v608
        %v1396 = vunpack.c.h.b16 %v608
        %v1397 = vunpack.c.l.b16 %v609
        %v1398 = vunpack.c.h.b16 %v609
        %v1399 = vunpack.c.l.b16 %v610
        %v1400 = vunpack.c.h.b16 %v610
        %v1401 = vunpack.c.l.b16 %v611
        %v1402 = vunpack.c.h.b16 %v611
        %v1403 = vunpack.c.l.b16 %v612
        %v1404 = vunpack.c.h.b16 %v612
        %v1405 = vunpack.c.l.b16 %v613
        %v1406 = vunpack.c.h.b16 %v613
        %v1407 = vunpack.c.l.b16 %v614
        %v1408 = vunpack.c.h.b16 %v614
        %v1409 = vunpack.c.l.b16 %v615
        %v1410 = vunpack.c.h.b16 %v615
        %v1411 = vunpack.c.l.b16 %v616
        %v1412 = vunpack.c.h.b16 %v616
        %v1413 = vunpack.c.l.b16 %v617
        %v1414 = vunpack.c.h.b16 %v617
        %v1415 = vunpack.c.l.b16 %v618
        %v1416 = vunpack.c.h.b16 %v618
        %v1417 = vunpack.c.l.b16 %v619
        %v1418 = vunpack.c.h.b16 %v619
        %v1419 = vunpack.c.l.b16 %v620
        %v1420 = vunpack.c.h.b16 %v620
        %v1421 = vunpack.c.l.b16 %v621
        %v1422 = vunpack.c.h.b16 %v621
        %v1423 = vunpack.c.l.b16 %v622
        %v1424 = vunpack.c.h.b16 %v622
        %v1425 = vunpack.c.l.b16 %v623
        %v1426 = vunpack.c.h.b16 %v623
        %v1427 = vunpack.c.l.b16 %v624
        %v1428 = vunpack.c.h.b16 %v624
        %v1429 = vunpack.c.l.b16 %v625
        %v1430 = vunpack.c.h.b16 %v625
        %v1431 = vunpack.c.l.b16 %v626
        %v1432 = vunpack.c.h.b16 %v626
        %v1433 = vunpack.c.l.b16 %v627
        %v1434 = vunpack.c.h.b16 %v627
        %v1435 = vunpack.c.l.b16 %v628
        %v1436 = vunpack.c.h.b16 %v628
        %v1437 = vunpack.c.l.b16 %v629
        %v1438 = vunpack.c.h.b16 %v629
        %v1439 = vunpack.c.l.b16 %v630
        %v1440 = vunpack.c.h.b16 %v630
        %v1441 = vunpack.c.l.b16 %v631
        %v1442 = vunpack.c.h.b16 %v631
        %v1443 = vunpack.c.l.b16 %v632
        %v1444 = vunpack.c.h.b16 %v632
        %v1445 = vunpack.c.l.b16 %v633
        %v1446 = vunpack.c.h.b16 %v633
        %v1447 = vunpack.c.l.b16 %v634
        %v1448 = vunpack.c.h.b16 %v634
        %v1449 = vunpack.c.l.b16 %v635
        %v1450 = vunpack.c.h.b16 %v635
        %v1451 = vunpack.c.l.b16 %v636
        %v1452 = vunpack.c.h.b16 %v636
        %v1453 = vunpack.c.l.b16 %v637
        %v1454 = vunpack.c.h.b16 %v637
        %v1455 = vunpack.c.l.b16 %v638
        %v1456 = vunpack.c.h.b16 %v638
        %v1457 = vunpack.c.l.b16 %v639
        %v1458 = vunpack.c.h.b16 %v639
        %v1459 = vunpack.c.l.b16 %v640
        %v1460 = vunpack.c.h.b16 %v640
        %v1461 = vunpack.c.l.b16 %v641
        %v1462 = vunpack.c.h.b16 %v641
        %v1463 = vunpack.c.l.b16 %v642
        %v1464 = vunpack.c.h.b16 %v642
        %v1465 = vunpack.c.l.b16 %v643
        %v1466 = vunpack.c.h.b16 %v643
        %v1467 = vunpack.c.l.b16 %v644
        %v1468 = vunpack.c.h.b16 %v644
        %v1469 = vunpack.c.l.b16 %v645
        %v1470 = vunpack.c.h.b16 %v645
        %v1471 = vunpack.c.l.b16 %v646
        %v1472 = vunpack.c.h.b16 %v646
        %v1473 = vunpack.c.l.b16 %v647
        %v1474 = vunpack.c.h.b16 %v647
        %v1475 = vunpack.c.l.b16 %v648
        %v1476 = vunpack.c.h.b16 %v648
        %v1477 = vunpack.c.l.b16 %v649
        %v1478 = vunpack.c.h.b16 %v649
        %v1479 = vunpack.c.l.b16 %v650
        %v1480 = vunpack.c.h.b16 %v650
        %v1481 = vunpack.c.l.b16 %v651
        %v1482 = vunpack.c.h.b16 %v651
        %v1483 = vunpack.c.l.b16 %v652
        %v1484 = vunpack.c.h.b16 %v652
        %v1485 = vunpack.c.l.b16 %v653
        %v1486 = vunpack.c.h.b16 %v653
        %v1487 = vunpack.c.l.b16 %v654
        %v1488 = vunpack.c.h.b16 %v654
        %v1489 = vunpack.c.l.b16 %v655
        %v1490 = vunpack.c.h.b16 %v655
        %v1491 = vunpack.c.l.b16 %v656
        %v1492 = vunpack.c.h.b16 %v656
        %v1493 = vunpack.c.l.b16 %v657
        %v1494 = vunpack.c.h.b16 %v657
        %v1495 = vunpack.c.l.b16 %v658
        %v1496 = vunpack.c.h.b16 %v658
        %v1497 = vunpack.c.l.b16 %v659
        %v1498 = vunpack.c.h.b16 %v659
        %v1499 = vunpack.c.l.b16 %v660
        %v1500 = vunpack.c.h.b16 %v660
        %v1501 = vunpack.c.l.b16 %v661
        %v1502 = vunpack.c.h.b16 %v661
        %v1503 = vunpack.c.l.b16 %v662
        %v1504 = vunpack.c.h.b16 %v662
        %v1505 = vunpack.c.l.b16 %v663
        %v1506 = vunpack.c.h.b16 %v663
        %v1507 = vunpack.c.l.b16 %v664
        %v1508 = vunpack.c.h.b16 %v664
        %v1509 = vunpack.c.l.b16 %v665
        %v1510 = vunpack.c.h.b16 %v665
        %v1511 = vunpack.c.l.b16 %v666
        %v1512 = vunpack.c.h.b16 %v666
        %v1513 = vunpack.c.l.b16 %v667
        %v1514 = vunpack.c.h.b16 %v667
        %v1515 = vunpack.c.l.b16 %v668
        %v1516 = vunpack.c.h.b16 %v668
        %v1517 = vunpack.c.l.b16 %v669
        %v1518 = vunpack.c.h.b16 %v669
        %v1519 = vunpack.c.l.b16 %v670
        %v1520 = vunpack.c.h.b16 %v670
        %v1521 = vunpack.c.l.b16 %v671
        %v1522 = vunpack.c.h.b16 %v671
        %v1523 = vunpack.c.l.b16 %v672
        %v1524 = vunpack.c.h.b16 %v672
        %v1525 = vunpack.c.l.b16 %v673
        %v1526 = vunpack.c.h.b16 %v673
        %v1527 = vunpack.c.l.b16 %v674
        %v1528 = vunpack.c.h.b16 %v674
        %v1529 = vunpack.c.l.b16 %v675
        %v1530 = vunpack.c.h.b16 %v675
        %v1531 = vunpack.c.l.b16 %v676
        %v1532 = vunpack.c.h.b16 %v676
        %v1533 = vunpack.c.l.b16 %v677
        %v1534 = vunpack.c.h.b16 %v677
        %v1535 = vunpack.c.l.b16 %v678
        %v1536 = vunpack.c.h.b16 %v678
        %v1537 = vunpack.c.l.b16 %v679
        %v1538 = vunpack.c.h.b16 %v679
        %v1539 = vunpack.c.l.b16 %v680
        %v1540 = vunpack.c.h.b16 %v680
        %v1541 = vunpack.c.l.b16 %v681
        %v1542 = vunpack.c.h.b16 %v681
        %v1543 = vunpack.c.l.b16 %v682
        %v1544 = vunpack.c.h.b16 %v682
        %v1545 = vunpack.c.l.b16 %v683
        %v1546 = vunpack.c.h.b16 %v683
        %v1547 = vunpack.c.l.b16 %v684
        %v1548 = vunpack.c.h.b16 %v684
        %v1549 = vunpack.c.l.b16 %v685
        %v1550 = vunpack.c.h.b16 %v685
        %v1551 = vunpack.c.l.b16 %v686
        %v1552 = vunpack.c.h.b16 %v686
        %v1553 = vunpack.c.l.b16 %v687
        %v1554 = vunpack.c.h.b16 %v687
        %v1555 = vunpack.c.l.b16 %v688
        %v1556 = vunpack.c.h.b16 %v688
        %v1557 = vunpack.c.l.b16 %v689
        %v1558 = vunpack.c.h.b16 %v689
        %v1559 = vunpack.c.l.b16 %v690
        %v1560 = vunpack.c.h.b16 %v690
        %v1561 = vunpack.c.l.b16 %v691
        %v1562 = vunpack.c.h.b16 %v691
        %v1563 = vunpack.c.l.b16 %v692
        %v1564 = vunpack.c.h.b16 %v692
        %v1565 = vunpack.c.l.b16 %v693
        %v1566 = vunpack.c.h.b16 %v693
        %v1567 = vunpack.c.l.b16 %v694
        %v1568 = vunpack.c.h.b16 %v694
        %v1569 = vunpack.c.l.b16 %v695
        %v1570 = vunpack.c.h.b16 %v695
        %v1571 = vunpack.c.l.b16 %v696
        %v1572 = vunpack.c.h.b16 %v696
        %v1573 = vunpack.c.l.b16 %v697
        %v1574 = vunpack.c.h.b16 %v697
        %v1575 = vunpack.c.l.b16 %v698
        %v1576 = vunpack.c.h.b16 %v698
        %v1577 = vunpack.c.l.b16 %v699
        %v1578 = vunpack.c.h.b16 %v699
        %v1579 = vunpack.c.l.b16 %v700
        %v1580 = vunpack.c.h.b16 %v700
        %v1581 = vunpack.c.l.b16 %v701
        %v1582 = vunpack.c.h.b16 %v701
        %v1583 = vunpack.c.l.b16 %v702
        %v1584 = vunpack.c.h.b16 %v702
        %v1585 = vunpack.c.l.b16 %v703
        %v1586 = vunpack.c.h.b16 %v703
        %v1587 = vunpack.c.l.b16 %v704
        %v1588 = vunpack.c.h.b16 %v704
        %v1589 = vunpack.c.l.b16 %v705
        %v1590 = vunpack.c.h.b16 %v705
        %v1591 = vunpack.c.l.b16 %v706
        %v1592 = vunpack.c.h.b16 %v706
        %v1593 = vunpack.c.l.b16 %v707
        %v1594 = vunpack.c.h.b16 %v707
        %v1595 = vunpack.c.l.b16 %v708
        %v1596 = vunpack.c.h.b16 %v708
        %v1597 = vunpack.c.l.b16 %v709
        %v1598 = vunpack.c.h.b16 %v709
        %v1599 = vunpack.c.l.b16 %v710
        %v1600 = vunpack.c.h.b16 %v710
        %v1601 = vunpack.c.l.b16 %v711
        %v1602 = vunpack.c.h.b16 %v711
        %v1603 = vunpack.c.l.b16 %v712
        %v1604 = vunpack.c.h.b16 %v712
        %v1605 = vunpack.c.l.b16 %v713
        %v1606 = vunpack.c.h.b16 %v713
        %v1607 = vunpack.c.l.b16 %v714
        %v1608 = vunpack.c.h.b16 %v714
        %v1609 = vunpack.c.l.b16 %v715
        %v1610 = vunpack.c.h.b16 %v715
        %v1611 = vpack.c.b16 %v1041, %v1035
        %v1612 = vpack.c.b16 %v1042, %v1036
        %v1613 = vpack.c.b16 %v1043, %v1037
        %v1614 = vpack.c.b16 %v1044, %v1038
        %v1615 = vpack.c.b16 %v1045, %v1039
        %v1616 = vpack.c.b16 %v1046, %v1040
        %v1617 = vpack.c.b16 %v1053, %v1047
        %v1618 = vpack.c.b16 %v1054, %v1048
        %v1619 = vpack.c.b16 %v1055, %v1049
        %v1620 = vpack.c.b16 %v1056, %v1050
        %v1621 = vpack.c.b16 %v1057, %v1051
        %v1622 = vpack.c.b16 %v1058, %v1052
        %v1623 = vpack.c.b16 %v1065, %v1059
        %v1624 = vpack.c.b16 %v1066, %v1060
        %v1625 = vpack.c.b16 %v1067, %v1061
        %v1626 = vpack.c.b16 %v1068, %v1062
        %v1627 = vpack.c.b16 %v1069, %v1063
        %v1628 = vpack.c.b16 %v1070, %v1064
        %v1629 = vpack.c.b16 %v1077, %v1071
        %v1630 = vpack.c.b16 %v1078, %v1072
        %v1631 = vpack.c.b16 %v1079, %v1073
        %v1632 = vpack.c.b16 %v1080, %v1074
        %v1633 = vpack.c.b16 %v1081, %v1075
        %v1634 = vpack.c.b16 %v1082, %v1076
        %v1635 = vpack.c.b16 %v1089, %v1083
        %v1636 = vpack.c.b16 %v1090, %v1084
        %v1637 = vpack.c.b16 %v1091, %v1085
        %v1638 = vpack.c.b16 %v1092, %v1086
        %v1639 = vpack.c.b16 %v1093, %v1087
        %v1640 = vpack.c.b16 %v1094, %v1088
        %v1641 = vpack.c.b16 %v1101, %v1095
        %v1642 = vpack.c.b16 %v1102, %v1096
        %v1643 = vpack.c.b16 %v1103, %v1097
        %v1644 = vpack.c.b16 %v1104, %v1098
        %v1645 = vpack.c.b16 %v1105, %v1099
        %v1646 = vpack.c.b16 %v1106, %v1100
        %v1647 = vpack.c.b16 %v1113, %v1107
        %v1648 = vpack.c.b16 %v1114, %v1108
        %v1649 = vpack.c.b16 %v1115, %v1109
        %v1650 = vpack.c.b16 %v1116, %v1110
        %v1651 = vpack.c.b16 %v1117, %v1111
        %v1652 = vpack.c.b16 %v1118, %v1112
        %v1653 = vpack.c.b16 %v1125, %v1119
        %v1654 = vpack.c.b16 %v1126, %v1120
        %v1655 = vpack.c.b16 %v1127, %v1121
        %v1656 = vpack.c.b16 %v1128, %v1122
        %v1657 = vpack.c.b16 %v1129, %v1123
        %v1658 = vpack.c.b16 %v1130, %v1124
        %v1659 = vpack.c.b16 %v1137, %v1131
        %v1660 = vpack.c.b16 %v1138, %v1132
        %v1661 = vpack.c.b16 %v1139, %v1133
        %v1662 = vpack.c.b16 %v1140, %v1134
        %v1663 = vpack.c.b16 %v1141, %v1135
        %v1664 = vpack.c.b16 %v1142, %v1136
        %v1665 = vpack.c.b16 %v1149, %v1143
        %v1666 = vpack.c.b16 %v1150, %v1144
        %v1667 = vpack.c.b16 %v1151, %v1145
        %v1668 = vpack.c.b16 %v1152, %v1146
        %v1669 = vpack.c.b16 %v1153, %v1147
        %v1670 = vpack.c.b16 %v1154, %v1148
        %v1671 = vpack.c.b16 %v1161, %v1155
        %v1672 = vpack.c.b16 %v1162, %v1156
        %v1673 = vpack.c.b16 %v1163, %v1157
        %v1674 = vpack.c.b16 %v1164, %v1158
        %v1675 = vpack.c.b16 %v1165, %v1159
        %v1676 = vpack.c.b16 %v1166, %v1160
        %v1677 = vpack.c.b16 %v1173, %v1167
        %v1678 = vpack.c.b16 %v1174, %v1168
        %v1679 = vpack.c.b16 %v1175, %v1169
        %v1680 = vpack.c.b16 %v1176, %v1170
        %v1681 = vpack.c.b16 %v1177, %v1171
        %v1682 = vpack.c.b16 %v1178, %v1172
        %v1683 = vpack.c.b16 %v1185, %v1179
        %v1684 = vpack.c.b16 %v1186, %v1180
        %v1685 = vpack.c.b16 %v1187, %v1181
        %v1686 = vpack.c.b16 %v1188, %v1182
        %v1687 = vpack.c.b16 %v1189, %v1183
        %v1688 = vpack.c.b16 %v1190, %v1184
        %v1689 = vpack.c.b16 %v1197, %v1191
        %v1690 = vpack.c.b16 %v1198, %v1192
        %v1691 = vpack.c.b16 %v1199, %v1193
        %v1692 = vpack.c.b16 %v1200, %v1194
        %v1693 = vpack.c.b16 %v1201, %v1195
        %v1694 = vpack.c.b16 %v1202, %v1196
        %v1695 = vpack.c.b16 %v1209, %v1203
        %v1696 = vpack.c.b16 %v1210, %v1204
        %v1697 = vpack.c.b16 %v1211, %v1205
        %v1698 = vpack.c.b16 %v1212, %v1206
        %v1699 = vpack.c.b16 %v1213, %v1207
        %v1700 = vpack.c.b16 %v1214, %v1208
        %v1701 = vpack.c.b16 %v1221, %v1215
        %v1702 = vpack.c.b16 %v1222, %v1216
        %v1703 = vpack.c.b16 %v1223, %v1217
        %v1704 = vpack.c.b16 %v1224, %v1218
        %v1705 = vpack.c.b16 %v1225, %v1219
        %v1706 = vpack.c.b16 %v1226, %v1220
        %v1707 = vpack.c.b16 %v1233, %v1227
        %v1708 = vpack.c.b16 %v1234, %v1228
        %v1709 = vpack.c.b16 %v1235, %v1229
        %v1710 = vpack.c.b16 %v1236, %v1230
        %v1711 = vpack.c.b16 %v1237, %v1231
        %v1712 = vpack.c.b16 %v1238, %v1232
        %v1713 = vpack.c.b16 %v1245, %v1239
        %v1714 = vpack.c.b16 %v1246, %v1240
        %v1715 = vpack.c.b16 %v1247, %v1241
        %v1716 = vpack.c.b16 %v1248, %v1242
        %v1717 = vpack.c.b16 %v1249, %v1243
        %v1718 = vpack.c.b16 %v1250, %v1244
        %v1719 = vpack.c.b16 %v1257, %v1251
        %v1720 = vpack.c.b16 %v1258, %v1252
        %v1721 = vpack.c.b16 %v1259, %v1253
        %v1722 = vpack.c.b16 %v1260, %v1254
        %v1723 = vpack.c.b16 %v1261, %v1255
        %v1724 = vpack.c.b16 %v1262, %v1256
        %v1725 = vpack.c.b16 %v1269, %v1263
        %v1726 = vpack.c.b16 %v1270, %v1264
        %v1727 = vpack.c.b16 %v1271, %v1265
        %v1728 = vpack.c.b16 %v1272, %v1266
        %v1729 = vpack.c.b16 %v1273, %v1267
        %v1730 = vpack.c.b16 %v1274, %v1268
        %v1731 = vpack.c.b16 %v1281, %v1275
        %v1732 = vpack.c.b16 %v1282, %v1276
        %v1733 = vpack.c.b16 %v1283, %v1277
        %v1734 = vpack.c.b16 %v1284, %v1278
        %v1735 = vpack.c.b16 %v1285, %v1279
        %v1736 = vpack.c.b16 %v1286, %v1280
        %v1737 = vpack.c.b16 %v1293, %v1287
        %v1738 = vpack.c.b16 %v1294, %v1288
        %v1739 = vpack.c.b16 %v1295, %v1289
        %v1740 = vpack.c.b16 %v1296, %v1290
        %v1741 = vpack.c.b16 %v1297, %v1291
        %v1742 = vpack.c.b16 %v1298, %v1292
        %v1743 = vpack.c.b16 %v1305, %v1299
        %v1744 = vpack.c.b16 %v1306, %v1300
        %v1745 = vpack.c.b16 %v1307, %v1301
        %v1746 = vpack.c.b16 %v1308, %v1302
        %v1747 = vpack.c.b16 %v1309, %v1303
        %v1748 = vpack.c.b16 %v1310, %v1304
        %v1749 = vpack.c.b16 %v1317, %v1311
        %v1750 = vpack.c.b16 %v1318, %v1312
        %v1751 = vpack.c.b16 %v1319, %v1313
        %v1752 = vpack.c.b16 %v1320, %v1314
        %v1753 = vpack.c.b16 %v1321, %v1315
        %v1754 = vpack.c.b16 %v1322, %v1316
        %v1755 = vpack.c.b16 %v1329, %v1323
        %v1756 = vpack.c.b16 %v1330, %v1324
        %v1757 = vpack.c.b16 %v1331, %v1325
        %v1758 = vpack.c.b16 %v1332, %v1326
        %v1759 = vpack.c.b16 %v1333, %v1327
        %v1760 = vpack.c.b16 %v1334, %v1328
        %v1761 = vpack.c.b16 %v1341, %v1335
        %v1762 = vpack.c.b16 %v1342, %v1336
        %v1763 = vpack.c.b16 %v1343, %v1337
        %v1764 = vpack.c.b16 %v1344, %v1338
        %v1765 = vpack.c.b16 %v1345, %v1339
        %v1766 = vpack.c.b16 %v1346, %v1340
        %v1767 = vpack.c.b16 %v1353, %v1347
        %v1768 = vpack.c.b16 %v1354, %v1348
        %v1769 = vpack.c.b16 %v1355, %v1349
        %v1770 = vpack.c.b16 %v1356, %v1350
        %v1771 = vpack.c.b16 %v1357, %v1351
        %v1772 = vpack.c.b16 %v1358, %v1352
        %v1773 = vpack.c.b16 %v1365, %v1359
        %v1774 = vpack.c.b16 %v1366, %v1360
        %v1775 = vpack.c.b16 %v1367, %v1361
        %v1776 = vpack.c.b16 %v1368, %v1362
        %v1777 = vpack.c.b16 %v1369, %v1363
        %v1778 = vpack.c.b16 %v1370, %v1364
        %v1779 = vpack.c.b16 %v1377, %v1371
        %v1780 = vpack.c.b16 %v1378, %v1372
        %v1781 = vpack.c.b16 %v1379, %v1373
        %v1782 = vpack.c.b16 %v1380, %v1374
        %v1783 = vpack.c.b16 %v1381, %v1375
        %v1784 = vpack.c.b16 %v1382, %v1376
        %v1785 = vpack.c.b16 %v1389, %v1383
        %v1786 = vpack.c.b16 %v1390, %v1384
        %v1787 = vpack.c.b16 %v1391, %v1385
        %v1788 = vpack.c.b16 %v1392, %v1386
        %v1789 = vpack.c.b16 %v1393, %v1387
        %v1790 = vpack.c.b16 %v1394, %v1388
        %v1791 = vpack.c.b16 %v1401, %v1395
        %v1792 = vpack.c.b16 %v1402, %v1396
        %v1793 = vpack.c.b16 %v1403, %v1397
        %v1794 = vpack.c.b16 %v1404, %v1398
        %v1795 = vpack.c.b16 %v1405, %v1399
        %v1796 = vpack.c.b16 %v1406, %v1400
        %v1797 = vpack.c.b16 %v1413, %v1407
        %v1798 = vpack.c.b16 %v1414, %v1408
        %v1799 = vpack.c.b16 %v1415, %v1409
        %v1800 = vpack.c.b16 %v1416, %v1410
        %v1801 = vpack.c.b16 %v1417, %v1411
        %v1802 = vpack.c.b16 %v1418, %v1412
        %v1803 = vpack.c.b16 %v1425, %v1419
        %v1804 = vpack.c.b16 %v1426, %v1420
        %v1805 = vpack.c.b16 %v1427, %v1421
        %v1806 = vpack.c.b16 %v1428, %v1422
        %v1807 = vpack.c.b16 %v1429, %v1423
        %v1808 = vpack.c.b16 %v1430, %v1424
        %v1809 = vpack.c.b16 %v1437, %v1431
        %v1810 = vpack.c.b16 %v1438, %v1432
        %v1811 = vpack.c.b16 %v1439, %v1433
        %v1812 = vpack.c.b16 %v1440, %v1434
        %v1813 = vpack.c.b16 %v1441, %v1435
        %v1814 = vpack.c.b16 %v1442, %v1436
        %v1815 = vpack.c.b16 %v1449, %v1443
        %v1816 = vpack.c.b16 %v1450, %v1444
        %v1817 = vpack.c.b16 %v1451, %v1445
        %v1818 = vpack.c.b16 %v1452, %v1446
        %v1819 = vpack.c.b16 %v1453, %v1447
        %v1820 = vpack.c.b16 %v1454, %v1448
        %v1821 = vpack.c.b16 %v1461, %v1455
        %v1822 = vpack.c.b16 %v1462, %v1456
        %v1823 = vpack.c.b16 %v1463, %v1457
        %v1824 = vpack.c.b16 %v1464, %v1458
        %v1825 = vpack.c.b16 %v1465, %v1459
        %v1826 = vpack.c.b16 %v1466, %v1460
        %v1827 = vpack.c.b16 %v1473, %v1467
        %v1828 = vpack.c.b16 %v1474, %v1468
        %v1829 = vpack.c.b16 %v1475, %v1469
        %v1830 = vpack.c.b16 %v1476, %v1470
        %v1831 = vpack.c.b16 %v1477, %v1471
        %v1832 = vpack.c.b16 %v1478, %v1472
        %v1833 = vpack.c.b16 %v1485, %v1479
        %v1834 = vpack.c.b16 %v1486, %v1480
        %v1835 = vpack.c.b16 %v1487, %v1481
        %v1836 = vpack.c.b16 %v1488, %v1482
        %v1837 = vpack.c.b16 %v1489, %v1483
        %v1838 = vpack.c.b16 %v1490, %v1484
        %v1839 = vpack.c.b16 %v1497, %v1491
        %v1840 = vpack.c.b16 %v1498, %v1492
        %v1841 = vpack.c.b16 %v1499, %v1493
        %v1842 = vpack.c.b16 %v1500, %v1494
        %v1843 = vpack.c.b16 %v1501, %v1495
        %v1844 = vpack.c.b16 %v1502, %v1496
        %v1845 = vpack.c.b16 %v1509, %v1503
        %v1846 = vpack.c.b16 %v1510, %v1504
        %v1847 = vpack.c.b16 %v1511, %v1505
        %v1848 = vpack.c.b16 %v1512, %v1506
        %v1849 = vpack.c.b16 %v1513, %v1507
        %v1850 = vpack.c.b16 %v1514, %v1508
        %v1851 = vpack.c.b16 %v1521, %v1515
        %v1852 = vpack.c.b16 %v1522, %v1516
        %v1853 = vpack.c.b16 %v1523, %v1517
        %v1854 = vpack.c.b16 %v1524, %v1518
        %v1855 = vpack.c.b16 %v1525, %v1519
        %v1856 = vpack.c.b16 %v1526, %v1520
        %v1857 = vpack.c.b16 %v1533, %v1527
        %v1858 = vpack.c.b16 %v1534, %v1528
        %v1859 = vpack.c.b16 %v1535, %v1529
        %v1860 = vpack.c.b16 %v1536, %v1530
        %v1861 = vpack.c.b16 %v1537, %v1531
        %v1862 = vpack.c.b16 %v1538, %v1532
        %v1863 = vpack.c.b16 %v1545, %v1539
        %v1864 = vpack.c.b16 %v1546, %v1540
        %v1865 = vpack.c.b16 %v1547, %v1541
        %v1866 = vpack.c.b16 %v1548, %v1542
        %v1867 = vpack.c.b16 %v1549, %v1543
        %v1868 = vpack.c.b16 %v1550, %v1544
        %v1869 = vpack.c.b16 %v1557, %v1551
        %v1870 = vpack.c.b16 %v1558, %v1552
        %v1871 = vpack.c.b16 %v1559, %v1553
        %v1872 = vpack.c.b16 %v1560, %v1554
        %v1873 = vpack.c.b16 %v1561, %v1555
        %v1874 = vpack.c.b16 %v1562, %v1556
        %v1875 = vpack.c.b16 %v1569, %v1563
        %v1876 = vpack.c.b16 %v1570, %v1564
        %v1877 = vpack.c.b16 %v1571, %v1565
        %v1878 = vpack.c.b16 %v1572, %v1566
        %v1879 = vpack.c.b16 %v1573, %v1567
        %v1880 = vpack.c.b16 %v1574, %v1568
        %v1881 = vpack.c.b16 %v1581, %v1575
        %v1882 = vpack.c.b16 %v1582, %v1576
        %v1883 = vpack.c.b16 %v1583, %v1577
        %v1884 = vpack.c.b16 %v1584, %v1578
        %v1885 = vpack.c.b16 %v1585, %v1579
        %v1886 = vpack.c.b16 %v1586, %v1580
        %v1887 = vpack.c.b16 %v1593, %v1587
        %v1888 = vpack.c.b16 %v1594, %v1588
        %v1889 = vpack.c.b16 %v1595, %v1589
        %v1890 = vpack.c.b16 %v1596, %v1590
        %v1891 = vpack.c.b16 %v1597, %v1591
        %v1892 = vpack.c.b16 %v1598, %v1592
        %v1893 = vpack.c.b16 %v1605, %v1599
        %v1894 = vpack.c.b16 %v1606, %v1600
        %v1895 = vpack.c.b16 %v1607, %v1601
        %v1896 = vpack.c.b16 %v1608, %v1602
        %v1897 = vpack.c.b16 %v1609, %v1603
        %v1898 = vpack.c.b16 %v1610, %v1604
        %2187 = vmatprep.subr.bf16.mxu0 %v1612
        %2188 = vmatpush1.bf16.msra.mxu0 %v1611
        %2189 = vmatprep.subr.bf16.mxu0 %v1618
        %2190 = vmatpush1.bf16.msra.mxu0 %v1617
        %2191 = vmatprep.subr.bf16.mxu0 %v1624
        %2192 = vmatpush1.bf16.msra.mxu0 %v1623
        %2193 = vmatprep.subr.bf16.mxu0 %v1630
        %2194 = vmatpush1.bf16.msra.mxu0 %v1629
        %2195 = vmatprep.subr.bf16.mxu0 %v1636
        %2196 = vmatpush1.bf16.msra.mxu0 %v1635
        %2197 = vmatprep.subr.bf16.mxu0 %v1642
        %2198 = vmatpush1.bf16.msra.mxu0 %v1641
        %2199 = vmatprep.subr.bf16.mxu0 %v1648
        %2200 = vmatpush1.bf16.msra.mxu0 %v1647
        %2201 = vmatprep.subr.bf16.mxu0 %v1654
        %2202 = vmatpush1.bf16.msra.mxu0 %v1653
        %2203 = vmatprep.subr.bf16.mxu0 %v1660
        %2204 = vmatpush1.bf16.msra.mxu0 %v1659
        %2205 = vmatprep.subr.bf16.mxu0 %v1666
        %2206 = vmatpush1.bf16.msra.mxu0 %v1665
        %2207 = vmatprep.subr.bf16.mxu0 %v1672
        %2208 = vmatpush1.bf16.msra.mxu0 %v1671
        %2209 = vmatprep.subr.bf16.mxu0 %v1678
        %2210 = vmatpush1.bf16.msra.mxu0 %v1677
        %2211 = vmatprep.subr.bf16.mxu0 %v1684
        %2212 = vmatpush1.bf16.msra.mxu0 %v1683
        %2213 = vmatprep.subr.bf16.mxu0 %v1690
        %2214 = vmatpush1.bf16.msra.mxu0 %v1689
        %2215 = vmatprep.subr.bf16.mxu0 %v1696
        %2216 = vmatpush1.bf16.msra.mxu0 %v1695
        %2217 = vmatprep.subr.bf16.mxu0 %v1702
        %2218 = vmatpush1.bf16.msra.mxu0 %v1701
        %2219 = vmatprep.mubr.bf16.mxu0 %v418
        %2220 = vmatmul.mubr.bf16.gmra.mrb[0].mxu0 %v417
        %v2221 = vpop.f32.mrb[0].mxu0
        %v2222 = vadd.f32 %v720, %v2221
        %v2223 = vpop.f32.mrb[0].mxu0
        %v2224 = vadd.f32 %v724, %v2223
        %v2225 = vpop.f32.mrb[0].mxu0
        %v2226 = vpop.f32.mrb[0].mxu0
        %2227 = vdwg.mxu0
        %2228 = vmatprep.subr.bf16.mxu0 %v1708
        %2229 = vmatpush1.bf16.msra.mxu0 %v1707
        %2230 = vmatprep.subr.bf16.mxu0 %v1714
        %2231 = vmatpush1.bf16.msra.mxu0 %v1713
        %2232 = vmatprep.subr.bf16.mxu0 %v1720
        %2233 = vmatpush1.bf16.msra.mxu0 %v1719
        %2234 = vmatprep.subr.bf16.mxu0 %v1726
        %2235 = vmatpush1.bf16.msra.mxu0 %v1725
        %2236 = vmatprep.subr.bf16.mxu0 %v1732
        %2237 = vmatpush1.bf16.msra.mxu0 %v1731
        %2238 = vmatprep.subr.bf16.mxu0 %v1738
        %2239 = vmatpush1.bf16.msra.mxu0 %v1737
        %2240 = vmatprep.subr.bf16.mxu0 %v1744
        %2241 = vmatpush1.bf16.msra.mxu0 %v1743
        %2242 = vmatprep.subr.bf16.mxu0 %v1750
        %2243 = vmatpush1.bf16.msra.mxu0 %v1749
        %2244 = vmatprep.subr.bf16.mxu0 %v1756
        %2245 = vmatpush1.bf16.msra.mxu0 %v1755
        %2246 = vmatprep.subr.bf16.mxu0 %v1762
        %2247 = vmatpush1.bf16.msra.mxu0 %v1761
        %2248 = vmatprep.subr.bf16.mxu0 %v1768
        %2249 = vmatpush1.bf16.msra.mxu0 %v1767
        %2250 = vmatprep.subr.bf16.mxu0 %v1774
        %2251 = vmatpush1.bf16.msra.mxu0 %v1773
        %2252 = vmatprep.subr.bf16.mxu0 %v1780
        %2253 = vmatpush1.bf16.msra.mxu0 %v1779
        %2254 = vmatprep.subr.bf16.mxu0 %v1786
        %2255 = vmatpush1.bf16.msra.mxu0 %v1785
        %2256 = vmatprep.subr.bf16.mxu0 %v1792
        %2257 = vmatpush1.bf16.msra.mxu0 %v1791
        %2258 = vmatprep.subr.bf16.mxu0 %v1798
        %2259 = vmatpush1.bf16.msra.mxu0 %v1797
        %2260 = vmatprep.mubr.bf16.mxu0 %v420
        %2261 = vmatmul.mubr.bf16.gmra.mrb[0].mxu0 %v419
        %v2262 = vpop.f32.mrb[0].mxu0
        %v2263 = vadd.f32 %v2222, %v2262
        %v2264 = vpop.f32.mrb[0].mxu0
        %v2265 = vadd.f32 %v2224, %v2264
        %v2266 = vpop.f32.mrb[0].mxu0
        %v2267 = vpop.f32.mrb[0].mxu0
        %2268 = vdwg.mxu0
        %2269 = vmatprep.subr.bf16.mxu0 %v1804
        %2270 = vmatpush1.bf16.msra.mxu0 %v1803
        %2271 = vmatprep.subr.bf16.mxu0 %v1810
        %2272 = vmatpush1.bf16.msra.mxu0 %v1809
        %2273 = vmatprep.subr.bf16.mxu0 %v1816
        %2274 = vmatpush1.bf16.msra.mxu0 %v1815
        %2275 = vmatprep.subr.bf16.mxu0 %v1822
        %2276 = vmatpush1.bf16.msra.mxu0 %v1821
        %2277 = vmatprep.subr.bf16.mxu0 %v1828
        %2278 = vmatpush1.bf16.msra.mxu0 %v1827
        %2279 = vmatprep.subr.bf16.mxu0 %v1834
        %2280 = vmatpush1.bf16.msra.mxu0 %v1833
        %2281 = vmatprep.subr.bf16.mxu0 %v1840
        %2282 = vmatpush1.bf16.msra.mxu0 %v1839
        %2283 = vmatprep.subr.bf16.mxu0 %v1846
        %2284 = vmatpush1.bf16.msra.mxu0 %v1845
        %2285 = vmatprep.subr.bf16.mxu0 %v1852
        %2286 = vmatpush1.bf16.msra.mxu0 %v1851
        %2287 = vmatprep.subr.bf16.mxu0 %v1858
        %2288 = vmatpush1.bf16.msra.mxu0 %v1857
        %2289 = vmatprep.subr.bf16.mxu0 %v1864
        %2290 = vmatpush1.bf16.msra.mxu0 %v1863
        %2291 = vmatprep.subr.bf16.mxu0 %v1870
        %2292 = vmatpush1.bf16.msra.mxu0 %v1869
        %2293 = vmatprep.subr.bf16.mxu0 %v1876
        %2294 = vmatpush1.bf16.msra.mxu0 %v1875
        %2295 = vmatprep.subr.bf16.mxu0 %v1882
        %2296 = vmatpush1.bf16.msra.mxu0 %v1881
        %2297 = vmatprep.subr.bf16.mxu0 %v1888
        %2298 = vmatpush1.bf16.msra.mxu0 %v1887
        %2299 = vmatprep.subr.bf16.mxu0 %v1894
        %2300 = vmatpush1.bf16.msra.mxu0 %v1893
        %2301 = vmatprep.mubr.bf16.mxu0 %v422
        %2302 = vmatmul.mubr.bf16.gmra.mrb[0].mxu0 %v421
        %v2303 = vpop.f32.mrb[0].mxu0
        %v2304 = vadd.f32 %v2263, %v2303
        %v2305 = vpop.f32.mrb[0].mxu0
        %v2306 = vadd.f32 %v2265, %v2305
        %v2307 = vpop.f32.mrb[0].mxu0
        %v2308 = vpop.f32.mrb[0].mxu0
        %2309 = vdwg.mxu0
        %2310 = vmatprep.subr.bf16.mxu0 %v1614
        %2311 = vmatpush1.bf16.msra.mxu0 %v1613
        %2312 = vmatprep.subr.bf16.mxu0 %v1620
        %2313 = vmatpush1.bf16.msra.mxu0 %v1619
        %2314 = vmatprep.subr.bf16.mxu0 %v1626
        %2315 = vmatpush1.bf16.msra.mxu0 %v1625
        %2316 = vmatprep.subr.bf16.mxu0 %v1632
        %2317 = vmatpush1.bf16.msra.mxu0 %v1631
        %2318 = vmatprep.subr.bf16.mxu0 %v1638
        %2319 = vmatpush1.bf16.msra.mxu0 %v1637
        %2320 = vmatprep.subr.bf16.mxu0 %v1644
        %2321 = vmatpush1.bf16.msra.mxu0 %v1643
        %2322 = vmatprep.subr.bf16.mxu0 %v1650
        %2323 = vmatpush1.bf16.msra.mxu0 %v1649
        %2324 = vmatprep.subr.bf16.mxu0 %v1656
        %2325 = vmatpush1.bf16.msra.mxu0 %v1655
        %2326 = vmatprep.subr.bf16.mxu0 %v1662
        %2327 = vmatpush1.bf16.msra.mxu0 %v1661
        %2328 = vmatprep.subr.bf16.mxu0 %v1668
        %2329 = vmatpush1.bf16.msra.mxu0 %v1667
        %2330 = vmatprep.subr.bf16.mxu0 %v1674
        %2331 = vmatpush1.bf16.msra.mxu0 %v1673
        %2332 = vmatprep.subr.bf16.mxu0 %v1680
        %2333 = vmatpush1.bf16.msra.mxu0 %v1679
        %2334 = vmatprep.subr.bf16.mxu0 %v1686
        %2335 = vmatpush1.bf16.msra.mxu0 %v1685
        %2336 = vmatprep.subr.bf16.mxu0 %v1692
        %2337 = vmatpush1.bf16.msra.mxu0 %v1691
        %2338 = vmatprep.subr.bf16.mxu0 %v1698
        %2339 = vmatpush1.bf16.msra.mxu0 %v1697
        %2340 = vmatprep.subr.bf16.mxu0 %v1704
        %2341 = vmatpush1.bf16.msra.mxu0 %v1703
        %2342 = vmatprep.mubr.bf16.mxu0 %v418
        %2343 = vmatmul.mubr.bf16.gmra.mrb[0].mxu0 %v417
        %v2344 = vpop.f32.mrb[0].mxu0
        %v2345 = vadd.f32 %v728, %v2344
        %v2346 = vpop.f32.mrb[0].mxu0
        %v2347 = vadd.f32 %v732, %v2346
        %v2348 = vpop.f32.mrb[0].mxu0
        %v2349 = vpop.f32.mrb[0].mxu0
        %2350 = vdwg.mxu0
        %2351 = vmatprep.subr.bf16.mxu0 %v1710
        %2352 = vmatpush1.bf16.msra.mxu0 %v1709
        %2353 = vmatprep.subr.bf16.mxu0 %v1716
        %2354 = vmatpush1.bf16.msra.mxu0 %v1715
        %2355 = vmatprep.subr.bf16.mxu0 %v1722
        %2356 = vmatpush1.bf16.msra.mxu0 %v1721
        %2357 = vmatprep.subr.bf16.mxu0 %v1728
        %2358 = vmatpush1.bf16.msra.mxu0 %v1727
        %2359 = vmatprep.subr.bf16.mxu0 %v1734
        %2360 = vmatpush1.bf16.msra.mxu0 %v1733
        %2361 = vmatprep.subr.bf16.mxu0 %v1740
        %2362 = vmatpush1.bf16.msra.mxu0 %v1739
        %2363 = vmatprep.subr.bf16.mxu0 %v1746
        %2364 = vmatpush1.bf16.msra.mxu0 %v1745
        %2365 = vmatprep.subr.bf16.mxu0 %v1752
        %2366 = vmatpush1.bf16.msra.mxu0 %v1751
        %2367 = vmatprep.subr.bf16.mxu0 %v1758
        %2368 = vmatpush1.bf16.msra.mxu0 %v1757
        %2369 = vmatprep.subr.bf16.mxu0 %v1764
        %2370 = vmatpush1.bf16.msra.mxu0 %v1763
        %2371 = vmatprep.subr.bf16.mxu0 %v1770
        %2372 = vmatpush1.bf16.msra.mxu0 %v1769
        %2373 = vmatprep.subr.bf16.mxu0 %v1776
        %2374 = vmatpush1.bf16.msra.mxu0 %v1775
        %2375 = vmatprep.subr.bf16.mxu0 %v1782
        %2376 = vmatpush1.bf16.msra.mxu0 %v1781
        %2377 = vmatprep.subr.bf16.mxu0 %v1788
        %2378 = vmatpush1.bf16.msra.mxu0 %v1787
        %2379 = vmatprep.subr.bf16.mxu0 %v1794
        %2380 = vmatpush1.bf16.msra.mxu0 %v1793
        %2381 = vmatprep.subr.bf16.mxu0 %v1800
        %2382 = vmatpush1.bf16.msra.mxu0 %v1799
        %2383 = vmatprep.mubr.bf16.mxu0 %v420
        %2384 = vmatmul.mubr.bf16.gmra.mrb[0].mxu0 %v419
        %v2385 = vpop.f32.mrb[0].mxu0
        %v2386 = vadd.f32 %v2345, %v2385
        %v2387 = vpop.f32.mrb[0].mxu0
        %v2388 = vadd.f32 %v2347, %v2387
        %v2389 = vpop.f32.mrb[0].mxu0
        %v2390 = vpop.f32.mrb[0].mxu0
        %2391 = vdwg.mxu0
        %2392 = vmatprep.subr.bf16.mxu0 %v1806
        %2393 = vmatpush1.bf16.msra.mxu0 %v1805
        %2394 = vmatprep.subr.bf16.mxu0 %v1812
        %2395 = vmatpush1.bf16.msra.mxu0 %v1811
        %2396 = vmatprep.subr.bf16.mxu0 %v1818
        %2397 = vmatpush1.bf16.msra.mxu0 %v1817
        %2398 = vmatprep.subr.bf16.mxu0 %v1824
        %2399 = vmatpush1.bf16.msra.mxu0 %v1823
        %2400 = vmatprep.subr.bf16.mxu0 %v1830
        %2401 = vmatpush1.bf16.msra.mxu0 %v1829
        %2402 = vmatprep.subr.bf16.mxu0 %v1836
        %2403 = vmatpush1.bf16.msra.mxu0 %v1835
        %2404 = vmatprep.subr.bf16.mxu0 %v1842
        %2405 = vmatpush1.bf16.msra.mxu0 %v1841
        %2406 = vmatprep.subr.bf16.mxu0 %v1848
        %2407 = vmatpush1.bf16.msra.mxu0 %v1847
        %2408 = vmatprep.subr.bf16.mxu0 %v1854
        %2409 = vmatpush1.bf16.msra.mxu0 %v1853
        %2410 = vmatprep.subr.bf16.mxu0 %v1860
        %2411 = vmatpush1.bf16.msra.mxu0 %v1859
        %2412 = vmatprep.subr.bf16.mxu0 %v1866
        %2413 = vmatpush1.bf16.msra.mxu0 %v1865
        %2414 = vmatprep.subr.bf16.mxu0 %v1872
        %2415 = vmatpush1.bf16.msra.mxu0 %v1871
        %2416 = vmatprep.subr.bf16.mxu0 %v1878
        %2417 = vmatpush1.bf16.msra.mxu0 %v1877
        %2418 = vmatprep.subr.bf16.mxu0 %v1884
        %2419 = vmatpush1.bf16.msra.mxu0 %v1883
        %2420 = vmatprep.subr.bf16.mxu0 %v1890
        %2421 = vmatpush1.bf16.msra.mxu0 %v1889
        %2422 = vmatprep.subr.bf16.mxu0 %v1896
        %2423 = vmatpush1.bf16.msra.mxu0 %v1895
        %2424 = vmatprep.mubr.bf16.mxu0 %v422
        %2425 = vmatmul.mubr.bf16.gmra.mrb[0].mxu0 %v421
        %v2426 = vpop.f32.mrb[0].mxu0
        %v2427 = vadd.f32 %v2386, %v2426
        %v2428 = vpop.f32.mrb[0].mxu0
        %v2429 = vadd.f32 %v2388, %v2428
        %v2430 = vpop.f32.mrb[0].mxu0
        %v2431 = vpop.f32.mrb[0].mxu0
        %2432 = vdwg.mxu0
        %2433 = vmatprep.subr.bf16.mxu0 %v1616
        %2434 = vmatpush1.bf16.msra.mxu0 %v1615
        %2435 = vmatprep.subr.bf16.mxu0 %v1622
        %2436 = vmatpush1.bf16.msra.mxu0 %v1621
        %2437 = vmatprep.subr.bf16.mxu0 %v1628
        %2438 = vmatpush1.bf16.msra.mxu0 %v1627
        %2439 = vmatprep.subr.bf16.mxu0 %v1634
        %2440 = vmatpush1.bf16.msra.mxu0 %v1633
        %2441 = vmatprep.subr.bf16.mxu0 %v1640
        %2442 = vmatpush1.bf16.msra.mxu0 %v1639
        %2443 = vmatprep.subr.bf16.mxu0 %v1646
        %2444 = vmatpush1.bf16.msra.mxu0 %v1645
        %2445 = vmatprep.subr.bf16.mxu0 %v1652
        %2446 = vmatpush1.bf16.msra.mxu0 %v1651
        %2447 = vmatprep.subr.bf16.mxu0 %v1658
        %2448 = vmatpush1.bf16.msra.mxu0 %v1657
        %2449 = vmatprep.subr.bf16.mxu0 %v1664
        %2450 = vmatpush1.bf16.msra.mxu0 %v1663
        %2451 = vmatprep.subr.bf16.mxu0 %v1670
        %2452 = vmatpush1.bf16.msra.mxu0 %v1669
        %2453 = vmatprep.subr.bf16.mxu0 %v1676
        %2454 = vmatpush1.bf16.msra.mxu0 %v1675
        %2455 = vmatprep.subr.bf16.mxu0 %v1682
        %2456 = vmatpush1.bf16.msra.mxu0 %v1681
        %2457 = vmatprep.subr.bf16.mxu0 %v1688
        %2458 = vmatpush1.bf16.msra.mxu0 %v1687
        %2459 = vmatprep.subr.bf16.mxu0 %v1694
        %2460 = vmatpush1.bf16.msra.mxu0 %v1693
        %2461 = vmatprep.subr.bf16.mxu0 %v1700
        %2462 = vmatpush1.bf16.msra.mxu0 %v1699
        %2463 = vmatprep.subr.bf16.mxu0 %v1706
        %2464 = vmatpush1.bf16.msra.mxu0 %v1705
        %2465 = vmatprep.mubr.bf16.mxu0 %v418
        %2466 = vmatmul.mubr.bf16.gmra.mrb[0].mxu0 %v417
        %v2467 = vpop.f32.mrb[0].mxu0
        %v2468 = vadd.f32 %v736, %v2467
        %v2469 = vpop.f32.mrb[0].mxu0
        %v2470 = vadd.f32 %v740, %v2469
        %v2471 = vpop.f32.mrb[0].mxu0
        %v2472 = vpop.f32.mrb[0].mxu0
        %2473 = vdwg.mxu0
        %2474 = vmatprep.subr.bf16.mxu0 %v1712
        %2475 = vmatpush1.bf16.msra.mxu0 %v1711
        %2476 = vmatprep.subr.bf16.mxu0 %v1718
        %2477 = vmatpush1.bf16.msra.mxu0 %v1717
        %2478 = vmatprep.subr.bf16.mxu0 %v1724
        %2479 = vmatpush1.bf16.msra.mxu0 %v1723
        %2480 = vmatprep.subr.bf16.mxu0 %v1730
        %2481 = vmatpush1.bf16.msra.mxu0 %v1729
        %2482 = vmatprep.subr.bf16.mxu0 %v1736
        %2483 = vmatpush1.bf16.msra.mxu0 %v1735
        %2484 = vmatprep.subr.bf16.mxu0 %v1742
        %2485 = vmatpush1.bf16.msra.mxu0 %v1741
        %2486 = vmatprep.subr.bf16.mxu0 %v1748
        %2487 = vmatpush1.bf16.msra.mxu0 %v1747
        %2488 = vmatprep.subr.bf16.mxu0 %v1754
        %2489 = vmatpush1.bf16.msra.mxu0 %v1753
        %2490 = vmatprep.subr.bf16.mxu0 %v1760
        %2491 = vmatpush1.bf16.msra.mxu0 %v1759
        %2492 = vmatprep.subr.bf16.mxu0 %v1766
        %2493 = vmatpush1.bf16.msra.mxu0 %v1765
        %2494 = vmatprep.subr.bf16.mxu0 %v1772
        %2495 = vmatpush1.bf16.msra.mxu0 %v1771
        %2496 = vmatprep.subr.bf16.mxu0 %v1778
        %2497 = vmatpush1.bf16.msra.mxu0 %v1777
        %2498 = vmatprep.subr.bf16.mxu0 %v1784
        %2499 = vmatpush1.bf16.msra.mxu0 %v1783
        %2500 = vmatprep.subr.bf16.mxu0 %v1790
        %2501 = vmatpush1.bf16.msra.mxu0 %v1789
        %2502 = vmatprep.subr.bf16.mxu0 %v1796
        %2503 = vmatpush1.bf16.msra.mxu0 %v1795
        %2504 = vmatprep.subr.bf16.mxu0 %v1802
        %2505 = vmatpush1.bf16.msra.mxu0 %v1801
        %2506 = vmatprep.mubr.bf16.mxu0 %v420
        %2507 = vmatmul.mubr.bf16.gmra.mrb[0].mxu0 %v419
        %v2508 = vpop.f32.mrb[0].mxu0
        %v2509 = vadd.f32 %v2468, %v2508
        %v2510 = vpop.f32.mrb[0].mxu0
        %v2511 = vadd.f32 %v2470, %v2510
        %v2512 = vpop.f32.mrb[0].mxu0
        %v2513 = vpop.f32.mrb[0].mxu0
        %2514 = vdwg.mxu0
        %2515 = vmatprep.subr.bf16.mxu0 %v1808
        %2516 = vmatpush1.bf16.msra.mxu0 %v1807
        %2517 = vmatprep.subr.bf16.mxu0 %v1814
        %2518 = vmatpush1.bf16.msra.mxu0 %v1813
        %2519 = vmatprep.subr.bf16.mxu0 %v1820
        %2520 = vmatpush1.bf16.msra.mxu0 %v1819
        %2521 = vmatprep.subr.bf16.mxu0 %v1826
        %2522 = vmatpush1.bf16.msra.mxu0 %v1825
        %2523 = vmatprep.subr.bf16.mxu0 %v1832
        %2524 = vmatpush1.bf16.msra.mxu0 %v1831
        %2525 = vmatprep.subr.bf16.mxu0 %v1838
        %2526 = vmatpush1.bf16.msra.mxu0 %v1837
        %2527 = vmatprep.subr.bf16.mxu0 %v1844
        %2528 = vmatpush1.bf16.msra.mxu0 %v1843
        %2529 = vmatprep.subr.bf16.mxu0 %v1850
        %2530 = vmatpush1.bf16.msra.mxu0 %v1849
        %2531 = vmatprep.subr.bf16.mxu0 %v1856
        %2532 = vmatpush1.bf16.msra.mxu0 %v1855
        %2533 = vmatprep.subr.bf16.mxu0 %v1862
        %2534 = vmatpush1.bf16.msra.mxu0 %v1861
        %2535 = vmatprep.subr.bf16.mxu0 %v1868
        %2536 = vmatpush1.bf16.msra.mxu0 %v1867
        %2537 = vmatprep.subr.bf16.mxu0 %v1874
        %2538 = vmatpush1.bf16.msra.mxu0 %v1873
        %2539 = vmatprep.subr.bf16.mxu0 %v1880
        %2540 = vmatpush1.bf16.msra.mxu0 %v1879
        %2541 = vmatprep.subr.bf16.mxu0 %v1886
        %2542 = vmatpush1.bf16.msra.mxu0 %v1885
        %2543 = vmatprep.subr.bf16.mxu0 %v1892
        %2544 = vmatpush1.bf16.msra.mxu0 %v1891
        %2545 = vmatprep.subr.bf16.mxu0 %v1898
        %2546 = vmatpush1.bf16.msra.mxu0 %v1897
        %2547 = vmatprep.mubr.bf16.mxu0 %v422
        %2548 = vmatmul.mubr.bf16.gmra.mrb[0].mxu0 %v421
        %v2549 = vpop.f32.mrb[0].mxu0
        %v2550 = vadd.f32 %v2509, %v2549
        %v2551 = vpop.f32.mrb[0].mxu0
        %v2552 = vadd.f32 %v2511, %v2551
        %v2553 = vpop.f32.mrb[0].mxu0
        %v2554 = vpop.f32.mrb[0].mxu0
        %2555 = vdwg.mxu0
        %v2556 = vtanh.pop %v2304
        %v2557 = vtanh.pop %v2306
        %v2558 = vtanh.pop %v2427
        %v2559 = vtanh.pop %v2429
        %v2560 = vtanh.pop %v2550
        %v2561 = vtanh.pop %v2552
        %v2562 = vpack.c.bf16 %v2556, %v2556
        %v2563 = vpack.c.bf16 %v2557, %v2557
        %v2564 = vpack.c.bf16 %v2558, %v2558
        %v2565 = vpack.c.bf16 %v2559, %v2559
        %v2566 = vpack.c.bf16 %v2560, %v2560
        %v2567 = vpack.c.bf16 %v2561, %v2561
        %s2568 = smul.addr %s425, 4
        %s2569 = scalar_lea.vmem %s6, %s2568
        %v2570 = vld [vmem:[%s2569] sm:$0xff]
        %v2571 = vld [vmem:[%s2569 + $0x8] sm:$0xff]
        %v2572 = vld [vmem:[%s2569 + $0x10] sm:$0xff]
        %v2573 = vld [vmem:[%s2569 + $0x18] sm:$0xff]
        %v2574 = vld [vmem:[%s2569 + $0x20] sm:$0xff]
        %v2575 = vld [vmem:[%s2569 + $0x28] sm:$0xff]
        %v2576 = vld [vmem:[%s2569 + $0x30] sm:$0xff]
        %v2577 = vld [vmem:[%s2569 + $0x38] sm:$0xff]
        %v2578 = vld [vmem:[%s2569 + $0x40] sm:$0xff]
        %v2579 = vld [vmem:[%s2569 + $0x48] sm:$0xff]
        %v2580 = vld [vmem:[%s2569 + $0x50] sm:$0xff]
        %v2581 = vld [vmem:[%s2569 + $0x58] sm:$0xff]
        %v2582 = vld [vmem:[%s2569 + $0x60] sm:$0xff]
        %v2583 = vld [vmem:[%s2569 + $0x68] sm:$0xff]
        %v2584 = vld [vmem:[%s2569 + $0x70] sm:$0xff]
        %v2585 = vld [vmem:[%s2569 + $0x78] sm:$0xff]
        %v2586 = vld [vmem:[%s2569 + $0x80] sm:$0xff]
        %v2587 = vld [vmem:[%s2569 + $0x88] sm:$0xff]
        %v2588 = vld [vmem:[%s2569 + $0x90] sm:$0xff]
        %v2589 = vld [vmem:[%s2569 + $0x98] sm:$0xff]
        %v2590 = vld [vmem:[%s2569 + $0xa0] sm:$0xff]
        %v2591 = vld [vmem:[%s2569 + $0xa8] sm:$0xff]
        %v2592 = vld [vmem:[%s2569 + $0xb0] sm:$0xff]
        %v2593 = vld [vmem:[%s2569 + $0xb8] sm:$0xff]
        %v2594 = vld [vmem:[%s2569 + $0xc0] sm:$0xff]
        %v2595 = vld [vmem:[%s2569 + $0xc8] sm:$0xff]
        %v2596 = vld [vmem:[%s2569 + $0xd0] sm:$0xff]
        %v2597 = vld [vmem:[%s2569 + $0xd8] sm:$0xff]
        %v2598 = vld [vmem:[%s2569 + $0xe0] sm:$0xff]
        %v2599 = vld [vmem:[%s2569 + $0xe8] sm:$0xff]
        %v2600 = vld [vmem:[%s2569 + $0xf0] sm:$0xff]
        %v2601 = vld [vmem:[%s2569 + $0xf8] sm:$0xff]
        %v2602 = vld [vmem:[%s2569 + $0x100] sm:$0xff]
        %v2603 = vld [vmem:[%s2569 + $0x108] sm:$0xff]
        %v2604 = vld [vmem:[%s2569 + $0x110] sm:$0xff]
        %v2605 = vld [vmem:[%s2569 + $0x118] sm:$0xff]
        %v2606 = vld [vmem:[%s2569 + $0x120] sm:$0xff]
        %v2607 = vld [vmem:[%s2569 + $0x128] sm:$0xff]
        %v2608 = vld [vmem:[%s2569 + $0x130] sm:$0xff]
        %v2609 = vld [vmem:[%s2569 + $0x138] sm:$0xff]
        %v2610 = vld [vmem:[%s2569 + $0x140] sm:$0xff]
        %v2611 = vld [vmem:[%s2569 + $0x148] sm:$0xff]
        %v2612 = vld [vmem:[%s2569 + $0x150] sm:$0xff]
        %v2613 = vld [vmem:[%s2569 + $0x158] sm:$0xff]
        %v2614 = vld [vmem:[%s2569 + $0x160] sm:$0xff]
        %v2615 = vld [vmem:[%s2569 + $0x168] sm:$0xff]
        %v2616 = vld [vmem:[%s2569 + $0x170] sm:$0xff]
        %v2617 = vld [vmem:[%s2569 + $0x178] sm:$0xff]
        %v2618 = vld [vmem:[%s2569 + $0x180] sm:$0xff]
        %v2619 = vld [vmem:[%s2569 + $0x188] sm:$0xff]
        %v2620 = vld [vmem:[%s2569 + $0x190] sm:$0xff]
        %v2621 = vld [vmem:[%s2569 + $0x198] sm:$0xff]
        %v2622 = vld [vmem:[%s2569 + $0x1a0] sm:$0xff]
        %v2623 = vld [vmem:[%s2569 + $0x1a8] sm:$0xff]
        %v2624 = vld [vmem:[%s2569 + $0x1b0] sm:$0xff]
        %v2625 = vld [vmem:[%s2569 + $0x1b8] sm:$0xff]
        %v2626 = vld [vmem:[%s2569 + $0x1c0] sm:$0xff]
        %v2627 = vld [vmem:[%s2569 + $0x1c8] sm:$0xff]
        %v2628 = vld [vmem:[%s2569 + $0x1d0] sm:$0xff]
        %v2629 = vld [vmem:[%s2569 + $0x1d8] sm:$0xff]
        %v2630 = vld [vmem:[%s2569 + $0x1e0] sm:$0xff]
        %v2631 = vld [vmem:[%s2569 + $0x1e8] sm:$0xff]
        %v2632 = vld [vmem:[%s2569 + $0x1f0] sm:$0xff]
        %v2633 = vld [vmem:[%s2569 + $0x1f8] sm:$0xff]
        %v2634 = vld [vmem:[%s2569 + $0x200] sm:$0xff]
        %v2635 = vld [vmem:[%s2569 + $0x208] sm:$0xff]
        %v2636 = vld [vmem:[%s2569 + $0x210] sm:$0xff]
        %v2637 = vld [vmem:[%s2569 + $0x218] sm:$0xff]
        %v2638 = vld [vmem:[%s2569 + $0x220] sm:$0xff]
        %v2639 = vld [vmem:[%s2569 + $0x228] sm:$0xff]
        %v2640 = vld [vmem:[%s2569 + $0x230] sm:$0xff]
        %v2641 = vld [vmem:[%s2569 + $0x238] sm:$0xff]
        %v2642 = vld [vmem:[%s2569 + $0x240] sm:$0xff]
        %v2643 = vld [vmem:[%s2569 + $0x248] sm:$0xff]
        %v2644 = vld [vmem:[%s2569 + $0x250] sm:$0xff]
        %v2645 = vld [vmem:[%s2569 + $0x258] sm:$0xff]
        %v2646 = vld [vmem:[%s2569 + $0x260] sm:$0xff]
        %v2647 = vld [vmem:[%s2569 + $0x268] sm:$0xff]
        %v2648 = vld [vmem:[%s2569 + $0x270] sm:$0xff]
        %v2649 = vld [vmem:[%s2569 + $0x278] sm:$0xff]
        %v2650 = vld [vmem:[%s2569 + $0x280] sm:$0xff]
        %v2651 = vld [vmem:[%s2569 + $0x288] sm:$0xff]
        %v2652 = vld [vmem:[%s2569 + $0x290] sm:$0xff]
        %v2653 = vld [vmem:[%s2569 + $0x298] sm:$0xff]
        %v2654 = vld [vmem:[%s2569 + $0x2a0] sm:$0xff]
        %v2655 = vld [vmem:[%s2569 + $0x2a8] sm:$0xff]
        %v2656 = vld [vmem:[%s2569 + $0x2b0] sm:$0xff]
        %v2657 = vld [vmem:[%s2569 + $0x2b8] sm:$0xff]
        %v2658 = vld [vmem:[%s2569 + $0x2c0] sm:$0xff]
        %v2659 = vld [vmem:[%s2569 + $0x2c8] sm:$0xff]
        %v2660 = vld [vmem:[%s2569 + $0x2d0] sm:$0xff]
        %v2661 = vld [vmem:[%s2569 + $0x2d8] sm:$0xff]
        %v2662 = vld [vmem:[%s2569 + $0x2e0] sm:$0xff]
        %v2663 = vld [vmem:[%s2569 + $0x2e8] sm:$0xff]
        %v2664 = vld [vmem:[%s2569 + $0x2f0] sm:$0xff]
        %v2665 = vld [vmem:[%s2569 + $0x2f8] sm:$0xff]
        %v2666 = vld [vmem:[%s2569 + $0x300] sm:$0xff]
        %v2667 = vld [vmem:[%s2569 + $0x308] sm:$0xff]
        %v2668 = vld [vmem:[%s2569 + $0x310] sm:$0xff]
        %v2669 = vld [vmem:[%s2569 + $0x318] sm:$0xff]
        %v2670 = vld [vmem:[%s2569 + $0x320] sm:$0xff]
        %v2671 = vld [vmem:[%s2569 + $0x328] sm:$0xff]
        %v2672 = vld [vmem:[%s2569 + $0x330] sm:$0xff]
        %v2673 = vld [vmem:[%s2569 + $0x338] sm:$0xff]
        %v2674 = vld [vmem:[%s2569 + $0x340] sm:$0xff]
        %v2675 = vld [vmem:[%s2569 + $0x348] sm:$0xff]
        %v2676 = vld [vmem:[%s2569 + $0x350] sm:$0xff]
        %v2677 = vld [vmem:[%s2569 + $0x358] sm:$0xff]
        %v2678 = vld [vmem:[%s2569 + $0x360] sm:$0xff]
        %v2679 = vld [vmem:[%s2569 + $0x368] sm:$0xff]
        %v2680 = vld [vmem:[%s2569 + $0x370] sm:$0xff]
        %v2681 = vld [vmem:[%s2569 + $0x378] sm:$0xff]
        %v2682 = vld [vmem:[%s2569 + $0x380] sm:$0xff]
        %v2683 = vld [vmem:[%s2569 + $0x388] sm:$0xff]
        %v2684 = vld [vmem:[%s2569 + $0x390] sm:$0xff]
        %v2685 = vld [vmem:[%s2569 + $0x398] sm:$0xff]
        %v2686 = vld [vmem:[%s2569 + $0x3a0] sm:$0xff]
        %v2687 = vld [vmem:[%s2569 + $0x3a8] sm:$0xff]
        %v2688 = vld [vmem:[%s2569 + $0x3b0] sm:$0xff]
        %v2689 = vld [vmem:[%s2569 + $0x3b8] sm:$0xff]
        %v2690 = vld [vmem:[%s2569 + $0x3c0] sm:$0xff]
        %v2691 = vld [vmem:[%s2569 + $0x3c8] sm:$0xff]
        %v2692 = vld [vmem:[%s2569 + $0x3d0] sm:$0xff]
        %v2693 = vld [vmem:[%s2569 + $0x3d8] sm:$0xff]
        %v2694 = vld [vmem:[%s2569 + $0x3e0] sm:$0xff]
        %v2695 = vld [vmem:[%s2569 + $0x3e8] sm:$0xff]
        %v2696 = vld [vmem:[%s2569 + $0x3f0] sm:$0xff]
        %v2697 = vld [vmem:[%s2569 + $0x3f8] sm:$0xff]
        %v2698 = vld [vmem:[%s2569 + $0x400] sm:$0xff]
        %v2699 = vld [vmem:[%s2569 + $0x408] sm:$0xff]
        %v2700 = vld [vmem:[%s2569 + $0x410] sm:$0xff]
        %v2701 = vld [vmem:[%s2569 + $0x418] sm:$0xff]
        %v2702 = vld [vmem:[%s2569 + $0x420] sm:$0xff]
        %v2703 = vld [vmem:[%s2569 + $0x428] sm:$0xff]
        %v2704 = vld [vmem:[%s2569 + $0x430] sm:$0xff]
        %v2705 = vld [vmem:[%s2569 + $0x438] sm:$0xff]
        %v2706 = vld [vmem:[%s2569 + $0x440] sm:$0xff]
        %v2707 = vld [vmem:[%s2569 + $0x448] sm:$0xff]
        %v2708 = vld [vmem:[%s2569 + $0x450] sm:$0xff]
        %v2709 = vld [vmem:[%s2569 + $0x458] sm:$0xff]
        %v2710 = vld [vmem:[%s2569 + $0x460] sm:$0xff]
        %v2711 = vld [vmem:[%s2569 + $0x468] sm:$0xff]
        %v2712 = vld [vmem:[%s2569 + $0x470] sm:$0xff]
        %v2713 = vld [vmem:[%s2569 + $0x478] sm:$0xff]
        %v2714 = vld [vmem:[%s2569 + $0x480] sm:$0xff]
        %v2715 = vld [vmem:[%s2569 + $0x488] sm:$0xff]
        %v2716 = vld [vmem:[%s2569 + $0x490] sm:$0xff]
        %v2717 = vld [vmem:[%s2569 + $0x498] sm:$0xff]
        %v2718 = vld [vmem:[%s2569 + $0x4a0] sm:$0xff]
        %v2719 = vld [vmem:[%s2569 + $0x4a8] sm:$0xff]
        %v2720 = vld [vmem:[%s2569 + $0x4b0] sm:$0xff]
        %v2721 = vld [vmem:[%s2569 + $0x4b8] sm:$0xff]
        %v2722 = vld [vmem:[%s2569 + $0x4c0] sm:$0xff]
        %v2723 = vld [vmem:[%s2569 + $0x4c8] sm:$0xff]
        %v2724 = vld [vmem:[%s2569 + $0x4d0] sm:$0xff]
        %v2725 = vld [vmem:[%s2569 + $0x4d8] sm:$0xff]
        %v2726 = vld [vmem:[%s2569 + $0x4e0] sm:$0xff]
        %v2727 = vld [vmem:[%s2569 + $0x4e8] sm:$0xff]
        %v2728 = vld [vmem:[%s2569 + $0x4f0] sm:$0xff]
        %v2729 = vld [vmem:[%s2569 + $0x4f8] sm:$0xff]
        %v2730 = vld [vmem:[%s2569 + $0x500] sm:$0xff]
        %v2731 = vld [vmem:[%s2569 + $0x508] sm:$0xff]
        %v2732 = vld [vmem:[%s2569 + $0x510] sm:$0xff]
        %v2733 = vld [vmem:[%s2569 + $0x518] sm:$0xff]
        %v2734 = vld [vmem:[%s2569 + $0x520] sm:$0xff]
        %v2735 = vld [vmem:[%s2569 + $0x528] sm:$0xff]
        %v2736 = vld [vmem:[%s2569 + $0x530] sm:$0xff]
        %v2737 = vld [vmem:[%s2569 + $0x538] sm:$0xff]
        %v2738 = vld [vmem:[%s2569 + $0x540] sm:$0xff]
        %v2739 = vld [vmem:[%s2569 + $0x548] sm:$0xff]
        %v2740 = vld [vmem:[%s2569 + $0x550] sm:$0xff]
        %v2741 = vld [vmem:[%s2569 + $0x558] sm:$0xff]
        %v2742 = vld [vmem:[%s2569 + $0x560] sm:$0xff]
        %v2743 = vld [vmem:[%s2569 + $0x568] sm:$0xff]
        %v2744 = vld [vmem:[%s2569 + $0x570] sm:$0xff]
        %v2745 = vld [vmem:[%s2569 + $0x578] sm:$0xff]
        %v2746 = vld [vmem:[%s2569 + $0x580] sm:$0xff]
        %v2747 = vld [vmem:[%s2569 + $0x588] sm:$0xff]
        %v2748 = vld [vmem:[%s2569 + $0x590] sm:$0xff]
        %v2749 = vld [vmem:[%s2569 + $0x598] sm:$0xff]
        %v2750 = vld [vmem:[%s2569 + $0x5a0] sm:$0xff]
        %v2751 = vld [vmem:[%s2569 + $0x5a8] sm:$0xff]
        %v2752 = vld [vmem:[%s2569 + $0x5b0] sm:$0xff]
        %v2753 = vld [vmem:[%s2569 + $0x5b8] sm:$0xff]
        %v2754 = vld [vmem:[%s2569 + $0x5c0] sm:$0xff]
        %v2755 = vld [vmem:[%s2569 + $0x5c8] sm:$0xff]
        %v2756 = vld [vmem:[%s2569 + $0x5d0] sm:$0xff]
        %v2757 = vld [vmem:[%s2569 + $0x5d8] sm:$0xff]
        %v2758 = vld [vmem:[%s2569 + $0x5e0] sm:$0xff]
        %v2759 = vld [vmem:[%s2569 + $0x5e8] sm:$0xff]
        %v2760 = vld [vmem:[%s2569 + $0x5f0] sm:$0xff]
        %v2761 = vld [vmem:[%s2569 + $0x5f8] sm:$0xff]
        %v2762 = vld [vmem:[%s2569 + $0x600] sm:$0xff]
        %v2763 = vld [vmem:[%s2569 + $0x608] sm:$0xff]
        %v2764 = vld [vmem:[%s2569 + $0x610] sm:$0xff]
        %v2765 = vld [vmem:[%s2569 + $0x618] sm:$0xff]
        %v2766 = vld [vmem:[%s2569 + $0x620] sm:$0xff]
        %v2767 = vld [vmem:[%s2569 + $0x628] sm:$0xff]
        %v2768 = vld [vmem:[%s2569 + $0x630] sm:$0xff]
        %v2769 = vld [vmem:[%s2569 + $0x638] sm:$0xff]
        %v2770 = vld [vmem:[%s2569 + $0x640] sm:$0xff]
        %v2771 = vld [vmem:[%s2569 + $0x648] sm:$0xff]
        %v2772 = vld [vmem:[%s2569 + $0x650] sm:$0xff]
        %v2773 = vld [vmem:[%s2569 + $0x658] sm:$0xff]
        %v2774 = vld [vmem:[%s2569 + $0x660] sm:$0xff]
        %v2775 = vld [vmem:[%s2569 + $0x668] sm:$0xff]
        %v2776 = vld [vmem:[%s2569 + $0x670] sm:$0xff]
        %v2777 = vld [vmem:[%s2569 + $0x678] sm:$0xff]
        %v2778 = vld [vmem:[%s2569 + $0x680] sm:$0xff]
        %v2779 = vld [vmem:[%s2569 + $0x688] sm:$0xff]
        %v2780 = vld [vmem:[%s2569 + $0x690] sm:$0xff]
        %v2781 = vld [vmem:[%s2569 + $0x698] sm:$0xff]
        %v2782 = vld [vmem:[%s2569 + $0x6a0] sm:$0xff]
        %v2783 = vld [vmem:[%s2569 + $0x6a8] sm:$0xff]
        %v2784 = vld [vmem:[%s2569 + $0x6b0] sm:$0xff]
        %v2785 = vld [vmem:[%s2569 + $0x6b8] sm:$0xff]
        %v2786 = vld [vmem:[%s2569 + $0x6c0] sm:$0xff]
        %v2787 = vld [vmem:[%s2569 + $0x6c8] sm:$0xff]
        %v2788 = vld [vmem:[%s2569 + $0x6d0] sm:$0xff]
        %v2789 = vld [vmem:[%s2569 + $0x6d8] sm:$0xff]
        %v2790 = vld [vmem:[%s2569 + $0x6e0] sm:$0xff]
        %v2791 = vld [vmem:[%s2569 + $0x6e8] sm:$0xff]
        %v2792 = vld [vmem:[%s2569 + $0x6f0] sm:$0xff]
        %v2793 = vld [vmem:[%s2569 + $0x6f8] sm:$0xff]
        %v2794 = vld [vmem:[%s2569 + $0x700] sm:$0xff]
        %v2795 = vld [vmem:[%s2569 + $0x708] sm:$0xff]
        %v2796 = vld [vmem:[%s2569 + $0x710] sm:$0xff]
        %v2797 = vld [vmem:[%s2569 + $0x718] sm:$0xff]
        %v2798 = vld [vmem:[%s2569 + $0x720] sm:$0xff]
        %v2799 = vld [vmem:[%s2569 + $0x728] sm:$0xff]
        %v2800 = vld [vmem:[%s2569 + $0x730] sm:$0xff]
        %v2801 = vld [vmem:[%s2569 + $0x738] sm:$0xff]
        %v2802 = vld [vmem:[%s2569 + $0x740] sm:$0xff]
        %v2803 = vld [vmem:[%s2569 + $0x748] sm:$0xff]
        %v2804 = vld [vmem:[%s2569 + $0x750] sm:$0xff]
        %v2805 = vld [vmem:[%s2569 + $0x758] sm:$0xff]
        %v2806 = vld [vmem:[%s2569 + $0x760] sm:$0xff]
        %v2807 = vld [vmem:[%s2569 + $0x768] sm:$0xff]
        %v2808 = vld [vmem:[%s2569 + $0x770] sm:$0xff]
        %v2809 = vld [vmem:[%s2569 + $0x778] sm:$0xff]
        %v2810 = vld [vmem:[%s2569 + $0x780] sm:$0xff]
        %v2811 = vld [vmem:[%s2569 + $0x788] sm:$0xff]
        %v2812 = vld [vmem:[%s2569 + $0x790] sm:$0xff]
        %v2813 = vld [vmem:[%s2569 + $0x798] sm:$0xff]
        %v2814 = vld [vmem:[%s2569 + $0x7a0] sm:$0xff]
        %v2815 = vld [vmem:[%s2569 + $0x7a8] sm:$0xff]
        %v2816 = vld [vmem:[%s2569 + $0x7b0] sm:$0xff]
        %v2817 = vld [vmem:[%s2569 + $0x7b8] sm:$0xff]
        %v2818 = vld [vmem:[%s2569 + $0x7c0] sm:$0xff]
        %v2819 = vld [vmem:[%s2569 + $0x7c8] sm:$0xff]
        %v2820 = vld [vmem:[%s2569 + $0x7d0] sm:$0xff]
        %v2821 = vld [vmem:[%s2569 + $0x7d8] sm:$0xff]
        %v2822 = vld [vmem:[%s2569 + $0x7e0] sm:$0xff]
        %v2823 = vld [vmem:[%s2569 + $0x7e8] sm:$0xff]
        %v2824 = vld [vmem:[%s2569 + $0x7f0] sm:$0xff]
        %v2825 = vld [vmem:[%s2569 + $0x7f8] sm:$0xff]
        %v2826 = vld [vmem:[%s2569 + $0x800] sm:$0xff]
        %v2827 = vld [vmem:[%s2569 + $0x808] sm:$0xff]
        %v2828 = vld [vmem:[%s2569 + $0x810] sm:$0xff]
        %v2829 = vld [vmem:[%s2569 + $0x818] sm:$0xff]
        %v2830 = vld [vmem:[%s2569 + $0x820] sm:$0xff]
        %v2831 = vld [vmem:[%s2569 + $0x828] sm:$0xff]
        %v2832 = vld [vmem:[%s2569 + $0x830] sm:$0xff]
        %v2833 = vld [vmem:[%s2569 + $0x838] sm:$0xff]
        %v2834 = vld [vmem:[%s2569 + $0x840] sm:$0xff]
        %v2835 = vld [vmem:[%s2569 + $0x848] sm:$0xff]
        %v2836 = vld [vmem:[%s2569 + $0x850] sm:$0xff]
        %v2837 = vld [vmem:[%s2569 + $0x858] sm:$0xff]
        %v2838 = vld [vmem:[%s2569 + $0x860] sm:$0xff]
        %v2839 = vld [vmem:[%s2569 + $0x868] sm:$0xff]
        %v2840 = vld [vmem:[%s2569 + $0x870] sm:$0xff]
        %v2841 = vld [vmem:[%s2569 + $0x878] sm:$0xff]
        %v2842 = vld [vmem:[%s2569 + $0x880] sm:$0xff]
        %v2843 = vld [vmem:[%s2569 + $0x888] sm:$0xff]
        %v2844 = vld [vmem:[%s2569 + $0x890] sm:$0xff]
        %v2845 = vld [vmem:[%s2569 + $0x898] sm:$0xff]
        %v2846 = vld [vmem:[%s2569 + $0x8a0] sm:$0xff]
        %v2847 = vld [vmem:[%s2569 + $0x8a8] sm:$0xff]
        %v2848 = vld [vmem:[%s2569 + $0x8b0] sm:$0xff]
        %v2849 = vld [vmem:[%s2569 + $0x8b8] sm:$0xff]
        %v2850 = vld [vmem:[%s2569 + $0x8c0] sm:$0xff]
        %v2851 = vld [vmem:[%s2569 + $0x8c8] sm:$0xff]
        %v2852 = vld [vmem:[%s2569 + $0x8d0] sm:$0xff]
        %v2853 = vld [vmem:[%s2569 + $0x8d8] sm:$0xff]
        %v2854 = vld [vmem:[%s2569 + $0x8e0] sm:$0xff]
        %v2855 = vld [vmem:[%s2569 + $0x8e8] sm:$0xff]
        %v2856 = vld [vmem:[%s2569 + $0x8f0] sm:$0xff]
        %v2857 = vld [vmem:[%s2569 + $0x8f8] sm:$0xff]
        %s2858 = smul.u32 %s407, 6
        %s2859 = scalar_lea.vmem %s7, %s2858
        %v2860 = vld [vmem:[%s2859] sm:$0x3f]
        %v2862 = vlaneseq
        %v2863 = vshrl.u32 %v2862, 7
        %v2864 = vsub.s32 0, %v2863
        %v2865 = vrot.slane %v2860, %v2864
        %v2866 = vlaneseq
        %v2867 = vshrl.u32 %v2866, 7
        %v2868 = vsub.s32 1, %v2867
        %v2869 = vrot.slane %v2860, %v2868
        %v2870 = vlaneseq
        %v2871 = vshrl.u32 %v2870, 7
        %v2872 = vsub.s32 2, %v2871
        %v2873 = vrot.slane %v2860, %v2872
        %v2874 = vlaneseq
        %v2875 = vshrl.u32 %v2874, 7
        %v2876 = vsub.s32 3, %v2875
        %v2877 = vrot.slane %v2860, %v2876
        %v2878 = vlaneseq
        %v2879 = vshrl.u32 %v2878, 7
        %v2880 = vsub.s32 4, %v2879
        %v2881 = vrot.slane %v2860, %v2880
        %v2882 = vlaneseq
        %v2883 = vshrl.u32 %v2882, 7
        %v2884 = vsub.s32 5, %v2883
        %v2885 = vrot.slane %v2860, %v2884
        %v3180 = vunpack.c.l.b16 %v2570
        %v3181 = vunpack.c.h.b16 %v2570
        %v3182 = vunpack.c.l.b16 %v2571
        %v3183 = vunpack.c.h.b16 %v2571
        %v3184 = vunpack.c.l.b16 %v2572
        %v3185 = vunpack.c.h.b16 %v2572
        %v3186 = vunpack.c.l.b16 %v2573
        %v3187 = vunpack.c.h.b16 %v2573
        %v3188 = vunpack.c.l.b16 %v2574
        %v3189 = vunpack.c.h.b16 %v2574
        %v3190 = vunpack.c.l.b16 %v2575
        %v3191 = vunpack.c.h.b16 %v2575
        %v3192 = vunpack.c.l.b16 %v2576
        %v3193 = vunpack.c.h.b16 %v2576
        %v3194 = vunpack.c.l.b16 %v2577
        %v3195 = vunpack.c.h.b16 %v2577
        %v3196 = vunpack.c.l.b16 %v2578
        %v3197 = vunpack.c.h.b16 %v2578
        %v3198 = vunpack.c.l.b16 %v2579
        %v3199 = vunpack.c.h.b16 %v2579
        %v3200 = vunpack.c.l.b16 %v2580
        %v3201 = vunpack.c.h.b16 %v2580
        %v3202 = vunpack.c.l.b16 %v2581
        %v3203 = vunpack.c.h.b16 %v2581
        %v3204 = vunpack.c.l.b16 %v2582
        %v3205 = vunpack.c.h.b16 %v2582
        %v3206 = vunpack.c.l.b16 %v2583
        %v3207 = vunpack.c.h.b16 %v2583
        %v3208 = vunpack.c.l.b16 %v2584
        %v3209 = vunpack.c.h.b16 %v2584
        %v3210 = vunpack.c.l.b16 %v2585
        %v3211 = vunpack.c.h.b16 %v2585
        %v3212 = vunpack.c.l.b16 %v2586
        %v3213 = vunpack.c.h.b16 %v2586
        %v3214 = vunpack.c.l.b16 %v2587
        %v3215 = vunpack.c.h.b16 %v2587
        %v3216 = vunpack.c.l.b16 %v2588
        %v3217 = vunpack.c.h.b16 %v2588
        %v3218 = vunpack.c.l.b16 %v2589
        %v3219 = vunpack.c.h.b16 %v2589
        %v3220 = vunpack.c.l.b16 %v2590
        %v3221 = vunpack.c.h.b16 %v2590
        %v3222 = vunpack.c.l.b16 %v2591
        %v3223 = vunpack.c.h.b16 %v2591
        %v3224 = vunpack.c.l.b16 %v2592
        %v3225 = vunpack.c.h.b16 %v2592
        %v3226 = vunpack.c.l.b16 %v2593
        %v3227 = vunpack.c.h.b16 %v2593
        %v3228 = vunpack.c.l.b16 %v2594
        %v3229 = vunpack.c.h.b16 %v2594
        %v3230 = vunpack.c.l.b16 %v2595
        %v3231 = vunpack.c.h.b16 %v2595
        %v3232 = vunpack.c.l.b16 %v2596
        %v3233 = vunpack.c.h.b16 %v2596
        %v3234 = vunpack.c.l.b16 %v2597
        %v3235 = vunpack.c.h.b16 %v2597
        %v3236 = vunpack.c.l.b16 %v2598
        %v3237 = vunpack.c.h.b16 %v2598
        %v3238 = vunpack.c.l.b16 %v2599
        %v3239 = vunpack.c.h.b16 %v2599
        %v3240 = vunpack.c.l.b16 %v2600
        %v3241 = vunpack.c.h.b16 %v2600
        %v3242 = vunpack.c.l.b16 %v2601
        %v3243 = vunpack.c.h.b16 %v2601
        %v3244 = vunpack.c.l.b16 %v2602
        %v3245 = vunpack.c.h.b16 %v2602
        %v3246 = vunpack.c.l.b16 %v2603
        %v3247 = vunpack.c.h.b16 %v2603
        %v3248 = vunpack.c.l.b16 %v2604
        %v3249 = vunpack.c.h.b16 %v2604
        %v3250 = vunpack.c.l.b16 %v2605
        %v3251 = vunpack.c.h.b16 %v2605
        %v3252 = vunpack.c.l.b16 %v2606
        %v3253 = vunpack.c.h.b16 %v2606
        %v3254 = vunpack.c.l.b16 %v2607
        %v3255 = vunpack.c.h.b16 %v2607
        %v3256 = vunpack.c.l.b16 %v2608
        %v3257 = vunpack.c.h.b16 %v2608
        %v3258 = vunpack.c.l.b16 %v2609
        %v3259 = vunpack.c.h.b16 %v2609
        %v3260 = vunpack.c.l.b16 %v2610
        %v3261 = vunpack.c.h.b16 %v2610
        %v3262 = vunpack.c.l.b16 %v2611
        %v3263 = vunpack.c.h.b16 %v2611
        %v3264 = vunpack.c.l.b16 %v2612
        %v3265 = vunpack.c.h.b16 %v2612
        %v3266 = vunpack.c.l.b16 %v2613
        %v3267 = vunpack.c.h.b16 %v2613
        %v3268 = vunpack.c.l.b16 %v2614
        %v3269 = vunpack.c.h.b16 %v2614
        %v3270 = vunpack.c.l.b16 %v2615
        %v3271 = vunpack.c.h.b16 %v2615
        %v3272 = vunpack.c.l.b16 %v2616
        %v3273 = vunpack.c.h.b16 %v2616
        %v3274 = vunpack.c.l.b16 %v2617
        %v3275 = vunpack.c.h.b16 %v2617
        %v3276 = vunpack.c.l.b16 %v2618
        %v3277 = vunpack.c.h.b16 %v2618
        %v3278 = vunpack.c.l.b16 %v2619
        %v3279 = vunpack.c.h.b16 %v2619
        %v3280 = vunpack.c.l.b16 %v2620
        %v3281 = vunpack.c.h.b16 %v2620
        %v3282 = vunpack.c.l.b16 %v2621
        %v3283 = vunpack.c.h.b16 %v2621
        %v3284 = vunpack.c.l.b16 %v2622
        %v3285 = vunpack.c.h.b16 %v2622
        %v3286 = vunpack.c.l.b16 %v2623
        %v3287 = vunpack.c.h.b16 %v2623
        %v3288 = vunpack.c.l.b16 %v2624
        %v3289 = vunpack.c.h.b16 %v2624
        %v3290 = vunpack.c.l.b16 %v2625
        %v3291 = vunpack.c.h.b16 %v2625
        %v3292 = vunpack.c.l.b16 %v2626
        %v3293 = vunpack.c.h.b16 %v2626
        %v3294 = vunpack.c.l.b16 %v2627
        %v3295 = vunpack.c.h.b16 %v2627
        %v3296 = vunpack.c.l.b16 %v2628
        %v3297 = vunpack.c.h.b16 %v2628
        %v3298 = vunpack.c.l.b16 %v2629
        %v3299 = vunpack.c.h.b16 %v2629
        %v3300 = vunpack.c.l.b16 %v2630
        %v3301 = vunpack.c.h.b16 %v2630
        %v3302 = vunpack.c.l.b16 %v2631
        %v3303 = vunpack.c.h.b16 %v2631
        %v3304 = vunpack.c.l.b16 %v2632
        %v3305 = vunpack.c.h.b16 %v2632
        %v3306 = vunpack.c.l.b16 %v2633
        %v3307 = vunpack.c.h.b16 %v2633
        %v3308 = vunpack.c.l.b16 %v2634
        %v3309 = vunpack.c.h.b16 %v2634
        %v3310 = vunpack.c.l.b16 %v2635
        %v3311 = vunpack.c.h.b16 %v2635
        %v3312 = vunpack.c.l.b16 %v2636
        %v3313 = vunpack.c.h.b16 %v2636
        %v3314 = vunpack.c.l.b16 %v2637
        %v3315 = vunpack.c.h.b16 %v2637
        %v3316 = vunpack.c.l.b16 %v2638
        %v3317 = vunpack.c.h.b16 %v2638
        %v3318 = vunpack.c.l.b16 %v2639
        %v3319 = vunpack.c.h.b16 %v2639
        %v3320 = vunpack.c.l.b16 %v2640
        %v3321 = vunpack.c.h.b16 %v2640
        %v3322 = vunpack.c.l.b16 %v2641
        %v3323 = vunpack.c.h.b16 %v2641
        %v3324 = vunpack.c.l.b16 %v2642
        %v3325 = vunpack.c.h.b16 %v2642
        %v3326 = vunpack.c.l.b16 %v2643
        %v3327 = vunpack.c.h.b16 %v2643
        %v3328 = vunpack.c.l.b16 %v2644
        %v3329 = vunpack.c.h.b16 %v2644
        %v3330 = vunpack.c.l.b16 %v2645
        %v3331 = vunpack.c.h.b16 %v2645
        %v3332 = vunpack.c.l.b16 %v2646
        %v3333 = vunpack.c.h.b16 %v2646
        %v3334 = vunpack.c.l.b16 %v2647
        %v3335 = vunpack.c.h.b16 %v2647
        %v3336 = vunpack.c.l.b16 %v2648
        %v3337 = vunpack.c.h.b16 %v2648
        %v3338 = vunpack.c.l.b16 %v2649
        %v3339 = vunpack.c.h.b16 %v2649
        %v3340 = vunpack.c.l.b16 %v2650
        %v3341 = vunpack.c.h.b16 %v2650
        %v3342 = vunpack.c.l.b16 %v2651
        %v3343 = vunpack.c.h.b16 %v2651
        %v3344 = vunpack.c.l.b16 %v2652
        %v3345 = vunpack.c.h.b16 %v2652
        %v3346 = vunpack.c.l.b16 %v2653
        %v3347 = vunpack.c.h.b16 %v2653
        %v3348 = vunpack.c.l.b16 %v2654
        %v3349 = vunpack.c.h.b16 %v2654
        %v3350 = vunpack.c.l.b16 %v2655
        %v3351 = vunpack.c.h.b16 %v2655
        %v3352 = vunpack.c.l.b16 %v2656
        %v3353 = vunpack.c.h.b16 %v2656
        %v3354 = vunpack.c.l.b16 %v2657
        %v3355 = vunpack.c.h.b16 %v2657
        %v3356 = vunpack.c.l.b16 %v2658
        %v3357 = vunpack.c.h.b16 %v2658
        %v3358 = vunpack.c.l.b16 %v2659
        %v3359 = vunpack.c.h.b16 %v2659
        %v3360 = vunpack.c.l.b16 %v2660
        %v3361 = vunpack.c.h.b16 %v2660
        %v3362 = vunpack.c.l.b16 %v2661
        %v3363 = vunpack.c.h.b16 %v2661
        %v3364 = vunpack.c.l.b16 %v2662
        %v3365 = vunpack.c.h.b16 %v2662
        %v3366 = vunpack.c.l.b16 %v2663
        %v3367 = vunpack.c.h.b16 %v2663
        %v3368 = vunpack.c.l.b16 %v2664
        %v3369 = vunpack.c.h.b16 %v2664
        %v3370 = vunpack.c.l.b16 %v2665
        %v3371 = vunpack.c.h.b16 %v2665
        %v3372 = vunpack.c.l.b16 %v2666
        %v3373 = vunpack.c.h.b16 %v2666
        %v3374 = vunpack.c.l.b16 %v2667
        %v3375 = vunpack.c.h.b16 %v2667
        %v3376 = vunpack.c.l.b16 %v2668
        %v3377 = vunpack.c.h.b16 %v2668
        %v3378 = vunpack.c.l.b16 %v2669
        %v3379 = vunpack.c.h.b16 %v2669
        %v3380 = vunpack.c.l.b16 %v2670
        %v3381 = vunpack.c.h.b16 %v2670
        %v3382 = vunpack.c.l.b16 %v2671
        %v3383 = vunpack.c.h.b16 %v2671
        %v3384 = vunpack.c.l.b16 %v2672
        %v3385 = vunpack.c.h.b16 %v2672
        %v3386 = vunpack.c.l.b16 %v2673
        %v3387 = vunpack.c.h.b16 %v2673
        %v3388 = vunpack.c.l.b16 %v2674
        %v3389 = vunpack.c.h.b16 %v2674
        %v3390 = vunpack.c.l.b16 %v2675
        %v3391 = vunpack.c.h.b16 %v2675
        %v3392 = vunpack.c.l.b16 %v2676
        %v3393 = vunpack.c.h.b16 %v2676
        %v3394 = vunpack.c.l.b16 %v2677
        %v3395 = vunpack.c.h.b16 %v2677
        %v3396 = vunpack.c.l.b16 %v2678
        %v3397 = vunpack.c.h.b16 %v2678
        %v3398 = vunpack.c.l.b16 %v2679
        %v3399 = vunpack.c.h.b16 %v2679
        %v3400 = vunpack.c.l.b16 %v2680
        %v3401 = vunpack.c.h.b16 %v2680
        %v3402 = vunpack.c.l.b16 %v2681
        %v3403 = vunpack.c.h.b16 %v2681
        %v3404 = vunpack.c.l.b16 %v2682
        %v3405 = vunpack.c.h.b16 %v2682
        %v3406 = vunpack.c.l.b16 %v2683
        %v3407 = vunpack.c.h.b16 %v2683
        %v3408 = vunpack.c.l.b16 %v2684
        %v3409 = vunpack.c.h.b16 %v2684
        %v3410 = vunpack.c.l.b16 %v2685
        %v3411 = vunpack.c.h.b16 %v2685
        %v3412 = vunpack.c.l.b16 %v2686
        %v3413 = vunpack.c.h.b16 %v2686
        %v3414 = vunpack.c.l.b16 %v2687
        %v3415 = vunpack.c.h.b16 %v2687
        %v3416 = vunpack.c.l.b16 %v2688
        %v3417 = vunpack.c.h.b16 %v2688
        %v3418 = vunpack.c.l.b16 %v2689
        %v3419 = vunpack.c.h.b16 %v2689
        %v3420 = vunpack.c.l.b16 %v2690
        %v3421 = vunpack.c.h.b16 %v2690
        %v3422 = vunpack.c.l.b16 %v2691
        %v3423 = vunpack.c.h.b16 %v2691
        %v3424 = vunpack.c.l.b16 %v2692
        %v3425 = vunpack.c.h.b16 %v2692
        %v3426 = vunpack.c.l.b16 %v2693
        %v3427 = vunpack.c.h.b16 %v2693
        %v3428 = vunpack.c.l.b16 %v2694
        %v3429 = vunpack.c.h.b16 %v2694
        %v3430 = vunpack.c.l.b16 %v2695
        %v3431 = vunpack.c.h.b16 %v2695
        %v3432 = vunpack.c.l.b16 %v2696
        %v3433 = vunpack.c.h.b16 %v2696
        %v3434 = vunpack.c.l.b16 %v2697
        %v3435 = vunpack.c.h.b16 %v2697
        %v3436 = vunpack.c.l.b16 %v2698
        %v3437 = vunpack.c.h.b16 %v2698
        %v3438 = vunpack.c.l.b16 %v2699
        %v3439 = vunpack.c.h.b16 %v2699
        %v3440 = vunpack.c.l.b16 %v2700
        %v3441 = vunpack.c.h.b16 %v2700
        %v3442 = vunpack.c.l.b16 %v2701
        %v3443 = vunpack.c.h.b16 %v2701
        %v3444 = vunpack.c.l.b16 %v2702
        %v3445 = vunpack.c.h.b16 %v2702
        %v3446 = vunpack.c.l.b16 %v2703
        %v3447 = vunpack.c.h.b16 %v2703
        %v3448 = vunpack.c.l.b16 %v2704
        %v3449 = vunpack.c.h.b16 %v2704
        %v3450 = vunpack.c.l.b16 %v2705
        %v3451 = vunpack.c.h.b16 %v2705
        %v3452 = vunpack.c.l.b16 %v2706
        %v3453 = vunpack.c.h.b16 %v2706
        %v3454 = vunpack.c.l.b16 %v2707
        %v3455 = vunpack.c.h.b16 %v2707
        %v3456 = vunpack.c.l.b16 %v2708
        %v3457 = vunpack.c.h.b16 %v2708
        %v3458 = vunpack.c.l.b16 %v2709
        %v3459 = vunpack.c.h.b16 %v2709
        %v3460 = vunpack.c.l.b16 %v2710
        %v3461 = vunpack.c.h.b16 %v2710
        %v3462 = vunpack.c.l.b16 %v2711
        %v3463 = vunpack.c.h.b16 %v2711
        %v3464 = vunpack.c.l.b16 %v2712
        %v3465 = vunpack.c.h.b16 %v2712
        %v3466 = vunpack.c.l.b16 %v2713
        %v3467 = vunpack.c.h.b16 %v2713
        %v3468 = vunpack.c.l.b16 %v2714
        %v3469 = vunpack.c.h.b16 %v2714
        %v3470 = vunpack.c.l.b16 %v2715
        %v3471 = vunpack.c.h.b16 %v2715
        %v3472 = vunpack.c.l.b16 %v2716
        %v3473 = vunpack.c.h.b16 %v2716
        %v3474 = vunpack.c.l.b16 %v2717
        %v3475 = vunpack.c.h.b16 %v2717
        %v3476 = vunpack.c.l.b16 %v2718
        %v3477 = vunpack.c.h.b16 %v2718
        %v3478 = vunpack.c.l.b16 %v2719
        %v3479 = vunpack.c.h.b16 %v2719
        %v3480 = vunpack.c.l.b16 %v2720
        %v3481 = vunpack.c.h.b16 %v2720
        %v3482 = vunpack.c.l.b16 %v2721
        %v3483 = vunpack.c.h.b16 %v2721
        %v3484 = vunpack.c.l.b16 %v2722
        %v3485 = vunpack.c.h.b16 %v2722
        %v3486 = vunpack.c.l.b16 %v2723
        %v3487 = vunpack.c.h.b16 %v2723
        %v3488 = vunpack.c.l.b16 %v2724
        %v3489 = vunpack.c.h.b16 %v2724
        %v3490 = vunpack.c.l.b16 %v2725
        %v3491 = vunpack.c.h.b16 %v2725
        %v3492 = vunpack.c.l.b16 %v2726
        %v3493 = vunpack.c.h.b16 %v2726
        %v3494 = vunpack.c.l.b16 %v2727
        %v3495 = vunpack.c.h.b16 %v2727
        %v3496 = vunpack.c.l.b16 %v2728
        %v3497 = vunpack.c.h.b16 %v2728
        %v3498 = vunpack.c.l.b16 %v2729
        %v3499 = vunpack.c.h.b16 %v2729
        %v3500 = vunpack.c.l.b16 %v2730
        %v3501 = vunpack.c.h.b16 %v2730
        %v3502 = vunpack.c.l.b16 %v2731
        %v3503 = vunpack.c.h.b16 %v2731
        %v3504 = vunpack.c.l.b16 %v2732
        %v3505 = vunpack.c.h.b16 %v2732
        %v3506 = vunpack.c.l.b16 %v2733
        %v3507 = vunpack.c.h.b16 %v2733
        %v3508 = vunpack.c.l.b16 %v2734
        %v3509 = vunpack.c.h.b16 %v2734
        %v3510 = vunpack.c.l.b16 %v2735
        %v3511 = vunpack.c.h.b16 %v2735
        %v3512 = vunpack.c.l.b16 %v2736
        %v3513 = vunpack.c.h.b16 %v2736
        %v3514 = vunpack.c.l.b16 %v2737
        %v3515 = vunpack.c.h.b16 %v2737
        %v3516 = vunpack.c.l.b16 %v2738
        %v3517 = vunpack.c.h.b16 %v2738
        %v3518 = vunpack.c.l.b16 %v2739
        %v3519 = vunpack.c.h.b16 %v2739
        %v3520 = vunpack.c.l.b16 %v2740
        %v3521 = vunpack.c.h.b16 %v2740
        %v3522 = vunpack.c.l.b16 %v2741
        %v3523 = vunpack.c.h.b16 %v2741
        %v3524 = vunpack.c.l.b16 %v2742
        %v3525 = vunpack.c.h.b16 %v2742
        %v3526 = vunpack.c.l.b16 %v2743
        %v3527 = vunpack.c.h.b16 %v2743
        %v3528 = vunpack.c.l.b16 %v2744
        %v3529 = vunpack.c.h.b16 %v2744
        %v3530 = vunpack.c.l.b16 %v2745
        %v3531 = vunpack.c.h.b16 %v2745
        %v3532 = vunpack.c.l.b16 %v2746
        %v3533 = vunpack.c.h.b16 %v2746
        %v3534 = vunpack.c.l.b16 %v2747
        %v3535 = vunpack.c.h.b16 %v2747
        %v3536 = vunpack.c.l.b16 %v2748
        %v3537 = vunpack.c.h.b16 %v2748
        %v3538 = vunpack.c.l.b16 %v2749
        %v3539 = vunpack.c.h.b16 %v2749
        %v3540 = vunpack.c.l.b16 %v2750
        %v3541 = vunpack.c.h.b16 %v2750
        %v3542 = vunpack.c.l.b16 %v2751
        %v3543 = vunpack.c.h.b16 %v2751
        %v3544 = vunpack.c.l.b16 %v2752
        %v3545 = vunpack.c.h.b16 %v2752
        %v3546 = vunpack.c.l.b16 %v2753
        %v3547 = vunpack.c.h.b16 %v2753
        %v3548 = vunpack.c.l.b16 %v2754
        %v3549 = vunpack.c.h.b16 %v2754
        %v3550 = vunpack.c.l.b16 %v2755
        %v3551 = vunpack.c.h.b16 %v2755
        %v3552 = vunpack.c.l.b16 %v2756
        %v3553 = vunpack.c.h.b16 %v2756
        %v3554 = vunpack.c.l.b16 %v2757
        %v3555 = vunpack.c.h.b16 %v2757
        %v3556 = vunpack.c.l.b16 %v2758
        %v3557 = vunpack.c.h.b16 %v2758
        %v3558 = vunpack.c.l.b16 %v2759
        %v3559 = vunpack.c.h.b16 %v2759
        %v3560 = vunpack.c.l.b16 %v2760
        %v3561 = vunpack.c.h.b16 %v2760
        %v3562 = vunpack.c.l.b16 %v2761
        %v3563 = vunpack.c.h.b16 %v2761
        %v3564 = vunpack.c.l.b16 %v2762
        %v3565 = vunpack.c.h.b16 %v2762
        %v3566 = vunpack.c.l.b16 %v2763
        %v3567 = vunpack.c.h.b16 %v2763
        %v3568 = vunpack.c.l.b16 %v2764
        %v3569 = vunpack.c.h.b16 %v2764
        %v3570 = vunpack.c.l.b16 %v2765
        %v3571 = vunpack.c.h.b16 %v2765
        %v3572 = vunpack.c.l.b16 %v2766
        %v3573 = vunpack.c.h.b16 %v2766
        %v3574 = vunpack.c.l.b16 %v2767
        %v3575 = vunpack.c.h.b16 %v2767
        %v3576 = vunpack.c.l.b16 %v2768
        %v3577 = vunpack.c.h.b16 %v2768
        %v3578 = vunpack.c.l.b16 %v2769
        %v3579 = vunpack.c.h.b16 %v2769
        %v3580 = vunpack.c.l.b16 %v2770
        %v3581 = vunpack.c.h.b16 %v2770
        %v3582 = vunpack.c.l.b16 %v2771
        %v3583 = vunpack.c.h.b16 %v2771
        %v3584 = vunpack.c.l.b16 %v2772
        %v3585 = vunpack.c.h.b16 %v2772
        %v3586 = vunpack.c.l.b16 %v2773
        %v3587 = vunpack.c.h.b16 %v2773
        %v3588 = vunpack.c.l.b16 %v2774
        %v3589 = vunpack.c.h.b16 %v2774
        %v3590 = vunpack.c.l.b16 %v2775
        %v3591 = vunpack.c.h.b16 %v2775
        %v3592 = vunpack.c.l.b16 %v2776
        %v3593 = vunpack.c.h.b16 %v2776
        %v3594 = vunpack.c.l.b16 %v2777
        %v3595 = vunpack.c.h.b16 %v2777
        %v3596 = vunpack.c.l.b16 %v2778
        %v3597 = vunpack.c.h.b16 %v2778
        %v3598 = vunpack.c.l.b16 %v2779
        %v3599 = vunpack.c.h.b16 %v2779
        %v3600 = vunpack.c.l.b16 %v2780
        %v3601 = vunpack.c.h.b16 %v2780
        %v3602 = vunpack.c.l.b16 %v2781
        %v3603 = vunpack.c.h.b16 %v2781
        %v3604 = vunpack.c.l.b16 %v2782
        %v3605 = vunpack.c.h.b16 %v2782
        %v3606 = vunpack.c.l.b16 %v2783
        %v3607 = vunpack.c.h.b16 %v2783
        %v3608 = vunpack.c.l.b16 %v2784
        %v3609 = vunpack.c.h.b16 %v2784
        %v3610 = vunpack.c.l.b16 %v2785
        %v3611 = vunpack.c.h.b16 %v2785
        %v3612 = vunpack.c.l.b16 %v2786
        %v3613 = vunpack.c.h.b16 %v2786
        %v3614 = vunpack.c.l.b16 %v2787
        %v3615 = vunpack.c.h.b16 %v2787
        %v3616 = vunpack.c.l.b16 %v2788
        %v3617 = vunpack.c.h.b16 %v2788
        %v3618 = vunpack.c.l.b16 %v2789
        %v3619 = vunpack.c.h.b16 %v2789
        %v3620 = vunpack.c.l.b16 %v2790
        %v3621 = vunpack.c.h.b16 %v2790
        %v3622 = vunpack.c.l.b16 %v2791
        %v3623 = vunpack.c.h.b16 %v2791
        %v3624 = vunpack.c.l.b16 %v2792
        %v3625 = vunpack.c.h.b16 %v2792
        %v3626 = vunpack.c.l.b16 %v2793
        %v3627 = vunpack.c.h.b16 %v2793
        %v3628 = vunpack.c.l.b16 %v2794
        %v3629 = vunpack.c.h.b16 %v2794
        %v3630 = vunpack.c.l.b16 %v2795
        %v3631 = vunpack.c.h.b16 %v2795
        %v3632 = vunpack.c.l.b16 %v2796
        %v3633 = vunpack.c.h.b16 %v2796
        %v3634 = vunpack.c.l.b16 %v2797
        %v3635 = vunpack.c.h.b16 %v2797
        %v3636 = vunpack.c.l.b16 %v2798
        %v3637 = vunpack.c.h.b16 %v2798
        %v3638 = vunpack.c.l.b16 %v2799
        %v3639 = vunpack.c.h.b16 %v2799
        %v3640 = vunpack.c.l.b16 %v2800
        %v3641 = vunpack.c.h.b16 %v2800
        %v3642 = vunpack.c.l.b16 %v2801
        %v3643 = vunpack.c.h.b16 %v2801
        %v3644 = vunpack.c.l.b16 %v2802
        %v3645 = vunpack.c.h.b16 %v2802
        %v3646 = vunpack.c.l.b16 %v2803
        %v3647 = vunpack.c.h.b16 %v2803
        %v3648 = vunpack.c.l.b16 %v2804
        %v3649 = vunpack.c.h.b16 %v2804
        %v3650 = vunpack.c.l.b16 %v2805
        %v3651 = vunpack.c.h.b16 %v2805
        %v3652 = vunpack.c.l.b16 %v2806
        %v3653 = vunpack.c.h.b16 %v2806
        %v3654 = vunpack.c.l.b16 %v2807
        %v3655 = vunpack.c.h.b16 %v2807
        %v3656 = vunpack.c.l.b16 %v2808
        %v3657 = vunpack.c.h.b16 %v2808
        %v3658 = vunpack.c.l.b16 %v2809
        %v3659 = vunpack.c.h.b16 %v2809
        %v3660 = vunpack.c.l.b16 %v2810
        %v3661 = vunpack.c.h.b16 %v2810
        %v3662 = vunpack.c.l.b16 %v2811
        %v3663 = vunpack.c.h.b16 %v2811
        %v3664 = vunpack.c.l.b16 %v2812
        %v3665 = vunpack.c.h.b16 %v2812
        %v3666 = vunpack.c.l.b16 %v2813
        %v3667 = vunpack.c.h.b16 %v2813
        %v3668 = vunpack.c.l.b16 %v2814
        %v3669 = vunpack.c.h.b16 %v2814
        %v3670 = vunpack.c.l.b16 %v2815
        %v3671 = vunpack.c.h.b16 %v2815
        %v3672 = vunpack.c.l.b16 %v2816
        %v3673 = vunpack.c.h.b16 %v2816
        %v3674 = vunpack.c.l.b16 %v2817
        %v3675 = vunpack.c.h.b16 %v2817
        %v3676 = vunpack.c.l.b16 %v2818
        %v3677 = vunpack.c.h.b16 %v2818
        %v3678 = vunpack.c.l.b16 %v2819
        %v3679 = vunpack.c.h.b16 %v2819
        %v3680 = vunpack.c.l.b16 %v2820
        %v3681 = vunpack.c.h.b16 %v2820
        %v3682 = vunpack.c.l.b16 %v2821
        %v3683 = vunpack.c.h.b16 %v2821
        %v3684 = vunpack.c.l.b16 %v2822
        %v3685 = vunpack.c.h.b16 %v2822
        %v3686 = vunpack.c.l.b16 %v2823
        %v3687 = vunpack.c.h.b16 %v2823
        %v3688 = vunpack.c.l.b16 %v2824
        %v3689 = vunpack.c.h.b16 %v2824
        %v3690 = vunpack.c.l.b16 %v2825
        %v3691 = vunpack.c.h.b16 %v2825
        %v3692 = vunpack.c.l.b16 %v2826
        %v3693 = vunpack.c.h.b16 %v2826
        %v3694 = vunpack.c.l.b16 %v2827
        %v3695 = vunpack.c.h.b16 %v2827
        %v3696 = vunpack.c.l.b16 %v2828
        %v3697 = vunpack.c.h.b16 %v2828
        %v3698 = vunpack.c.l.b16 %v2829
        %v3699 = vunpack.c.h.b16 %v2829
        %v3700 = vunpack.c.l.b16 %v2830
        %v3701 = vunpack.c.h.b16 %v2830
        %v3702 = vunpack.c.l.b16 %v2831
        %v3703 = vunpack.c.h.b16 %v2831
        %v3704 = vunpack.c.l.b16 %v2832
        %v3705 = vunpack.c.h.b16 %v2832
        %v3706 = vunpack.c.l.b16 %v2833
        %v3707 = vunpack.c.h.b16 %v2833
        %v3708 = vunpack.c.l.b16 %v2834
        %v3709 = vunpack.c.h.b16 %v2834
        %v3710 = vunpack.c.l.b16 %v2835
        %v3711 = vunpack.c.h.b16 %v2835
        %v3712 = vunpack.c.l.b16 %v2836
        %v3713 = vunpack.c.h.b16 %v2836
        %v3714 = vunpack.c.l.b16 %v2837
        %v3715 = vunpack.c.h.b16 %v2837
        %v3716 = vunpack.c.l.b16 %v2838
        %v3717 = vunpack.c.h.b16 %v2838
        %v3718 = vunpack.c.l.b16 %v2839
        %v3719 = vunpack.c.h.b16 %v2839
        %v3720 = vunpack.c.l.b16 %v2840
        %v3721 = vunpack.c.h.b16 %v2840
        %v3722 = vunpack.c.l.b16 %v2841
        %v3723 = vunpack.c.h.b16 %v2841
        %v3724 = vunpack.c.l.b16 %v2842
        %v3725 = vunpack.c.h.b16 %v2842
        %v3726 = vunpack.c.l.b16 %v2843
        %v3727 = vunpack.c.h.b16 %v2843
        %v3728 = vunpack.c.l.b16 %v2844
        %v3729 = vunpack.c.h.b16 %v2844
        %v3730 = vunpack.c.l.b16 %v2845
        %v3731 = vunpack.c.h.b16 %v2845
        %v3732 = vunpack.c.l.b16 %v2846
        %v3733 = vunpack.c.h.b16 %v2846
        %v3734 = vunpack.c.l.b16 %v2847
        %v3735 = vunpack.c.h.b16 %v2847
        %v3736 = vunpack.c.l.b16 %v2848
        %v3737 = vunpack.c.h.b16 %v2848
        %v3738 = vunpack.c.l.b16 %v2849
        %v3739 = vunpack.c.h.b16 %v2849
        %v3740 = vunpack.c.l.b16 %v2850
        %v3741 = vunpack.c.h.b16 %v2850
        %v3742 = vunpack.c.l.b16 %v2851
        %v3743 = vunpack.c.h.b16 %v2851
        %v3744 = vunpack.c.l.b16 %v2852
        %v3745 = vunpack.c.h.b16 %v2852
        %v3746 = vunpack.c.l.b16 %v2853
        %v3747 = vunpack.c.h.b16 %v2853
        %v3748 = vunpack.c.l.b16 %v2854
        %v3749 = vunpack.c.h.b16 %v2854
        %v3750 = vunpack.c.l.b16 %v2855
        %v3751 = vunpack.c.h.b16 %v2855
        %v3752 = vunpack.c.l.b16 %v2856
        %v3753 = vunpack.c.h.b16 %v2856
        %v3754 = vunpack.c.l.b16 %v2857
        %v3755 = vunpack.c.h.b16 %v2857
        %v3756 = vpack.c.b16 %v3186, %v3180
        %v3757 = vpack.c.b16 %v3187, %v3181
        %v3758 = vpack.c.b16 %v3188, %v3182
        %v3759 = vpack.c.b16 %v3189, %v3183
        %v3760 = vpack.c.b16 %v3190, %v3184
        %v3761 = vpack.c.b16 %v3191, %v3185
        %v3762 = vpack.c.b16 %v3198, %v3192
        %v3763 = vpack.c.b16 %v3199, %v3193
        %v3764 = vpack.c.b16 %v3200, %v3194
        %v3765 = vpack.c.b16 %v3201, %v3195
        %v3766 = vpack.c.b16 %v3202, %v3196
        %v3767 = vpack.c.b16 %v3203, %v3197
        %v3768 = vpack.c.b16 %v3210, %v3204
        %v3769 = vpack.c.b16 %v3211, %v3205
        %v3770 = vpack.c.b16 %v3212, %v3206
        %v3771 = vpack.c.b16 %v3213, %v3207
        %v3772 = vpack.c.b16 %v3214, %v3208
        %v3773 = vpack.c.b16 %v3215, %v3209
        %v3774 = vpack.c.b16 %v3222, %v3216
        %v3775 = vpack.c.b16 %v3223, %v3217
        %v3776 = vpack.c.b16 %v3224, %v3218
        %v3777 = vpack.c.b16 %v3225, %v3219
        %v3778 = vpack.c.b16 %v3226, %v3220
        %v3779 = vpack.c.b16 %v3227, %v3221
        %v3780 = vpack.c.b16 %v3234, %v3228
        %v3781 = vpack.c.b16 %v3235, %v3229
        %v3782 = vpack.c.b16 %v3236, %v3230
        %v3783 = vpack.c.b16 %v3237, %v3231
        %v3784 = vpack.c.b16 %v3238, %v3232
        %v3785 = vpack.c.b16 %v3239, %v3233
        %v3786 = vpack.c.b16 %v3246, %v3240
        %v3787 = vpack.c.b16 %v3247, %v3241
        %v3788 = vpack.c.b16 %v3248, %v3242
        %v3789 = vpack.c.b16 %v3249, %v3243
        %v3790 = vpack.c.b16 %v3250, %v3244
        %v3791 = vpack.c.b16 %v3251, %v3245
        %v3792 = vpack.c.b16 %v3258, %v3252
        %v3793 = vpack.c.b16 %v3259, %v3253
        %v3794 = vpack.c.b16 %v3260, %v3254
        %v3795 = vpack.c.b16 %v3261, %v3255
        %v3796 = vpack.c.b16 %v3262, %v3256
        %v3797 = vpack.c.b16 %v3263, %v3257
        %v3798 = vpack.c.b16 %v3270, %v3264
        %v3799 = vpack.c.b16 %v3271, %v3265
        %v3800 = vpack.c.b16 %v3272, %v3266
        %v3801 = vpack.c.b16 %v3273, %v3267
        %v3802 = vpack.c.b16 %v3274, %v3268
        %v3803 = vpack.c.b16 %v3275, %v3269
        %v3804 = vpack.c.b16 %v3282, %v3276
        %v3805 = vpack.c.b16 %v3283, %v3277
        %v3806 = vpack.c.b16 %v3284, %v3278
        %v3807 = vpack.c.b16 %v3285, %v3279
        %v3808 = vpack.c.b16 %v3286, %v3280
        %v3809 = vpack.c.b16 %v3287, %v3281
        %v3810 = vpack.c.b16 %v3294, %v3288
        %v3811 = vpack.c.b16 %v3295, %v3289
        %v3812 = vpack.c.b16 %v3296, %v3290
        %v3813 = vpack.c.b16 %v3297, %v3291
        %v3814 = vpack.c.b16 %v3298, %v3292
        %v3815 = vpack.c.b16 %v3299, %v3293
        %v3816 = vpack.c.b16 %v3306, %v3300
        %v3817 = vpack.c.b16 %v3307, %v3301
        %v3818 = vpack.c.b16 %v3308, %v3302
        %v3819 = vpack.c.b16 %v3309, %v3303
        %v3820 = vpack.c.b16 %v3310, %v3304
        %v3821 = vpack.c.b16 %v3311, %v3305
        %v3822 = vpack.c.b16 %v3318, %v3312
        %v3823 = vpack.c.b16 %v3319, %v3313
        %v3824 = vpack.c.b16 %v3320, %v3314
        %v3825 = vpack.c.b16 %v3321, %v3315
        %v3826 = vpack.c.b16 %v3322, %v3316
        %v3827 = vpack.c.b16 %v3323, %v3317
        %v3828 = vpack.c.b16 %v3330, %v3324
        %v3829 = vpack.c.b16 %v3331, %v3325
        %v3830 = vpack.c.b16 %v3332, %v3326
        %v3831 = vpack.c.b16 %v3333, %v3327
        %v3832 = vpack.c.b16 %v3334, %v3328
        %v3833 = vpack.c.b16 %v3335, %v3329
        %v3834 = vpack.c.b16 %v3342, %v3336
        %v3835 = vpack.c.b16 %v3343, %v3337
        %v3836 = vpack.c.b16 %v3344, %v3338
        %v3837 = vpack.c.b16 %v3345, %v3339
        %v3838 = vpack.c.b16 %v3346, %v3340
        %v3839 = vpack.c.b16 %v3347, %v3341
        %v3840 = vpack.c.b16 %v3354, %v3348
        %v3841 = vpack.c.b16 %v3355, %v3349
        %v3842 = vpack.c.b16 %v3356, %v3350
        %v3843 = vpack.c.b16 %v3357, %v3351
        %v3844 = vpack.c.b16 %v3358, %v3352
        %v3845 = vpack.c.b16 %v3359, %v3353
        %v3846 = vpack.c.b16 %v3366, %v3360
        %v3847 = vpack.c.b16 %v3367, %v3361
        %v3848 = vpack.c.b16 %v3368, %v3362
        %v3849 = vpack.c.b16 %v3369, %v3363
        %v3850 = vpack.c.b16 %v3370, %v3364
        %v3851 = vpack.c.b16 %v3371, %v3365
        %v3852 = vpack.c.b16 %v3378, %v3372
        %v3853 = vpack.c.b16 %v3379, %v3373
        %v3854 = vpack.c.b16 %v3380, %v3374
        %v3855 = vpack.c.b16 %v3381, %v3375
        %v3856 = vpack.c.b16 %v3382, %v3376
        %v3857 = vpack.c.b16 %v3383, %v3377
        %v3858 = vpack.c.b16 %v3390, %v3384
        %v3859 = vpack.c.b16 %v3391, %v3385
        %v3860 = vpack.c.b16 %v3392, %v3386
        %v3861 = vpack.c.b16 %v3393, %v3387
        %v3862 = vpack.c.b16 %v3394, %v3388
        %v3863 = vpack.c.b16 %v3395, %v3389
        %v3864 = vpack.c.b16 %v3402, %v3396
        %v3865 = vpack.c.b16 %v3403, %v3397
        %v3866 = vpack.c.b16 %v3404, %v3398
        %v3867 = vpack.c.b16 %v3405, %v3399
        %v3868 = vpack.c.b16 %v3406, %v3400
        %v3869 = vpack.c.b16 %v3407, %v3401
        %v3870 = vpack.c.b16 %v3414, %v3408
        %v3871 = vpack.c.b16 %v3415, %v3409
        %v3872 = vpack.c.b16 %v3416, %v3410
        %v3873 = vpack.c.b16 %v3417, %v3411
        %v3874 = vpack.c.b16 %v3418, %v3412
        %v3875 = vpack.c.b16 %v3419, %v3413
        %v3876 = vpack.c.b16 %v3426, %v3420
        %v3877 = vpack.c.b16 %v3427, %v3421
        %v3878 = vpack.c.b16 %v3428, %v3422
        %v3879 = vpack.c.b16 %v3429, %v3423
        %v3880 = vpack.c.b16 %v3430, %v3424
        %v3881 = vpack.c.b16 %v3431, %v3425
        %v3882 = vpack.c.b16 %v3438, %v3432
        %v3883 = vpack.c.b16 %v3439, %v3433
        %v3884 = vpack.c.b16 %v3440, %v3434
        %v3885 = vpack.c.b16 %v3441, %v3435
        %v3886 = vpack.c.b16 %v3442, %v3436
        %v3887 = vpack.c.b16 %v3443, %v3437
        %v3888 = vpack.c.b16 %v3450, %v3444
        %v3889 = vpack.c.b16 %v3451, %v3445
        %v3890 = vpack.c.b16 %v3452, %v3446
        %v3891 = vpack.c.b16 %v3453, %v3447
        %v3892 = vpack.c.b16 %v3454, %v3448
        %v3893 = vpack.c.b16 %v3455, %v3449
        %v3894 = vpack.c.b16 %v3462, %v3456
        %v3895 = vpack.c.b16 %v3463, %v3457
        %v3896 = vpack.c.b16 %v3464, %v3458
        %v3897 = vpack.c.b16 %v3465, %v3459
        %v3898 = vpack.c.b16 %v3466, %v3460
        %v3899 = vpack.c.b16 %v3467, %v3461
        %v3900 = vpack.c.b16 %v3474, %v3468
        %v3901 = vpack.c.b16 %v3475, %v3469
        %v3902 = vpack.c.b16 %v3476, %v3470
        %v3903 = vpack.c.b16 %v3477, %v3471
        %v3904 = vpack.c.b16 %v3478, %v3472
        %v3905 = vpack.c.b16 %v3479, %v3473
        %v3906 = vpack.c.b16 %v3486, %v3480
        %v3907 = vpack.c.b16 %v3487, %v3481
        %v3908 = vpack.c.b16 %v3488, %v3482
        %v3909 = vpack.c.b16 %v3489, %v3483
        %v3910 = vpack.c.b16 %v3490, %v3484
        %v3911 = vpack.c.b16 %v3491, %v3485
        %v3912 = vpack.c.b16 %v3498, %v3492
        %v3913 = vpack.c.b16 %v3499, %v3493
        %v3914 = vpack.c.b16 %v3500, %v3494
        %v3915 = vpack.c.b16 %v3501, %v3495
        %v3916 = vpack.c.b16 %v3502, %v3496
        %v3917 = vpack.c.b16 %v3503, %v3497
        %v3918 = vpack.c.b16 %v3510, %v3504
        %v3919 = vpack.c.b16 %v3511, %v3505
        %v3920 = vpack.c.b16 %v3512, %v3506
        %v3921 = vpack.c.b16 %v3513, %v3507
        %v3922 = vpack.c.b16 %v3514, %v3508
        %v3923 = vpack.c.b16 %v3515, %v3509
        %v3924 = vpack.c.b16 %v3522, %v3516
        %v3925 = vpack.c.b16 %v3523, %v3517
        %v3926 = vpack.c.b16 %v3524, %v3518
        %v3927 = vpack.c.b16 %v3525, %v3519
        %v3928 = vpack.c.b16 %v3526, %v3520
        %v3929 = vpack.c.b16 %v3527, %v3521
        %v3930 = vpack.c.b16 %v3534, %v3528
        %v3931 = vpack.c.b16 %v3535, %v3529
        %v3932 = vpack.c.b16 %v3536, %v3530
        %v3933 = vpack.c.b16 %v3537, %v3531
        %v3934 = vpack.c.b16 %v3538, %v3532
        %v3935 = vpack.c.b16 %v3539, %v3533
        %v3936 = vpack.c.b16 %v3546, %v3540
        %v3937 = vpack.c.b16 %v3547, %v3541
        %v3938 = vpack.c.b16 %v3548, %v3542
        %v3939 = vpack.c.b16 %v3549, %v3543
        %v3940 = vpack.c.b16 %v3550, %v3544
        %v3941 = vpack.c.b16 %v3551, %v3545
        %v3942 = vpack.c.b16 %v3558, %v3552
        %v3943 = vpack.c.b16 %v3559, %v3553
        %v3944 = vpack.c.b16 %v3560, %v3554
        %v3945 = vpack.c.b16 %v3561, %v3555
        %v3946 = vpack.c.b16 %v3562, %v3556
        %v3947 = vpack.c.b16 %v3563, %v3557
        %v3948 = vpack.c.b16 %v3570, %v3564
        %v3949 = vpack.c.b16 %v3571, %v3565
        %v3950 = vpack.c.b16 %v3572, %v3566
        %v3951 = vpack.c.b16 %v3573, %v3567
        %v3952 = vpack.c.b16 %v3574, %v3568
        %v3953 = vpack.c.b16 %v3575, %v3569
        %v3954 = vpack.c.b16 %v3582, %v3576
        %v3955 = vpack.c.b16 %v3583, %v3577
        %v3956 = vpack.c.b16 %v3584, %v3578
        %v3957 = vpack.c.b16 %v3585, %v3579
        %v3958 = vpack.c.b16 %v3586, %v3580
        %v3959 = vpack.c.b16 %v3587, %v3581
        %v3960 = vpack.c.b16 %v3594, %v3588
        %v3961 = vpack.c.b16 %v3595, %v3589
        %v3962 = vpack.c.b16 %v3596, %v3590
        %v3963 = vpack.c.b16 %v3597, %v3591
        %v3964 = vpack.c.b16 %v3598, %v3592
        %v3965 = vpack.c.b16 %v3599, %v3593
        %v3966 = vpack.c.b16 %v3606, %v3600
        %v3967 = vpack.c.b16 %v3607, %v3601
        %v3968 = vpack.c.b16 %v3608, %v3602
        %v3969 = vpack.c.b16 %v3609, %v3603
        %v3970 = vpack.c.b16 %v3610, %v3604
        %v3971 = vpack.c.b16 %v3611, %v3605
        %v3972 = vpack.c.b16 %v3618, %v3612
        %v3973 = vpack.c.b16 %v3619, %v3613
        %v3974 = vpack.c.b16 %v3620, %v3614
        %v3975 = vpack.c.b16 %v3621, %v3615
        %v3976 = vpack.c.b16 %v3622, %v3616
        %v3977 = vpack.c.b16 %v3623, %v3617
        %v3978 = vpack.c.b16 %v3630, %v3624
        %v3979 = vpack.c.b16 %v3631, %v3625
        %v3980 = vpack.c.b16 %v3632, %v3626
        %v3981 = vpack.c.b16 %v3633, %v3627
        %v3982 = vpack.c.b16 %v3634, %v3628
        %v3983 = vpack.c.b16 %v3635, %v3629
        %v3984 = vpack.c.b16 %v3642, %v3636
        %v3985 = vpack.c.b16 %v3643, %v3637
        %v3986 = vpack.c.b16 %v3644, %v3638
        %v3987 = vpack.c.b16 %v3645, %v3639
        %v3988 = vpack.c.b16 %v3646, %v3640
        %v3989 = vpack.c.b16 %v3647, %v3641
        %v3990 = vpack.c.b16 %v3654, %v3648
        %v3991 = vpack.c.b16 %v3655, %v3649
        %v3992 = vpack.c.b16 %v3656, %v3650
        %v3993 = vpack.c.b16 %v3657, %v3651
        %v3994 = vpack.c.b16 %v3658, %v3652
        %v3995 = vpack.c.b16 %v3659, %v3653
        %v3996 = vpack.c.b16 %v3666, %v3660
        %v3997 = vpack.c.b16 %v3667, %v3661
        %v3998 = vpack.c.b16 %v3668, %v3662
        %v3999 = vpack.c.b16 %v3669, %v3663
        %v4000 = vpack.c.b16 %v3670, %v3664
        %v4001 = vpack.c.b16 %v3671, %v3665
        %v4002 = vpack.c.b16 %v3678, %v3672
        %v4003 = vpack.c.b16 %v3679, %v3673
        %v4004 = vpack.c.b16 %v3680, %v3674
        %v4005 = vpack.c.b16 %v3681, %v3675
        %v4006 = vpack.c.b16 %v3682, %v3676
        %v4007 = vpack.c.b16 %v3683, %v3677
        %v4008 = vpack.c.b16 %v3690, %v3684
        %v4009 = vpack.c.b16 %v3691, %v3685
        %v4010 = vpack.c.b16 %v3692, %v3686
        %v4011 = vpack.c.b16 %v3693, %v3687
        %v4012 = vpack.c.b16 %v3694, %v3688
        %v4013 = vpack.c.b16 %v3695, %v3689
        %v4014 = vpack.c.b16 %v3702, %v3696
        %v4015 = vpack.c.b16 %v3703, %v3697
        %v4016 = vpack.c.b16 %v3704, %v3698
        %v4017 = vpack.c.b16 %v3705, %v3699
        %v4018 = vpack.c.b16 %v3706, %v3700
        %v4019 = vpack.c.b16 %v3707, %v3701
        %v4020 = vpack.c.b16 %v3714, %v3708
        %v4021 = vpack.c.b16 %v3715, %v3709
        %v4022 = vpack.c.b16 %v3716, %v3710
        %v4023 = vpack.c.b16 %v3717, %v3711
        %v4024 = vpack.c.b16 %v3718, %v3712
        %v4025 = vpack.c.b16 %v3719, %v3713
        %v4026 = vpack.c.b16 %v3726, %v3720
        %v4027 = vpack.c.b16 %v3727, %v3721
        %v4028 = vpack.c.b16 %v3728, %v3722
        %v4029 = vpack.c.b16 %v3729, %v3723
        %v4030 = vpack.c.b16 %v3730, %v3724
        %v4031 = vpack.c.b16 %v3731, %v3725
        %v4032 = vpack.c.b16 %v3738, %v3732
        %v4033 = vpack.c.b16 %v3739, %v3733
        %v4034 = vpack.c.b16 %v3740, %v3734
        %v4035 = vpack.c.b16 %v3741, %v3735
        %v4036 = vpack.c.b16 %v3742, %v3736
        %v4037 = vpack.c.b16 %v3743, %v3737
        %v4038 = vpack.c.b16 %v3750, %v3744
        %v4039 = vpack.c.b16 %v3751, %v3745
        %v4040 = vpack.c.b16 %v3752, %v3746
        %v4041 = vpack.c.b16 %v3753, %v3747
        %v4042 = vpack.c.b16 %v3754, %v3748
        %v4043 = vpack.c.b16 %v3755, %v3749
        %4332 = vmatprep.subr.bf16.mxu0 %v3757
        %4333 = vmatpush1.bf16.msra.mxu0 %v3756
        %4334 = vmatprep.subr.bf16.mxu0 %v3763
        %4335 = vmatpush1.bf16.msra.mxu0 %v3762
        %4336 = vmatprep.subr.bf16.mxu0 %v3769
        %4337 = vmatpush1.bf16.msra.mxu0 %v3768
        %4338 = vmatprep.subr.bf16.mxu0 %v3775
        %4339 = vmatpush1.bf16.msra.mxu0 %v3774
        %4340 = vmatprep.subr.bf16.mxu0 %v3781
        %4341 = vmatpush1.bf16.msra.mxu0 %v3780
        %4342 = vmatprep.subr.bf16.mxu0 %v3787
        %4343 = vmatpush1.bf16.msra.mxu0 %v3786
        %4344 = vmatprep.subr.bf16.mxu0 %v3793
        %4345 = vmatpush1.bf16.msra.mxu0 %v3792
        %4346 = vmatprep.subr.bf16.mxu0 %v3799
        %4347 = vmatpush1.bf16.msra.mxu0 %v3798
        %4348 = vmatprep.subr.bf16.mxu0 %v3805
        %4349 = vmatpush1.bf16.msra.mxu0 %v3804
        %4350 = vmatprep.subr.bf16.mxu0 %v3811
        %4351 = vmatpush1.bf16.msra.mxu0 %v3810
        %4352 = vmatprep.subr.bf16.mxu0 %v3817
        %4353 = vmatpush1.bf16.msra.mxu0 %v3816
        %4354 = vmatprep.subr.bf16.mxu0 %v3823
        %4355 = vmatpush1.bf16.msra.mxu0 %v3822
        %4356 = vmatprep.subr.bf16.mxu0 %v3829
        %4357 = vmatpush1.bf16.msra.mxu0 %v3828
        %4358 = vmatprep.subr.bf16.mxu0 %v3835
        %4359 = vmatpush1.bf16.msra.mxu0 %v3834
        %4360 = vmatprep.subr.bf16.mxu0 %v3841
        %4361 = vmatpush1.bf16.msra.mxu0 %v3840
        %4362 = vmatprep.subr.bf16.mxu0 %v3847
        %4363 = vmatpush1.bf16.msra.mxu0 %v3846
        %4364 = vmatprep.mubr.bf16.mxu0 %v2563
        %4365 = vmatmul.mubr.bf16.gmra.mrb[0].mxu0 %v2562
        %v4366 = vpop.f32.mrb[0].mxu0
        %v4367 = vadd.f32 %v2865, %v4366
        %v4368 = vpop.f32.mrb[0].mxu0
        %v4369 = vadd.f32 %v2869, %v4368
        %v4370 = vpop.f32.mrb[0].mxu0
        %v4371 = vpop.f32.mrb[0].mxu0
        %4372 = vdwg.mxu0
        %4373 = vmatprep.subr.bf16.mxu0 %v3853
        %4374 = vmatpush1.bf16.msra.mxu0 %v3852
        %4375 = vmatprep.subr.bf16.mxu0 %v3859
        %4376 = vmatpush1.bf16.msra.mxu0 %v3858
        %4377 = vmatprep.subr.bf16.mxu0 %v3865
        %4378 = vmatpush1.bf16.msra.mxu0 %v3864
        %4379 = vmatprep.subr.bf16.mxu0 %v3871
        %4380 = vmatpush1.bf16.msra.mxu0 %v3870
        %4381 = vmatprep.subr.bf16.mxu0 %v3877
        %4382 = vmatpush1.bf16.msra.mxu0 %v3876
        %4383 = vmatprep.subr.bf16.mxu0 %v3883
        %4384 = vmatpush1.bf16.msra.mxu0 %v3882
        %4385 = vmatprep.subr.bf16.mxu0 %v3889
        %4386 = vmatpush1.bf16.msra.mxu0 %v3888
        %4387 = vmatprep.subr.bf16.mxu0 %v3895
        %4388 = vmatpush1.bf16.msra.mxu0 %v3894
        %4389 = vmatprep.subr.bf16.mxu0 %v3901
        %4390 = vmatpush1.bf16.msra.mxu0 %v3900
        %4391 = vmatprep.subr.bf16.mxu0 %v3907
        %4392 = vmatpush1.bf16.msra.mxu0 %v3906
        %4393 = vmatprep.subr.bf16.mxu0 %v3913
        %4394 = vmatpush1.bf16.msra.mxu0 %v3912
        %4395 = vmatprep.subr.bf16.mxu0 %v3919
        %4396 = vmatpush1.bf16.msra.mxu0 %v3918
        %4397 = vmatprep.subr.bf16.mxu0 %v3925
        %4398 = vmatpush1.bf16.msra.mxu0 %v3924
        %4399 = vmatprep.subr.bf16.mxu0 %v3931
        %4400 = vmatpush1.bf16.msra.mxu0 %v3930
        %4401 = vmatprep.subr.bf16.mxu0 %v3937
        %4402 = vmatpush1.bf16.msra.mxu0 %v3936
        %4403 = vmatprep.subr.bf16.mxu0 %v3943
        %4404 = vmatpush1.bf16.msra.mxu0 %v3942
        %4405 = vmatprep.mubr.bf16.mxu0 %v2565
        %4406 = vmatmul.mubr.bf16.gmra.mrb[0].mxu0 %v2564
        %v4407 = vpop.f32.mrb[0].mxu0
        %v4408 = vadd.f32 %v4367, %v4407
        %v4409 = vpop.f32.mrb[0].mxu0
        %v4410 = vadd.f32 %v4369, %v4409
        %v4411 = vpop.f32.mrb[0].mxu0
        %v4412 = vpop.f32.mrb[0].mxu0
        %4413 = vdwg.mxu0
        %4414 = vmatprep.subr.bf16.mxu0 %v3949
        %4415 = vmatpush1.bf16.msra.mxu0 %v3948
        %4416 = vmatprep.subr.bf16.mxu0 %v3955
        %4417 = vmatpush1.bf16.msra.mxu0 %v3954
        %4418 = vmatprep.subr.bf16.mxu0 %v3961
        %4419 = vmatpush1.bf16.msra.mxu0 %v3960
        %4420 = vmatprep.subr.bf16.mxu0 %v3967
        %4421 = vmatpush1.bf16.msra.mxu0 %v3966
        %4422 = vmatprep.subr.bf16.mxu0 %v3973
        %4423 = vmatpush1.bf16.msra.mxu0 %v3972
        %4424 = vmatprep.subr.bf16.mxu0 %v3979
        %4425 = vmatpush1.bf16.msra.mxu0 %v3978
        %4426 = vmatprep.subr.bf16.mxu0 %v3985
        %4427 = vmatpush1.bf16.msra.mxu0 %v3984
        %4428 = vmatprep.subr.bf16.mxu0 %v3991
        %4429 = vmatpush1.bf16.msra.mxu0 %v3990
        %4430 = vmatprep.subr.bf16.mxu0 %v3997
        %4431 = vmatpush1.bf16.msra.mxu0 %v3996
        %4432 = vmatprep.subr.bf16.mxu0 %v4003
        %4433 = vmatpush1.bf16.msra.mxu0 %v4002
        %4434 = vmatprep.subr.bf16.mxu0 %v4009
        %4435 = vmatpush1.bf16.msra.mxu0 %v4008
        %4436 = vmatprep.subr.bf16.mxu0 %v4015
        %4437 = vmatpush1.bf16.msra.mxu0 %v4014
        %4438 = vmatprep.subr.bf16.mxu0 %v4021
        %4439 = vmatpush1.bf16.msra.mxu0 %v4020
        %4440 = vmatprep.subr.bf16.mxu0 %v4027
        %4441 = vmatpush1.bf16.msra.mxu0 %v4026
        %4442 = vmatprep.subr.bf16.mxu0 %v4033
        %4443 = vmatpush1.bf16.msra.mxu0 %v4032
        %4444 = vmatprep.subr.bf16.mxu0 %v4039
        %4445 = vmatpush1.bf16.msra.mxu0 %v4038
        %4446 = vmatprep.mubr.bf16.mxu0 %v2567
        %4447 = vmatmul.mubr.bf16.gmra.mrb[0].mxu0 %v2566
        %v4448 = vpop.f32.mrb[0].mxu0
        %v4449 = vadd.f32 %v4408, %v4448
        %v4450 = vpop.f32.mrb[0].mxu0
        %v4451 = vadd.f32 %v4410, %v4450
        %v4452 = vpop.f32.mrb[0].mxu0
        %v4453 = vpop.f32.mrb[0].mxu0
        %4454 = vdwg.mxu0
        %4455 = vmatprep.subr.bf16.mxu0 %v3759
        %4456 = vmatpush1.bf16.msra.mxu0 %v3758
        %4457 = vmatprep.subr.bf16.mxu0 %v3765
        %4458 = vmatpush1.bf16.msra.mxu0 %v3764
        %4459 = vmatprep.subr.bf16.mxu0 %v3771
        %4460 = vmatpush1.bf16.msra.mxu0 %v3770
        %4461 = vmatprep.subr.bf16.mxu0 %v3777
        %4462 = vmatpush1.bf16.msra.mxu0 %v3776
        %4463 = vmatprep.subr.bf16.mxu0 %v3783
        %4464 = vmatpush1.bf16.msra.mxu0 %v3782
        %4465 = vmatprep.subr.bf16.mxu0 %v3789
        %4466 = vmatpush1.bf16.msra.mxu0 %v3788
        %4467 = vmatprep.subr.bf16.mxu0 %v3795
        %4468 = vmatpush1.bf16.msra.mxu0 %v3794
        %4469 = vmatprep.subr.bf16.mxu0 %v3801
        %4470 = vmatpush1.bf16.msra.mxu0 %v3800
        %4471 = vmatprep.subr.bf16.mxu0 %v3807
        %4472 = vmatpush1.bf16.msra.mxu0 %v3806
        %4473 = vmatprep.subr.bf16.mxu0 %v3813
        %4474 = vmatpush1.bf16.msra.mxu0 %v3812
        %4475 = vmatprep.subr.bf16.mxu0 %v3819
        %4476 = vmatpush1.bf16.msra.mxu0 %v3818
        %4477 = vmatprep.subr.bf16.mxu0 %v3825
        %4478 = vmatpush1.bf16.msra.mxu0 %v3824
        %4479 = vmatprep.subr.bf16.mxu0 %v3831
        %4480 = vmatpush1.bf16.msra.mxu0 %v3830
        %4481 = vmatprep.subr.bf16.mxu0 %v3837
        %4482 = vmatpush1.bf16.msra.mxu0 %v3836
        %4483 = vmatprep.subr.bf16.mxu0 %v3843
        %4484 = vmatpush1.bf16.msra.mxu0 %v3842
        %4485 = vmatprep.subr.bf16.mxu0 %v3849
        %4486 = vmatpush1.bf16.msra.mxu0 %v3848
        %4487 = vmatprep.mubr.bf16.mxu0 %v2563
        %4488 = vmatmul.mubr.bf16.gmra.mrb[0].mxu0 %v2562
        %v4489 = vpop.f32.mrb[0].mxu0
        %v4490 = vadd.f32 %v2873, %v4489
        %v4491 = vpop.f32.mrb[0].mxu0
        %v4492 = vadd.f32 %v2877, %v4491
        %v4493 = vpop.f32.mrb[0].mxu0
        %v4494 = vpop.f32.mrb[0].mxu0
        %4495 = vdwg.mxu0
        %4496 = vmatprep.subr.bf16.mxu0 %v3855
        %4497 = vmatpush1.bf16.msra.mxu0 %v3854
        %4498 = vmatprep.subr.bf16.mxu0 %v3861
        %4499 = vmatpush1.bf16.msra.mxu0 %v3860
        %4500 = vmatprep.subr.bf16.mxu0 %v3867
        %4501 = vmatpush1.bf16.msra.mxu0 %v3866
        %4502 = vmatprep.subr.bf16.mxu0 %v3873
        %4503 = vmatpush1.bf16.msra.mxu0 %v3872
        %4504 = vmatprep.subr.bf16.mxu0 %v3879
        %4505 = vmatpush1.bf16.msra.mxu0 %v3878
        %4506 = vmatprep.subr.bf16.mxu0 %v3885
        %4507 = vmatpush1.bf16.msra.mxu0 %v3884
        %4508 = vmatprep.subr.bf16.mxu0 %v3891
        %4509 = vmatpush1.bf16.msra.mxu0 %v3890
        %4510 = vmatprep.subr.bf16.mxu0 %v3897
        %4511 = vmatpush1.bf16.msra.mxu0 %v3896
        %4512 = vmatprep.subr.bf16.mxu0 %v3903
        %4513 = vmatpush1.bf16.msra.mxu0 %v3902
        %4514 = vmatprep.subr.bf16.mxu0 %v3909
        %4515 = vmatpush1.bf16.msra.mxu0 %v3908
        %4516 = vmatprep.subr.bf16.mxu0 %v3915
        %4517 = vmatpush1.bf16.msra.mxu0 %v3914
        %4518 = vmatprep.subr.bf16.mxu0 %v3921
        %4519 = vmatpush1.bf16.msra.mxu0 %v3920
        %4520 = vmatprep.subr.bf16.mxu0 %v3927
        %4521 = vmatpush1.bf16.msra.mxu0 %v3926
        %4522 = vmatprep.subr.bf16.mxu0 %v3933
        %4523 = vmatpush1.bf16.msra.mxu0 %v3932
        %4524 = vmatprep.subr.bf16.mxu0 %v3939
        %4525 = vmatpush1.bf16.msra.mxu0 %v3938
        %4526 = vmatprep.subr.bf16.mxu0 %v3945
        %4527 = vmatpush1.bf16.msra.mxu0 %v3944
        %4528 = vmatprep.mubr.bf16.mxu0 %v2565
        %4529 = vmatmul.mubr.bf16.gmra.mrb[0].mxu0 %v2564
        %v4530 = vpop.f32.mrb[0].mxu0
        %v4531 = vadd.f32 %v4490, %v4530
        %v4532 = vpop.f32.mrb[0].mxu0
        %v4533 = vadd.f32 %v4492, %v4532
        %v4534 = vpop.f32.mrb[0].mxu0
        %v4535 = vpop.f32.mrb[0].mxu0
        %4536 = vdwg.mxu0
        %4537 = vmatprep.subr.bf16.mxu0 %v3951
        %4538 = vmatpush1.bf16.msra.mxu0 %v3950
        %4539 = vmatprep.subr.bf16.mxu0 %v3957
        %4540 = vmatpush1.bf16.msra.mxu0 %v3956
        %4541 = vmatprep.subr.bf16.mxu0 %v3963
        %4542 = vmatpush1.bf16.msra.mxu0 %v3962
        %4543 = vmatprep.subr.bf16.mxu0 %v3969
        %4544 = vmatpush1.bf16.msra.mxu0 %v3968
        %4545 = vmatprep.subr.bf16.mxu0 %v3975
        %4546 = vmatpush1.bf16.msra.mxu0 %v3974
        %4547 = vmatprep.subr.bf16.mxu0 %v3981
        %4548 = vmatpush1.bf16.msra.mxu0 %v3980
        %4549 = vmatprep.subr.bf16.mxu0 %v3987
        %4550 = vmatpush1.bf16.msra.mxu0 %v3986
        %4551 = vmatprep.subr.bf16.mxu0 %v3993
        %4552 = vmatpush1.bf16.msra.mxu0 %v3992
        %4553 = vmatprep.subr.bf16.mxu0 %v3999
        %4554 = vmatpush1.bf16.msra.mxu0 %v3998
        %4555 = vmatprep.subr.bf16.mxu0 %v4005
        %4556 = vmatpush1.bf16.msra.mxu0 %v4004
        %4557 = vmatprep.subr.bf16.mxu0 %v4011
        %4558 = vmatpush1.bf16.msra.mxu0 %v4010
        %4559 = vmatprep.subr.bf16.mxu0 %v4017
        %4560 = vmatpush1.bf16.msra.mxu0 %v4016
        %4561 = vmatprep.subr.bf16.mxu0 %v4023
        %4562 = vmatpush1.bf16.msra.mxu0 %v4022
        %4563 = vmatprep.subr.bf16.mxu0 %v4029
        %4564 = vmatpush1.bf16.msra.mxu0 %v4028
        %4565 = vmatprep.subr.bf16.mxu0 %v4035
        %4566 = vmatpush1.bf16.msra.mxu0 %v4034
        %4567 = vmatprep.subr.bf16.mxu0 %v4041
        %4568 = vmatpush1.bf16.msra.mxu0 %v4040
        %4569 = vmatprep.mubr.bf16.mxu0 %v2567
        %4570 = vmatmul.mubr.bf16.gmra.mrb[0].mxu0 %v2566
        %v4571 = vpop.f32.mrb[0].mxu0
        %v4572 = vadd.f32 %v4531, %v4571
        %v4573 = vpop.f32.mrb[0].mxu0
        %v4574 = vadd.f32 %v4533, %v4573
        %v4575 = vpop.f32.mrb[0].mxu0
        %v4576 = vpop.f32.mrb[0].mxu0
        %4577 = vdwg.mxu0
        %4578 = vmatprep.subr.bf16.mxu0 %v3761
        %4579 = vmatpush1.bf16.msra.mxu0 %v3760
        %4580 = vmatprep.subr.bf16.mxu0 %v3767
        %4581 = vmatpush1.bf16.msra.mxu0 %v3766
        %4582 = vmatprep.subr.bf16.mxu0 %v3773
        %4583 = vmatpush1.bf16.msra.mxu0 %v3772
        %4584 = vmatprep.subr.bf16.mxu0 %v3779
        %4585 = vmatpush1.bf16.msra.mxu0 %v3778
        %4586 = vmatprep.subr.bf16.mxu0 %v3785
        %4587 = vmatpush1.bf16.msra.mxu0 %v3784
        %4588 = vmatprep.subr.bf16.mxu0 %v3791
        %4589 = vmatpush1.bf16.msra.mxu0 %v3790
        %4590 = vmatprep.subr.bf16.mxu0 %v3797
        %4591 = vmatpush1.bf16.msra.mxu0 %v3796
        %4592 = vmatprep.subr.bf16.mxu0 %v3803
        %4593 = vmatpush1.bf16.msra.mxu0 %v3802
        %4594 = vmatprep.subr.bf16.mxu0 %v3809
        %4595 = vmatpush1.bf16.msra.mxu0 %v3808
        %4596 = vmatprep.subr.bf16.mxu0 %v3815
        %4597 = vmatpush1.bf16.msra.mxu0 %v3814
        %4598 = vmatprep.subr.bf16.mxu0 %v3821
        %4599 = vmatpush1.bf16.msra.mxu0 %v3820
        %4600 = vmatprep.subr.bf16.mxu0 %v3827
        %4601 = vmatpush1.bf16.msra.mxu0 %v3826
        %4602 = vmatprep.subr.bf16.mxu0 %v3833
        %4603 = vmatpush1.bf16.msra.mxu0 %v3832
        %4604 = vmatprep.subr.bf16.mxu0 %v3839
        %4605 = vmatpush1.bf16.msra.mxu0 %v3838
        %4606 = vmatprep.subr.bf16.mxu0 %v3845
        %4607 = vmatpush1.bf16.msra.mxu0 %v3844
        %4608 = vmatprep.subr.bf16.mxu0 %v3851
        %4609 = vmatpush1.bf16.msra.mxu0 %v3850
        %4610 = vmatprep.mubr.bf16.mxu0 %v2563
        %4611 = vmatmul.mubr.bf16.gmra.mrb[0].mxu0 %v2562
        %v4612 = vpop.f32.mrb[0].mxu0
        %v4613 = vadd.f32 %v2881, %v4612
        %v4614 = vpop.f32.mrb[0].mxu0
        %v4615 = vadd.f32 %v2885, %v4614
        %v4616 = vpop.f32.mrb[0].mxu0
        %v4617 = vpop.f32.mrb[0].mxu0
        %4618 = vdwg.mxu0
        %4619 = vmatprep.subr.bf16.mxu0 %v3857
        %4620 = vmatpush1.bf16.msra.mxu0 %v3856
        %4621 = vmatprep.subr.bf16.mxu0 %v3863
        %4622 = vmatpush1.bf16.msra.mxu0 %v3862
        %4623 = vmatprep.subr.bf16.mxu0 %v3869
        %4624 = vmatpush1.bf16.msra.mxu0 %v3868
        %4625 = vmatprep.subr.bf16.mxu0 %v3875
        %4626 = vmatpush1.bf16.msra.mxu0 %v3874
        %4627 = vmatprep.subr.bf16.mxu0 %v3881
        %4628 = vmatpush1.bf16.msra.mxu0 %v3880
        %4629 = vmatprep.subr.bf16.mxu0 %v3887
        %4630 = vmatpush1.bf16.msra.mxu0 %v3886
        %4631 = vmatprep.subr.bf16.mxu0 %v3893
        %4632 = vmatpush1.bf16.msra.mxu0 %v3892
        %4633 = vmatprep.subr.bf16.mxu0 %v3899
        %4634 = vmatpush1.bf16.msra.mxu0 %v3898
        %4635 = vmatprep.subr.bf16.mxu0 %v3905
        %4636 = vmatpush1.bf16.msra.mxu0 %v3904
        %4637 = vmatprep.subr.bf16.mxu0 %v3911
        %4638 = vmatpush1.bf16.msra.mxu0 %v3910
        %4639 = vmatprep.subr.bf16.mxu0 %v3917
        %4640 = vmatpush1.bf16.msra.mxu0 %v3916
        %4641 = vmatprep.subr.bf16.mxu0 %v3923
        %4642 = vmatpush1.bf16.msra.mxu0 %v3922
        %4643 = vmatprep.subr.bf16.mxu0 %v3929
        %4644 = vmatpush1.bf16.msra.mxu0 %v3928
        %4645 = vmatprep.subr.bf16.mxu0 %v3935
        %4646 = vmatpush1.bf16.msra.mxu0 %v3934
        %4647 = vmatprep.subr.bf16.mxu0 %v3941
        %4648 = vmatpush1.bf16.msra.mxu0 %v3940
        %4649 = vmatprep.subr.bf16.mxu0 %v3947
        %4650 = vmatpush1.bf16.msra.mxu0 %v3946
        %4651 = vmatprep.mubr.bf16.mxu0 %v2565
        %4652 = vmatmul.mubr.bf16.gmra.mrb[0].mxu0 %v2564
        %v4653 = vpop.f32.mrb[0].mxu0
        %v4654 = vadd.f32 %v4613, %v4653
        %v4655 = vpop.f32.mrb[0].mxu0
        %v4656 = vadd.f32 %v4615, %v4655
        %v4657 = vpop.f32.mrb[0].mxu0
        %v4658 = vpop.f32.mrb[0].mxu0
        %4659 = vdwg.mxu0
        %4660 = vmatprep.subr.bf16.mxu0 %v3953
        %4661 = vmatpush1.bf16.msra.mxu0 %v3952
        %4662 = vmatprep.subr.bf16.mxu0 %v3959
        %4663 = vmatpush1.bf16.msra.mxu0 %v3958
        %4664 = vmatprep.subr.bf16.mxu0 %v3965
        %4665 = vmatpush1.bf16.msra.mxu0 %v3964
        %4666 = vmatprep.subr.bf16.mxu0 %v3971
        %4667 = vmatpush1.bf16.msra.mxu0 %v3970
        %4668 = vmatprep.subr.bf16.mxu0 %v3977
        %4669 = vmatpush1.bf16.msra.mxu0 %v3976
        %4670 = vmatprep.subr.bf16.mxu0 %v3983
        %4671 = vmatpush1.bf16.msra.mxu0 %v3982
        %4672 = vmatprep.subr.bf16.mxu0 %v3989
        %4673 = vmatpush1.bf16.msra.mxu0 %v3988
        %4674 = vmatprep.subr.bf16.mxu0 %v3995
        %4675 = vmatpush1.bf16.msra.mxu0 %v3994
        %4676 = vmatprep.subr.bf16.mxu0 %v4001
        %4677 = vmatpush1.bf16.msra.mxu0 %v4000
        %4678 = vmatprep.subr.bf16.mxu0 %v4007
        %4679 = vmatpush1.bf16.msra.mxu0 %v4006
        %4680 = vmatprep.subr.bf16.mxu0 %v4013
        %4681 = vmatpush1.bf16.msra.mxu0 %v4012
        %4682 = vmatprep.subr.bf16.mxu0 %v4019
        %4683 = vmatpush1.bf16.msra.mxu0 %v4018
        %4684 = vmatprep.subr.bf16.mxu0 %v4025
        %4685 = vmatpush1.bf16.msra.mxu0 %v4024
        %4686 = vmatprep.subr.bf16.mxu0 %v4031
        %4687 = vmatpush1.bf16.msra.mxu0 %v4030
        %4688 = vmatprep.subr.bf16.mxu0 %v4037
        %4689 = vmatpush1.bf16.msra.mxu0 %v4036
        %4690 = vmatprep.subr.bf16.mxu0 %v4043
        %4691 = vmatpush1.bf16.msra.mxu0 %v4042
        %4692 = vmatprep.mubr.bf16.mxu0 %v2567
        %4693 = vmatmul.mubr.bf16.gmra.mrb[0].mxu0 %v2566
        %v4694 = vpop.f32.mrb[0].mxu0
        %v4695 = vadd.f32 %v4654, %v4694
        %v4696 = vpop.f32.mrb[0].mxu0
        %v4697 = vadd.f32 %v4656, %v4696
        %v4698 = vpop.f32.mrb[0].mxu0
        %v4699 = vpop.f32.mrb[0].mxu0
        %4700 = vdwg.mxu0
        %4702 = vset.pattern.permute.xlu0 0
        %4703 = vperm.xlu0 %4702, %v423
        %v4704 = vpop.permute.xlu0 %4703
        %v4706 = vmul.f32 %v4449, %v4704
        %v4707 = vmul.f32 %v4451, %v4704
        %v4708 = vmul.f32 %v4572, %v4704
        %v4709 = vmul.f32 %v4574, %v4704
        %v4710 = vmul.f32 %v4695, %v4704
        %v4711 = vmul.f32 %v4697, %v4704
        %v4712 = vld [vmem:[%s406] sm:$0x3f]
        %s4713 = smul.u32 %s410, 576
        %s4714 = smul.addr %s4713, 4
        %s4715 = scalar_lea.vmem %s5, %s4714
        %v4716 = vld [vmem:[%s4715] sm:$0xff]
        %v4717 = vld [vmem:[%s4715 + $0x8] sm:$0xff]
        %v4718 = vld [vmem:[%s4715 + $0x10] sm:$0xff]
        %v4719 = vld [vmem:[%s4715 + $0x18] sm:$0xff]
        %v4720 = vld [vmem:[%s4715 + $0x20] sm:$0xff]
        %v4721 = vld [vmem:[%s4715 + $0x28] sm:$0xff]
        %v4722 = vld [vmem:[%s4715 + $0x30] sm:$0xff]
        %v4723 = vld [vmem:[%s4715 + $0x38] sm:$0xff]
        %v4724 = vld [vmem:[%s4715 + $0x40] sm:$0xff]
        %v4725 = vld [vmem:[%s4715 + $0x48] sm:$0xff]
        %v4726 = vld [vmem:[%s4715 + $0x50] sm:$0xff]
        %v4727 = vld [vmem:[%s4715 + $0x58] sm:$0xff]
        %v4728 = vld [vmem:[%s4715 + $0x60] sm:$0xff]
        %v4729 = vld [vmem:[%s4715 + $0x68] sm:$0xff]
        %v4730 = vld [vmem:[%s4715 + $0x70] sm:$0xff]
        %v4731 = vld [vmem:[%s4715 + $0x78] sm:$0xff]
        %v4732 = vld [vmem:[%s4715 + $0x80] sm:$0xff]
        %v4733 = vld [vmem:[%s4715 + $0x88] sm:$0xff]
        %v4734 = vld [vmem:[%s4715 + $0x90] sm:$0xff]
        %v4735 = vld [vmem:[%s4715 + $0x98] sm:$0xff]
        %v4736 = vld [vmem:[%s4715 + $0xa0] sm:$0xff]
        %v4737 = vld [vmem:[%s4715 + $0xa8] sm:$0xff]
        %v4738 = vld [vmem:[%s4715 + $0xb0] sm:$0xff]
        %v4739 = vld [vmem:[%s4715 + $0xb8] sm:$0xff]
        %v4740 = vld [vmem:[%s4715 + $0xc0] sm:$0xff]
        %v4741 = vld [vmem:[%s4715 + $0xc8] sm:$0xff]
        %v4742 = vld [vmem:[%s4715 + $0xd0] sm:$0xff]
        %v4743 = vld [vmem:[%s4715 + $0xd8] sm:$0xff]
        %v4744 = vld [vmem:[%s4715 + $0xe0] sm:$0xff]
        %v4745 = vld [vmem:[%s4715 + $0xe8] sm:$0xff]
        %v4746 = vld [vmem:[%s4715 + $0xf0] sm:$0xff]
        %v4747 = vld [vmem:[%s4715 + $0xf8] sm:$0xff]
        %v4748 = vld [vmem:[%s4715 + $0x100] sm:$0xff]
        %v4749 = vld [vmem:[%s4715 + $0x108] sm:$0xff]
        %v4750 = vld [vmem:[%s4715 + $0x110] sm:$0xff]
        %v4751 = vld [vmem:[%s4715 + $0x118] sm:$0xff]
        %v4752 = vld [vmem:[%s4715 + $0x120] sm:$0xff]
        %v4753 = vld [vmem:[%s4715 + $0x128] sm:$0xff]
        %v4754 = vld [vmem:[%s4715 + $0x130] sm:$0xff]
        %v4755 = vld [vmem:[%s4715 + $0x138] sm:$0xff]
        %v4756 = vld [vmem:[%s4715 + $0x140] sm:$0xff]
        %v4757 = vld [vmem:[%s4715 + $0x148] sm:$0xff]
        %v4758 = vld [vmem:[%s4715 + $0x150] sm:$0xff]
        %v4759 = vld [vmem:[%s4715 + $0x158] sm:$0xff]
        %v4760 = vld [vmem:[%s4715 + $0x160] sm:$0xff]
        %v4761 = vld [vmem:[%s4715 + $0x168] sm:$0xff]
        %v4762 = vld [vmem:[%s4715 + $0x170] sm:$0xff]
        %v4763 = vld [vmem:[%s4715 + $0x178] sm:$0xff]
        %v4764 = vld [vmem:[%s4715 + $0x180] sm:$0xff]
        %v4765 = vld [vmem:[%s4715 + $0x188] sm:$0xff]
        %v4766 = vld [vmem:[%s4715 + $0x190] sm:$0xff]
        %v4767 = vld [vmem:[%s4715 + $0x198] sm:$0xff]
        %v4768 = vld [vmem:[%s4715 + $0x1a0] sm:$0xff]
        %v4769 = vld [vmem:[%s4715 + $0x1a8] sm:$0xff]
        %v4770 = vld [vmem:[%s4715 + $0x1b0] sm:$0xff]
        %v4771 = vld [vmem:[%s4715 + $0x1b8] sm:$0xff]
        %v4772 = vld [vmem:[%s4715 + $0x1c0] sm:$0xff]
        %v4773 = vld [vmem:[%s4715 + $0x1c8] sm:$0xff]
        %v4774 = vld [vmem:[%s4715 + $0x1d0] sm:$0xff]
        %v4775 = vld [vmem:[%s4715 + $0x1d8] sm:$0xff]
        %v4776 = vld [vmem:[%s4715 + $0x1e0] sm:$0xff]
        %v4777 = vld [vmem:[%s4715 + $0x1e8] sm:$0xff]
        %v4778 = vld [vmem:[%s4715 + $0x1f0] sm:$0xff]
        %v4779 = vld [vmem:[%s4715 + $0x1f8] sm:$0xff]
        %v4780 = vld [vmem:[%s4715 + $0x200] sm:$0xff]
        %v4781 = vld [vmem:[%s4715 + $0x208] sm:$0xff]
        %v4782 = vld [vmem:[%s4715 + $0x210] sm:$0xff]
        %v4783 = vld [vmem:[%s4715 + $0x218] sm:$0xff]
        %v4784 = vld [vmem:[%s4715 + $0x220] sm:$0xff]
        %v4785 = vld [vmem:[%s4715 + $0x228] sm:$0xff]
        %v4786 = vld [vmem:[%s4715 + $0x230] sm:$0xff]
        %v4787 = vld [vmem:[%s4715 + $0x238] sm:$0xff]
        %v4788 = vld [vmem:[%s4715 + $0x240] sm:$0xff]
        %v4789 = vld [vmem:[%s4715 + $0x248] sm:$0xff]
        %v4790 = vld [vmem:[%s4715 + $0x250] sm:$0xff]
        %v4791 = vld [vmem:[%s4715 + $0x258] sm:$0xff]
        %v4792 = vld [vmem:[%s4715 + $0x260] sm:$0xff]
        %v4793 = vld [vmem:[%s4715 + $0x268] sm:$0xff]
        %v4794 = vld [vmem:[%s4715 + $0x270] sm:$0xff]
        %v4795 = vld [vmem:[%s4715 + $0x278] sm:$0xff]
        %v4796 = vld [vmem:[%s4715 + $0x280] sm:$0xff]
        %v4797 = vld [vmem:[%s4715 + $0x288] sm:$0xff]
        %v4798 = vld [vmem:[%s4715 + $0x290] sm:$0xff]
        %v4799 = vld [vmem:[%s4715 + $0x298] sm:$0xff]
        %v4800 = vld [vmem:[%s4715 + $0x2a0] sm:$0xff]
        %v4801 = vld [vmem:[%s4715 + $0x2a8] sm:$0xff]
        %v4802 = vld [vmem:[%s4715 + $0x2b0] sm:$0xff]
        %v4803 = vld [vmem:[%s4715 + $0x2b8] sm:$0xff]
        %v4804 = vld [vmem:[%s4715 + $0x2c0] sm:$0xff]
        %v4805 = vld [vmem:[%s4715 + $0x2c8] sm:$0xff]
        %v4806 = vld [vmem:[%s4715 + $0x2d0] sm:$0xff]
        %v4807 = vld [vmem:[%s4715 + $0x2d8] sm:$0xff]
        %v4808 = vld [vmem:[%s4715 + $0x2e0] sm:$0xff]
        %v4809 = vld [vmem:[%s4715 + $0x2e8] sm:$0xff]
        %v4810 = vld [vmem:[%s4715 + $0x2f0] sm:$0xff]
        %v4811 = vld [vmem:[%s4715 + $0x2f8] sm:$0xff]
        %v4812 = vld [vmem:[%s4715 + $0x300] sm:$0xff]
        %v4813 = vld [vmem:[%s4715 + $0x308] sm:$0xff]
        %v4814 = vld [vmem:[%s4715 + $0x310] sm:$0xff]
        %v4815 = vld [vmem:[%s4715 + $0x318] sm:$0xff]
        %v4816 = vld [vmem:[%s4715 + $0x320] sm:$0xff]
        %v4817 = vld [vmem:[%s4715 + $0x328] sm:$0xff]
        %v4818 = vld [vmem:[%s4715 + $0x330] sm:$0xff]
        %v4819 = vld [vmem:[%s4715 + $0x338] sm:$0xff]
        %v4820 = vld [vmem:[%s4715 + $0x340] sm:$0xff]
        %v4821 = vld [vmem:[%s4715 + $0x348] sm:$0xff]
        %v4822 = vld [vmem:[%s4715 + $0x350] sm:$0xff]
        %v4823 = vld [vmem:[%s4715 + $0x358] sm:$0xff]
        %v4824 = vld [vmem:[%s4715 + $0x360] sm:$0xff]
        %v4825 = vld [vmem:[%s4715 + $0x368] sm:$0xff]
        %v4826 = vld [vmem:[%s4715 + $0x370] sm:$0xff]
        %v4827 = vld [vmem:[%s4715 + $0x378] sm:$0xff]
        %v4828 = vld [vmem:[%s4715 + $0x380] sm:$0xff]
        %v4829 = vld [vmem:[%s4715 + $0x388] sm:$0xff]
        %v4830 = vld [vmem:[%s4715 + $0x390] sm:$0xff]
        %v4831 = vld [vmem:[%s4715 + $0x398] sm:$0xff]
        %v4832 = vld [vmem:[%s4715 + $0x3a0] sm:$0xff]
        %v4833 = vld [vmem:[%s4715 + $0x3a8] sm:$0xff]
        %v4834 = vld [vmem:[%s4715 + $0x3b0] sm:$0xff]
        %v4835 = vld [vmem:[%s4715 + $0x3b8] sm:$0xff]
        %v4836 = vld [vmem:[%s4715 + $0x3c0] sm:$0xff]
        %v4837 = vld [vmem:[%s4715 + $0x3c8] sm:$0xff]
        %v4838 = vld [vmem:[%s4715 + $0x3d0] sm:$0xff]
        %v4839 = vld [vmem:[%s4715 + $0x3d8] sm:$0xff]
        %v4840 = vld [vmem:[%s4715 + $0x3e0] sm:$0xff]
        %v4841 = vld [vmem:[%s4715 + $0x3e8] sm:$0xff]
        %v4842 = vld [vmem:[%s4715 + $0x3f0] sm:$0xff]
        %v4843 = vld [vmem:[%s4715 + $0x3f8] sm:$0xff]
        %v4844 = vld [vmem:[%s4715 + $0x400] sm:$0xff]
        %v4845 = vld [vmem:[%s4715 + $0x408] sm:$0xff]
        %v4846 = vld [vmem:[%s4715 + $0x410] sm:$0xff]
        %v4847 = vld [vmem:[%s4715 + $0x418] sm:$0xff]
        %v4848 = vld [vmem:[%s4715 + $0x420] sm:$0xff]
        %v4849 = vld [vmem:[%s4715 + $0x428] sm:$0xff]
        %v4850 = vld [vmem:[%s4715 + $0x430] sm:$0xff]
        %v4851 = vld [vmem:[%s4715 + $0x438] sm:$0xff]
        %v4852 = vld [vmem:[%s4715 + $0x440] sm:$0xff]
        %v4853 = vld [vmem:[%s4715 + $0x448] sm:$0xff]
        %v4854 = vld [vmem:[%s4715 + $0x450] sm:$0xff]
        %v4855 = vld [vmem:[%s4715 + $0x458] sm:$0xff]
        %v4856 = vld [vmem:[%s4715 + $0x460] sm:$0xff]
        %v4857 = vld [vmem:[%s4715 + $0x468] sm:$0xff]
        %v4858 = vld [vmem:[%s4715 + $0x470] sm:$0xff]
        %v4859 = vld [vmem:[%s4715 + $0x478] sm:$0xff]
        %v4860 = vld [vmem:[%s4715 + $0x480] sm:$0xff]
        %v4861 = vld [vmem:[%s4715 + $0x488] sm:$0xff]
        %v4862 = vld [vmem:[%s4715 + $0x490] sm:$0xff]
        %v4863 = vld [vmem:[%s4715 + $0x498] sm:$0xff]
        %v4864 = vld [vmem:[%s4715 + $0x4a0] sm:$0xff]
        %v4865 = vld [vmem:[%s4715 + $0x4a8] sm:$0xff]
        %v4866 = vld [vmem:[%s4715 + $0x4b0] sm:$0xff]
        %v4867 = vld [vmem:[%s4715 + $0x4b8] sm:$0xff]
        %v4868 = vld [vmem:[%s4715 + $0x4c0] sm:$0xff]
        %v4869 = vld [vmem:[%s4715 + $0x4c8] sm:$0xff]
        %v4870 = vld [vmem:[%s4715 + $0x4d0] sm:$0xff]
        %v4871 = vld [vmem:[%s4715 + $0x4d8] sm:$0xff]
        %v4872 = vld [vmem:[%s4715 + $0x4e0] sm:$0xff]
        %v4873 = vld [vmem:[%s4715 + $0x4e8] sm:$0xff]
        %v4874 = vld [vmem:[%s4715 + $0x4f0] sm:$0xff]
        %v4875 = vld [vmem:[%s4715 + $0x4f8] sm:$0xff]
        %v4876 = vld [vmem:[%s4715 + $0x500] sm:$0xff]
        %v4877 = vld [vmem:[%s4715 + $0x508] sm:$0xff]
        %v4878 = vld [vmem:[%s4715 + $0x510] sm:$0xff]
        %v4879 = vld [vmem:[%s4715 + $0x518] sm:$0xff]
        %v4880 = vld [vmem:[%s4715 + $0x520] sm:$0xff]
        %v4881 = vld [vmem:[%s4715 + $0x528] sm:$0xff]
        %v4882 = vld [vmem:[%s4715 + $0x530] sm:$0xff]
        %v4883 = vld [vmem:[%s4715 + $0x538] sm:$0xff]
        %v4884 = vld [vmem:[%s4715 + $0x540] sm:$0xff]
        %v4885 = vld [vmem:[%s4715 + $0x548] sm:$0xff]
        %v4886 = vld [vmem:[%s4715 + $0x550] sm:$0xff]
        %v4887 = vld [vmem:[%s4715 + $0x558] sm:$0xff]
        %v4888 = vld [vmem:[%s4715 + $0x560] sm:$0xff]
        %v4889 = vld [vmem:[%s4715 + $0x568] sm:$0xff]
        %v4890 = vld [vmem:[%s4715 + $0x570] sm:$0xff]
        %v4891 = vld [vmem:[%s4715 + $0x578] sm:$0xff]
        %v4892 = vld [vmem:[%s4715 + $0x580] sm:$0xff]
        %v4893 = vld [vmem:[%s4715 + $0x588] sm:$0xff]
        %v4894 = vld [vmem:[%s4715 + $0x590] sm:$0xff]
        %v4895 = vld [vmem:[%s4715 + $0x598] sm:$0xff]
        %v4896 = vld [vmem:[%s4715 + $0x5a0] sm:$0xff]
        %v4897 = vld [vmem:[%s4715 + $0x5a8] sm:$0xff]
        %v4898 = vld [vmem:[%s4715 + $0x5b0] sm:$0xff]
        %v4899 = vld [vmem:[%s4715 + $0x5b8] sm:$0xff]
        %v4900 = vld [vmem:[%s4715 + $0x5c0] sm:$0xff]
        %v4901 = vld [vmem:[%s4715 + $0x5c8] sm:$0xff]
        %v4902 = vld [vmem:[%s4715 + $0x5d0] sm:$0xff]
        %v4903 = vld [vmem:[%s4715 + $0x5d8] sm:$0xff]
        %v4904 = vld [vmem:[%s4715 + $0x5e0] sm:$0xff]
        %v4905 = vld [vmem:[%s4715 + $0x5e8] sm:$0xff]
        %v4906 = vld [vmem:[%s4715 + $0x5f0] sm:$0xff]
        %v4907 = vld [vmem:[%s4715 + $0x5f8] sm:$0xff]
        %v4908 = vld [vmem:[%s4715 + $0x600] sm:$0xff]
        %v4909 = vld [vmem:[%s4715 + $0x608] sm:$0xff]
        %v4910 = vld [vmem:[%s4715 + $0x610] sm:$0xff]
        %v4911 = vld [vmem:[%s4715 + $0x618] sm:$0xff]
        %v4912 = vld [vmem:[%s4715 + $0x620] sm:$0xff]
        %v4913 = vld [vmem:[%s4715 + $0x628] sm:$0xff]
        %v4914 = vld [vmem:[%s4715 + $0x630] sm:$0xff]
        %v4915 = vld [vmem:[%s4715 + $0x638] sm:$0xff]
        %v4916 = vld [vmem:[%s4715 + $0x640] sm:$0xff]
        %v4917 = vld [vmem:[%s4715 + $0x648] sm:$0xff]
        %v4918 = vld [vmem:[%s4715 + $0x650] sm:$0xff]
        %v4919 = vld [vmem:[%s4715 + $0x658] sm:$0xff]
        %v4920 = vld [vmem:[%s4715 + $0x660] sm:$0xff]
        %v4921 = vld [vmem:[%s4715 + $0x668] sm:$0xff]
        %v4922 = vld [vmem:[%s4715 + $0x670] sm:$0xff]
        %v4923 = vld [vmem:[%s4715 + $0x678] sm:$0xff]
        %v4924 = vld [vmem:[%s4715 + $0x680] sm:$0xff]
        %v4925 = vld [vmem:[%s4715 + $0x688] sm:$0xff]
        %v4926 = vld [vmem:[%s4715 + $0x690] sm:$0xff]
        %v4927 = vld [vmem:[%s4715 + $0x698] sm:$0xff]
        %v4928 = vld [vmem:[%s4715 + $0x6a0] sm:$0xff]
        %v4929 = vld [vmem:[%s4715 + $0x6a8] sm:$0xff]
        %v4930 = vld [vmem:[%s4715 + $0x6b0] sm:$0xff]
        %v4931 = vld [vmem:[%s4715 + $0x6b8] sm:$0xff]
        %v4932 = vld [vmem:[%s4715 + $0x6c0] sm:$0xff]
        %v4933 = vld [vmem:[%s4715 + $0x6c8] sm:$0xff]
        %v4934 = vld [vmem:[%s4715 + $0x6d0] sm:$0xff]
        %v4935 = vld [vmem:[%s4715 + $0x6d8] sm:$0xff]
        %v4936 = vld [vmem:[%s4715 + $0x6e0] sm:$0xff]
        %v4937 = vld [vmem:[%s4715 + $0x6e8] sm:$0xff]
        %v4938 = vld [vmem:[%s4715 + $0x6f0] sm:$0xff]
        %v4939 = vld [vmem:[%s4715 + $0x6f8] sm:$0xff]
        %v4940 = vld [vmem:[%s4715 + $0x700] sm:$0xff]
        %v4941 = vld [vmem:[%s4715 + $0x708] sm:$0xff]
        %v4942 = vld [vmem:[%s4715 + $0x710] sm:$0xff]
        %v4943 = vld [vmem:[%s4715 + $0x718] sm:$0xff]
        %v4944 = vld [vmem:[%s4715 + $0x720] sm:$0xff]
        %v4945 = vld [vmem:[%s4715 + $0x728] sm:$0xff]
        %v4946 = vld [vmem:[%s4715 + $0x730] sm:$0xff]
        %v4947 = vld [vmem:[%s4715 + $0x738] sm:$0xff]
        %v4948 = vld [vmem:[%s4715 + $0x740] sm:$0xff]
        %v4949 = vld [vmem:[%s4715 + $0x748] sm:$0xff]
        %v4950 = vld [vmem:[%s4715 + $0x750] sm:$0xff]
        %v4951 = vld [vmem:[%s4715 + $0x758] sm:$0xff]
        %v4952 = vld [vmem:[%s4715 + $0x760] sm:$0xff]
        %v4953 = vld [vmem:[%s4715 + $0x768] sm:$0xff]
        %v4954 = vld [vmem:[%s4715 + $0x770] sm:$0xff]
        %v4955 = vld [vmem:[%s4715 + $0x778] sm:$0xff]
        %v4956 = vld [vmem:[%s4715 + $0x780] sm:$0xff]
        %v4957 = vld [vmem:[%s4715 + $0x788] sm:$0xff]
        %v4958 = vld [vmem:[%s4715 + $0x790] sm:$0xff]
        %v4959 = vld [vmem:[%s4715 + $0x798] sm:$0xff]
        %v4960 = vld [vmem:[%s4715 + $0x7a0] sm:$0xff]
        %v4961 = vld [vmem:[%s4715 + $0x7a8] sm:$0xff]
        %v4962 = vld [vmem:[%s4715 + $0x7b0] sm:$0xff]
        %v4963 = vld [vmem:[%s4715 + $0x7b8] sm:$0xff]
        %v4964 = vld [vmem:[%s4715 + $0x7c0] sm:$0xff]
        %v4965 = vld [vmem:[%s4715 + $0x7c8] sm:$0xff]
        %v4966 = vld [vmem:[%s4715 + $0x7d0] sm:$0xff]
        %v4967 = vld [vmem:[%s4715 + $0x7d8] sm:$0xff]
        %v4968 = vld [vmem:[%s4715 + $0x7e0] sm:$0xff]
        %v4969 = vld [vmem:[%s4715 + $0x7e8] sm:$0xff]
        %v4970 = vld [vmem:[%s4715 + $0x7f0] sm:$0xff]
        %v4971 = vld [vmem:[%s4715 + $0x7f8] sm:$0xff]
        %v4972 = vld [vmem:[%s4715 + $0x800] sm:$0xff]
        %v4973 = vld [vmem:[%s4715 + $0x808] sm:$0xff]
        %v4974 = vld [vmem:[%s4715 + $0x810] sm:$0xff]
        %v4975 = vld [vmem:[%s4715 + $0x818] sm:$0xff]
        %v4976 = vld [vmem:[%s4715 + $0x820] sm:$0xff]
        %v4977 = vld [vmem:[%s4715 + $0x828] sm:$0xff]
        %v4978 = vld [vmem:[%s4715 + $0x830] sm:$0xff]
        %v4979 = vld [vmem:[%s4715 + $0x838] sm:$0xff]
        %v4980 = vld [vmem:[%s4715 + $0x840] sm:$0xff]
        %v4981 = vld [vmem:[%s4715 + $0x848] sm:$0xff]
        %v4982 = vld [vmem:[%s4715 + $0x850] sm:$0xff]
        %v4983 = vld [vmem:[%s4715 + $0x858] sm:$0xff]
        %v4984 = vld [vmem:[%s4715 + $0x860] sm:$0xff]
        %v4985 = vld [vmem:[%s4715 + $0x868] sm:$0xff]
        %v4986 = vld [vmem:[%s4715 + $0x870] sm:$0xff]
        %v4987 = vld [vmem:[%s4715 + $0x878] sm:$0xff]
        %v4988 = vld [vmem:[%s4715 + $0x880] sm:$0xff]
        %v4989 = vld [vmem:[%s4715 + $0x888] sm:$0xff]
        %v4990 = vld [vmem:[%s4715 + $0x890] sm:$0xff]
        %v4991 = vld [vmem:[%s4715 + $0x898] sm:$0xff]
        %v4992 = vld [vmem:[%s4715 + $0x8a0] sm:$0xff]
        %v4993 = vld [vmem:[%s4715 + $0x8a8] sm:$0xff]
        %v4994 = vld [vmem:[%s4715 + $0x8b0] sm:$0xff]
        %v4995 = vld [vmem:[%s4715 + $0x8b8] sm:$0xff]
        %v4996 = vld [vmem:[%s4715 + $0x8c0] sm:$0xff]
        %v4997 = vld [vmem:[%s4715 + $0x8c8] sm:$0xff]
        %v4998 = vld [vmem:[%s4715 + $0x8d0] sm:$0xff]
        %v4999 = vld [vmem:[%s4715 + $0x8d8] sm:$0xff]
        %v5000 = vld [vmem:[%s4715 + $0x8e0] sm:$0xff]
        %v5001 = vld [vmem:[%s4715 + $0x8e8] sm:$0xff]
        %v5002 = vld [vmem:[%s4715 + $0x8f0] sm:$0xff]
        %v5003 = vld [vmem:[%s4715 + $0x8f8] sm:$0xff]
        %v5005 = vlaneseq
        %v5006 = vshrl.u32 %v5005, 7
        %v5007 = vsub.s32 0, %v5006
        %v5008 = vrot.slane %v4712, %v5007
        %v5009 = vlaneseq
        %v5010 = vshrl.u32 %v5009, 7
        %v5011 = vsub.s32 1, %v5010
        %v5012 = vrot.slane %v4712, %v5011
        %v5013 = vlaneseq
        %v5014 = vshrl.u32 %v5013, 7
        %v5015 = vsub.s32 2, %v5014
        %v5016 = vrot.slane %v4712, %v5015
        %v5017 = vlaneseq
        %v5018 = vshrl.u32 %v5017, 7
        %v5019 = vsub.s32 3, %v5018
        %v5020 = vrot.slane %v4712, %v5019
        %v5021 = vlaneseq
        %v5022 = vshrl.u32 %v5021, 7
        %v5023 = vsub.s32 4, %v5022
        %v5024 = vrot.slane %v4712, %v5023
        %v5025 = vlaneseq
        %v5026 = vshrl.u32 %v5025, 7
        %v5027 = vsub.s32 5, %v5026
        %v5028 = vrot.slane %v4712, %v5027
        %v5323 = vunpack.c.l.b16 %v4716
        %v5324 = vunpack.c.h.b16 %v4716
        %v5325 = vunpack.c.l.b16 %v4717
        %v5326 = vunpack.c.h.b16 %v4717
        %v5327 = vunpack.c.l.b16 %v4718
        %v5328 = vunpack.c.h.b16 %v4718
        %v5329 = vunpack.c.l.b16 %v4719
        %v5330 = vunpack.c.h.b16 %v4719
        %v5331 = vunpack.c.l.b16 %v4720
        %v5332 = vunpack.c.h.b16 %v4720
        %v5333 = vunpack.c.l.b16 %v4721
        %v5334 = vunpack.c.h.b16 %v4721
        %v5335 = vunpack.c.l.b16 %v4722
        %v5336 = vunpack.c.h.b16 %v4722
        %v5337 = vunpack.c.l.b16 %v4723
        %v5338 = vunpack.c.h.b16 %v4723
        %v5339 = vunpack.c.l.b16 %v4724
        %v5340 = vunpack.c.h.b16 %v4724
        %v5341 = vunpack.c.l.b16 %v4725
        %v5342 = vunpack.c.h.b16 %v4725
        %v5343 = vunpack.c.l.b16 %v4726
        %v5344 = vunpack.c.h.b16 %v4726
        %v5345 = vunpack.c.l.b16 %v4727
        %v5346 = vunpack.c.h.b16 %v4727
        %v5347 = vunpack.c.l.b16 %v4728
        %v5348 = vunpack.c.h.b16 %v4728
        %v5349 = vunpack.c.l.b16 %v4729
        %v5350 = vunpack.c.h.b16 %v4729
        %v5351 = vunpack.c.l.b16 %v4730
        %v5352 = vunpack.c.h.b16 %v4730
        %v5353 = vunpack.c.l.b16 %v4731
        %v5354 = vunpack.c.h.b16 %v4731
        %v5355 = vunpack.c.l.b16 %v4732
        %v5356 = vunpack.c.h.b16 %v4732
        %v5357 = vunpack.c.l.b16 %v4733
        %v5358 = vunpack.c.h.b16 %v4733
        %v5359 = vunpack.c.l.b16 %v4734
        %v5360 = vunpack.c.h.b16 %v4734
        %v5361 = vunpack.c.l.b16 %v4735
        %v5362 = vunpack.c.h.b16 %v4735
        %v5363 = vunpack.c.l.b16 %v4736
        %v5364 = vunpack.c.h.b16 %v4736
        %v5365 = vunpack.c.l.b16 %v4737
        %v5366 = vunpack.c.h.b16 %v4737
        %v5367 = vunpack.c.l.b16 %v4738
        %v5368 = vunpack.c.h.b16 %v4738
        %v5369 = vunpack.c.l.b16 %v4739
        %v5370 = vunpack.c.h.b16 %v4739
        %v5371 = vunpack.c.l.b16 %v4740
        %v5372 = vunpack.c.h.b16 %v4740
        %v5373 = vunpack.c.l.b16 %v4741
        %v5374 = vunpack.c.h.b16 %v4741
        %v5375 = vunpack.c.l.b16 %v4742
        %v5376 = vunpack.c.h.b16 %v4742
        %v5377 = vunpack.c.l.b16 %v4743
        %v5378 = vunpack.c.h.b16 %v4743
        %v5379 = vunpack.c.l.b16 %v4744
        %v5380 = vunpack.c.h.b16 %v4744
        %v5381 = vunpack.c.l.b16 %v4745
        %v5382 = vunpack.c.h.b16 %v4745
        %v5383 = vunpack.c.l.b16 %v4746
        %v5384 = vunpack.c.h.b16 %v4746
        %v5385 = vunpack.c.l.b16 %v4747
        %v5386 = vunpack.c.h.b16 %v4747
        %v5387 = vunpack.c.l.b16 %v4748
        %v5388 = vunpack.c.h.b16 %v4748
        %v5389 = vunpack.c.l.b16 %v4749
        %v5390 = vunpack.c.h.b16 %v4749
        %v5391 = vunpack.c.l.b16 %v4750
        %v5392 = vunpack.c.h.b16 %v4750
        %v5393 = vunpack.c.l.b16 %v4751
        %v5394 = vunpack.c.h.b16 %v4751
        %v5395 = vunpack.c.l.b16 %v4752
        %v5396 = vunpack.c.h.b16 %v4752
        %v5397 = vunpack.c.l.b16 %v4753
        %v5398 = vunpack.c.h.b16 %v4753
        %v5399 = vunpack.c.l.b16 %v4754
        %v5400 = vunpack.c.h.b16 %v4754
        %v5401 = vunpack.c.l.b16 %v4755
        %v5402 = vunpack.c.h.b16 %v4755
        %v5403 = vunpack.c.l.b16 %v4756
        %v5404 = vunpack.c.h.b16 %v4756
        %v5405 = vunpack.c.l.b16 %v4757
        %v5406 = vunpack.c.h.b16 %v4757
        %v5407 = vunpack.c.l.b16 %v4758
        %v5408 = vunpack.c.h.b16 %v4758
        %v5409 = vunpack.c.l.b16 %v4759
        %v5410 = vunpack.c.h.b16 %v4759
        %v5411 = vunpack.c.l.b16 %v4760
        %v5412 = vunpack.c.h.b16 %v4760
        %v5413 = vunpack.c.l.b16 %v4761
        %v5414 = vunpack.c.h.b16 %v4761
        %v5415 = vunpack.c.l.b16 %v4762
        %v5416 = vunpack.c.h.b16 %v4762
        %v5417 = vunpack.c.l.b16 %v4763
        %v5418 = vunpack.c.h.b16 %v4763
        %v5419 = vunpack.c.l.b16 %v4764
        %v5420 = vunpack.c.h.b16 %v4764
        %v5421 = vunpack.c.l.b16 %v4765
        %v5422 = vunpack.c.h.b16 %v4765
        %v5423 = vunpack.c.l.b16 %v4766
        %v5424 = vunpack.c.h.b16 %v4766
        %v5425 = vunpack.c.l.b16 %v4767
        %v5426 = vunpack.c.h.b16 %v4767
        %v5427 = vunpack.c.l.b16 %v4768
        %v5428 = vunpack.c.h.b16 %v4768
        %v5429 = vunpack.c.l.b16 %v4769
        %v5430 = vunpack.c.h.b16 %v4769
        %v5431 = vunpack.c.l.b16 %v4770
        %v5432 = vunpack.c.h.b16 %v4770
        %v5433 = vunpack.c.l.b16 %v4771
        %v5434 = vunpack.c.h.b16 %v4771
        %v5435 = vunpack.c.l.b16 %v4772
        %v5436 = vunpack.c.h.b16 %v4772
        %v5437 = vunpack.c.l.b16 %v4773
        %v5438 = vunpack.c.h.b16 %v4773
        %v5439 = vunpack.c.l.b16 %v4774
        %v5440 = vunpack.c.h.b16 %v4774
        %v5441 = vunpack.c.l.b16 %v4775
        %v5442 = vunpack.c.h.b16 %v4775
        %v5443 = vunpack.c.l.b16 %v4776
        %v5444 = vunpack.c.h.b16 %v4776
        %v5445 = vunpack.c.l.b16 %v4777
        %v5446 = vunpack.c.h.b16 %v4777
        %v5447 = vunpack.c.l.b16 %v4778
        %v5448 = vunpack.c.h.b16 %v4778
        %v5449 = vunpack.c.l.b16 %v4779
        %v5450 = vunpack.c.h.b16 %v4779
        %v5451 = vunpack.c.l.b16 %v4780
        %v5452 = vunpack.c.h.b16 %v4780
        %v5453 = vunpack.c.l.b16 %v4781
        %v5454 = vunpack.c.h.b16 %v4781
        %v5455 = vunpack.c.l.b16 %v4782
        %v5456 = vunpack.c.h.b16 %v4782
        %v5457 = vunpack.c.l.b16 %v4783
        %v5458 = vunpack.c.h.b16 %v4783
        %v5459 = vunpack.c.l.b16 %v4784
        %v5460 = vunpack.c.h.b16 %v4784
        %v5461 = vunpack.c.l.b16 %v4785
        %v5462 = vunpack.c.h.b16 %v4785
        %v5463 = vunpack.c.l.b16 %v4786
        %v5464 = vunpack.c.h.b16 %v4786
        %v5465 = vunpack.c.l.b16 %v4787
        %v5466 = vunpack.c.h.b16 %v4787
        %v5467 = vunpack.c.l.b16 %v4788
        %v5468 = vunpack.c.h.b16 %v4788
        %v5469 = vunpack.c.l.b16 %v4789
        %v5470 = vunpack.c.h.b16 %v4789
        %v5471 = vunpack.c.l.b16 %v4790
        %v5472 = vunpack.c.h.b16 %v4790
        %v5473 = vunpack.c.l.b16 %v4791
        %v5474 = vunpack.c.h.b16 %v4791
        %v5475 = vunpack.c.l.b16 %v4792
        %v5476 = vunpack.c.h.b16 %v4792
        %v5477 = vunpack.c.l.b16 %v4793
        %v5478 = vunpack.c.h.b16 %v4793
        %v5479 = vunpack.c.l.b16 %v4794
        %v5480 = vunpack.c.h.b16 %v4794
        %v5481 = vunpack.c.l.b16 %v4795
        %v5482 = vunpack.c.h.b16 %v4795
        %v5483 = vunpack.c.l.b16 %v4796
        %v5484 = vunpack.c.h.b16 %v4796
        %v5485 = vunpack.c.l.b16 %v4797
        %v5486 = vunpack.c.h.b16 %v4797
        %v5487 = vunpack.c.l.b16 %v4798
        %v5488 = vunpack.c.h.b16 %v4798
        %v5489 = vunpack.c.l.b16 %v4799
        %v5490 = vunpack.c.h.b16 %v4799
        %v5491 = vunpack.c.l.b16 %v4800
        %v5492 = vunpack.c.h.b16 %v4800
        %v5493 = vunpack.c.l.b16 %v4801
        %v5494 = vunpack.c.h.b16 %v4801
        %v5495 = vunpack.c.l.b16 %v4802
        %v5496 = vunpack.c.h.b16 %v4802
        %v5497 = vunpack.c.l.b16 %v4803
        %v5498 = vunpack.c.h.b16 %v4803
        %v5499 = vunpack.c.l.b16 %v4804
        %v5500 = vunpack.c.h.b16 %v4804
        %v5501 = vunpack.c.l.b16 %v4805
        %v5502 = vunpack.c.h.b16 %v4805
        %v5503 = vunpack.c.l.b16 %v4806
        %v5504 = vunpack.c.h.b16 %v4806
        %v5505 = vunpack.c.l.b16 %v4807
        %v5506 = vunpack.c.h.b16 %v4807
        %v5507 = vunpack.c.l.b16 %v4808
        %v5508 = vunpack.c.h.b16 %v4808
        %v5509 = vunpack.c.l.b16 %v4809
        %v5510 = vunpack.c.h.b16 %v4809
        %v5511 = vunpack.c.l.b16 %v4810
        %v5512 = vunpack.c.h.b16 %v4810
        %v5513 = vunpack.c.l.b16 %v4811
        %v5514 = vunpack.c.h.b16 %v4811
        %v5515 = vunpack.c.l.b16 %v4812
        %v5516 = vunpack.c.h.b16 %v4812
        %v5517 = vunpack.c.l.b16 %v4813
        %v5518 = vunpack.c.h.b16 %v4813
        %v5519 = vunpack.c.l.b16 %v4814
        %v5520 = vunpack.c.h.b16 %v4814
        %v5521 = vunpack.c.l.b16 %v4815
        %v5522 = vunpack.c.h.b16 %v4815
        %v5523 = vunpack.c.l.b16 %v4816
        %v5524 = vunpack.c.h.b16 %v4816
        %v5525 = vunpack.c.l.b16 %v4817
        %v5526 = vunpack.c.h.b16 %v4817
        %v5527 = vunpack.c.l.b16 %v4818
        %v5528 = vunpack.c.h.b16 %v4818
        %v5529 = vunpack.c.l.b16 %v4819
        %v5530 = vunpack.c.h.b16 %v4819
        %v5531 = vunpack.c.l.b16 %v4820
        %v5532 = vunpack.c.h.b16 %v4820
        %v5533 = vunpack.c.l.b16 %v4821
        %v5534 = vunpack.c.h.b16 %v4821
        %v5535 = vunpack.c.l.b16 %v4822
        %v5536 = vunpack.c.h.b16 %v4822
        %v5537 = vunpack.c.l.b16 %v4823
        %v5538 = vunpack.c.h.b16 %v4823
        %v5539 = vunpack.c.l.b16 %v4824
        %v5540 = vunpack.c.h.b16 %v4824
        %v5541 = vunpack.c.l.b16 %v4825
        %v5542 = vunpack.c.h.b16 %v4825
        %v5543 = vunpack.c.l.b16 %v4826
        %v5544 = vunpack.c.h.b16 %v4826
        %v5545 = vunpack.c.l.b16 %v4827
        %v5546 = vunpack.c.h.b16 %v4827
        %v5547 = vunpack.c.l.b16 %v4828
        %v5548 = vunpack.c.h.b16 %v4828
        %v5549 = vunpack.c.l.b16 %v4829
        %v5550 = vunpack.c.h.b16 %v4829
        %v5551 = vunpack.c.l.b16 %v4830
        %v5552 = vunpack.c.h.b16 %v4830
        %v5553 = vunpack.c.l.b16 %v4831
        %v5554 = vunpack.c.h.b16 %v4831
        %v5555 = vunpack.c.l.b16 %v4832
        %v5556 = vunpack.c.h.b16 %v4832
        %v5557 = vunpack.c.l.b16 %v4833
        %v5558 = vunpack.c.h.b16 %v4833
        %v5559 = vunpack.c.l.b16 %v4834
        %v5560 = vunpack.c.h.b16 %v4834
        %v5561 = vunpack.c.l.b16 %v4835
        %v5562 = vunpack.c.h.b16 %v4835
        %v5563 = vunpack.c.l.b16 %v4836
        %v5564 = vunpack.c.h.b16 %v4836
        %v5565 = vunpack.c.l.b16 %v4837
        %v5566 = vunpack.c.h.b16 %v4837
        %v5567 = vunpack.c.l.b16 %v4838
        %v5568 = vunpack.c.h.b16 %v4838
        %v5569 = vunpack.c.l.b16 %v4839
        %v5570 = vunpack.c.h.b16 %v4839
        %v5571 = vunpack.c.l.b16 %v4840
        %v5572 = vunpack.c.h.b16 %v4840
        %v5573 = vunpack.c.l.b16 %v4841
        %v5574 = vunpack.c.h.b16 %v4841
        %v5575 = vunpack.c.l.b16 %v4842
        %v5576 = vunpack.c.h.b16 %v4842
        %v5577 = vunpack.c.l.b16 %v4843
        %v5578 = vunpack.c.h.b16 %v4843
        %v5579 = vunpack.c.l.b16 %v4844
        %v5580 = vunpack.c.h.b16 %v4844
        %v5581 = vunpack.c.l.b16 %v4845
        %v5582 = vunpack.c.h.b16 %v4845
        %v5583 = vunpack.c.l.b16 %v4846
        %v5584 = vunpack.c.h.b16 %v4846
        %v5585 = vunpack.c.l.b16 %v4847
        %v5586 = vunpack.c.h.b16 %v4847
        %v5587 = vunpack.c.l.b16 %v4848
        %v5588 = vunpack.c.h.b16 %v4848
        %v5589 = vunpack.c.l.b16 %v4849
        %v5590 = vunpack.c.h.b16 %v4849
        %v5591 = vunpack.c.l.b16 %v4850
        %v5592 = vunpack.c.h.b16 %v4850
        %v5593 = vunpack.c.l.b16 %v4851
        %v5594 = vunpack.c.h.b16 %v4851
        %v5595 = vunpack.c.l.b16 %v4852
        %v5596 = vunpack.c.h.b16 %v4852
        %v5597 = vunpack.c.l.b16 %v4853
        %v5598 = vunpack.c.h.b16 %v4853
        %v5599 = vunpack.c.l.b16 %v4854
        %v5600 = vunpack.c.h.b16 %v4854
        %v5601 = vunpack.c.l.b16 %v4855
        %v5602 = vunpack.c.h.b16 %v4855
        %v5603 = vunpack.c.l.b16 %v4856
        %v5604 = vunpack.c.h.b16 %v4856
        %v5605 = vunpack.c.l.b16 %v4857
        %v5606 = vunpack.c.h.b16 %v4857
        %v5607 = vunpack.c.l.b16 %v4858
        %v5608 = vunpack.c.h.b16 %v4858
        %v5609 = vunpack.c.l.b16 %v4859
        %v5610 = vunpack.c.h.b16 %v4859
        %v5611 = vunpack.c.l.b16 %v4860
        %v5612 = vunpack.c.h.b16 %v4860
        %v5613 = vunpack.c.l.b16 %v4861
        %v5614 = vunpack.c.h.b16 %v4861
        %v5615 = vunpack.c.l.b16 %v4862
        %v5616 = vunpack.c.h.b16 %v4862
        %v5617 = vunpack.c.l.b16 %v4863
        %v5618 = vunpack.c.h.b16 %v4863
        %v5619 = vunpack.c.l.b16 %v4864
        %v5620 = vunpack.c.h.b16 %v4864
        %v5621 = vunpack.c.l.b16 %v4865
        %v5622 = vunpack.c.h.b16 %v4865
        %v5623 = vunpack.c.l.b16 %v4866
        %v5624 = vunpack.c.h.b16 %v4866
        %v5625 = vunpack.c.l.b16 %v4867
        %v5626 = vunpack.c.h.b16 %v4867
        %v5627 = vunpack.c.l.b16 %v4868
        %v5628 = vunpack.c.h.b16 %v4868
        %v5629 = vunpack.c.l.b16 %v4869
        %v5630 = vunpack.c.h.b16 %v4869
        %v5631 = vunpack.c.l.b16 %v4870
        %v5632 = vunpack.c.h.b16 %v4870
        %v5633 = vunpack.c.l.b16 %v4871
        %v5634 = vunpack.c.h.b16 %v4871
        %v5635 = vunpack.c.l.b16 %v4872
        %v5636 = vunpack.c.h.b16 %v4872
        %v5637 = vunpack.c.l.b16 %v4873
        %v5638 = vunpack.c.h.b16 %v4873
        %v5639 = vunpack.c.l.b16 %v4874
        %v5640 = vunpack.c.h.b16 %v4874
        %v5641 = vunpack.c.l.b16 %v4875
        %v5642 = vunpack.c.h.b16 %v4875
        %v5643 = vunpack.c.l.b16 %v4876
        %v5644 = vunpack.c.h.b16 %v4876
        %v5645 = vunpack.c.l.b16 %v4877
        %v5646 = vunpack.c.h.b16 %v4877
        %v5647 = vunpack.c.l.b16 %v4878
        %v5648 = vunpack.c.h.b16 %v4878
        %v5649 = vunpack.c.l.b16 %v4879
        %v5650 = vunpack.c.h.b16 %v4879
        %v5651 = vunpack.c.l.b16 %v4880
        %v5652 = vunpack.c.h.b16 %v4880
        %v5653 = vunpack.c.l.b16 %v4881
        %v5654 = vunpack.c.h.b16 %v4881
        %v5655 = vunpack.c.l.b16 %v4882
        %v5656 = vunpack.c.h.b16 %v4882
        %v5657 = vunpack.c.l.b16 %v4883
        %v5658 = vunpack.c.h.b16 %v4883
        %v5659 = vunpack.c.l.b16 %v4884
        %v5660 = vunpack.c.h.b16 %v4884
        %v5661 = vunpack.c.l.b16 %v4885
        %v5662 = vunpack.c.h.b16 %v4885
        %v5663 = vunpack.c.l.b16 %v4886
        %v5664 = vunpack.c.h.b16 %v4886
        %v5665 = vunpack.c.l.b16 %v4887
        %v5666 = vunpack.c.h.b16 %v4887
        %v5667 = vunpack.c.l.b16 %v4888
        %v5668 = vunpack.c.h.b16 %v4888
        %v5669 = vunpack.c.l.b16 %v4889
        %v5670 = vunpack.c.h.b16 %v4889
        %v5671 = vunpack.c.l.b16 %v4890
        %v5672 = vunpack.c.h.b16 %v4890
        %v5673 = vunpack.c.l.b16 %v4891
        %v5674 = vunpack.c.h.b16 %v4891
        %v5675 = vunpack.c.l.b16 %v4892
        %v5676 = vunpack.c.h.b16 %v4892
        %v5677 = vunpack.c.l.b16 %v4893
        %v5678 = vunpack.c.h.b16 %v4893
        %v5679 = vunpack.c.l.b16 %v4894
        %v5680 = vunpack.c.h.b16 %v4894
        %v5681 = vunpack.c.l.b16 %v4895
        %v5682 = vunpack.c.h.b16 %v4895
        %v5683 = vunpack.c.l.b16 %v4896
        %v5684 = vunpack.c.h.b16 %v4896
        %v5685 = vunpack.c.l.b16 %v4897
        %v5686 = vunpack.c.h.b16 %v4897
        %v5687 = vunpack.c.l.b16 %v4898
        %v5688 = vunpack.c.h.b16 %v4898
        %v5689 = vunpack.c.l.b16 %v4899
        %v5690 = vunpack.c.h.b16 %v4899
        %v5691 = vunpack.c.l.b16 %v4900
        %v5692 = vunpack.c.h.b16 %v4900
        %v5693 = vunpack.c.l.b16 %v4901
        %v5694 = vunpack.c.h.b16 %v4901
        %v5695 = vunpack.c.l.b16 %v4902
        %v5696 = vunpack.c.h.b16 %v4902
        %v5697 = vunpack.c.l.b16 %v4903
        %v5698 = vunpack.c.h.b16 %v4903
        %v5699 = vunpack.c.l.b16 %v4904
        %v5700 = vunpack.c.h.b16 %v4904
        %v5701 = vunpack.c.l.b16 %v4905
        %v5702 = vunpack.c.h.b16 %v4905
        %v5703 = vunpack.c.l.b16 %v4906
        %v5704 = vunpack.c.h.b16 %v4906
        %v5705 = vunpack.c.l.b16 %v4907
        %v5706 = vunpack.c.h.b16 %v4907
        %v5707 = vunpack.c.l.b16 %v4908
        %v5708 = vunpack.c.h.b16 %v4908
        %v5709 = vunpack.c.l.b16 %v4909
        %v5710 = vunpack.c.h.b16 %v4909
        %v5711 = vunpack.c.l.b16 %v4910
        %v5712 = vunpack.c.h.b16 %v4910
        %v5713 = vunpack.c.l.b16 %v4911
        %v5714 = vunpack.c.h.b16 %v4911
        %v5715 = vunpack.c.l.b16 %v4912
        %v5716 = vunpack.c.h.b16 %v4912
        %v5717 = vunpack.c.l.b16 %v4913
        %v5718 = vunpack.c.h.b16 %v4913
        %v5719 = vunpack.c.l.b16 %v4914
        %v5720 = vunpack.c.h.b16 %v4914
        %v5721 = vunpack.c.l.b16 %v4915
        %v5722 = vunpack.c.h.b16 %v4915
        %v5723 = vunpack.c.l.b16 %v4916
        %v5724 = vunpack.c.h.b16 %v4916
        %v5725 = vunpack.c.l.b16 %v4917
        %v5726 = vunpack.c.h.b16 %v4917
        %v5727 = vunpack.c.l.b16 %v4918
        %v5728 = vunpack.c.h.b16 %v4918
        %v5729 = vunpack.c.l.b16 %v4919
        %v5730 = vunpack.c.h.b16 %v4919
        %v5731 = vunpack.c.l.b16 %v4920
        %v5732 = vunpack.c.h.b16 %v4920
        %v5733 = vunpack.c.l.b16 %v4921
        %v5734 = vunpack.c.h.b16 %v4921
        %v5735 = vunpack.c.l.b16 %v4922
        %v5736 = vunpack.c.h.b16 %v4922
        %v5737 = vunpack.c.l.b16 %v4923
        %v5738 = vunpack.c.h.b16 %v4923
        %v5739 = vunpack.c.l.b16 %v4924
        %v5740 = vunpack.c.h.b16 %v4924
        %v5741 = vunpack.c.l.b16 %v4925
        %v5742 = vunpack.c.h.b16 %v4925
        %v5743 = vunpack.c.l.b16 %v4926
        %v5744 = vunpack.c.h.b16 %v4926
        %v5745 = vunpack.c.l.b16 %v4927
        %v5746 = vunpack.c.h.b16 %v4927
        %v5747 = vunpack.c.l.b16 %v4928
        %v5748 = vunpack.c.h.b16 %v4928
        %v5749 = vunpack.c.l.b16 %v4929
        %v5750 = vunpack.c.h.b16 %v4929
        %v5751 = vunpack.c.l.b16 %v4930
        %v5752 = vunpack.c.h.b16 %v4930
        %v5753 = vunpack.c.l.b16 %v4931
        %v5754 = vunpack.c.h.b16 %v4931
        %v5755 = vunpack.c.l.b16 %v4932
        %v5756 = vunpack.c.h.b16 %v4932
        %v5757 = vunpack.c.l.b16 %v4933
        %v5758 = vunpack.c.h.b16 %v4933
        %v5759 = vunpack.c.l.b16 %v4934
        %v5760 = vunpack.c.h.b16 %v4934
        %v5761 = vunpack.c.l.b16 %v4935
        %v5762 = vunpack.c.h.b16 %v4935
        %v5763 = vunpack.c.l.b16 %v4936
        %v5764 = vunpack.c.h.b16 %v4936
        %v5765 = vunpack.c.l.b16 %v4937
        %v5766 = vunpack.c.h.b16 %v4937
        %v5767 = vunpack.c.l.b16 %v4938
        %v5768 = vunpack.c.h.b16 %v4938
        %v5769 = vunpack.c.l.b16 %v4939
        %v5770 = vunpack.c.h.b16 %v4939
        %v5771 = vunpack.c.l.b16 %v4940
        %v5772 = vunpack.c.h.b16 %v4940
        %v5773 = vunpack.c.l.b16 %v4941
        %v5774 = vunpack.c.h.b16 %v4941
        %v5775 = vunpack.c.l.b16 %v4942
        %v5776 = vunpack.c.h.b16 %v4942
        %v5777 = vunpack.c.l.b16 %v4943
        %v5778 = vunpack.c.h.b16 %v4943
        %v5779 = vunpack.c.l.b16 %v4944
        %v5780 = vunpack.c.h.b16 %v4944
        %v5781 = vunpack.c.l.b16 %v4945
        %v5782 = vunpack.c.h.b16 %v4945
        %v5783 = vunpack.c.l.b16 %v4946
        %v5784 = vunpack.c.h.b16 %v4946
        %v5785 = vunpack.c.l.b16 %v4947
        %v5786 = vunpack.c.h.b16 %v4947
        %v5787 = vunpack.c.l.b16 %v4948
        %v5788 = vunpack.c.h.b16 %v4948
        %v5789 = vunpack.c.l.b16 %v4949
        %v5790 = vunpack.c.h.b16 %v4949
        %v5791 = vunpack.c.l.b16 %v4950
        %v5792 = vunpack.c.h.b16 %v4950
        %v5793 = vunpack.c.l.b16 %v4951
        %v5794 = vunpack.c.h.b16 %v4951
        %v5795 = vunpack.c.l.b16 %v4952
        %v5796 = vunpack.c.h.b16 %v4952
        %v5797 = vunpack.c.l.b16 %v4953
        %v5798 = vunpack.c.h.b16 %v4953
        %v5799 = vunpack.c.l.b16 %v4954
        %v5800 = vunpack.c.h.b16 %v4954
        %v5801 = vunpack.c.l.b16 %v4955
        %v5802 = vunpack.c.h.b16 %v4955
        %v5803 = vunpack.c.l.b16 %v4956
        %v5804 = vunpack.c.h.b16 %v4956
        %v5805 = vunpack.c.l.b16 %v4957
        %v5806 = vunpack.c.h.b16 %v4957
        %v5807 = vunpack.c.l.b16 %v4958
        %v5808 = vunpack.c.h.b16 %v4958
        %v5809 = vunpack.c.l.b16 %v4959
        %v5810 = vunpack.c.h.b16 %v4959
        %v5811 = vunpack.c.l.b16 %v4960
        %v5812 = vunpack.c.h.b16 %v4960
        %v5813 = vunpack.c.l.b16 %v4961
        %v5814 = vunpack.c.h.b16 %v4961
        %v5815 = vunpack.c.l.b16 %v4962
        %v5816 = vunpack.c.h.b16 %v4962
        %v5817 = vunpack.c.l.b16 %v4963
        %v5818 = vunpack.c.h.b16 %v4963
        %v5819 = vunpack.c.l.b16 %v4964
        %v5820 = vunpack.c.h.b16 %v4964
        %v5821 = vunpack.c.l.b16 %v4965
        %v5822 = vunpack.c.h.b16 %v4965
        %v5823 = vunpack.c.l.b16 %v4966
        %v5824 = vunpack.c.h.b16 %v4966
        %v5825 = vunpack.c.l.b16 %v4967
        %v5826 = vunpack.c.h.b16 %v4967
        %v5827 = vunpack.c.l.b16 %v4968
        %v5828 = vunpack.c.h.b16 %v4968
        %v5829 = vunpack.c.l.b16 %v4969
        %v5830 = vunpack.c.h.b16 %v4969
        %v5831 = vunpack.c.l.b16 %v4970
        %v5832 = vunpack.c.h.b16 %v4970
        %v5833 = vunpack.c.l.b16 %v4971
        %v5834 = vunpack.c.h.b16 %v4971
        %v5835 = vunpack.c.l.b16 %v4972
        %v5836 = vunpack.c.h.b16 %v4972
        %v5837 = vunpack.c.l.b16 %v4973
        %v5838 = vunpack.c.h.b16 %v4973
        %v5839 = vunpack.c.l.b16 %v4974
        %v5840 = vunpack.c.h.b16 %v4974
        %v5841 = vunpack.c.l.b16 %v4975
        %v5842 = vunpack.c.h.b16 %v4975
        %v5843 = vunpack.c.l.b16 %v4976
        %v5844 = vunpack.c.h.b16 %v4976
        %v5845 = vunpack.c.l.b16 %v4977
        %v5846 = vunpack.c.h.b16 %v4977
        %v5847 = vunpack.c.l.b16 %v4978
        %v5848 = vunpack.c.h.b16 %v4978
        %v5849 = vunpack.c.l.b16 %v4979
        %v5850 = vunpack.c.h.b16 %v4979
        %v5851 = vunpack.c.l.b16 %v4980
        %v5852 = vunpack.c.h.b16 %v4980
        %v5853 = vunpack.c.l.b16 %v4981
        %v5854 = vunpack.c.h.b16 %v4981
        %v5855 = vunpack.c.l.b16 %v4982
        %v5856 = vunpack.c.h.b16 %v4982
        %v5857 = vunpack.c.l.b16 %v4983
        %v5858 = vunpack.c.h.b16 %v4983
        %v5859 = vunpack.c.l.b16 %v4984
        %v5860 = vunpack.c.h.b16 %v4984
        %v5861 = vunpack.c.l.b16 %v4985
        %v5862 = vunpack.c.h.b16 %v4985
        %v5863 = vunpack.c.l.b16 %v4986
        %v5864 = vunpack.c.h.b16 %v4986
        %v5865 = vunpack.c.l.b16 %v4987
        %v5866 = vunpack.c.h.b16 %v4987
        %v5867 = vunpack.c.l.b16 %v4988
        %v5868 = vunpack.c.h.b16 %v4988
        %v5869 = vunpack.c.l.b16 %v4989
        %v5870 = vunpack.c.h.b16 %v4989
        %v5871 = vunpack.c.l.b16 %v4990
        %v5872 = vunpack.c.h.b16 %v4990
        %v5873 = vunpack.c.l.b16 %v4991
        %v5874 = vunpack.c.h.b16 %v4991
        %v5875 = vunpack.c.l.b16 %v4992
        %v5876 = vunpack.c.h.b16 %v4992
        %v5877 = vunpack.c.l.b16 %v4993
        %v5878 = vunpack.c.h.b16 %v4993
        %v5879 = vunpack.c.l.b16 %v4994
        %v5880 = vunpack.c.h.b16 %v4994
        %v5881 = vunpack.c.l.b16 %v4995
        %v5882 = vunpack.c.h.b16 %v4995
        %v5883 = vunpack.c.l.b16 %v4996
        %v5884 = vunpack.c.h.b16 %v4996
        %v5885 = vunpack.c.l.b16 %v4997
        %v5886 = vunpack.c.h.b16 %v4997
        %v5887 = vunpack.c.l.b16 %v4998
        %v5888 = vunpack.c.h.b16 %v4998
        %v5889 = vunpack.c.l.b16 %v4999
        %v5890 = vunpack.c.h.b16 %v4999
        %v5891 = vunpack.c.l.b16 %v5000
        %v5892 = vunpack.c.h.b16 %v5000
        %v5893 = vunpack.c.l.b16 %v5001
        %v5894 = vunpack.c.h.b16 %v5001
        %v5895 = vunpack.c.l.b16 %v5002
        %v5896 = vunpack.c.h.b16 %v5002
        %v5897 = vunpack.c.l.b16 %v5003
        %v5898 = vunpack.c.h.b16 %v5003
        %v5899 = vpack.c.b16 %v5329, %v5323
        %v5900 = vpack.c.b16 %v5330, %v5324
        %v5901 = vpack.c.b16 %v5331, %v5325
        %v5902 = vpack.c.b16 %v5332, %v5326
        %v5903 = vpack.c.b16 %v5333, %v5327
        %v5904 = vpack.c.b16 %v5334, %v5328
        %v5905 = vpack.c.b16 %v5341, %v5335
        %v5906 = vpack.c.b16 %v5342, %v5336
        %v5907 = vpack.c.b16 %v5343, %v5337
        %v5908 = vpack.c.b16 %v5344, %v5338
        %v5909 = vpack.c.b16 %v5345, %v5339
        %v5910 = vpack.c.b16 %v5346, %v5340
        %v5911 = vpack.c.b16 %v5353, %v5347
        %v5912 = vpack.c.b16 %v5354, %v5348
        %v5913 = vpack.c.b16 %v5355, %v5349
        %v5914 = vpack.c.b16 %v5356, %v5350
        %v5915 = vpack.c.b16 %v5357, %v5351
        %v5916 = vpack.c.b16 %v5358, %v5352
        %v5917 = vpack.c.b16 %v5365, %v5359
        %v5918 = vpack.c.b16 %v5366, %v5360
        %v5919 = vpack.c.b16 %v5367, %v5361
        %v5920 = vpack.c.b16 %v5368, %v5362
        %v5921 = vpack.c.b16 %v5369, %v5363
        %v5922 = vpack.c.b16 %v5370, %v5364
        %v5923 = vpack.c.b16 %v5377, %v5371
        %v5924 = vpack.c.b16 %v5378, %v5372
        %v5925 = vpack.c.b16 %v5379, %v5373
        %v5926 = vpack.c.b16 %v5380, %v5374
        %v5927 = vpack.c.b16 %v5381, %v5375
        %v5928 = vpack.c.b16 %v5382, %v5376
        %v5929 = vpack.c.b16 %v5389, %v5383
        %v5930 = vpack.c.b16 %v5390, %v5384
        %v5931 = vpack.c.b16 %v5391, %v5385
        %v5932 = vpack.c.b16 %v5392, %v5386
        %v5933 = vpack.c.b16 %v5393, %v5387
        %v5934 = vpack.c.b16 %v5394, %v5388
        %v5935 = vpack.c.b16 %v5401, %v5395
        %v5936 = vpack.c.b16 %v5402, %v5396
        %v5937 = vpack.c.b16 %v5403, %v5397
        %v5938 = vpack.c.b16 %v5404, %v5398
        %v5939 = vpack.c.b16 %v5405, %v5399
        %v5940 = vpack.c.b16 %v5406, %v5400
        %v5941 = vpack.c.b16 %v5413, %v5407
        %v5942 = vpack.c.b16 %v5414, %v5408
        %v5943 = vpack.c.b16 %v5415, %v5409
        %v5944 = vpack.c.b16 %v5416, %v5410
        %v5945 = vpack.c.b16 %v5417, %v5411
        %v5946 = vpack.c.b16 %v5418, %v5412
        %v5947 = vpack.c.b16 %v5425, %v5419
        %v5948 = vpack.c.b16 %v5426, %v5420
        %v5949 = vpack.c.b16 %v5427, %v5421
        %v5950 = vpack.c.b16 %v5428, %v5422
        %v5951 = vpack.c.b16 %v5429, %v5423
        %v5952 = vpack.c.b16 %v5430, %v5424
        %v5953 = vpack.c.b16 %v5437, %v5431
        %v5954 = vpack.c.b16 %v5438, %v5432
        %v5955 = vpack.c.b16 %v5439, %v5433
        %v5956 = vpack.c.b16 %v5440, %v5434
        %v5957 = vpack.c.b16 %v5441, %v5435
        %v5958 = vpack.c.b16 %v5442, %v5436
        %v5959 = vpack.c.b16 %v5449, %v5443
        %v5960 = vpack.c.b16 %v5450, %v5444
        %v5961 = vpack.c.b16 %v5451, %v5445
        %v5962 = vpack.c.b16 %v5452, %v5446
        %v5963 = vpack.c.b16 %v5453, %v5447
        %v5964 = vpack.c.b16 %v5454, %v5448
        %v5965 = vpack.c.b16 %v5461, %v5455
        %v5966 = vpack.c.b16 %v5462, %v5456
        %v5967 = vpack.c.b16 %v5463, %v5457
        %v5968 = vpack.c.b16 %v5464, %v5458
        %v5969 = vpack.c.b16 %v5465, %v5459
        %v5970 = vpack.c.b16 %v5466, %v5460
        %v5971 = vpack.c.b16 %v5473, %v5467
        %v5972 = vpack.c.b16 %v5474, %v5468
        %v5973 = vpack.c.b16 %v5475, %v5469
        %v5974 = vpack.c.b16 %v5476, %v5470
        %v5975 = vpack.c.b16 %v5477, %v5471
        %v5976 = vpack.c.b16 %v5478, %v5472
        %v5977 = vpack.c.b16 %v5485, %v5479
        %v5978 = vpack.c.b16 %v5486, %v5480
        %v5979 = vpack.c.b16 %v5487, %v5481
        %v5980 = vpack.c.b16 %v5488, %v5482
        %v5981 = vpack.c.b16 %v5489, %v5483
        %v5982 = vpack.c.b16 %v5490, %v5484
        %v5983 = vpack.c.b16 %v5497, %v5491
        %v5984 = vpack.c.b16 %v5498, %v5492
        %v5985 = vpack.c.b16 %v5499, %v5493
        %v5986 = vpack.c.b16 %v5500, %v5494
        %v5987 = vpack.c.b16 %v5501, %v5495
        %v5988 = vpack.c.b16 %v5502, %v5496
        %v5989 = vpack.c.b16 %v5509, %v5503
        %v5990 = vpack.c.b16 %v5510, %v5504
        %v5991 = vpack.c.b16 %v5511, %v5505
        %v5992 = vpack.c.b16 %v5512, %v5506
        %v5993 = vpack.c.b16 %v5513, %v5507
        %v5994 = vpack.c.b16 %v5514, %v5508
        %v5995 = vpack.c.b16 %v5521, %v5515
        %v5996 = vpack.c.b16 %v5522, %v5516
        %v5997 = vpack.c.b16 %v5523, %v5517
        %v5998 = vpack.c.b16 %v5524, %v5518
        %v5999 = vpack.c.b16 %v5525, %v5519
        %v6000 = vpack.c.b16 %v5526, %v5520
        %v6001 = vpack.c.b16 %v5533, %v5527
        %v6002 = vpack.c.b16 %v5534, %v5528
        %v6003 = vpack.c.b16 %v5535, %v5529
        %v6004 = vpack.c.b16 %v5536, %v5530
        %v6005 = vpack.c.b16 %v5537, %v5531
        %v6006 = vpack.c.b16 %v5538, %v5532
        %v6007 = vpack.c.b16 %v5545, %v5539
        %v6008 = vpack.c.b16 %v5546, %v5540
        %v6009 = vpack.c.b16 %v5547, %v5541
        %v6010 = vpack.c.b16 %v5548, %v5542
        %v6011 = vpack.c.b16 %v5549, %v5543
        %v6012 = vpack.c.b16 %v5550, %v5544
        %v6013 = vpack.c.b16 %v5557, %v5551
        %v6014 = vpack.c.b16 %v5558, %v5552
        %v6015 = vpack.c.b16 %v5559, %v5553
        %v6016 = vpack.c.b16 %v5560, %v5554
        %v6017 = vpack.c.b16 %v5561, %v5555
        %v6018 = vpack.c.b16 %v5562, %v5556
        %v6019 = vpack.c.b16 %v5569, %v5563
        %v6020 = vpack.c.b16 %v5570, %v5564
        %v6021 = vpack.c.b16 %v5571, %v5565
        %v6022 = vpack.c.b16 %v5572, %v5566
        %v6023 = vpack.c.b16 %v5573, %v5567
        %v6024 = vpack.c.b16 %v5574, %v5568
        %v6025 = vpack.c.b16 %v5581, %v5575
        %v6026 = vpack.c.b16 %v5582, %v5576
        %v6027 = vpack.c.b16 %v5583, %v5577
        %v6028 = vpack.c.b16 %v5584, %v5578
        %v6029 = vpack.c.b16 %v5585, %v5579
        %v6030 = vpack.c.b16 %v5586, %v5580
        %v6031 = vpack.c.b16 %v5593, %v5587
        %v6032 = vpack.c.b16 %v5594, %v5588
        %v6033 = vpack.c.b16 %v5595, %v5589
        %v6034 = vpack.c.b16 %v5596, %v5590
        %v6035 = vpack.c.b16 %v5597, %v5591
        %v6036 = vpack.c.b16 %v5598, %v5592
        %v6037 = vpack.c.b16 %v5605, %v5599
        %v6038 = vpack.c.b16 %v5606, %v5600
        %v6039 = vpack.c.b16 %v5607, %v5601
        %v6040 = vpack.c.b16 %v5608, %v5602
        %v6041 = vpack.c.b16 %v5609, %v5603
        %v6042 = vpack.c.b16 %v5610, %v5604
        %v6043 = vpack.c.b16 %v5617, %v5611
        %v6044 = vpack.c.b16 %v5618, %v5612
        %v6045 = vpack.c.b16 %v5619, %v5613
        %v6046 = vpack.c.b16 %v5620, %v5614
        %v6047 = vpack.c.b16 %v5621, %v5615
        %v6048 = vpack.c.b16 %v5622, %v5616
        %v6049 = vpack.c.b16 %v5629, %v5623
        %v6050 = vpack.c.b16 %v5630, %v5624
        %v6051 = vpack.c.b16 %v5631, %v5625
        %v6052 = vpack.c.b16 %v5632, %v5626
        %v6053 = vpack.c.b16 %v5633, %v5627
        %v6054 = vpack.c.b16 %v5634, %v5628
        %v6055 = vpack.c.b16 %v5641, %v5635
        %v6056 = vpack.c.b16 %v5642, %v5636
        %v6057 = vpack.c.b16 %v5643, %v5637
        %v6058 = vpack.c.b16 %v5644, %v5638
        %v6059 = vpack.c.b16 %v5645, %v5639
        %v6060 = vpack.c.b16 %v5646, %v5640
        %v6061 = vpack.c.b16 %v5653, %v5647
        %v6062 = vpack.c.b16 %v5654, %v5648
        %v6063 = vpack.c.b16 %v5655, %v5649
        %v6064 = vpack.c.b16 %v5656, %v5650
        %v6065 = vpack.c.b16 %v5657, %v5651
        %v6066 = vpack.c.b16 %v5658, %v5652
        %v6067 = vpack.c.b16 %v5665, %v5659
        %v6068 = vpack.c.b16 %v5666, %v5660
        %v6069 = vpack.c.b16 %v5667, %v5661
        %v6070 = vpack.c.b16 %v5668, %v5662
        %v6071 = vpack.c.b16 %v5669, %v5663
        %v6072 = vpack.c.b16 %v5670, %v5664
        %v6073 = vpack.c.b16 %v5677, %v5671
        %v6074 = vpack.c.b16 %v5678, %v5672
        %v6075 = vpack.c.b16 %v5679, %v5673
        %v6076 = vpack.c.b16 %v5680, %v5674
        %v6077 = vpack.c.b16 %v5681, %v5675
        %v6078 = vpack.c.b16 %v5682, %v5676
        %v6079 = vpack.c.b16 %v5689, %v5683
        %v6080 = vpack.c.b16 %v5690, %v5684
        %v6081 = vpack.c.b16 %v5691, %v5685
        %v6082 = vpack.c.b16 %v5692, %v5686
        %v6083 = vpack.c.b16 %v5693, %v5687
        %v6084 = vpack.c.b16 %v5694, %v5688
        %v6085 = vpack.c.b16 %v5701, %v5695
        %v6086 = vpack.c.b16 %v5702, %v5696
        %v6087 = vpack.c.b16 %v5703, %v5697
        %v6088 = vpack.c.b16 %v5704, %v5698
        %v6089 = vpack.c.b16 %v5705, %v5699
        %v6090 = vpack.c.b16 %v5706, %v5700
        %v6091 = vpack.c.b16 %v5713, %v5707
        %v6092 = vpack.c.b16 %v5714, %v5708
        %v6093 = vpack.c.b16 %v5715, %v5709
        %v6094 = vpack.c.b16 %v5716, %v5710
        %v6095 = vpack.c.b16 %v5717, %v5711
        %v6096 = vpack.c.b16 %v5718, %v5712
        %v6097 = vpack.c.b16 %v5725, %v5719
        %v6098 = vpack.c.b16 %v5726, %v5720
        %v6099 = vpack.c.b16 %v5727, %v5721
        %v6100 = vpack.c.b16 %v5728, %v5722
        %v6101 = vpack.c.b16 %v5729, %v5723
        %v6102 = vpack.c.b16 %v5730, %v5724
        %v6103 = vpack.c.b16 %v5737, %v5731
        %v6104 = vpack.c.b16 %v5738, %v5732
        %v6105 = vpack.c.b16 %v5739, %v5733
        %v6106 = vpack.c.b16 %v5740, %v5734
        %v6107 = vpack.c.b16 %v5741, %v5735
        %v6108 = vpack.c.b16 %v5742, %v5736
        %v6109 = vpack.c.b16 %v5749, %v5743
        %v6110 = vpack.c.b16 %v5750, %v5744
        %v6111 = vpack.c.b16 %v5751, %v5745
        %v6112 = vpack.c.b16 %v5752, %v5746
        %v6113 = vpack.c.b16 %v5753, %v5747
        %v6114 = vpack.c.b16 %v5754, %v5748
        %v6115 = vpack.c.b16 %v5761, %v5755
        %v6116 = vpack.c.b16 %v5762, %v5756
        %v6117 = vpack.c.b16 %v5763, %v5757
        %v6118 = vpack.c.b16 %v5764, %v5758
        %v6119 = vpack.c.b16 %v5765, %v5759
        %v6120 = vpack.c.b16 %v5766, %v5760
        %v6121 = vpack.c.b16 %v5773, %v5767
        %v6122 = vpack.c.b16 %v5774, %v5768
        %v6123 = vpack.c.b16 %v5775, %v5769
        %v6124 = vpack.c.b16 %v5776, %v5770
        %v6125 = vpack.c.b16 %v5777, %v5771
        %v6126 = vpack.c.b16 %v5778, %v5772
        %v6127 = vpack.c.b16 %v5785, %v5779
        %v6128 = vpack.c.b16 %v5786, %v5780
        %v6129 = vpack.c.b16 %v5787, %v5781
        %v6130 = vpack.c.b16 %v5788, %v5782
        %v6131 = vpack.c.b16 %v5789, %v5783
        %v6132 = vpack.c.b16 %v5790, %v5784
        %v6133 = vpack.c.b16 %v5797, %v5791
        %v6134 = vpack.c.b16 %v5798, %v5792
        %v6135 = vpack.c.b16 %v5799, %v5793
        %v6136 = vpack.c.b16 %v5800, %v5794
        %v6137 = vpack.c.b16 %v5801, %v5795
        %v6138 = vpack.c.b16 %v5802, %v5796
        %v6139 = vpack.c.b16 %v5809, %v5803
        %v6140 = vpack.c.b16 %v5810, %v5804
        %v6141 = vpack.c.b16 %v5811, %v5805
        %v6142 = vpack.c.b16 %v5812, %v5806
        %v6143 = vpack.c.b16 %v5813, %v5807
        %v6144 = vpack.c.b16 %v5814, %v5808
        %v6145 = vpack.c.b16 %v5821, %v5815
        %v6146 = vpack.c.b16 %v5822, %v5816
        %v6147 = vpack.c.b16 %v5823, %v5817
        %v6148 = vpack.c.b16 %v5824, %v5818
        %v6149 = vpack.c.b16 %v5825, %v5819
        %v6150 = vpack.c.b16 %v5826, %v5820
        %v6151 = vpack.c.b16 %v5833, %v5827
        %v6152 = vpack.c.b16 %v5834, %v5828
        %v6153 = vpack.c.b16 %v5835, %v5829
        %v6154 = vpack.c.b16 %v5836, %v5830
        %v6155 = vpack.c.b16 %v5837, %v5831
        %v6156 = vpack.c.b16 %v5838, %v5832
        %v6157 = vpack.c.b16 %v5845, %v5839
        %v6158 = vpack.c.b16 %v5846, %v5840
        %v6159 = vpack.c.b16 %v5847, %v5841
        %v6160 = vpack.c.b16 %v5848, %v5842
        %v6161 = vpack.c.b16 %v5849, %v5843
        %v6162 = vpack.c.b16 %v5850, %v5844
        %v6163 = vpack.c.b16 %v5857, %v5851
        %v6164 = vpack.c.b16 %v5858, %v5852
        %v6165 = vpack.c.b16 %v5859, %v5853
        %v6166 = vpack.c.b16 %v5860, %v5854
        %v6167 = vpack.c.b16 %v5861, %v5855
        %v6168 = vpack.c.b16 %v5862, %v5856
        %v6169 = vpack.c.b16 %v5869, %v5863
        %v6170 = vpack.c.b16 %v5870, %v5864
        %v6171 = vpack.c.b16 %v5871, %v5865
        %v6172 = vpack.c.b16 %v5872, %v5866
        %v6173 = vpack.c.b16 %v5873, %v5867
        %v6174 = vpack.c.b16 %v5874, %v5868
        %v6175 = vpack.c.b16 %v5881, %v5875
        %v6176 = vpack.c.b16 %v5882, %v5876
        %v6177 = vpack.c.b16 %v5883, %v5877
        %v6178 = vpack.c.b16 %v5884, %v5878
        %v6179 = vpack.c.b16 %v5885, %v5879
        %v6180 = vpack.c.b16 %v5886, %v5880
        %v6181 = vpack.c.b16 %v5893, %v5887
        %v6182 = vpack.c.b16 %v5894, %v5888
        %v6183 = vpack.c.b16 %v5895, %v5889
        %v6184 = vpack.c.b16 %v5896, %v5890
        %v6185 = vpack.c.b16 %v5897, %v5891
        %v6186 = vpack.c.b16 %v5898, %v5892
        %6475 = vmatprep.subr.bf16.mxu0 %v5900
        %6476 = vmatpush1.bf16.msra.mxu0 %v5899
        %6477 = vmatprep.subr.bf16.mxu0 %v5906
        %6478 = vmatpush1.bf16.msra.mxu0 %v5905
        %6479 = vmatprep.subr.bf16.mxu0 %v5912
        %6480 = vmatpush1.bf16.msra.mxu0 %v5911
        %6481 = vmatprep.subr.bf16.mxu0 %v5918
        %6482 = vmatpush1.bf16.msra.mxu0 %v5917
        %6483 = vmatprep.subr.bf16.mxu0 %v5924
        %6484 = vmatpush1.bf16.msra.mxu0 %v5923
        %6485 = vmatprep.subr.bf16.mxu0 %v5930
        %6486 = vmatpush1.bf16.msra.mxu0 %v5929
        %6487 = vmatprep.subr.bf16.mxu0 %v5936
        %6488 = vmatpush1.bf16.msra.mxu0 %v5935
        %6489 = vmatprep.subr.bf16.mxu0 %v5942
        %6490 = vmatpush1.bf16.msra.mxu0 %v5941
        %6491 = vmatprep.subr.bf16.mxu0 %v5948
        %6492 = vmatpush1.bf16.msra.mxu0 %v5947
        %6493 = vmatprep.subr.bf16.mxu0 %v5954
        %6494 = vmatpush1.bf16.msra.mxu0 %v5953
        %6495 = vmatprep.subr.bf16.mxu0 %v5960
        %6496 = vmatpush1.bf16.msra.mxu0 %v5959
        %6497 = vmatprep.subr.bf16.mxu0 %v5966
        %6498 = vmatpush1.bf16.msra.mxu0 %v5965
        %6499 = vmatprep.subr.bf16.mxu0 %v5972
        %6500 = vmatpush1.bf16.msra.mxu0 %v5971
        %6501 = vmatprep.subr.bf16.mxu0 %v5978
        %6502 = vmatpush1.bf16.msra.mxu0 %v5977
        %6503 = vmatprep.subr.bf16.mxu0 %v5984
        %6504 = vmatpush1.bf16.msra.mxu0 %v5983
        %6505 = vmatprep.subr.bf16.mxu0 %v5990
        %6506 = vmatpush1.bf16.msra.mxu0 %v5989
        %6507 = vmatprep.mubr.bf16.mxu0 %v418
        %6508 = vmatmul.mubr.bf16.gmra.mrb[0].mxu0 %v417
        %v6509 = vpop.f32.mrb[0].mxu0
        %v6510 = vadd.f32 %v5008, %v6509
        %v6511 = vpop.f32.mrb[0].mxu0
        %v6512 = vadd.f32 %v5012, %v6511
        %v6513 = vpop.f32.mrb[0].mxu0
        %v6514 = vpop.f32.mrb[0].mxu0
        %6515 = vdwg.mxu0
        %6516 = vmatprep.subr.bf16.mxu0 %v5996
        %6517 = vmatpush1.bf16.msra.mxu0 %v5995
        %6518 = vmatprep.subr.bf16.mxu0 %v6002
        %6519 = vmatpush1.bf16.msra.mxu0 %v6001
        %6520 = vmatprep.subr.bf16.mxu0 %v6008
        %6521 = vmatpush1.bf16.msra.mxu0 %v6007
        %6522 = vmatprep.subr.bf16.mxu0 %v6014
        %6523 = vmatpush1.bf16.msra.mxu0 %v6013
        %6524 = vmatprep.subr.bf16.mxu0 %v6020
        %6525 = vmatpush1.bf16.msra.mxu0 %v6019
        %6526 = vmatprep.subr.bf16.mxu0 %v6026
        %6527 = vmatpush1.bf16.msra.mxu0 %v6025
        %6528 = vmatprep.subr.bf16.mxu0 %v6032
        %6529 = vmatpush1.bf16.msra.mxu0 %v6031
        %6530 = vmatprep.subr.bf16.mxu0 %v6038
        %6531 = vmatpush1.bf16.msra.mxu0 %v6037
        %6532 = vmatprep.subr.bf16.mxu0 %v6044
        %6533 = vmatpush1.bf16.msra.mxu0 %v6043
        %6534 = vmatprep.subr.bf16.mxu0 %v6050
        %6535 = vmatpush1.bf16.msra.mxu0 %v6049
        %6536 = vmatprep.subr.bf16.mxu0 %v6056
        %6537 = vmatpush1.bf16.msra.mxu0 %v6055
        %6538 = vmatprep.subr.bf16.mxu0 %v6062
        %6539 = vmatpush1.bf16.msra.mxu0 %v6061
        %6540 = vmatprep.subr.bf16.mxu0 %v6068
        %6541 = vmatpush1.bf16.msra.mxu0 %v6067
        %6542 = vmatprep.subr.bf16.mxu0 %v6074
        %6543 = vmatpush1.bf16.msra.mxu0 %v6073
        %6544 = vmatprep.subr.bf16.mxu0 %v6080
        %6545 = vmatpush1.bf16.msra.mxu0 %v6079
        %6546 = vmatprep.subr.bf16.mxu0 %v6086
        %6547 = vmatpush1.bf16.msra.mxu0 %v6085
        %6548 = vmatprep.mubr.bf16.mxu0 %v420
        %6549 = vmatmul.mubr.bf16.gmra.mrb[0].mxu0 %v419
        %v6550 = vpop.f32.mrb[0].mxu0
        %v6551 = vadd.f32 %v6510, %v6550
        %v6552 = vpop.f32.mrb[0].mxu0
        %v6553 = vadd.f32 %v6512, %v6552
        %v6554 = vpop.f32.mrb[0].mxu0
        %v6555 = vpop.f32.mrb[0].mxu0
        %6556 = vdwg.mxu0
        %6557 = vmatprep.subr.bf16.mxu0 %v6092
        %6558 = vmatpush1.bf16.msra.mxu0 %v6091
        %6559 = vmatprep.subr.bf16.mxu0 %v6098
        %6560 = vmatpush1.bf16.msra.mxu0 %v6097
        %6561 = vmatprep.subr.bf16.mxu0 %v6104
        %6562 = vmatpush1.bf16.msra.mxu0 %v6103
        %6563 = vmatprep.subr.bf16.mxu0 %v6110
        %6564 = vmatpush1.bf16.msra.mxu0 %v6109
        %6565 = vmatprep.subr.bf16.mxu0 %v6116
        %6566 = vmatpush1.bf16.msra.mxu0 %v6115
        %6567 = vmatprep.subr.bf16.mxu0 %v6122
        %6568 = vmatpush1.bf16.msra.mxu0 %v6121
        %6569 = vmatprep.subr.bf16.mxu0 %v6128
        %6570 = vmatpush1.bf16.msra.mxu0 %v6127
        %6571 = vmatprep.subr.bf16.mxu0 %v6134
        %6572 = vmatpush1.bf16.msra.mxu0 %v6133
        %6573 = vmatprep.subr.bf16.mxu0 %v6140
        %6574 = vmatpush1.bf16.msra.mxu0 %v6139
        %6575 = vmatprep.subr.bf16.mxu0 %v6146
        %6576 = vmatpush1.bf16.msra.mxu0 %v6145
        %6577 = vmatprep.subr.bf16.mxu0 %v6152
        %6578 = vmatpush1.bf16.msra.mxu0 %v6151
        %6579 = vmatprep.subr.bf16.mxu0 %v6158
        %6580 = vmatpush1.bf16.msra.mxu0 %v6157
        %6581 = vmatprep.subr.bf16.mxu0 %v6164
        %6582 = vmatpush1.bf16.msra.mxu0 %v6163
        %6583 = vmatprep.subr.bf16.mxu0 %v6170
        %6584 = vmatpush1.bf16.msra.mxu0 %v6169
        %6585 = vmatprep.subr.bf16.mxu0 %v6176
        %6586 = vmatpush1.bf16.msra.mxu0 %v6175
        %6587 = vmatprep.subr.bf16.mxu0 %v6182
        %6588 = vmatpush1.bf16.msra.mxu0 %v6181
        %6589 = vmatprep.mubr.bf16.mxu0 %v422
        %6590 = vmatmul.mubr.bf16.gmra.mrb[0].mxu0 %v421
        %v6591 = vpop.f32.mrb[0].mxu0
        %v6592 = vadd.f32 %v6551, %v6591
        %v6593 = vpop.f32.mrb[0].mxu0
        %v6594 = vadd.f32 %v6553, %v6593
        %v6595 = vpop.f32.mrb[0].mxu0
        %v6596 = vpop.f32.mrb[0].mxu0
        %6597 = vdwg.mxu0
        %6598 = vmatprep.subr.bf16.mxu0 %v5902
        %6599 = vmatpush1.bf16.msra.mxu0 %v5901
        %6600 = vmatprep.subr.bf16.mxu0 %v5908
        %6601 = vmatpush1.bf16.msra.mxu0 %v5907
        %6602 = vmatprep.subr.bf16.mxu0 %v5914
        %6603 = vmatpush1.bf16.msra.mxu0 %v5913
        %6604 = vmatprep.subr.bf16.mxu0 %v5920
        %6605 = vmatpush1.bf16.msra.mxu0 %v5919
        %6606 = vmatprep.subr.bf16.mxu0 %v5926
        %6607 = vmatpush1.bf16.msra.mxu0 %v5925
        %6608 = vmatprep.subr.bf16.mxu0 %v5932
        %6609 = vmatpush1.bf16.msra.mxu0 %v5931
        %6610 = vmatprep.subr.bf16.mxu0 %v5938
        %6611 = vmatpush1.bf16.msra.mxu0 %v5937
        %6612 = vmatprep.subr.bf16.mxu0 %v5944
        %6613 = vmatpush1.bf16.msra.mxu0 %v5943
        %6614 = vmatprep.subr.bf16.mxu0 %v5950
        %6615 = vmatpush1.bf16.msra.mxu0 %v5949
        %6616 = vmatprep.subr.bf16.mxu0 %v5956
        %6617 = vmatpush1.bf16.msra.mxu0 %v5955
        %6618 = vmatprep.subr.bf16.mxu0 %v5962
        %6619 = vmatpush1.bf16.msra.mxu0 %v5961
        %6620 = vmatprep.subr.bf16.mxu0 %v5968
        %6621 = vmatpush1.bf16.msra.mxu0 %v5967
        %6622 = vmatprep.subr.bf16.mxu0 %v5974
        %6623 = vmatpush1.bf16.msra.mxu0 %v5973
        %6624 = vmatprep.subr.bf16.mxu0 %v5980
        %6625 = vmatpush1.bf16.msra.mxu0 %v5979
        %6626 = vmatprep.subr.bf16.mxu0 %v5986
        %6627 = vmatpush1.bf16.msra.mxu0 %v5985
        %6628 = vmatprep.subr.bf16.mxu0 %v5992
        %6629 = vmatpush1.bf16.msra.mxu0 %v5991
        %6630 = vmatprep.mubr.bf16.mxu0 %v418
        %6631 = vmatmul.mubr.bf16.gmra.mrb[0].mxu0 %v417
        %v6632 = vpop.f32.mrb[0].mxu0
        %v6633 = vadd.f32 %v5016, %v6632
        %v6634 = vpop.f32.mrb[0].mxu0
        %v6635 = vadd.f32 %v5020, %v6634
        %v6636 = vpop.f32.mrb[0].mxu0
        %v6637 = vpop.f32.mrb[0].mxu0
        %6638 = vdwg.mxu0
        %6639 = vmatprep.subr.bf16.mxu0 %v5998
        %6640 = vmatpush1.bf16.msra.mxu0 %v5997
        %6641 = vmatprep.subr.bf16.mxu0 %v6004
        %6642 = vmatpush1.bf16.msra.mxu0 %v6003
        %6643 = vmatprep.subr.bf16.mxu0 %v6010
        %6644 = vmatpush1.bf16.msra.mxu0 %v6009
        %6645 = vmatprep.subr.bf16.mxu0 %v6016
        %6646 = vmatpush1.bf16.msra.mxu0 %v6015
        %6647 = vmatprep.subr.bf16.mxu0 %v6022
        %6648 = vmatpush1.bf16.msra.mxu0 %v6021
        %6649 = vmatprep.subr.bf16.mxu0 %v6028
        %6650 = vmatpush1.bf16.msra.mxu0 %v6027
        %6651 = vmatprep.subr.bf16.mxu0 %v6034
        %6652 = vmatpush1.bf16.msra.mxu0 %v6033
        %6653 = vmatprep.subr.bf16.mxu0 %v6040
        %6654 = vmatpush1.bf16.msra.mxu0 %v6039
        %6655 = vmatprep.subr.bf16.mxu0 %v6046
        %6656 = vmatpush1.bf16.msra.mxu0 %v6045
        %6657 = vmatprep.subr.bf16.mxu0 %v6052
        %6658 = vmatpush1.bf16.msra.mxu0 %v6051
        %6659 = vmatprep.subr.bf16.mxu0 %v6058
        %6660 = vmatpush1.bf16.msra.mxu0 %v6057
        %6661 = vmatprep.subr.bf16.mxu0 %v6064
        %6662 = vmatpush1.bf16.msra.mxu0 %v6063
        %6663 = vmatprep.subr.bf16.mxu0 %v6070
        %6664 = vmatpush1.bf16.msra.mxu0 %v6069
        %6665 = vmatprep.subr.bf16.mxu0 %v6076
        %6666 = vmatpush1.bf16.msra.mxu0 %v6075
        %6667 = vmatprep.subr.bf16.mxu0 %v6082
        %6668 = vmatpush1.bf16.msra.mxu0 %v6081
        %6669 = vmatprep.subr.bf16.mxu0 %v6088
        %6670 = vmatpush1.bf16.msra.mxu0 %v6087
        %6671 = vmatprep.mubr.bf16.mxu0 %v420
        %6672 = vmatmul.mubr.bf16.gmra.mrb[0].mxu0 %v419
        %v6673 = vpop.f32.mrb[0].mxu0
        %v6674 = vadd.f32 %v6633, %v6673
        %v6675 = vpop.f32.mrb[0].mxu0
        %v6676 = vadd.f32 %v6635, %v6675
        %v6677 = vpop.f32.mrb[0].mxu0
        %v6678 = vpop.f32.mrb[0].mxu0
        %6679 = vdwg.mxu0
        %6680 = vmatprep.subr.bf16.mxu0 %v6094
        %6681 = vmatpush1.bf16.msra.mxu0 %v6093
        %6682 = vmatprep.subr.bf16.mxu0 %v6100
        %6683 = vmatpush1.bf16.msra.mxu0 %v6099
        %6684 = vmatprep.subr.bf16.mxu0 %v6106
        %6685 = vmatpush1.bf16.msra.mxu0 %v6105
        %6686 = vmatprep.subr.bf16.mxu0 %v6112
        %6687 = vmatpush1.bf16.msra.mxu0 %v6111
        %6688 = vmatprep.subr.bf16.mxu0 %v6118
        %6689 = vmatpush1.bf16.msra.mxu0 %v6117
        %6690 = vmatprep.subr.bf16.mxu0 %v6124
        %6691 = vmatpush1.bf16.msra.mxu0 %v6123
        %6692 = vmatprep.subr.bf16.mxu0 %v6130
        %6693 = vmatpush1.bf16.msra.mxu0 %v6129
        %6694 = vmatprep.subr.bf16.mxu0 %v6136
        %6695 = vmatpush1.bf16.msra.mxu0 %v6135
        %6696 = vmatprep.subr.bf16.mxu0 %v6142
        %6697 = vmatpush1.bf16.msra.mxu0 %v6141
        %6698 = vmatprep.subr.bf16.mxu0 %v6148
        %6699 = vmatpush1.bf16.msra.mxu0 %v6147
        %6700 = vmatprep.subr.bf16.mxu0 %v6154
        %6701 = vmatpush1.bf16.msra.mxu0 %v6153
        %6702 = vmatprep.subr.bf16.mxu0 %v6160
        %6703 = vmatpush1.bf16.msra.mxu0 %v6159
        %6704 = vmatprep.subr.bf16.mxu0 %v6166
        %6705 = vmatpush1.bf16.msra.mxu0 %v6165
        %6706 = vmatprep.subr.bf16.mxu0 %v6172
        %6707 = vmatpush1.bf16.msra.mxu0 %v6171
        %6708 = vmatprep.subr.bf16.mxu0 %v6178
        %6709 = vmatpush1.bf16.msra.mxu0 %v6177
        %6710 = vmatprep.subr.bf16.mxu0 %v6184
        %6711 = vmatpush1.bf16.msra.mxu0 %v6183
        %6712 = vmatprep.mubr.bf16.mxu0 %v422
        %6713 = vmatmul.mubr.bf16.gmra.mrb[0].mxu0 %v421
        %v6714 = vpop.f32.mrb[0].mxu0
        %v6715 = vadd.f32 %v6674, %v6714
        %v6716 = vpop.f32.mrb[0].mxu0
        %v6717 = vadd.f32 %v6676, %v6716
        %v6718 = vpop.f32.mrb[0].mxu0
        %v6719 = vpop.f32.mrb[0].mxu0
        %6720 = vdwg.mxu0
        %6721 = vmatprep.subr.bf16.mxu0 %v5904
        %6722 = vmatpush1.bf16.msra.mxu0 %v5903
        %6723 = vmatprep.subr.bf16.mxu0 %v5910
        %6724 = vmatpush1.bf16.msra.mxu0 %v5909
        %6725 = vmatprep.subr.bf16.mxu0 %v5916
        %6726 = vmatpush1.bf16.msra.mxu0 %v5915
        %6727 = vmatprep.subr.bf16.mxu0 %v5922
        %6728 = vmatpush1.bf16.msra.mxu0 %v5921
        %6729 = vmatprep.subr.bf16.mxu0 %v5928
        %6730 = vmatpush1.bf16.msra.mxu0 %v5927
        %6731 = vmatprep.subr.bf16.mxu0 %v5934
        %6732 = vmatpush1.bf16.msra.mxu0 %v5933
        %6733 = vmatprep.subr.bf16.mxu0 %v5940
        %6734 = vmatpush1.bf16.msra.mxu0 %v5939
        %6735 = vmatprep.subr.bf16.mxu0 %v5946
        %6736 = vmatpush1.bf16.msra.mxu0 %v5945
        %6737 = vmatprep.subr.bf16.mxu0 %v5952
        %6738 = vmatpush1.bf16.msra.mxu0 %v5951
        %6739 = vmatprep.subr.bf16.mxu0 %v5958
        %6740 = vmatpush1.bf16.msra.mxu0 %v5957
        %6741 = vmatprep.subr.bf16.mxu0 %v5964
        %6742 = vmatpush1.bf16.msra.mxu0 %v5963
        %6743 = vmatprep.subr.bf16.mxu0 %v5970
        %6744 = vmatpush1.bf16.msra.mxu0 %v5969
        %6745 = vmatprep.subr.bf16.mxu0 %v5976
        %6746 = vmatpush1.bf16.msra.mxu0 %v5975
        %6747 = vmatprep.subr.bf16.mxu0 %v5982
        %6748 = vmatpush1.bf16.msra.mxu0 %v5981
        %6749 = vmatprep.subr.bf16.mxu0 %v5988
        %6750 = vmatpush1.bf16.msra.mxu0 %v5987
        %6751 = vmatprep.subr.bf16.mxu0 %v5994
        %6752 = vmatpush1.bf16.msra.mxu0 %v5993
        %6753 = vmatprep.mubr.bf16.mxu0 %v418
        %6754 = vmatmul.mubr.bf16.gmra.mrb[0].mxu0 %v417
        %v6755 = vpop.f32.mrb[0].mxu0
        %v6756 = vadd.f32 %v5024, %v6755
        %v6757 = vpop.f32.mrb[0].mxu0
        %v6758 = vadd.f32 %v5028, %v6757
        %v6759 = vpop.f32.mrb[0].mxu0
        %v6760 = vpop.f32.mrb[0].mxu0
        %6761 = vdwg.mxu0
        %6762 = vmatprep.subr.bf16.mxu0 %v6000
        %6763 = vmatpush1.bf16.msra.mxu0 %v5999
        %6764 = vmatprep.subr.bf16.mxu0 %v6006
        %6765 = vmatpush1.bf16.msra.mxu0 %v6005
        %6766 = vmatprep.subr.bf16.mxu0 %v6012
        %6767 = vmatpush1.bf16.msra.mxu0 %v6011
        %6768 = vmatprep.subr.bf16.mxu0 %v6018
        %6769 = vmatpush1.bf16.msra.mxu0 %v6017
        %6770 = vmatprep.subr.bf16.mxu0 %v6024
        %6771 = vmatpush1.bf16.msra.mxu0 %v6023
        %6772 = vmatprep.subr.bf16.mxu0 %v6030
        %6773 = vmatpush1.bf16.msra.mxu0 %v6029
        %6774 = vmatprep.subr.bf16.mxu0 %v6036
        %6775 = vmatpush1.bf16.msra.mxu0 %v6035
        %6776 = vmatprep.subr.bf16.mxu0 %v6042
        %6777 = vmatpush1.bf16.msra.mxu0 %v6041
        %6778 = vmatprep.subr.bf16.mxu0 %v6048
        %6779 = vmatpush1.bf16.msra.mxu0 %v6047
        %6780 = vmatprep.subr.bf16.mxu0 %v6054
        %6781 = vmatpush1.bf16.msra.mxu0 %v6053
        %6782 = vmatprep.subr.bf16.mxu0 %v6060
        %6783 = vmatpush1.bf16.msra.mxu0 %v6059
        %6784 = vmatprep.subr.bf16.mxu0 %v6066
        %6785 = vmatpush1.bf16.msra.mxu0 %v6065
        %6786 = vmatprep.subr.bf16.mxu0 %v6072
        %6787 = vmatpush1.bf16.msra.mxu0 %v6071
        %6788 = vmatprep.subr.bf16.mxu0 %v6078
        %6789 = vmatpush1.bf16.msra.mxu0 %v6077
        %6790 = vmatprep.subr.bf16.mxu0 %v6084
        %6791 = vmatpush1.bf16.msra.mxu0 %v6083
        %6792 = vmatprep.subr.bf16.mxu0 %v6090
        %6793 = vmatpush1.bf16.msra.mxu0 %v6089
        %6794 = vmatprep.mubr.bf16.mxu0 %v420
        %6795 = vmatmul.mubr.bf16.gmra.mrb[0].mxu0 %v419
        %v6796 = vpop.f32.mrb[0].mxu0
        %v6797 = vadd.f32 %v6756, %v6796
        %v6798 = vpop.f32.mrb[0].mxu0
        %v6799 = vadd.f32 %v6758, %v6798
        %v6800 = vpop.f32.mrb[0].mxu0
        %v6801 = vpop.f32.mrb[0].mxu0
        %6802 = vdwg.mxu0
        %6803 = vmatprep.subr.bf16.mxu0 %v6096
        %6804 = vmatpush1.bf16.msra.mxu0 %v6095
        %6805 = vmatprep.subr.bf16.mxu0 %v6102
        %6806 = vmatpush1.bf16.msra.mxu0 %v6101
        %6807 = vmatprep.subr.bf16.mxu0 %v6108
        %6808 = vmatpush1.bf16.msra.mxu0 %v6107
        %6809 = vmatprep.subr.bf16.mxu0 %v6114
        %6810 = vmatpush1.bf16.msra.mxu0 %v6113
        %6811 = vmatprep.subr.bf16.mxu0 %v6120
        %6812 = vmatpush1.bf16.msra.mxu0 %v6119
        %6813 = vmatprep.subr.bf16.mxu0 %v6126
        %6814 = vmatpush1.bf16.msra.mxu0 %v6125
        %6815 = vmatprep.subr.bf16.mxu0 %v6132
        %6816 = vmatpush1.bf16.msra.mxu0 %v6131
        %6817 = vmatprep.subr.bf16.mxu0 %v6138
        %6818 = vmatpush1.bf16.msra.mxu0 %v6137
        %6819 = vmatprep.subr.bf16.mxu0 %v6144
        %6820 = vmatpush1.bf16.msra.mxu0 %v6143
        %6821 = vmatprep.subr.bf16.mxu0 %v6150
        %6822 = vmatpush1.bf16.msra.mxu0 %v6149
        %6823 = vmatprep.subr.bf16.mxu0 %v6156
        %6824 = vmatpush1.bf16.msra.mxu0 %v6155
        %6825 = vmatprep.subr.bf16.mxu0 %v6162
        %6826 = vmatpush1.bf16.msra.mxu0 %v6161
        %6827 = vmatprep.subr.bf16.mxu0 %v6168
        %6828 = vmatpush1.bf16.msra.mxu0 %v6167
        %6829 = vmatprep.subr.bf16.mxu0 %v6174
        %6830 = vmatpush1.bf16.msra.mxu0 %v6173
        %6831 = vmatprep.subr.bf16.mxu0 %v6180
        %6832 = vmatpush1.bf16.msra.mxu0 %v6179
        %6833 = vmatprep.subr.bf16.mxu0 %v6186
        %6834 = vmatpush1.bf16.msra.mxu0 %v6185
        %6835 = vmatprep.mubr.bf16.mxu0 %v422
        %6836 = vmatmul.mubr.bf16.gmra.mrb[0].mxu0 %v421
        %v6837 = vpop.f32.mrb[0].mxu0
        %v6838 = vadd.f32 %v6797, %v6837
        %v6839 = vpop.f32.mrb[0].mxu0
        %v6840 = vadd.f32 %v6799, %v6839
        %v6841 = vpop.f32.mrb[0].mxu0
        %v6842 = vpop.f32.mrb[0].mxu0
        %6843 = vdwg.mxu0
        %v6844 = vtanh.pop %v6592
        %v6845 = vtanh.pop %v6594
        %v6846 = vtanh.pop %v6715
        %v6847 = vtanh.pop %v6717
        %v6848 = vtanh.pop %v6838
        %v6849 = vtanh.pop %v6840
        %v6850 = vpack.c.bf16 %v6844, %v6844
        %v6851 = vpack.c.bf16 %v6845, %v6845
        %v6852 = vpack.c.bf16 %v6846, %v6846
        %v6853 = vpack.c.bf16 %v6847, %v6847
        %v6854 = vpack.c.bf16 %v6848, %v6848
        %v6855 = vpack.c.bf16 %v6849, %v6849
        %s6856 = smul.addr %s4713, 4
        %s6857 = scalar_lea.vmem %s6, %s6856
        %v6858 = vld [vmem:[%s6857] sm:$0xff]
        %v6859 = vld [vmem:[%s6857 + $0x8] sm:$0xff]
        %v6860 = vld [vmem:[%s6857 + $0x10] sm:$0xff]
        %v6861 = vld [vmem:[%s6857 + $0x18] sm:$0xff]
        %v6862 = vld [vmem:[%s6857 + $0x20] sm:$0xff]
        %v6863 = vld [vmem:[%s6857 + $0x28] sm:$0xff]
        %v6864 = vld [vmem:[%s6857 + $0x30] sm:$0xff]
        %v6865 = vld [vmem:[%s6857 + $0x38] sm:$0xff]
        %v6866 = vld [vmem:[%s6857 + $0x40] sm:$0xff]
        %v6867 = vld [vmem:[%s6857 + $0x48] sm:$0xff]
        %v6868 = vld [vmem:[%s6857 + $0x50] sm:$0xff]
        %v6869 = vld [vmem:[%s6857 + $0x58] sm:$0xff]
        %v6870 = vld [vmem:[%s6857 + $0x60] sm:$0xff]
        %v6871 = vld [vmem:[%s6857 + $0x68] sm:$0xff]
        %v6872 = vld [vmem:[%s6857 + $0x70] sm:$0xff]
        %v6873 = vld [vmem:[%s6857 + $0x78] sm:$0xff]
        %v6874 = vld [vmem:[%s6857 + $0x80] sm:$0xff]
        %v6875 = vld [vmem:[%s6857 + $0x88] sm:$0xff]
        %v6876 = vld [vmem:[%s6857 + $0x90] sm:$0xff]
        %v6877 = vld [vmem:[%s6857 + $0x98] sm:$0xff]
        %v6878 = vld [vmem:[%s6857 + $0xa0] sm:$0xff]
        %v6879 = vld [vmem:[%s6857 + $0xa8] sm:$0xff]
        %v6880 = vld [vmem:[%s6857 + $0xb0] sm:$0xff]
        %v6881 = vld [vmem:[%s6857 + $0xb8] sm:$0xff]
        %v6882 = vld [vmem:[%s6857 + $0xc0] sm:$0xff]
        %v6883 = vld [vmem:[%s6857 + $0xc8] sm:$0xff]
        %v6884 = vld [vmem:[%s6857 + $0xd0] sm:$0xff]
        %v6885 = vld [vmem:[%s6857 + $0xd8] sm:$0xff]
        %v6886 = vld [vmem:[%s6857 + $0xe0] sm:$0xff]
        %v6887 = vld [vmem:[%s6857 + $0xe8] sm:$0xff]
        %v6888 = vld [vmem:[%s6857 + $0xf0] sm:$0xff]
        %v6889 = vld [vmem:[%s6857 + $0xf8] sm:$0xff]
        %v6890 = vld [vmem:[%s6857 + $0x100] sm:$0xff]
        %v6891 = vld [vmem:[%s6857 + $0x108] sm:$0xff]
        %v6892 = vld [vmem:[%s6857 + $0x110] sm:$0xff]
        %v6893 = vld [vmem:[%s6857 + $0x118] sm:$0xff]
        %v6894 = vld [vmem:[%s6857 + $0x120] sm:$0xff]
        %v6895 = vld [vmem:[%s6857 + $0x128] sm:$0xff]
        %v6896 = vld [vmem:[%s6857 + $0x130] sm:$0xff]
        %v6897 = vld [vmem:[%s6857 + $0x138] sm:$0xff]
        %v6898 = vld [vmem:[%s6857 + $0x140] sm:$0xff]
        %v6899 = vld [vmem:[%s6857 + $0x148] sm:$0xff]
        %v6900 = vld [vmem:[%s6857 + $0x150] sm:$0xff]
        %v6901 = vld [vmem:[%s6857 + $0x158] sm:$0xff]
        %v6902 = vld [vmem:[%s6857 + $0x160] sm:$0xff]
        %v6903 = vld [vmem:[%s6857 + $0x168] sm:$0xff]
        %v6904 = vld [vmem:[%s6857 + $0x170] sm:$0xff]
        %v6905 = vld [vmem:[%s6857 + $0x178] sm:$0xff]
        %v6906 = vld [vmem:[%s6857 + $0x180] sm:$0xff]
        %v6907 = vld [vmem:[%s6857 + $0x188] sm:$0xff]
        %v6908 = vld [vmem:[%s6857 + $0x190] sm:$0xff]
        %v6909 = vld [vmem:[%s6857 + $0x198] sm:$0xff]
        %v6910 = vld [vmem:[%s6857 + $0x1a0] sm:$0xff]
        %v6911 = vld [vmem:[%s6857 + $0x1a8] sm:$0xff]
        %v6912 = vld [vmem:[%s6857 + $0x1b0] sm:$0xff]
        %v6913 = vld [vmem:[%s6857 + $0x1b8] sm:$0xff]
        %v6914 = vld [vmem:[%s6857 + $0x1c0] sm:$0xff]
        %v6915 = vld [vmem:[%s6857 + $0x1c8] sm:$0xff]
        %v6916 = vld [vmem:[%s6857 + $0x1d0] sm:$0xff]
        %v6917 = vld [vmem:[%s6857 + $0x1d8] sm:$0xff]
        %v6918 = vld [vmem:[%s6857 + $0x1e0] sm:$0xff]
        %v6919 = vld [vmem:[%s6857 + $0x1e8] sm:$0xff]
        %v6920 = vld [vmem:[%s6857 + $0x1f0] sm:$0xff]
        %v6921 = vld [vmem:[%s6857 + $0x1f8] sm:$0xff]
        %v6922 = vld [vmem:[%s6857 + $0x200] sm:$0xff]
        %v6923 = vld [vmem:[%s6857 + $0x208] sm:$0xff]
        %v6924 = vld [vmem:[%s6857 + $0x210] sm:$0xff]
        %v6925 = vld [vmem:[%s6857 + $0x218] sm:$0xff]
        %v6926 = vld [vmem:[%s6857 + $0x220] sm:$0xff]
        %v6927 = vld [vmem:[%s6857 + $0x228] sm:$0xff]
        %v6928 = vld [vmem:[%s6857 + $0x230] sm:$0xff]
        %v6929 = vld [vmem:[%s6857 + $0x238] sm:$0xff]
        %v6930 = vld [vmem:[%s6857 + $0x240] sm:$0xff]
        %v6931 = vld [vmem:[%s6857 + $0x248] sm:$0xff]
        %v6932 = vld [vmem:[%s6857 + $0x250] sm:$0xff]
        %v6933 = vld [vmem:[%s6857 + $0x258] sm:$0xff]
        %v6934 = vld [vmem:[%s6857 + $0x260] sm:$0xff]
        %v6935 = vld [vmem:[%s6857 + $0x268] sm:$0xff]
        %v6936 = vld [vmem:[%s6857 + $0x270] sm:$0xff]
        %v6937 = vld [vmem:[%s6857 + $0x278] sm:$0xff]
        %v6938 = vld [vmem:[%s6857 + $0x280] sm:$0xff]
        %v6939 = vld [vmem:[%s6857 + $0x288] sm:$0xff]
        %v6940 = vld [vmem:[%s6857 + $0x290] sm:$0xff]
        %v6941 = vld [vmem:[%s6857 + $0x298] sm:$0xff]
        %v6942 = vld [vmem:[%s6857 + $0x2a0] sm:$0xff]
        %v6943 = vld [vmem:[%s6857 + $0x2a8] sm:$0xff]
        %v6944 = vld [vmem:[%s6857 + $0x2b0] sm:$0xff]
        %v6945 = vld [vmem:[%s6857 + $0x2b8] sm:$0xff]
        %v6946 = vld [vmem:[%s6857 + $0x2c0] sm:$0xff]
        %v6947 = vld [vmem:[%s6857 + $0x2c8] sm:$0xff]
        %v6948 = vld [vmem:[%s6857 + $0x2d0] sm:$0xff]
        %v6949 = vld [vmem:[%s6857 + $0x2d8] sm:$0xff]
        %v6950 = vld [vmem:[%s6857 + $0x2e0] sm:$0xff]
        %v6951 = vld [vmem:[%s6857 + $0x2e8] sm:$0xff]
        %v6952 = vld [vmem:[%s6857 + $0x2f0] sm:$0xff]
        %v6953 = vld [vmem:[%s6857 + $0x2f8] sm:$0xff]
        %v6954 = vld [vmem:[%s6857 + $0x300] sm:$0xff]
        %v6955 = vld [vmem:[%s6857 + $0x308] sm:$0xff]
        %v6956 = vld [vmem:[%s6857 + $0x310] sm:$0xff]
        %v6957 = vld [vmem:[%s6857 + $0x318] sm:$0xff]
        %v6958 = vld [vmem:[%s6857 + $0x320] sm:$0xff]
        %v6959 = vld [vmem:[%s6857 + $0x328] sm:$0xff]
        %v6960 = vld [vmem:[%s6857 + $0x330] sm:$0xff]
        %v6961 = vld [vmem:[%s6857 + $0x338] sm:$0xff]
        %v6962 = vld [vmem:[%s6857 + $0x340] sm:$0xff]
        %v6963 = vld [vmem:[%s6857 + $0x348] sm:$0xff]
        %v6964 = vld [vmem:[%s6857 + $0x350] sm:$0xff]
        %v6965 = vld [vmem:[%s6857 + $0x358] sm:$0xff]
        %v6966 = vld [vmem:[%s6857 + $0x360] sm:$0xff]
        %v6967 = vld [vmem:[%s6857 + $0x368] sm:$0xff]
        %v6968 = vld [vmem:[%s6857 + $0x370] sm:$0xff]
        %v6969 = vld [vmem:[%s6857 + $0x378] sm:$0xff]
        %v6970 = vld [vmem:[%s6857 + $0x380] sm:$0xff]
        %v6971 = vld [vmem:[%s6857 + $0x388] sm:$0xff]
        %v6972 = vld [vmem:[%s6857 + $0x390] sm:$0xff]
        %v6973 = vld [vmem:[%s6857 + $0x398] sm:$0xff]
        %v6974 = vld [vmem:[%s6857 + $0x3a0] sm:$0xff]
        %v6975 = vld [vmem:[%s6857 + $0x3a8] sm:$0xff]
        %v6976 = vld [vmem:[%s6857 + $0x3b0] sm:$0xff]
        %v6977 = vld [vmem:[%s6857 + $0x3b8] sm:$0xff]
        %v6978 = vld [vmem:[%s6857 + $0x3c0] sm:$0xff]
        %v6979 = vld [vmem:[%s6857 + $0x3c8] sm:$0xff]
        %v6980 = vld [vmem:[%s6857 + $0x3d0] sm:$0xff]
        %v6981 = vld [vmem:[%s6857 + $0x3d8] sm:$0xff]
        %v6982 = vld [vmem:[%s6857 + $0x3e0] sm:$0xff]
        %v6983 = vld [vmem:[%s6857 + $0x3e8] sm:$0xff]
        %v6984 = vld [vmem:[%s6857 + $0x3f0] sm:$0xff]
        %v6985 = vld [vmem:[%s6857 + $0x3f8] sm:$0xff]
        %v6986 = vld [vmem:[%s6857 + $0x400] sm:$0xff]
        %v6987 = vld [vmem:[%s6857 + $0x408] sm:$0xff]
        %v6988 = vld [vmem:[%s6857 + $0x410] sm:$0xff]
        %v6989 = vld [vmem:[%s6857 + $0x418] sm:$0xff]
        %v6990 = vld [vmem:[%s6857 + $0x420] sm:$0xff]
        %v6991 = vld [vmem:[%s6857 + $0x428] sm:$0xff]
        %v6992 = vld [vmem:[%s6857 + $0x430] sm:$0xff]
        %v6993 = vld [vmem:[%s6857 + $0x438] sm:$0xff]
        %v6994 = vld [vmem:[%s6857 + $0x440] sm:$0xff]
        %v6995 = vld [vmem:[%s6857 + $0x448] sm:$0xff]
        %v6996 = vld [vmem:[%s6857 + $0x450] sm:$0xff]
        %v6997 = vld [vmem:[%s6857 + $0x458] sm:$0xff]
        %v6998 = vld [vmem:[%s6857 + $0x460] sm:$0xff]
        %v6999 = vld [vmem:[%s6857 + $0x468] sm:$0xff]
        %v7000 = vld [vmem:[%s6857 + $0x470] sm:$0xff]
        %v7001 = vld [vmem:[%s6857 + $0x478] sm:$0xff]
        %v7002 = vld [vmem:[%s6857 + $0x480] sm:$0xff]
        %v7003 = vld [vmem:[%s6857 + $0x488] sm:$0xff]
        %v7004 = vld [vmem:[%s6857 + $0x490] sm:$0xff]
        %v7005 = vld [vmem:[%s6857 + $0x498] sm:$0xff]
        %v7006 = vld [vmem:[%s6857 + $0x4a0] sm:$0xff]
        %v7007 = vld [vmem:[%s6857 + $0x4a8] sm:$0xff]
        %v7008 = vld [vmem:[%s6857 + $0x4b0] sm:$0xff]
        %v7009 = vld [vmem:[%s6857 + $0x4b8] sm:$0xff]
        %v7010 = vld [vmem:[%s6857 + $0x4c0] sm:$0xff]
        %v7011 = vld [vmem:[%s6857 + $0x4c8] sm:$0xff]
        %v7012 = vld [vmem:[%s6857 + $0x4d0] sm:$0xff]
        %v7013 = vld [vmem:[%s6857 + $0x4d8] sm:$0xff]
        %v7014 = vld [vmem:[%s6857 + $0x4e0] sm:$0xff]
        %v7015 = vld [vmem:[%s6857 + $0x4e8] sm:$0xff]
        %v7016 = vld [vmem:[%s6857 + $0x4f0] sm:$0xff]
        %v7017 = vld [vmem:[%s6857 + $0x4f8] sm:$0xff]
        %v7018 = vld [vmem:[%s6857 + $0x500] sm:$0xff]
        %v7019 = vld [vmem:[%s6857 + $0x508] sm:$0xff]
        %v7020 = vld [vmem:[%s6857 + $0x510] sm:$0xff]
        %v7021 = vld [vmem:[%s6857 + $0x518] sm:$0xff]
        %v7022 = vld [vmem:[%s6857 + $0x520] sm:$0xff]
        %v7023 = vld [vmem:[%s6857 + $0x528] sm:$0xff]
        %v7024 = vld [vmem:[%s6857 + $0x530] sm:$0xff]
        %v7025 = vld [vmem:[%s6857 + $0x538] sm:$0xff]
        %v7026 = vld [vmem:[%s6857 + $0x540] sm:$0xff]
        %v7027 = vld [vmem:[%s6857 + $0x548] sm:$0xff]
        %v7028 = vld [vmem:[%s6857 + $0x550] sm:$0xff]
        %v7029 = vld [vmem:[%s6857 + $0x558] sm:$0xff]
        %v7030 = vld [vmem:[%s6857 + $0x560] sm:$0xff]
        %v7031 = vld [vmem:[%s6857 + $0x568] sm:$0xff]
        %v7032 = vld [vmem:[%s6857 + $0x570] sm:$0xff]
        %v7033 = vld [vmem:[%s6857 + $0x578] sm:$0xff]
        %v7034 = vld [vmem:[%s6857 + $0x580] sm:$0xff]
        %v7035 = vld [vmem:[%s6857 + $0x588] sm:$0xff]
        %v7036 = vld [vmem:[%s6857 + $0x590] sm:$0xff]
        %v7037 = vld [vmem:[%s6857 + $0x598] sm:$0xff]
        %v7038 = vld [vmem:[%s6857 + $0x5a0] sm:$0xff]
        %v7039 = vld [vmem:[%s6857 + $0x5a8] sm:$0xff]
        %v7040 = vld [vmem:[%s6857 + $0x5b0] sm:$0xff]
        %v7041 = vld [vmem:[%s6857 + $0x5b8] sm:$0xff]
        %v7042 = vld [vmem:[%s6857 + $0x5c0] sm:$0xff]
        %v7043 = vld [vmem:[%s6857 + $0x5c8] sm:$0xff]
        %v7044 = vld [vmem:[%s6857 + $0x5d0] sm:$0xff]
        %v7045 = vld [vmem:[%s6857 + $0x5d8] sm:$0xff]
        %v7046 = vld [vmem:[%s6857 + $0x5e0] sm:$0xff]
        %v7047 = vld [vmem:[%s6857 + $0x5e8] sm:$0xff]
        %v7048 = vld [vmem:[%s6857 + $0x5f0] sm:$0xff]
        %v7049 = vld [vmem:[%s6857 + $0x5f8] sm:$0xff]
        %v7050 = vld [vmem:[%s6857 + $0x600] sm:$0xff]
        %v7051 = vld [vmem:[%s6857 + $0x608] sm:$0xff]
        %v7052 = vld [vmem:[%s6857 + $0x610] sm:$0xff]
        %v7053 = vld [vmem:[%s6857 + $0x618] sm:$0xff]
        %v7054 = vld [vmem:[%s6857 + $0x620] sm:$0xff]
        %v7055 = vld [vmem:[%s6857 + $0x628] sm:$0xff]
        %v7056 = vld [vmem:[%s6857 + $0x630] sm:$0xff]
        %v7057 = vld [vmem:[%s6857 + $0x638] sm:$0xff]
        %v7058 = vld [vmem:[%s6857 + $0x640] sm:$0xff]
        %v7059 = vld [vmem:[%s6857 + $0x648] sm:$0xff]
        %v7060 = vld [vmem:[%s6857 + $0x650] sm:$0xff]
        %v7061 = vld [vmem:[%s6857 + $0x658] sm:$0xff]
        %v7062 = vld [vmem:[%s6857 + $0x660] sm:$0xff]
        %v7063 = vld [vmem:[%s6857 + $0x668] sm:$0xff]
        %v7064 = vld [vmem:[%s6857 + $0x670] sm:$0xff]
        %v7065 = vld [vmem:[%s6857 + $0x678] sm:$0xff]
        %v7066 = vld [vmem:[%s6857 + $0x680] sm:$0xff]
        %v7067 = vld [vmem:[%s6857 + $0x688] sm:$0xff]
        %v7068 = vld [vmem:[%s6857 + $0x690] sm:$0xff]
        %v7069 = vld [vmem:[%s6857 + $0x698] sm:$0xff]
        %v7070 = vld [vmem:[%s6857 + $0x6a0] sm:$0xff]
        %v7071 = vld [vmem:[%s6857 + $0x6a8] sm:$0xff]
        %v7072 = vld [vmem:[%s6857 + $0x6b0] sm:$0xff]
        %v7073 = vld [vmem:[%s6857 + $0x6b8] sm:$0xff]
        %v7074 = vld [vmem:[%s6857 + $0x6c0] sm:$0xff]
        %v7075 = vld [vmem:[%s6857 + $0x6c8] sm:$0xff]
        %v7076 = vld [vmem:[%s6857 + $0x6d0] sm:$0xff]
        %v7077 = vld [vmem:[%s6857 + $0x6d8] sm:$0xff]
        %v7078 = vld [vmem:[%s6857 + $0x6e0] sm:$0xff]
        %v7079 = vld [vmem:[%s6857 + $0x6e8] sm:$0xff]
        %v7080 = vld [vmem:[%s6857 + $0x6f0] sm:$0xff]
        %v7081 = vld [vmem:[%s6857 + $0x6f8] sm:$0xff]
        %v7082 = vld [vmem:[%s6857 + $0x700] sm:$0xff]
        %v7083 = vld [vmem:[%s6857 + $0x708] sm:$0xff]
        %v7084 = vld [vmem:[%s6857 + $0x710] sm:$0xff]
        %v7085 = vld [vmem:[%s6857 + $0x718] sm:$0xff]
        %v7086 = vld [vmem:[%s6857 + $0x720] sm:$0xff]
        %v7087 = vld [vmem:[%s6857 + $0x728] sm:$0xff]
        %v7088 = vld [vmem:[%s6857 + $0x730] sm:$0xff]
        %v7089 = vld [vmem:[%s6857 + $0x738] sm:$0xff]
        %v7090 = vld [vmem:[%s6857 + $0x740] sm:$0xff]
        %v7091 = vld [vmem:[%s6857 + $0x748] sm:$0xff]
        %v7092 = vld [vmem:[%s6857 + $0x750] sm:$0xff]
        %v7093 = vld [vmem:[%s6857 + $0x758] sm:$0xff]
        %v7094 = vld [vmem:[%s6857 + $0x760] sm:$0xff]
        %v7095 = vld [vmem:[%s6857 + $0x768] sm:$0xff]
        %v7096 = vld [vmem:[%s6857 + $0x770] sm:$0xff]
        %v7097 = vld [vmem:[%s6857 + $0x778] sm:$0xff]
        %v7098 = vld [vmem:[%s6857 + $0x780] sm:$0xff]
        %v7099 = vld [vmem:[%s6857 + $0x788] sm:$0xff]
        %v7100 = vld [vmem:[%s6857 + $0x790] sm:$0xff]
        %v7101 = vld [vmem:[%s6857 + $0x798] sm:$0xff]
        %v7102 = vld [vmem:[%s6857 + $0x7a0] sm:$0xff]
        %v7103 = vld [vmem:[%s6857 + $0x7a8] sm:$0xff]
        %v7104 = vld [vmem:[%s6857 + $0x7b0] sm:$0xff]
        %v7105 = vld [vmem:[%s6857 + $0x7b8] sm:$0xff]
        %v7106 = vld [vmem:[%s6857 + $0x7c0] sm:$0xff]
        %v7107 = vld [vmem:[%s6857 + $0x7c8] sm:$0xff]
        %v7108 = vld [vmem:[%s6857 + $0x7d0] sm:$0xff]
        %v7109 = vld [vmem:[%s6857 + $0x7d8] sm:$0xff]
        %v7110 = vld [vmem:[%s6857 + $0x7e0] sm:$0xff]
        %v7111 = vld [vmem:[%s6857 + $0x7e8] sm:$0xff]
        %v7112 = vld [vmem:[%s6857 + $0x7f0] sm:$0xff]
        %v7113 = vld [vmem:[%s6857 + $0x7f8] sm:$0xff]
        %v7114 = vld [vmem:[%s6857 + $0x800] sm:$0xff]
        %v7115 = vld [vmem:[%s6857 + $0x808] sm:$0xff]
        %v7116 = vld [vmem:[%s6857 + $0x810] sm:$0xff]
        %v7117 = vld [vmem:[%s6857 + $0x818] sm:$0xff]
        %v7118 = vld [vmem:[%s6857 + $0x820] sm:$0xff]
        %v7119 = vld [vmem:[%s6857 + $0x828] sm:$0xff]
        %v7120 = vld [vmem:[%s6857 + $0x830] sm:$0xff]
        %v7121 = vld [vmem:[%s6857 + $0x838] sm:$0xff]
        %v7122 = vld [vmem:[%s6857 + $0x840] sm:$0xff]
        %v7123 = vld [vmem:[%s6857 + $0x848] sm:$0xff]
        %v7124 = vld [vmem:[%s6857 + $0x850] sm:$0xff]
        %v7125 = vld [vmem:[%s6857 + $0x858] sm:$0xff]
        %v7126 = vld [vmem:[%s6857 + $0x860] sm:$0xff]
        %v7127 = vld [vmem:[%s6857 + $0x868] sm:$0xff]
        %v7128 = vld [vmem:[%s6857 + $0x870] sm:$0xff]
        %v7129 = vld [vmem:[%s6857 + $0x878] sm:$0xff]
        %v7130 = vld [vmem:[%s6857 + $0x880] sm:$0xff]
        %v7131 = vld [vmem:[%s6857 + $0x888] sm:$0xff]
        %v7132 = vld [vmem:[%s6857 + $0x890] sm:$0xff]
        %v7133 = vld [vmem:[%s6857 + $0x898] sm:$0xff]
        %v7134 = vld [vmem:[%s6857 + $0x8a0] sm:$0xff]
        %v7135 = vld [vmem:[%s6857 + $0x8a8] sm:$0xff]
        %v7136 = vld [vmem:[%s6857 + $0x8b0] sm:$0xff]
        %v7137 = vld [vmem:[%s6857 + $0x8b8] sm:$0xff]
        %v7138 = vld [vmem:[%s6857 + $0x8c0] sm:$0xff]
        %v7139 = vld [vmem:[%s6857 + $0x8c8] sm:$0xff]
        %v7140 = vld [vmem:[%s6857 + $0x8d0] sm:$0xff]
        %v7141 = vld [vmem:[%s6857 + $0x8d8] sm:$0xff]
        %v7142 = vld [vmem:[%s6857 + $0x8e0] sm:$0xff]
        %v7143 = vld [vmem:[%s6857 + $0x8e8] sm:$0xff]
        %v7144 = vld [vmem:[%s6857 + $0x8f0] sm:$0xff]
        %v7145 = vld [vmem:[%s6857 + $0x8f8] sm:$0xff]
        %s7146 = smul.u32 %s410, 6
        %s7147 = scalar_lea.vmem %s7, %s7146
        %v7148 = vld [vmem:[%s7147] sm:$0x3f]
        %v7150 = vlaneseq
        %v7151 = vshrl.u32 %v7150, 7
        %v7152 = vsub.s32 0, %v7151
        %v7153 = vrot.slane %v7148, %v7152
        %v7154 = vlaneseq
        %v7155 = vshrl.u32 %v7154, 7
        %v7156 = vsub.s32 1, %v7155
        %v7157 = vrot.slane %v7148, %v7156
        %v7158 = vlaneseq
        %v7159 = vshrl.u32 %v7158, 7
        %v7160 = vsub.s32 2, %v7159
        %v7161 = vrot.slane %v7148, %v7160
        %v7162 = vlaneseq
        %v7163 = vshrl.u32 %v7162, 7
        %v7164 = vsub.s32 3, %v7163
        %v7165 = vrot.slane %v7148, %v7164
        %v7166 = vlaneseq
        %v7167 = vshrl.u32 %v7166, 7
        %v7168 = vsub.s32 4, %v7167
        %v7169 = vrot.slane %v7148, %v7168
        %v7170 = vlaneseq
        %v7171 = vshrl.u32 %v7170, 7
        %v7172 = vsub.s32 5, %v7171
        %v7173 = vrot.slane %v7148, %v7172
        %v7468 = vunpack.c.l.b16 %v6858
        %v7469 = vunpack.c.h.b16 %v6858
        %v7470 = vunpack.c.l.b16 %v6859
        %v7471 = vunpack.c.h.b16 %v6859
        %v7472 = vunpack.c.l.b16 %v6860
        %v7473 = vunpack.c.h.b16 %v6860
        %v7474 = vunpack.c.l.b16 %v6861
        %v7475 = vunpack.c.h.b16 %v6861
        %v7476 = vunpack.c.l.b16 %v6862
        %v7477 = vunpack.c.h.b16 %v6862
        %v7478 = vunpack.c.l.b16 %v6863
        %v7479 = vunpack.c.h.b16 %v6863
        %v7480 = vunpack.c.l.b16 %v6864
        %v7481 = vunpack.c.h.b16 %v6864
        %v7482 = vunpack.c.l.b16 %v6865
        %v7483 = vunpack.c.h.b16 %v6865
        %v7484 = vunpack.c.l.b16 %v6866
        %v7485 = vunpack.c.h.b16 %v6866
        %v7486 = vunpack.c.l.b16 %v6867
        %v7487 = vunpack.c.h.b16 %v6867
        %v7488 = vunpack.c.l.b16 %v6868
        %v7489 = vunpack.c.h.b16 %v6868
        %v7490 = vunpack.c.l.b16 %v6869
        %v7491 = vunpack.c.h.b16 %v6869
        %v7492 = vunpack.c.l.b16 %v6870
        %v7493 = vunpack.c.h.b16 %v6870
        %v7494 = vunpack.c.l.b16 %v6871
        %v7495 = vunpack.c.h.b16 %v6871
        %v7496 = vunpack.c.l.b16 %v6872
        %v7497 = vunpack.c.h.b16 %v6872
        %v7498 = vunpack.c.l.b16 %v6873
        %v7499 = vunpack.c.h.b16 %v6873
        %v7500 = vunpack.c.l.b16 %v6874
        %v7501 = vunpack.c.h.b16 %v6874
        %v7502 = vunpack.c.l.b16 %v6875
        %v7503 = vunpack.c.h.b16 %v6875
        %v7504 = vunpack.c.l.b16 %v6876
        %v7505 = vunpack.c.h.b16 %v6876
        %v7506 = vunpack.c.l.b16 %v6877
        %v7507 = vunpack.c.h.b16 %v6877
        %v7508 = vunpack.c.l.b16 %v6878
        %v7509 = vunpack.c.h.b16 %v6878
        %v7510 = vunpack.c.l.b16 %v6879
        %v7511 = vunpack.c.h.b16 %v6879
        %v7512 = vunpack.c.l.b16 %v6880
        %v7513 = vunpack.c.h.b16 %v6880
        %v7514 = vunpack.c.l.b16 %v6881
        %v7515 = vunpack.c.h.b16 %v6881
        %v7516 = vunpack.c.l.b16 %v6882
        %v7517 = vunpack.c.h.b16 %v6882
        %v7518 = vunpack.c.l.b16 %v6883
        %v7519 = vunpack.c.h.b16 %v6883
        %v7520 = vunpack.c.l.b16 %v6884
        %v7521 = vunpack.c.h.b16 %v6884
        %v7522 = vunpack.c.l.b16 %v6885
        %v7523 = vunpack.c.h.b16 %v6885
        %v7524 = vunpack.c.l.b16 %v6886
        %v7525 = vunpack.c.h.b16 %v6886
        %v7526 = vunpack.c.l.b16 %v6887
        %v7527 = vunpack.c.h.b16 %v6887
        %v7528 = vunpack.c.l.b16 %v6888
        %v7529 = vunpack.c.h.b16 %v6888
        %v7530 = vunpack.c.l.b16 %v6889
        %v7531 = vunpack.c.h.b16 %v6889
        %v7532 = vunpack.c.l.b16 %v6890
        %v7533 = vunpack.c.h.b16 %v6890
        %v7534 = vunpack.c.l.b16 %v6891
        %v7535 = vunpack.c.h.b16 %v6891
        %v7536 = vunpack.c.l.b16 %v6892
        %v7537 = vunpack.c.h.b16 %v6892
        %v7538 = vunpack.c.l.b16 %v6893
        %v7539 = vunpack.c.h.b16 %v6893
        %v7540 = vunpack.c.l.b16 %v6894
        %v7541 = vunpack.c.h.b16 %v6894
        %v7542 = vunpack.c.l.b16 %v6895
        %v7543 = vunpack.c.h.b16 %v6895
        %v7544 = vunpack.c.l.b16 %v6896
        %v7545 = vunpack.c.h.b16 %v6896
        %v7546 = vunpack.c.l.b16 %v6897
        %v7547 = vunpack.c.h.b16 %v6897
        %v7548 = vunpack.c.l.b16 %v6898
        %v7549 = vunpack.c.h.b16 %v6898
        %v7550 = vunpack.c.l.b16 %v6899
        %v7551 = vunpack.c.h.b16 %v6899
        %v7552 = vunpack.c.l.b16 %v6900
        %v7553 = vunpack.c.h.b16 %v6900
        %v7554 = vunpack.c.l.b16 %v6901
        %v7555 = vunpack.c.h.b16 %v6901
        %v7556 = vunpack.c.l.b16 %v6902
        %v7557 = vunpack.c.h.b16 %v6902
        %v7558 = vunpack.c.l.b16 %v6903
        %v7559 = vunpack.c.h.b16 %v6903
        %v7560 = vunpack.c.l.b16 %v6904
        %v7561 = vunpack.c.h.b16 %v6904
        %v7562 = vunpack.c.l.b16 %v6905
        %v7563 = vunpack.c.h.b16 %v6905
        %v7564 = vunpack.c.l.b16 %v6906
        %v7565 = vunpack.c.h.b16 %v6906
        %v7566 = vunpack.c.l.b16 %v6907
        %v7567 = vunpack.c.h.b16 %v6907
        %v7568 = vunpack.c.l.b16 %v6908
        %v7569 = vunpack.c.h.b16 %v6908
        %v7570 = vunpack.c.l.b16 %v6909
        %v7571 = vunpack.c.h.b16 %v6909
        %v7572 = vunpack.c.l.b16 %v6910
        %v7573 = vunpack.c.h.b16 %v6910
        %v7574 = vunpack.c.l.b16 %v6911
        %v7575 = vunpack.c.h.b16 %v6911
        %v7576 = vunpack.c.l.b16 %v6912
        %v7577 = vunpack.c.h.b16 %v6912
        %v7578 = vunpack.c.l.b16 %v6913
        %v7579 = vunpack.c.h.b16 %v6913
        %v7580 = vunpack.c.l.b16 %v6914
        %v7581 = vunpack.c.h.b16 %v6914
        %v7582 = vunpack.c.l.b16 %v6915
        %v7583 = vunpack.c.h.b16 %v6915
        %v7584 = vunpack.c.l.b16 %v6916
        %v7585 = vunpack.c.h.b16 %v6916
        %v7586 = vunpack.c.l.b16 %v6917
        %v7587 = vunpack.c.h.b16 %v6917
        %v7588 = vunpack.c.l.b16 %v6918
        %v7589 = vunpack.c.h.b16 %v6918
        %v7590 = vunpack.c.l.b16 %v6919
        %v7591 = vunpack.c.h.b16 %v6919
        %v7592 = vunpack.c.l.b16 %v6920
        %v7593 = vunpack.c.h.b16 %v6920
        %v7594 = vunpack.c.l.b16 %v6921
        %v7595 = vunpack.c.h.b16 %v6921
        %v7596 = vunpack.c.l.b16 %v6922
        %v7597 = vunpack.c.h.b16 %v6922
        %v7598 = vunpack.c.l.b16 %v6923
        %v7599 = vunpack.c.h.b16 %v6923
        %v7600 = vunpack.c.l.b16 %v6924
        %v7601 = vunpack.c.h.b16 %v6924
        %v7602 = vunpack.c.l.b16 %v6925
        %v7603 = vunpack.c.h.b16 %v6925
        %v7604 = vunpack.c.l.b16 %v6926
        %v7605 = vunpack.c.h.b16 %v6926
        %v7606 = vunpack.c.l.b16 %v6927
        %v7607 = vunpack.c.h.b16 %v6927
        %v7608 = vunpack.c.l.b16 %v6928
        %v7609 = vunpack.c.h.b16 %v6928
        %v7610 = vunpack.c.l.b16 %v6929
        %v7611 = vunpack.c.h.b16 %v6929
        %v7612 = vunpack.c.l.b16 %v6930
        %v7613 = vunpack.c.h.b16 %v6930
        %v7614 = vunpack.c.l.b16 %v6931
        %v7615 = vunpack.c.h.b16 %v6931
        %v7616 = vunpack.c.l.b16 %v6932
        %v7617 = vunpack.c.h.b16 %v6932
        %v7618 = vunpack.c.l.b16 %v6933
        %v7619 = vunpack.c.h.b16 %v6933
        %v7620 = vunpack.c.l.b16 %v6934
        %v7621 = vunpack.c.h.b16 %v6934
        %v7622 = vunpack.c.l.b16 %v6935
        %v7623 = vunpack.c.h.b16 %v6935
        %v7624 = vunpack.c.l.b16 %v6936
        %v7625 = vunpack.c.h.b16 %v6936
        %v7626 = vunpack.c.l.b16 %v6937
        %v7627 = vunpack.c.h.b16 %v6937
        %v7628 = vunpack.c.l.b16 %v6938
        %v7629 = vunpack.c.h.b16 %v6938
        %v7630 = vunpack.c.l.b16 %v6939
        %v7631 = vunpack.c.h.b16 %v6939
        %v7632 = vunpack.c.l.b16 %v6940
        %v7633 = vunpack.c.h.b16 %v6940
        %v7634 = vunpack.c.l.b16 %v6941
        %v7635 = vunpack.c.h.b16 %v6941
        %v7636 = vunpack.c.l.b16 %v6942
        %v7637 = vunpack.c.h.b16 %v6942
        %v7638 = vunpack.c.l.b16 %v6943
        %v7639 = vunpack.c.h.b16 %v6943
        %v7640 = vunpack.c.l.b16 %v6944
        %v7641 = vunpack.c.h.b16 %v6944
        %v7642 = vunpack.c.l.b16 %v6945
        %v7643 = vunpack.c.h.b16 %v6945
        %v7644 = vunpack.c.l.b16 %v6946
        %v7645 = vunpack.c.h.b16 %v6946
        %v7646 = vunpack.c.l.b16 %v6947
        %v7647 = vunpack.c.h.b16 %v6947
        %v7648 = vunpack.c.l.b16 %v6948
        %v7649 = vunpack.c.h.b16 %v6948
        %v7650 = vunpack.c.l.b16 %v6949
        %v7651 = vunpack.c.h.b16 %v6949
        %v7652 = vunpack.c.l.b16 %v6950
        %v7653 = vunpack.c.h.b16 %v6950
        %v7654 = vunpack.c.l.b16 %v6951
        %v7655 = vunpack.c.h.b16 %v6951
        %v7656 = vunpack.c.l.b16 %v6952
        %v7657 = vunpack.c.h.b16 %v6952
        %v7658 = vunpack.c.l.b16 %v6953
        %v7659 = vunpack.c.h.b16 %v6953
        %v7660 = vunpack.c.l.b16 %v6954
        %v7661 = vunpack.c.h.b16 %v6954
        %v7662 = vunpack.c.l.b16 %v6955
        %v7663 = vunpack.c.h.b16 %v6955
        %v7664 = vunpack.c.l.b16 %v6956
        %v7665 = vunpack.c.h.b16 %v6956
        %v7666 = vunpack.c.l.b16 %v6957
        %v7667 = vunpack.c.h.b16 %v6957
        %v7668 = vunpack.c.l.b16 %v6958
        %v7669 = vunpack.c.h.b16 %v6958
        %v7670 = vunpack.c.l.b16 %v6959
        %v7671 = vunpack.c.h.b16 %v6959
        %v7672 = vunpack.c.l.b16 %v6960
        %v7673 = vunpack.c.h.b16 %v6960
        %v7674 = vunpack.c.l.b16 %v6961
        %v7675 = vunpack.c.h.b16 %v6961
        %v7676 = vunpack.c.l.b16 %v6962
        %v7677 = vunpack.c.h.b16 %v6962
        %v7678 = vunpack.c.l.b16 %v6963
        %v7679 = vunpack.c.h.b16 %v6963
        %v7680 = vunpack.c.l.b16 %v6964
        %v7681 = vunpack.c.h.b16 %v6964
        %v7682 = vunpack.c.l.b16 %v6965
        %v7683 = vunpack.c.h.b16 %v6965
        %v7684 = vunpack.c.l.b16 %v6966
        %v7685 = vunpack.c.h.b16 %v6966
        %v7686 = vunpack.c.l.b16 %v6967
        %v7687 = vunpack.c.h.b16 %v6967
        %v7688 = vunpack.c.l.b16 %v6968
        %v7689 = vunpack.c.h.b16 %v6968
        %v7690 = vunpack.c.l.b16 %v6969
        %v7691 = vunpack.c.h.b16 %v6969
        %v7692 = vunpack.c.l.b16 %v6970
        %v7693 = vunpack.c.h.b16 %v6970
        %v7694 = vunpack.c.l.b16 %v6971
        %v7695 = vunpack.c.h.b16 %v6971
        %v7696 = vunpack.c.l.b16 %v6972
        %v7697 = vunpack.c.h.b16 %v6972
        %v7698 = vunpack.c.l.b16 %v6973
        %v7699 = vunpack.c.h.b16 %v6973
        %v7700 = vunpack.c.l.b16 %v6974
        %v7701 = vunpack.c.h.b16 %v6974
        %v7702 = vunpack.c.l.b16 %v6975
        %v7703 = vunpack.c.h.b16 %v6975
        %v7704 = vunpack.c.l.b16 %v6976
        %v7705 = vunpack.c.h.b16 %v6976
        %v7706 = vunpack.c.l.b16 %v6977
        %v7707 = vunpack.c.h.b16 %v6977
        %v7708 = vunpack.c.l.b16 %v6978
        %v7709 = vunpack.c.h.b16 %v6978
        %v7710 = vunpack.c.l.b16 %v6979
        %v7711 = vunpack.c.h.b16 %v6979
        %v7712 = vunpack.c.l.b16 %v6980
        %v7713 = vunpack.c.h.b16 %v6980
        %v7714 = vunpack.c.l.b16 %v6981
        %v7715 = vunpack.c.h.b16 %v6981
        %v7716 = vunpack.c.l.b16 %v6982
        %v7717 = vunpack.c.h.b16 %v6982
        %v7718 = vunpack.c.l.b16 %v6983
        %v7719 = vunpack.c.h.b16 %v6983
        %v7720 = vunpack.c.l.b16 %v6984
        %v7721 = vunpack.c.h.b16 %v6984
        %v7722 = vunpack.c.l.b16 %v6985
        %v7723 = vunpack.c.h.b16 %v6985
        %v7724 = vunpack.c.l.b16 %v6986
        %v7725 = vunpack.c.h.b16 %v6986
        %v7726 = vunpack.c.l.b16 %v6987
        %v7727 = vunpack.c.h.b16 %v6987
        %v7728 = vunpack.c.l.b16 %v6988
        %v7729 = vunpack.c.h.b16 %v6988
        %v7730 = vunpack.c.l.b16 %v6989
        %v7731 = vunpack.c.h.b16 %v6989
        %v7732 = vunpack.c.l.b16 %v6990
        %v7733 = vunpack.c.h.b16 %v6990
        %v7734 = vunpack.c.l.b16 %v6991
        %v7735 = vunpack.c.h.b16 %v6991
        %v7736 = vunpack.c.l.b16 %v6992
        %v7737 = vunpack.c.h.b16 %v6992
        %v7738 = vunpack.c.l.b16 %v6993
        %v7739 = vunpack.c.h.b16 %v6993
        %v7740 = vunpack.c.l.b16 %v6994
        %v7741 = vunpack.c.h.b16 %v6994
        %v7742 = vunpack.c.l.b16 %v6995
        %v7743 = vunpack.c.h.b16 %v6995
        %v7744 = vunpack.c.l.b16 %v6996
        %v7745 = vunpack.c.h.b16 %v6996
        %v7746 = vunpack.c.l.b16 %v6997
        %v7747 = vunpack.c.h.b16 %v6997
        %v7748 = vunpack.c.l.b16 %v6998
        %v7749 = vunpack.c.h.b16 %v6998
        %v7750 = vunpack.c.l.b16 %v6999
        %v7751 = vunpack.c.h.b16 %v6999
        %v7752 = vunpack.c.l.b16 %v7000
        %v7753 = vunpack.c.h.b16 %v7000
        %v7754 = vunpack.c.l.b16 %v7001
        %v7755 = vunpack.c.h.b16 %v7001
        %v7756 = vunpack.c.l.b16 %v7002
        %v7757 = vunpack.c.h.b16 %v7002
        %v7758 = vunpack.c.l.b16 %v7003
        %v7759 = vunpack.c.h.b16 %v7003
        %v7760 = vunpack.c.l.b16 %v7004
        %v7761 = vunpack.c.h.b16 %v7004
        %v7762 = vunpack.c.l.b16 %v7005
        %v7763 = vunpack.c.h.b16 %v7005
        %v7764 = vunpack.c.l.b16 %v7006
        %v7765 = vunpack.c.h.b16 %v7006
        %v7766 = vunpack.c.l.b16 %v7007
        %v7767 = vunpack.c.h.b16 %v7007
        %v7768 = vunpack.c.l.b16 %v7008
        %v7769 = vunpack.c.h.b16 %v7008
        %v7770 = vunpack.c.l.b16 %v7009
        %v7771 = vunpack.c.h.b16 %v7009
        %v7772 = vunpack.c.l.b16 %v7010
        %v7773 = vunpack.c.h.b16 %v7010
        %v7774 = vunpack.c.l.b16 %v7011
        %v7775 = vunpack.c.h.b16 %v7011
        %v7776 = vunpack.c.l.b16 %v7012
        %v7777 = vunpack.c.h.b16 %v7012
        %v7778 = vunpack.c.l.b16 %v7013
        %v7779 = vunpack.c.h.b16 %v7013
        %v7780 = vunpack.c.l.b16 %v7014
        %v7781 = vunpack.c.h.b16 %v7014
        %v7782 = vunpack.c.l.b16 %v7015
        %v7783 = vunpack.c.h.b16 %v7015
        %v7784 = vunpack.c.l.b16 %v7016
        %v7785 = vunpack.c.h.b16 %v7016
        %v7786 = vunpack.c.l.b16 %v7017
        %v7787 = vunpack.c.h.b16 %v7017
        %v7788 = vunpack.c.l.b16 %v7018
        %v7789 = vunpack.c.h.b16 %v7018
        %v7790 = vunpack.c.l.b16 %v7019
        %v7791 = vunpack.c.h.b16 %v7019
        %v7792 = vunpack.c.l.b16 %v7020
        %v7793 = vunpack.c.h.b16 %v7020
        %v7794 = vunpack.c.l.b16 %v7021
        %v7795 = vunpack.c.h.b16 %v7021
        %v7796 = vunpack.c.l.b16 %v7022
        %v7797 = vunpack.c.h.b16 %v7022
        %v7798 = vunpack.c.l.b16 %v7023
        %v7799 = vunpack.c.h.b16 %v7023
        %v7800 = vunpack.c.l.b16 %v7024
        %v7801 = vunpack.c.h.b16 %v7024
        %v7802 = vunpack.c.l.b16 %v7025
        %v7803 = vunpack.c.h.b16 %v7025
        %v7804 = vunpack.c.l.b16 %v7026
        %v7805 = vunpack.c.h.b16 %v7026
        %v7806 = vunpack.c.l.b16 %v7027
        %v7807 = vunpack.c.h.b16 %v7027
        %v7808 = vunpack.c.l.b16 %v7028
        %v7809 = vunpack.c.h.b16 %v7028
        %v7810 = vunpack.c.l.b16 %v7029
        %v7811 = vunpack.c.h.b16 %v7029
        %v7812 = vunpack.c.l.b16 %v7030
        %v7813 = vunpack.c.h.b16 %v7030
        %v7814 = vunpack.c.l.b16 %v7031
        %v7815 = vunpack.c.h.b16 %v7031
        %v7816 = vunpack.c.l.b16 %v7032
        %v7817 = vunpack.c.h.b16 %v7032
        %v7818 = vunpack.c.l.b16 %v7033
        %v7819 = vunpack.c.h.b16 %v7033
        %v7820 = vunpack.c.l.b16 %v7034
        %v7821 = vunpack.c.h.b16 %v7034
        %v7822 = vunpack.c.l.b16 %v7035
        %v7823 = vunpack.c.h.b16 %v7035
        %v7824 = vunpack.c.l.b16 %v7036
        %v7825 = vunpack.c.h.b16 %v7036
        %v7826 = vunpack.c.l.b16 %v7037
        %v7827 = vunpack.c.h.b16 %v7037
        %v7828 = vunpack.c.l.b16 %v7038
        %v7829 = vunpack.c.h.b16 %v7038
        %v7830 = vunpack.c.l.b16 %v7039
        %v7831 = vunpack.c.h.b16 %v7039
        %v7832 = vunpack.c.l.b16 %v7040
        %v7833 = vunpack.c.h.b16 %v7040
        %v7834 = vunpack.c.l.b16 %v7041
        %v7835 = vunpack.c.h.b16 %v7041
        %v7836 = vunpack.c.l.b16 %v7042
        %v7837 = vunpack.c.h.b16 %v7042
        %v7838 = vunpack.c.l.b16 %v7043
        %v7839 = vunpack.c.h.b16 %v7043
        %v7840 = vunpack.c.l.b16 %v7044
        %v7841 = vunpack.c.h.b16 %v7044
        %v7842 = vunpack.c.l.b16 %v7045
        %v7843 = vunpack.c.h.b16 %v7045
        %v7844 = vunpack.c.l.b16 %v7046
        %v7845 = vunpack.c.h.b16 %v7046
        %v7846 = vunpack.c.l.b16 %v7047
        %v7847 = vunpack.c.h.b16 %v7047
        %v7848 = vunpack.c.l.b16 %v7048
        %v7849 = vunpack.c.h.b16 %v7048
        %v7850 = vunpack.c.l.b16 %v7049
        %v7851 = vunpack.c.h.b16 %v7049
        %v7852 = vunpack.c.l.b16 %v7050
        %v7853 = vunpack.c.h.b16 %v7050
        %v7854 = vunpack.c.l.b16 %v7051
        %v7855 = vunpack.c.h.b16 %v7051
        %v7856 = vunpack.c.l.b16 %v7052
        %v7857 = vunpack.c.h.b16 %v7052
        %v7858 = vunpack.c.l.b16 %v7053
        %v7859 = vunpack.c.h.b16 %v7053
        %v7860 = vunpack.c.l.b16 %v7054
        %v7861 = vunpack.c.h.b16 %v7054
        %v7862 = vunpack.c.l.b16 %v7055
        %v7863 = vunpack.c.h.b16 %v7055
        %v7864 = vunpack.c.l.b16 %v7056
        %v7865 = vunpack.c.h.b16 %v7056
        %v7866 = vunpack.c.l.b16 %v7057
        %v7867 = vunpack.c.h.b16 %v7057
        %v7868 = vunpack.c.l.b16 %v7058
        %v7869 = vunpack.c.h.b16 %v7058
        %v7870 = vunpack.c.l.b16 %v7059
        %v7871 = vunpack.c.h.b16 %v7059
        %v7872 = vunpack.c.l.b16 %v7060
        %v7873 = vunpack.c.h.b16 %v7060
        %v7874 = vunpack.c.l.b16 %v7061
        %v7875 = vunpack.c.h.b16 %v7061
        %v7876 = vunpack.c.l.b16 %v7062
        %v7877 = vunpack.c.h.b16 %v7062
        %v7878 = vunpack.c.l.b16 %v7063
        %v7879 = vunpack.c.h.b16 %v7063
        %v7880 = vunpack.c.l.b16 %v7064
        %v7881 = vunpack.c.h.b16 %v7064
        %v7882 = vunpack.c.l.b16 %v7065
        %v7883 = vunpack.c.h.b16 %v7065
        %v7884 = vunpack.c.l.b16 %v7066
        %v7885 = vunpack.c.h.b16 %v7066
        %v7886 = vunpack.c.l.b16 %v7067
        %v7887 = vunpack.c.h.b16 %v7067
        %v7888 = vunpack.c.l.b16 %v7068
        %v7889 = vunpack.c.h.b16 %v7068
        %v7890 = vunpack.c.l.b16 %v7069
        %v7891 = vunpack.c.h.b16 %v7069
        %v7892 = vunpack.c.l.b16 %v7070
        %v7893 = vunpack.c.h.b16 %v7070
        %v7894 = vunpack.c.l.b16 %v7071
        %v7895 = vunpack.c.h.b16 %v7071
        %v7896 = vunpack.c.l.b16 %v7072
        %v7897 = vunpack.c.h.b16 %v7072
        %v7898 = vunpack.c.l.b16 %v7073
        %v7899 = vunpack.c.h.b16 %v7073
        %v7900 = vunpack.c.l.b16 %v7074
        %v7901 = vunpack.c.h.b16 %v7074
        %v7902 = vunpack.c.l.b16 %v7075
        %v7903 = vunpack.c.h.b16 %v7075
        %v7904 = vunpack.c.l.b16 %v7076
        %v7905 = vunpack.c.h.b16 %v7076
        %v7906 = vunpack.c.l.b16 %v7077
        %v7907 = vunpack.c.h.b16 %v7077
        %v7908 = vunpack.c.l.b16 %v7078
        %v7909 = vunpack.c.h.b16 %v7078
        %v7910 = vunpack.c.l.b16 %v7079
        %v7911 = vunpack.c.h.b16 %v7079
        %v7912 = vunpack.c.l.b16 %v7080
        %v7913 = vunpack.c.h.b16 %v7080
        %v7914 = vunpack.c.l.b16 %v7081
        %v7915 = vunpack.c.h.b16 %v7081
        %v7916 = vunpack.c.l.b16 %v7082
        %v7917 = vunpack.c.h.b16 %v7082
        %v7918 = vunpack.c.l.b16 %v7083
        %v7919 = vunpack.c.h.b16 %v7083
        %v7920 = vunpack.c.l.b16 %v7084
        %v7921 = vunpack.c.h.b16 %v7084
        %v7922 = vunpack.c.l.b16 %v7085
        %v7923 = vunpack.c.h.b16 %v7085
        %v7924 = vunpack.c.l.b16 %v7086
        %v7925 = vunpack.c.h.b16 %v7086
        %v7926 = vunpack.c.l.b16 %v7087
        %v7927 = vunpack.c.h.b16 %v7087
        %v7928 = vunpack.c.l.b16 %v7088
        %v7929 = vunpack.c.h.b16 %v7088
        %v7930 = vunpack.c.l.b16 %v7089
        %v7931 = vunpack.c.h.b16 %v7089
        %v7932 = vunpack.c.l.b16 %v7090
        %v7933 = vunpack.c.h.b16 %v7090
        %v7934 = vunpack.c.l.b16 %v7091
        %v7935 = vunpack.c.h.b16 %v7091
        %v7936 = vunpack.c.l.b16 %v7092
        %v7937 = vunpack.c.h.b16 %v7092
        %v7938 = vunpack.c.l.b16 %v7093
        %v7939 = vunpack.c.h.b16 %v7093
        %v7940 = vunpack.c.l.b16 %v7094
        %v7941 = vunpack.c.h.b16 %v7094
        %v7942 = vunpack.c.l.b16 %v7095
        %v7943 = vunpack.c.h.b16 %v7095
        %v7944 = vunpack.c.l.b16 %v7096
        %v7945 = vunpack.c.h.b16 %v7096
        %v7946 = vunpack.c.l.b16 %v7097
        %v7947 = vunpack.c.h.b16 %v7097
        %v7948 = vunpack.c.l.b16 %v7098
        %v7949 = vunpack.c.h.b16 %v7098
        %v7950 = vunpack.c.l.b16 %v7099
        %v7951 = vunpack.c.h.b16 %v7099
        %v7952 = vunpack.c.l.b16 %v7100
        %v7953 = vunpack.c.h.b16 %v7100
        %v7954 = vunpack.c.l.b16 %v7101
        %v7955 = vunpack.c.h.b16 %v7101
        %v7956 = vunpack.c.l.b16 %v7102
        %v7957 = vunpack.c.h.b16 %v7102
        %v7958 = vunpack.c.l.b16 %v7103
        %v7959 = vunpack.c.h.b16 %v7103
        %v7960 = vunpack.c.l.b16 %v7104
        %v7961 = vunpack.c.h.b16 %v7104
        %v7962 = vunpack.c.l.b16 %v7105
        %v7963 = vunpack.c.h.b16 %v7105
        %v7964 = vunpack.c.l.b16 %v7106
        %v7965 = vunpack.c.h.b16 %v7106
        %v7966 = vunpack.c.l.b16 %v7107
        %v7967 = vunpack.c.h.b16 %v7107
        %v7968 = vunpack.c.l.b16 %v7108
        %v7969 = vunpack.c.h.b16 %v7108
        %v7970 = vunpack.c.l.b16 %v7109
        %v7971 = vunpack.c.h.b16 %v7109
        %v7972 = vunpack.c.l.b16 %v7110
        %v7973 = vunpack.c.h.b16 %v7110
        %v7974 = vunpack.c.l.b16 %v7111
        %v7975 = vunpack.c.h.b16 %v7111
        %v7976 = vunpack.c.l.b16 %v7112
        %v7977 = vunpack.c.h.b16 %v7112
        %v7978 = vunpack.c.l.b16 %v7113
        %v7979 = vunpack.c.h.b16 %v7113
        %v7980 = vunpack.c.l.b16 %v7114
        %v7981 = vunpack.c.h.b16 %v7114
        %v7982 = vunpack.c.l.b16 %v7115
        %v7983 = vunpack.c.h.b16 %v7115
        %v7984 = vunpack.c.l.b16 %v7116
        %v7985 = vunpack.c.h.b16 %v7116
        %v7986 = vunpack.c.l.b16 %v7117
        %v7987 = vunpack.c.h.b16 %v7117
        %v7988 = vunpack.c.l.b16 %v7118
        %v7989 = vunpack.c.h.b16 %v7118
        %v7990 = vunpack.c.l.b16 %v7119
        %v7991 = vunpack.c.h.b16 %v7119
        %v7992 = vunpack.c.l.b16 %v7120
        %v7993 = vunpack.c.h.b16 %v7120
        %v7994 = vunpack.c.l.b16 %v7121
        %v7995 = vunpack.c.h.b16 %v7121
        %v7996 = vunpack.c.l.b16 %v7122
        %v7997 = vunpack.c.h.b16 %v7122
        %v7998 = vunpack.c.l.b16 %v7123
        %v7999 = vunpack.c.h.b16 %v7123
        %v8000 = vunpack.c.l.b16 %v7124
        %v8001 = vunpack.c.h.b16 %v7124
        %v8002 = vunpack.c.l.b16 %v7125
        %v8003 = vunpack.c.h.b16 %v7125
        %v8004 = vunpack.c.l.b16 %v7126
        %v8005 = vunpack.c.h.b16 %v7126
        %v8006 = vunpack.c.l.b16 %v7127
        %v8007 = vunpack.c.h.b16 %v7127
        %v8008 = vunpack.c.l.b16 %v7128
        %v8009 = vunpack.c.h.b16 %v7128
        %v8010 = vunpack.c.l.b16 %v7129
        %v8011 = vunpack.c.h.b16 %v7129
        %v8012 = vunpack.c.l.b16 %v7130
        %v8013 = vunpack.c.h.b16 %v7130
        %v8014 = vunpack.c.l.b16 %v7131
        %v8015 = vunpack.c.h.b16 %v7131
        %v8016 = vunpack.c.l.b16 %v7132
        %v8017 = vunpack.c.h.b16 %v7132
        %v8018 = vunpack.c.l.b16 %v7133
        %v8019 = vunpack.c.h.b16 %v7133
        %v8020 = vunpack.c.l.b16 %v7134
        %v8021 = vunpack.c.h.b16 %v7134
        %v8022 = vunpack.c.l.b16 %v7135
        %v8023 = vunpack.c.h.b16 %v7135
        %v8024 = vunpack.c.l.b16 %v7136
        %v8025 = vunpack.c.h.b16 %v7136
        %v8026 = vunpack.c.l.b16 %v7137
        %v8027 = vunpack.c.h.b16 %v7137
        %v8028 = vunpack.c.l.b16 %v7138
        %v8029 = vunpack.c.h.b16 %v7138
        %v8030 = vunpack.c.l.b16 %v7139
        %v8031 = vunpack.c.h.b16 %v7139
        %v8032 = vunpack.c.l.b16 %v7140
        %v8033 = vunpack.c.h.b16 %v7140
        %v8034 = vunpack.c.l.b16 %v7141
        %v8035 = vunpack.c.h.b16 %v7141
        %v8036 = vunpack.c.l.b16 %v7142
        %v8037 = vunpack.c.h.b16 %v7142
        %v8038 = vunpack.c.l.b16 %v7143
        %v8039 = vunpack.c.h.b16 %v7143
        %v8040 = vunpack.c.l.b16 %v7144
        %v8041 = vunpack.c.h.b16 %v7144
        %v8042 = vunpack.c.l.b16 %v7145
        %v8043 = vunpack.c.h.b16 %v7145
        %v8044 = vpack.c.b16 %v7474, %v7468
        %v8045 = vpack.c.b16 %v7475, %v7469
        %v8046 = vpack.c.b16 %v7476, %v7470
        %v8047 = vpack.c.b16 %v7477, %v7471
        %v8048 = vpack.c.b16 %v7478, %v7472
        %v8049 = vpack.c.b16 %v7479, %v7473
        %v8050 = vpack.c.b16 %v7486, %v7480
        %v8051 = vpack.c.b16 %v7487, %v7481
        %v8052 = vpack.c.b16 %v7488, %v7482
        %v8053 = vpack.c.b16 %v7489, %v7483
        %v8054 = vpack.c.b16 %v7490, %v7484
        %v8055 = vpack.c.b16 %v7491, %v7485
        %v8056 = vpack.c.b16 %v7498, %v7492
        %v8057 = vpack.c.b16 %v7499, %v7493
        %v8058 = vpack.c.b16 %v7500, %v7494
        %v8059 = vpack.c.b16 %v7501, %v7495
        %v8060 = vpack.c.b16 %v7502, %v7496
        %v8061 = vpack.c.b16 %v7503, %v7497
        %v8062 = vpack.c.b16 %v7510, %v7504
        %v8063 = vpack.c.b16 %v7511, %v7505
        %v8064 = vpack.c.b16 %v7512, %v7506
        %v8065 = vpack.c.b16 %v7513, %v7507
        %v8066 = vpack.c.b16 %v7514, %v7508
        %v8067 = vpack.c.b16 %v7515, %v7509
        %v8068 = vpack.c.b16 %v7522, %v7516
        %v8069 = vpack.c.b16 %v7523, %v7517
        %v8070 = vpack.c.b16 %v7524, %v7518
        %v8071 = vpack.c.b16 %v7525, %v7519
        %v8072 = vpack.c.b16 %v7526, %v7520
        %v8073 = vpack.c.b16 %v7527, %v7521
        %v8074 = vpack.c.b16 %v7534, %v7528
        %v8075 = vpack.c.b16 %v7535, %v7529
        %v8076 = vpack.c.b16 %v7536, %v7530
        %v8077 = vpack.c.b16 %v7537, %v7531
        %v8078 = vpack.c.b16 %v7538, %v7532
        %v8079 = vpack.c.b16 %v7539, %v7533
        %v8080 = vpack.c.b16 %v7546, %v7540
        %v8081 = vpack.c.b16 %v7547, %v7541
        %v8082 = vpack.c.b16 %v7548, %v7542
        %v8083 = vpack.c.b16 %v7549, %v7543
        %v8084 = vpack.c.b16 %v7550, %v7544
        %v8085 = vpack.c.b16 %v7551, %v7545
        %v8086 = vpack.c.b16 %v7558, %v7552
        %v8087 = vpack.c.b16 %v7559, %v7553
        %v8088 = vpack.c.b16 %v7560, %v7554
        %v8089 = vpack.c.b16 %v7561, %v7555
        %v8090 = vpack.c.b16 %v7562, %v7556
        %v8091 = vpack.c.b16 %v7563, %v7557
        %v8092 = vpack.c.b16 %v7570, %v7564
        %v8093 = vpack.c.b16 %v7571, %v7565
        %v8094 = vpack.c.b16 %v7572, %v7566
        %v8095 = vpack.c.b16 %v7573, %v7567
        %v8096 = vpack.c.b16 %v7574, %v7568
        %v8097 = vpack.c.b16 %v7575, %v7569
        %v8098 = vpack.c.b16 %v7582, %v7576
        %v8099 = vpack.c.b16 %v7583, %v7577
        %v8100 = vpack.c.b16 %v7584, %v7578
        %v8101 = vpack.c.b16 %v7585, %v7579
        %v8102 = vpack.c.b16 %v7586, %v7580
        %v8103 = vpack.c.b16 %v7587, %v7581
        %v8104 = vpack.c.b16 %v7594, %v7588
        %v8105 = vpack.c.b16 %v7595, %v7589
        %v8106 = vpack.c.b16 %v7596, %v7590
        %v8107 = vpack.c.b16 %v7597, %v7591
        %v8108 = vpack.c.b16 %v7598, %v7592
        %v8109 = vpack.c.b16 %v7599, %v7593
        %v8110 = vpack.c.b16 %v7606, %v7600
        %v8111 = vpack.c.b16 %v7607, %v7601
        %v8112 = vpack.c.b16 %v7608, %v7602
        %v8113 = vpack.c.b16 %v7609, %v7603
        %v8114 = vpack.c.b16 %v7610, %v7604
        %v8115 = vpack.c.b16 %v7611, %v7605
        %v8116 = vpack.c.b16 %v7618, %v7612
        %v8117 = vpack.c.b16 %v7619, %v7613
        %v8118 = vpack.c.b16 %v7620, %v7614
        %v8119 = vpack.c.b16 %v7621, %v7615
        %v8120 = vpack.c.b16 %v7622, %v7616
        %v8121 = vpack.c.b16 %v7623, %v7617
        %v8122 = vpack.c.b16 %v7630, %v7624
        %v8123 = vpack.c.b16 %v7631, %v7625
        %v8124 = vpack.c.b16 %v7632, %v7626
        %v8125 = vpack.c.b16 %v7633, %v7627
        %v8126 = vpack.c.b16 %v7634, %v7628
        %v8127 = vpack.c.b16 %v7635, %v7629
        %v8128 = vpack.c.b16 %v7642, %v7636
        %v8129 = vpack.c.b16 %v7643, %v7637
        %v8130 = vpack.c.b16 %v7644, %v7638
        %v8131 = vpack.c.b16 %v7645, %v7639
        %v8132 = vpack.c.b16 %v7646, %v7640
        %v8133 = vpack.c.b16 %v7647, %v7641
        %v8134 = vpack.c.b16 %v7654, %v7648
        %v8135 = vpack.c.b16 %v7655, %v7649
        %v8136 = vpack.c.b16 %v7656, %v7650
        %v8137 = vpack.c.b16 %v7657, %v7651
        %v8138 = vpack.c.b16 %v7658, %v7652
        %v8139 = vpack.c.b16 %v7659, %v7653
        %v8140 = vpack.c.b16 %v7666, %v7660
        %v8141 = vpack.c.b16 %v7667, %v7661
        %v8142 = vpack.c.b16 %v7668, %v7662
        %v8143 = vpack.c.b16 %v7669, %v7663
        %v8144 = vpack.c.b16 %v7670, %v7664
        %v8145 = vpack.c.b16 %v7671, %v7665
        %v8146 = vpack.c.b16 %v7678, %v7672
        %v8147 = vpack.c.b16 %v7679, %v7673
        %v8148 = vpack.c.b16 %v7680, %v7674
        %v8149 = vpack.c.b16 %v7681, %v7675
        %v8150 = vpack.c.b16 %v7682, %v7676
        %v8151 = vpack.c.b16 %v7683, %v7677
        %v8152 = vpack.c.b16 %v7690, %v7684
        %v8153 = vpack.c.b16 %v7691, %v7685
        %v8154 = vpack.c.b16 %v7692, %v7686
        %v8155 = vpack.c.b16 %v7693, %v7687
        %v8156 = vpack.c.b16 %v7694, %v7688
        %v8157 = vpack.c.b16 %v7695, %v7689
        %v8158 = vpack.c.b16 %v7702, %v7696
        %v8159 = vpack.c.b16 %v7703, %v7697
        %v8160 = vpack.c.b16 %v7704, %v7698
        %v8161 = vpack.c.b16 %v7705, %v7699
        %v8162 = vpack.c.b16 %v7706, %v7700
        %v8163 = vpack.c.b16 %v7707, %v7701
        %v8164 = vpack.c.b16 %v7714, %v7708
        %v8165 = vpack.c.b16 %v7715, %v7709
        %v8166 = vpack.c.b16 %v7716, %v7710
        %v8167 = vpack.c.b16 %v7717, %v7711
        %v8168 = vpack.c.b16 %v7718, %v7712
        %v8169 = vpack.c.b16 %v7719, %v7713
        %v8170 = vpack.c.b16 %v7726, %v7720
        %v8171 = vpack.c.b16 %v7727, %v7721
        %v8172 = vpack.c.b16 %v7728, %v7722
        %v8173 = vpack.c.b16 %v7729, %v7723
        %v8174 = vpack.c.b16 %v7730, %v7724
        %v8175 = vpack.c.b16 %v7731, %v7725
        %v8176 = vpack.c.b16 %v7738, %v7732
        %v8177 = vpack.c.b16 %v7739, %v7733
        %v8178 = vpack.c.b16 %v7740, %v7734
        %v8179 = vpack.c.b16 %v7741, %v7735
        %v8180 = vpack.c.b16 %v7742, %v7736
        %v8181 = vpack.c.b16 %v7743, %v7737
        %v8182 = vpack.c.b16 %v7750, %v7744
        %v8183 = vpack.c.b16 %v7751, %v7745
        %v8184 = vpack.c.b16 %v7752, %v7746
        %v8185 = vpack.c.b16 %v7753, %v7747
        %v8186 = vpack.c.b16 %v7754, %v7748
        %v8187 = vpack.c.b16 %v7755, %v7749
        %v8188 = vpack.c.b16 %v7762, %v7756
        %v8189 = vpack.c.b16 %v7763, %v7757
        %v8190 = vpack.c.b16 %v7764, %v7758
        %v8191 = vpack.c.b16 %v7765, %v7759
        %v8192 = vpack.c.b16 %v7766, %v7760
        %v8193 = vpack.c.b16 %v7767, %v7761
        %v8194 = vpack.c.b16 %v7774, %v7768
        %v8195 = vpack.c.b16 %v7775, %v7769
        %v8196 = vpack.c.b16 %v7776, %v7770
        %v8197 = vpack.c.b16 %v7777, %v7771
        %v8198 = vpack.c.b16 %v7778, %v7772
        %v8199 = vpack.c.b16 %v7779, %v7773
        %v8200 = vpack.c.b16 %v7786, %v7780
        %v8201 = vpack.c.b16 %v7787, %v7781
        %v8202 = vpack.c.b16 %v7788, %v7782
        %v8203 = vpack.c.b16 %v7789, %v7783
        %v8204 = vpack.c.b16 %v7790, %v7784
        %v8205 = vpack.c.b16 %v7791, %v7785
        %v8206 = vpack.c.b16 %v7798, %v7792
        %v8207 = vpack.c.b16 %v7799, %v7793
        %v8208 = vpack.c.b16 %v7800, %v7794
        %v8209 = vpack.c.b16 %v7801, %v7795
        %v8210 = vpack.c.b16 %v7802, %v7796
        %v8211 = vpack.c.b16 %v7803, %v7797
        %v8212 = vpack.c.b16 %v7810, %v7804
        %v8213 = vpack.c.b16 %v7811, %v7805
        %v8214 = vpack.c.b16 %v7812, %v7806
        %v8215 = vpack.c.b16 %v7813, %v7807
        %v8216 = vpack.c.b16 %v7814, %v7808
        %v8217 = vpack.c.b16 %v7815, %v7809
        %v8218 = vpack.c.b16 %v7822, %v7816
        %v8219 = vpack.c.b16 %v7823, %v7817
        %v8220 = vpack.c.b16 %v7824, %v7818
        %v8221 = vpack.c.b16 %v7825, %v7819
        %v8222 = vpack.c.b16 %v7826, %v7820
        %v8223 = vpack.c.b16 %v7827, %v7821
        %v8224 = vpack.c.b16 %v7834, %v7828
        %v8225 = vpack.c.b16 %v7835, %v7829
        %v8226 = vpack.c.b16 %v7836, %v7830
        %v8227 = vpack.c.b16 %v7837, %v7831
        %v8228 = vpack.c.b16 %v7838, %v7832
        %v8229 = vpack.c.b16 %v7839, %v7833
        %v8230 = vpack.c.b16 %v7846, %v7840
        %v8231 = vpack.c.b16 %v7847, %v7841
        %v8232 = vpack.c.b16 %v7848, %v7842
        %v8233 = vpack.c.b16 %v7849, %v7843
        %v8234 = vpack.c.b16 %v7850, %v7844
        %v8235 = vpack.c.b16 %v7851, %v7845
        %v8236 = vpack.c.b16 %v7858, %v7852
        %v8237 = vpack.c.b16 %v7859, %v7853
        %v8238 = vpack.c.b16 %v7860, %v7854
        %v8239 = vpack.c.b16 %v7861, %v7855
        %v8240 = vpack.c.b16 %v7862, %v7856
        %v8241 = vpack.c.b16 %v7863, %v7857
        %v8242 = vpack.c.b16 %v7870, %v7864
        %v8243 = vpack.c.b16 %v7871, %v7865
        %v8244 = vpack.c.b16 %v7872, %v7866
        %v8245 = vpack.c.b16 %v7873, %v7867
        %v8246 = vpack.c.b16 %v7874, %v7868
        %v8247 = vpack.c.b16 %v7875, %v7869
        %v8248 = vpack.c.b16 %v7882, %v7876
        %v8249 = vpack.c.b16 %v7883, %v7877
        %v8250 = vpack.c.b16 %v7884, %v7878
        %v8251 = vpack.c.b16 %v7885, %v7879
        %v8252 = vpack.c.b16 %v7886, %v7880
        %v8253 = vpack.c.b16 %v7887, %v7881
        %v8254 = vpack.c.b16 %v7894, %v7888
        %v8255 = vpack.c.b16 %v7895, %v7889
        %v8256 = vpack.c.b16 %v7896, %v7890
        %v8257 = vpack.c.b16 %v7897, %v7891
        %v8258 = vpack.c.b16 %v7898, %v7892
        %v8259 = vpack.c.b16 %v7899, %v7893
        %v8260 = vpack.c.b16 %v7906, %v7900
        %v8261 = vpack.c.b16 %v7907, %v7901
        %v8262 = vpack.c.b16 %v7908, %v7902
        %v8263 = vpack.c.b16 %v7909, %v7903
        %v8264 = vpack.c.b16 %v7910, %v7904
        %v8265 = vpack.c.b16 %v7911, %v7905
        %v8266 = vpack.c.b16 %v7918, %v7912
        %v8267 = vpack.c.b16 %v7919, %v7913
        %v8268 = vpack.c.b16 %v7920, %v7914
        %v8269 = vpack.c.b16 %v7921, %v7915
        %v8270 = vpack.c.b16 %v7922, %v7916
        %v8271 = vpack.c.b16 %v7923, %v7917
        %v8272 = vpack.c.b16 %v7930, %v7924
        %v8273 = vpack.c.b16 %v7931, %v7925
        %v8274 = vpack.c.b16 %v7932, %v7926
        %v8275 = vpack.c.b16 %v7933, %v7927
        %v8276 = vpack.c.b16 %v7934, %v7928
        %v8277 = vpack.c.b16 %v7935, %v7929
        %v8278 = vpack.c.b16 %v7942, %v7936
        %v8279 = vpack.c.b16 %v7943, %v7937
        %v8280 = vpack.c.b16 %v7944, %v7938
        %v8281 = vpack.c.b16 %v7945, %v7939
        %v8282 = vpack.c.b16 %v7946, %v7940
        %v8283 = vpack.c.b16 %v7947, %v7941
        %v8284 = vpack.c.b16 %v7954, %v7948
        %v8285 = vpack.c.b16 %v7955, %v7949
        %v8286 = vpack.c.b16 %v7956, %v7950
        %v8287 = vpack.c.b16 %v7957, %v7951
        %v8288 = vpack.c.b16 %v7958, %v7952
        %v8289 = vpack.c.b16 %v7959, %v7953
        %v8290 = vpack.c.b16 %v7966, %v7960
        %v8291 = vpack.c.b16 %v7967, %v7961
        %v8292 = vpack.c.b16 %v7968, %v7962
        %v8293 = vpack.c.b16 %v7969, %v7963
        %v8294 = vpack.c.b16 %v7970, %v7964
        %v8295 = vpack.c.b16 %v7971, %v7965
        %v8296 = vpack.c.b16 %v7978, %v7972
        %v8297 = vpack.c.b16 %v7979, %v7973
        %v8298 = vpack.c.b16 %v7980, %v7974
        %v8299 = vpack.c.b16 %v7981, %v7975
        %v8300 = vpack.c.b16 %v7982, %v7976
        %v8301 = vpack.c.b16 %v7983, %v7977
        %v8302 = vpack.c.b16 %v7990, %v7984
        %v8303 = vpack.c.b16 %v7991, %v7985
        %v8304 = vpack.c.b16 %v7992, %v7986
        %v8305 = vpack.c.b16 %v7993, %v7987
        %v8306 = vpack.c.b16 %v7994, %v7988
        %v8307 = vpack.c.b16 %v7995, %v7989
        %v8308 = vpack.c.b16 %v8002, %v7996
        %v8309 = vpack.c.b16 %v8003, %v7997
        %v8310 = vpack.c.b16 %v8004, %v7998
        %v8311 = vpack.c.b16 %v8005, %v7999
        %v8312 = vpack.c.b16 %v8006, %v8000
        %v8313 = vpack.c.b16 %v8007, %v8001
        %v8314 = vpack.c.b16 %v8014, %v8008
        %v8315 = vpack.c.b16 %v8015, %v8009
        %v8316 = vpack.c.b16 %v8016, %v8010
        %v8317 = vpack.c.b16 %v8017, %v8011
        %v8318 = vpack.c.b16 %v8018, %v8012
        %v8319 = vpack.c.b16 %v8019, %v8013
        %v8320 = vpack.c.b16 %v8026, %v8020
        %v8321 = vpack.c.b16 %v8027, %v8021
        %v8322 = vpack.c.b16 %v8028, %v8022
        %v8323 = vpack.c.b16 %v8029, %v8023
        %v8324 = vpack.c.b16 %v8030, %v8024
        %v8325 = vpack.c.b16 %v8031, %v8025
        %v8326 = vpack.c.b16 %v8038, %v8032
        %v8327 = vpack.c.b16 %v8039, %v8033
        %v8328 = vpack.c.b16 %v8040, %v8034
        %v8329 = vpack.c.b16 %v8041, %v8035
        %v8330 = vpack.c.b16 %v8042, %v8036
        %v8331 = vpack.c.b16 %v8043, %v8037
        %8620 = vmatprep.subr.bf16.mxu0 %v8045
        %8621 = vmatpush1.bf16.msra.mxu0 %v8044
        %8622 = vmatprep.subr.bf16.mxu0 %v8051
        %8623 = vmatpush1.bf16.msra.mxu0 %v8050
        %8624 = vmatprep.subr.bf16.mxu0 %v8057
        %8625 = vmatpush1.bf16.msra.mxu0 %v8056
        %8626 = vmatprep.subr.bf16.mxu0 %v8063
        %8627 = vmatpush1.bf16.msra.mxu0 %v8062
        %8628 = vmatprep.subr.bf16.mxu0 %v8069
        %8629 = vmatpush1.bf16.msra.mxu0 %v8068
        %8630 = vmatprep.subr.bf16.mxu0 %v8075
        %8631 = vmatpush1.bf16.msra.mxu0 %v8074
        %8632 = vmatprep.subr.bf16.mxu0 %v8081
        %8633 = vmatpush1.bf16.msra.mxu0 %v8080
        %8634 = vmatprep.subr.bf16.mxu0 %v8087
        %8635 = vmatpush1.bf16.msra.mxu0 %v8086
        %8636 = vmatprep.subr.bf16.mxu0 %v8093
        %8637 = vmatpush1.bf16.msra.mxu0 %v8092
        %8638 = vmatprep.subr.bf16.mxu0 %v8099
        %8639 = vmatpush1.bf16.msra.mxu0 %v8098
        %8640 = vmatprep.subr.bf16.mxu0 %v8105
        %8641 = vmatpush1.bf16.msra.mxu0 %v8104
        %8642 = vmatprep.subr.bf16.mxu0 %v8111
        %8643 = vmatpush1.bf16.msra.mxu0 %v8110
        %8644 = vmatprep.subr.bf16.mxu0 %v8117
        %8645 = vmatpush1.bf16.msra.mxu0 %v8116
        %8646 = vmatprep.subr.bf16.mxu0 %v8123
        %8647 = vmatpush1.bf16.msra.mxu0 %v8122
        %8648 = vmatprep.subr.bf16.mxu0 %v8129
        %8649 = vmatpush1.bf16.msra.mxu0 %v8128
        %8650 = vmatprep.subr.bf16.mxu0 %v8135
        %8651 = vmatpush1.bf16.msra.mxu0 %v8134
        %8652 = vmatprep.mubr.bf16.mxu0 %v6851
        %8653 = vmatmul.mubr.bf16.gmra.mrb[0].mxu0 %v6850
        %v8654 = vpop.f32.mrb[0].mxu0
        %v8655 = vadd.f32 %v7153, %v8654
        %v8656 = vpop.f32.mrb[0].mxu0
        %v8657 = vadd.f32 %v7157, %v8656
        %v8658 = vpop.f32.mrb[0].mxu0
        %v8659 = vpop.f32.mrb[0].mxu0
        %8660 = vdwg.mxu0
        %8661 = vmatprep.subr.bf16.mxu0 %v8141
        %8662 = vmatpush1.bf16.msra.mxu0 %v8140
        %8663 = vmatprep.subr.bf16.mxu0 %v8147
        %8664 = vmatpush1.bf16.msra.mxu0 %v8146
        %8665 = vmatprep.subr.bf16.mxu0 %v8153
        %8666 = vmatpush1.bf16.msra.mxu0 %v8152
        %8667 = vmatprep.subr.bf16.mxu0 %v8159
        %8668 = vmatpush1.bf16.msra.mxu0 %v8158
        %8669 = vmatprep.subr.bf16.mxu0 %v8165
        %8670 = vmatpush1.bf16.msra.mxu0 %v8164
        %8671 = vmatprep.subr.bf16.mxu0 %v8171
        %8672 = vmatpush1.bf16.msra.mxu0 %v8170
        %8673 = vmatprep.subr.bf16.mxu0 %v8177
        %8674 = vmatpush1.bf16.msra.mxu0 %v8176
        %8675 = vmatprep.subr.bf16.mxu0 %v8183
        %8676 = vmatpush1.bf16.msra.mxu0 %v8182
        %8677 = vmatprep.subr.bf16.mxu0 %v8189
        %8678 = vmatpush1.bf16.msra.mxu0 %v8188
        %8679 = vmatprep.subr.bf16.mxu0 %v8195
        %8680 = vmatpush1.bf16.msra.mxu0 %v8194
        %8681 = vmatprep.subr.bf16.mxu0 %v8201
        %8682 = vmatpush1.bf16.msra.mxu0 %v8200
        %8683 = vmatprep.subr.bf16.mxu0 %v8207
        %8684 = vmatpush1.bf16.msra.mxu0 %v8206
        %8685 = vmatprep.subr.bf16.mxu0 %v8213
        %8686 = vmatpush1.bf16.msra.mxu0 %v8212
        %8687 = vmatprep.subr.bf16.mxu0 %v8219
        %8688 = vmatpush1.bf16.msra.mxu0 %v8218
        %8689 = vmatprep.subr.bf16.mxu0 %v8225
        %8690 = vmatpush1.bf16.msra.mxu0 %v8224
        %8691 = vmatprep.subr.bf16.mxu0 %v8231
        %8692 = vmatpush1.bf16.msra.mxu0 %v8230
        %8693 = vmatprep.mubr.bf16.mxu0 %v6853
        %8694 = vmatmul.mubr.bf16.gmra.mrb[0].mxu0 %v6852
        %v8695 = vpop.f32.mrb[0].mxu0
        %v8696 = vadd.f32 %v8655, %v8695
        %v8697 = vpop.f32.mrb[0].mxu0
        %v8698 = vadd.f32 %v8657, %v8697
        %v8699 = vpop.f32.mrb[0].mxu0
        %v8700 = vpop.f32.mrb[0].mxu0
        %8701 = vdwg.mxu0
        %8702 = vmatprep.subr.bf16.mxu0 %v8237
        %8703 = vmatpush1.bf16.msra.mxu0 %v8236
        %8704 = vmatprep.subr.bf16.mxu0 %v8243
        %8705 = vmatpush1.bf16.msra.mxu0 %v8242
        %8706 = vmatprep.subr.bf16.mxu0 %v8249
        %8707 = vmatpush1.bf16.msra.mxu0 %v8248
        %8708 = vmatprep.subr.bf16.mxu0 %v8255
        %8709 = vmatpush1.bf16.msra.mxu0 %v8254
        %8710 = vmatprep.subr.bf16.mxu0 %v8261
        %8711 = vmatpush1.bf16.msra.mxu0 %v8260
        %8712 = vmatprep.subr.bf16.mxu0 %v8267
        %8713 = vmatpush1.bf16.msra.mxu0 %v8266
        %8714 = vmatprep.subr.bf16.mxu0 %v8273
        %8715 = vmatpush1.bf16.msra.mxu0 %v8272
        %8716 = vmatprep.subr.bf16.mxu0 %v8279
        %8717 = vmatpush1.bf16.msra.mxu0 %v8278
        %8718 = vmatprep.subr.bf16.mxu0 %v8285
        %8719 = vmatpush1.bf16.msra.mxu0 %v8284
        %8720 = vmatprep.subr.bf16.mxu0 %v8291
        %8721 = vmatpush1.bf16.msra.mxu0 %v8290
        %8722 = vmatprep.subr.bf16.mxu0 %v8297
        %8723 = vmatpush1.bf16.msra.mxu0 %v8296
        %8724 = vmatprep.subr.bf16.mxu0 %v8303
        %8725 = vmatpush1.bf16.msra.mxu0 %v8302
        %8726 = vmatprep.subr.bf16.mxu0 %v8309
        %8727 = vmatpush1.bf16.msra.mxu0 %v8308
        %8728 = vmatprep.subr.bf16.mxu0 %v8315
        %8729 = vmatpush1.bf16.msra.mxu0 %v8314
        %8730 = vmatprep.subr.bf16.mxu0 %v8321
        %8731 = vmatpush1.bf16.msra.mxu0 %v8320
        %8732 = vmatprep.subr.bf16.mxu0 %v8327
        %8733 = vmatpush1.bf16.msra.mxu0 %v8326
        %8734 = vmatprep.mubr.bf16.mxu0 %v6855
        %8735 = vmatmul.mubr.bf16.gmra.mrb[0].mxu0 %v6854
        %v8736 = vpop.f32.mrb[0].mxu0
        %v8737 = vadd.f32 %v8696, %v8736
        %v8738 = vpop.f32.mrb[0].mxu0
        %v8739 = vadd.f32 %v8698, %v8738
        %v8740 = vpop.f32.mrb[0].mxu0
        %v8741 = vpop.f32.mrb[0].mxu0
        %8742 = vdwg.mxu0
        %8743 = vmatprep.subr.bf16.mxu0 %v8047
        %8744 = vmatpush1.bf16.msra.mxu0 %v8046
        %8745 = vmatprep.subr.bf16.mxu0 %v8053
        %8746 = vmatpush1.bf16.msra.mxu0 %v8052
        %8747 = vmatprep.subr.bf16.mxu0 %v8059
        %8748 = vmatpush1.bf16.msra.mxu0 %v8058
        %8749 = vmatprep.subr.bf16.mxu0 %v8065
        %8750 = vmatpush1.bf16.msra.mxu0 %v8064
        %8751 = vmatprep.subr.bf16.mxu0 %v8071
        %8752 = vmatpush1.bf16.msra.mxu0 %v8070
        %8753 = vmatprep.subr.bf16.mxu0 %v8077
        %8754 = vmatpush1.bf16.msra.mxu0 %v8076
        %8755 = vmatprep.subr.bf16.mxu0 %v8083
        %8756 = vmatpush1.bf16.msra.mxu0 %v8082
        %8757 = vmatprep.subr.bf16.mxu0 %v8089
        %8758 = vmatpush1.bf16.msra.mxu0 %v8088
        %8759 = vmatprep.subr.bf16.mxu0 %v8095
        %8760 = vmatpush1.bf16.msra.mxu0 %v8094
        %8761 = vmatprep.subr.bf16.mxu0 %v8101
        %8762 = vmatpush1.bf16.msra.mxu0 %v8100
        %8763 = vmatprep.subr.bf16.mxu0 %v8107
        %8764 = vmatpush1.bf16.msra.mxu0 %v8106
        %8765 = vmatprep.subr.bf16.mxu0 %v8113
        %8766 = vmatpush1.bf16.msra.mxu0 %v8112
        %8767 = vmatprep.subr.bf16.mxu0 %v8119
        %8768 = vmatpush1.bf16.msra.mxu0 %v8118
        %8769 = vmatprep.subr.bf16.mxu0 %v8125
        %8770 = vmatpush1.bf16.msra.mxu0 %v8124
        %8771 = vmatprep.subr.bf16.mxu0 %v8131
        %8772 = vmatpush1.bf16.msra.mxu0 %v8130
        %8773 = vmatprep.subr.bf16.mxu0 %v8137
        %8774 = vmatpush1.bf16.msra.mxu0 %v8136
        %8775 = vmatprep.mubr.bf16.mxu0 %v6851
        %8776 = vmatmul.mubr.bf16.gmra.mrb[0].mxu0 %v6850
        %v8777 = vpop.f32.mrb[0].mxu0
        %v8778 = vadd.f32 %v7161, %v8777
        %v8779 = vpop.f32.mrb[0].mxu0
        %v8780 = vadd.f32 %v7165, %v8779
        %v8781 = vpop.f32.mrb[0].mxu0
        %v8782 = vpop.f32.mrb[0].mxu0
        %8783 = vdwg.mxu0
        %8784 = vmatprep.subr.bf16.mxu0 %v8143
        %8785 = vmatpush1.bf16.msra.mxu0 %v8142
        %8786 = vmatprep.subr.bf16.mxu0 %v8149
        %8787 = vmatpush1.bf16.msra.mxu0 %v8148
        %8788 = vmatprep.subr.bf16.mxu0 %v8155
        %8789 = vmatpush1.bf16.msra.mxu0 %v8154
        %8790 = vmatprep.subr.bf16.mxu0 %v8161
        %8791 = vmatpush1.bf16.msra.mxu0 %v8160
        %8792 = vmatprep.subr.bf16.mxu0 %v8167
        %8793 = vmatpush1.bf16.msra.mxu0 %v8166
        %8794 = vmatprep.subr.bf16.mxu0 %v8173
        %8795 = vmatpush1.bf16.msra.mxu0 %v8172
        %8796 = vmatprep.subr.bf16.mxu0 %v8179
        %8797 = vmatpush1.bf16.msra.mxu0 %v8178
        %8798 = vmatprep.subr.bf16.mxu0 %v8185
        %8799 = vmatpush1.bf16.msra.mxu0 %v8184
        %8800 = vmatprep.subr.bf16.mxu0 %v8191
        %8801 = vmatpush1.bf16.msra.mxu0 %v8190
        %8802 = vmatprep.subr.bf16.mxu0 %v8197
        %8803 = vmatpush1.bf16.msra.mxu0 %v8196
        %8804 = vmatprep.subr.bf16.mxu0 %v8203
        %8805 = vmatpush1.bf16.msra.mxu0 %v8202
        %8806 = vmatprep.subr.bf16.mxu0 %v8209
        %8807 = vmatpush1.bf16.msra.mxu0 %v8208
        %8808 = vmatprep.subr.bf16.mxu0 %v8215
        %8809 = vmatpush1.bf16.msra.mxu0 %v8214
        %8810 = vmatprep.subr.bf16.mxu0 %v8221
        %8811 = vmatpush1.bf16.msra.mxu0 %v8220
        %8812 = vmatprep.subr.bf16.mxu0 %v8227
        %8813 = vmatpush1.bf16.msra.mxu0 %v8226
        %8814 = vmatprep.subr.bf16.mxu0 %v8233
        %8815 = vmatpush1.bf16.msra.mxu0 %v8232
        %8816 = vmatprep.mubr.bf16.mxu0 %v6853
        %8817 = vmatmul.mubr.bf16.gmra.mrb[0].mxu0 %v6852
        %v8818 = vpop.f32.mrb[0].mxu0
        %v8819 = vadd.f32 %v8778, %v8818
        %v8820 = vpop.f32.mrb[0].mxu0
        %v8821 = vadd.f32 %v8780, %v8820
        %v8822 = vpop.f32.mrb[0].mxu0
        %v8823 = vpop.f32.mrb[0].mxu0
        %8824 = vdwg.mxu0
        %8825 = vmatprep.subr.bf16.mxu0 %v8239
        %8826 = vmatpush1.bf16.msra.mxu0 %v8238
        %8827 = vmatprep.subr.bf16.mxu0 %v8245
        %8828 = vmatpush1.bf16.msra.mxu0 %v8244
        %8829 = vmatprep.subr.bf16.mxu0 %v8251
        %8830 = vmatpush1.bf16.msra.mxu0 %v8250
        %8831 = vmatprep.subr.bf16.mxu0 %v8257
        %8832 = vmatpush1.bf16.msra.mxu0 %v8256
        %8833 = vmatprep.subr.bf16.mxu0 %v8263
        %8834 = vmatpush1.bf16.msra.mxu0 %v8262
        %8835 = vmatprep.subr.bf16.mxu0 %v8269
        %8836 = vmatpush1.bf16.msra.mxu0 %v8268
        %8837 = vmatprep.subr.bf16.mxu0 %v8275
        %8838 = vmatpush1.bf16.msra.mxu0 %v8274
        %8839 = vmatprep.subr.bf16.mxu0 %v8281
        %8840 = vmatpush1.bf16.msra.mxu0 %v8280
        %8841 = vmatprep.subr.bf16.mxu0 %v8287
        %8842 = vmatpush1.bf16.msra.mxu0 %v8286
        %8843 = vmatprep.subr.bf16.mxu0 %v8293
        %8844 = vmatpush1.bf16.msra.mxu0 %v8292
        %8845 = vmatprep.subr.bf16.mxu0 %v8299
        %8846 = vmatpush1.bf16.msra.mxu0 %v8298
        %8847 = vmatprep.subr.bf16.mxu0 %v8305
        %8848 = vmatpush1.bf16.msra.mxu0 %v8304
        %8849 = vmatprep.subr.bf16.mxu0 %v8311
        %8850 = vmatpush1.bf16.msra.mxu0 %v8310
        %8851 = vmatprep.subr.bf16.mxu0 %v8317
        %8852 = vmatpush1.bf16.msra.mxu0 %v8316
        %8853 = vmatprep.subr.bf16.mxu0 %v8323
        %8854 = vmatpush1.bf16.msra.mxu0 %v8322
        %8855 = vmatprep.subr.bf16.mxu0 %v8329
        %8856 = vmatpush1.bf16.msra.mxu0 %v8328
        %8857 = vmatprep.mubr.bf16.mxu0 %v6855
        %8858 = vmatmul.mubr.bf16.gmra.mrb[0].mxu0 %v6854
        %v8859 = vpop.f32.mrb[0].mxu0
        %v8860 = vadd.f32 %v8819, %v8859
        %v8861 = vpop.f32.mrb[0].mxu0
        %v8862 = vadd.f32 %v8821, %v8861
        %v8863 = vpop.f32.mrb[0].mxu0
        %v8864 = vpop.f32.mrb[0].mxu0
        %8865 = vdwg.mxu0
        %8866 = vmatprep.subr.bf16.mxu0 %v8049
        %8867 = vmatpush1.bf16.msra.mxu0 %v8048
        %8868 = vmatprep.subr.bf16.mxu0 %v8055
        %8869 = vmatpush1.bf16.msra.mxu0 %v8054
        %8870 = vmatprep.subr.bf16.mxu0 %v8061
        %8871 = vmatpush1.bf16.msra.mxu0 %v8060
        %8872 = vmatprep.subr.bf16.mxu0 %v8067
        %8873 = vmatpush1.bf16.msra.mxu0 %v8066
        %8874 = vmatprep.subr.bf16.mxu0 %v8073
        %8875 = vmatpush1.bf16.msra.mxu0 %v8072
        %8876 = vmatprep.subr.bf16.mxu0 %v8079
        %8877 = vmatpush1.bf16.msra.mxu0 %v8078
        %8878 = vmatprep.subr.bf16.mxu0 %v8085
        %8879 = vmatpush1.bf16.msra.mxu0 %v8084
        %8880 = vmatprep.subr.bf16.mxu0 %v8091
        %8881 = vmatpush1.bf16.msra.mxu0 %v8090
        %8882 = vmatprep.subr.bf16.mxu0 %v8097
        %8883 = vmatpush1.bf16.msra.mxu0 %v8096
        %8884 = vmatprep.subr.bf16.mxu0 %v8103
        %8885 = vmatpush1.bf16.msra.mxu0 %v8102
        %8886 = vmatprep.subr.bf16.mxu0 %v8109
        %8887 = vmatpush1.bf16.msra.mxu0 %v8108
        %8888 = vmatprep.subr.bf16.mxu0 %v8115
        %8889 = vmatpush1.bf16.msra.mxu0 %v8114
        %8890 = vmatprep.subr.bf16.mxu0 %v8121
        %8891 = vmatpush1.bf16.msra.mxu0 %v8120
        %8892 = vmatprep.subr.bf16.mxu0 %v8127
        %8893 = vmatpush1.bf16.msra.mxu0 %v8126
        %8894 = vmatprep.subr.bf16.mxu0 %v8133
        %8895 = vmatpush1.bf16.msra.mxu0 %v8132
        %8896 = vmatprep.subr.bf16.mxu0 %v8139
        %8897 = vmatpush1.bf16.msra.mxu0 %v8138
        %8898 = vmatprep.mubr.bf16.mxu0 %v6851
        %8899 = vmatmul.mubr.bf16.gmra.mrb[0].mxu0 %v6850
        %v8900 = vpop.f32.mrb[0].mxu0
        %v8901 = vadd.f32 %v7169, %v8900
        %v8902 = vpop.f32.mrb[0].mxu0
        %v8903 = vadd.f32 %v7173, %v8902
        %v8904 = vpop.f32.mrb[0].mxu0
        %v8905 = vpop.f32.mrb[0].mxu0
        %8906 = vdwg.mxu0
        %8907 = vmatprep.subr.bf16.mxu0 %v8145
        %8908 = vmatpush1.bf16.msra.mxu0 %v8144
        %8909 = vmatprep.subr.bf16.mxu0 %v8151
        %8910 = vmatpush1.bf16.msra.mxu0 %v8150
        %8911 = vmatprep.subr.bf16.mxu0 %v8157
        %8912 = vmatpush1.bf16.msra.mxu0 %v8156
        %8913 = vmatprep.subr.bf16.mxu0 %v8163
        %8914 = vmatpush1.bf16.msra.mxu0 %v8162
        %8915 = vmatprep.subr.bf16.mxu0 %v8169
        %8916 = vmatpush1.bf16.msra.mxu0 %v8168
        %8917 = vmatprep.subr.bf16.mxu0 %v8175
        %8918 = vmatpush1.bf16.msra.mxu0 %v8174
        %8919 = vmatprep.subr.bf16.mxu0 %v8181
        %8920 = vmatpush1.bf16.msra.mxu0 %v8180
        %8921 = vmatprep.subr.bf16.mxu0 %v8187
        %8922 = vmatpush1.bf16.msra.mxu0 %v8186
        %8923 = vmatprep.subr.bf16.mxu0 %v8193
        %8924 = vmatpush1.bf16.msra.mxu0 %v8192
        %8925 = vmatprep.subr.bf16.mxu0 %v8199
        %8926 = vmatpush1.bf16.msra.mxu0 %v8198
        %8927 = vmatprep.subr.bf16.mxu0 %v8205
        %8928 = vmatpush1.bf16.msra.mxu0 %v8204
        %8929 = vmatprep.subr.bf16.mxu0 %v8211
        %8930 = vmatpush1.bf16.msra.mxu0 %v8210
        %8931 = vmatprep.subr.bf16.mxu0 %v8217
        %8932 = vmatpush1.bf16.msra.mxu0 %v8216
        %8933 = vmatprep.subr.bf16.mxu0 %v8223
        %8934 = vmatpush1.bf16.msra.mxu0 %v8222
        %8935 = vmatprep.subr.bf16.mxu0 %v8229
        %8936 = vmatpush1.bf16.msra.mxu0 %v8228
        %8937 = vmatprep.subr.bf16.mxu0 %v8235
        %8938 = vmatpush1.bf16.msra.mxu0 %v8234
        %8939 = vmatprep.mubr.bf16.mxu0 %v6853
        %8940 = vmatmul.mubr.bf16.gmra.mrb[0].mxu0 %v6852
        %v8941 = vpop.f32.mrb[0].mxu0
        %v8942 = vadd.f32 %v8901, %v8941
        %v8943 = vpop.f32.mrb[0].mxu0
        %v8944 = vadd.f32 %v8903, %v8943
        %v8945 = vpop.f32.mrb[0].mxu0
        %v8946 = vpop.f32.mrb[0].mxu0
        %8947 = vdwg.mxu0
        %8948 = vmatprep.subr.bf16.mxu0 %v8241
        %8949 = vmatpush1.bf16.msra.mxu0 %v8240
        %8950 = vmatprep.subr.bf16.mxu0 %v8247
        %8951 = vmatpush1.bf16.msra.mxu0 %v8246
        %8952 = vmatprep.subr.bf16.mxu0 %v8253
        %8953 = vmatpush1.bf16.msra.mxu0 %v8252
        %8954 = vmatprep.subr.bf16.mxu0 %v8259
        %8955 = vmatpush1.bf16.msra.mxu0 %v8258
        %8956 = vmatprep.subr.bf16.mxu0 %v8265
        %8957 = vmatpush1.bf16.msra.mxu0 %v8264
        %8958 = vmatprep.subr.bf16.mxu0 %v8271
        %8959 = vmatpush1.bf16.msra.mxu0 %v8270
        %8960 = vmatprep.subr.bf16.mxu0 %v8277
        %8961 = vmatpush1.bf16.msra.mxu0 %v8276
        %8962 = vmatprep.subr.bf16.mxu0 %v8283
        %8963 = vmatpush1.bf16.msra.mxu0 %v8282
        %8964 = vmatprep.subr.bf16.mxu0 %v8289
        %8965 = vmatpush1.bf16.msra.mxu0 %v8288
        %8966 = vmatprep.subr.bf16.mxu0 %v8295
        %8967 = vmatpush1.bf16.msra.mxu0 %v8294
        %8968 = vmatprep.subr.bf16.mxu0 %v8301
        %8969 = vmatpush1.bf16.msra.mxu0 %v8300
        %8970 = vmatprep.subr.bf16.mxu0 %v8307
        %8971 = vmatpush1.bf16.msra.mxu0 %v8306
        %8972 = vmatprep.subr.bf16.mxu0 %v8313
        %8973 = vmatpush1.bf16.msra.mxu0 %v8312
        %8974 = vmatprep.subr.bf16.mxu0 %v8319
        %8975 = vmatpush1.bf16.msra.mxu0 %v8318
        %8976 = vmatprep.subr.bf16.mxu0 %v8325
        %8977 = vmatpush1.bf16.msra.mxu0 %v8324
        %8978 = vmatprep.subr.bf16.mxu0 %v8331
        %8979 = vmatpush1.bf16.msra.mxu0 %v8330
        %8980 = vmatprep.mubr.bf16.mxu0 %v6855
        %8981 = vmatmul.mubr.bf16.gmra.mrb[0].mxu0 %v6854
        %v8982 = vpop.f32.mrb[0].mxu0
        %v8983 = vadd.f32 %v8942, %v8982
        %v8984 = vpop.f32.mrb[0].mxu0
        %v8985 = vadd.f32 %v8944, %v8984
        %v8986 = vpop.f32.mrb[0].mxu0
        %v8987 = vpop.f32.mrb[0].mxu0
        %8988 = vdwg.mxu0
        %v8989 = vmul.f32 %v8737, %v4704
        %v8990 = vmul.f32 %v8739, %v4704
        %v8991 = vmul.f32 %v8860, %v4704
        %v8992 = vmul.f32 %v8862, %v4704
        %v8993 = vmul.f32 %v8983, %v4704
        %v8994 = vmul.f32 %v8985, %v4704
        %8995 = vst [vmem:[%s382] sm:$0xff] %v4706
        %8996 = vst [vmem:[%s382 + $0x8] sm:$0xff] %v4707
        %8997 = vst [vmem:[%s382 + $0x10] sm:$0xff] %v4708
        %8998 = vst [vmem:[%s382 + $0x18] sm:$0xff] %v4709
        %8999 = vst [vmem:[%s382 + $0x20] sm:$0xff] %v4710
        %9000 = vst [vmem:[%s382 + $0x28] sm:$0xff] %v4711
        %9001 = vst [vmem:[%s375] sm:$0xff] %v8989
        %9002 = vst [vmem:[%s375 + $0x8] sm:$0xff] %v8990
        %9003 = vst [vmem:[%s375 + $0x10] sm:$0xff] %v8991
        %9004 = vst [vmem:[%s375 + $0x18] sm:$0xff] %v8992
        %9005 = vst [vmem:[%s375 + $0x20] sm:$0xff] %v8993
        %9006 = vst [vmem:[%s375 + $0x28] sm:$0xff] %v8994
        %v9007 = vadd.f32 %v411, %v4706
        %v9008 = vadd.f32 %v412, %v4707
        %v9009 = vadd.f32 %v413, %v4708
        %v9010 = vadd.f32 %v414, %v4709
        %v9011 = vadd.f32 %v415, %v4710
        %v9012 = vadd.f32 %v416, %v4711
        %9013 = vst [vmem:[%s389] sm:$0xff] %v9007
        %9014 = vst [vmem:[%s389 + $0x8] sm:$0xff] %v9008
        %9015 = vst [vmem:[%s389 + $0x10] sm:$0xff] %v9009
        %9016 = vst [vmem:[%s389 + $0x18] sm:$0xff] %v9010
        %9017 = vst [vmem:[%s389 + $0x20] sm:$0xff] %v9011
        %9018 = vst [vmem:[%s389 + $0x28] sm:$0xff] %v9012
        %s9019 = sand.u32 %s209, 1
        %s9020 = scalar_lea.sflag [#allocation5], %s9019
        %s9021 = sand.u32 %s209, 1
        %s9022 = smul.addr %s9021, 48
        %s9023 = scalar_lea.vmem [#allocation4], %s9022
        %s9024 = sand.u32 %s34, 1
        %s9025 = scalar_lea.sflag [#allocation7], %s9024
        %s9026 = sand.u32 %s235, 1
        %s9027 = smul.addr %s9026, 48
        %s9028 = scalar_lea.vmem [#allocation6], %s9027
        %s9029 = sand.u32 %s34, 1
        %s9030 = scalar_lea.sflag [#allocation7], %s9029
        %s9031 = sand.u32 %s261, 1
        %s9032 = smul.addr %s9031, 48
        %s9033 = scalar_lea.vmem [#allocation8], %s9032
        // Predicated region
        $region49: #{mlm_model_forward.1} parent=47 // pred_check
          %p9034 = pneg %p219
        $region50: #{mlm_model_forward.1} parent=47 // pred_check_branch
          %9036 = sbr.rel (%p9034) target = $region52
        $region51: #{mlm_model_forward.1} parent=47 // pred_region
          %s9038 = ssub.s32 768, 768
          %9039 = vsyncadd %s9020, %s9038
          %s9040 = smul.addr %s34, 6
          %s9041 = smul.addr %s9040, 128
          %s9042 = scalar_lea.hbm %s8, %s9041
          %s9044 = sshll.u32 %s9023, 4
          %s9045 = int_to_ptr.vmem [resolvable:$true] %s9044
          %9047 = dma.vmem_to_hbm [thread:$0]  %s9045, 768, %s9042, %s9020
        $region52: #{mlm_model_forward.1} parent=47 // pred_fallthru
          _
        // Predicated region
        $region53: #{mlm_model_forward.1} parent=47 // pred_check
          %p9048 = pneg %p245
        $region54: #{mlm_model_forward.1} parent=47 // pred_check_branch
          %9050 = sbr.rel (%p9048) target = $region56
        $region55: #{mlm_model_forward.1} parent=47 // pred_region
          %s9052 = ssub.s32 768, 768
          %9053 = vsyncadd %s9025, %s9052
          %s9054 = smul.addr %s34, 6
          %s9055 = smul.addr %s9054, 128
          %s9056 = scalar_lea.hbm %s9, %s9055
          %s9058 = sshll.u32 %s9028, 4
          %s9059 = int_to_ptr.vmem [resolvable:$true] %s9058
          %9061 = dma.vmem_to_hbm [thread:$0]  %s9059, 768, %s9056, %s9025
        $region56: #{mlm_model_forward.1} parent=47 // pred_fallthru
          _
        // Predicated region
        $region57: #{mlm_model_forward.1} parent=47 // pred_check
          %p9062 = pneg %p271
        $region58: #{mlm_model_forward.1} parent=47 // pred_check_branch
          %9064 = sbr.rel (%p9062) target = $region60
        $region59: #{mlm_model_forward.1} parent=47 // pred_region
          %s9066 = ssub.s32 768, 768
          %9067 = vsyncadd %s9030, %s9066
          %s9068 = smul.addr %s34, 6
          %s9069 = smul.addr %s9068, 128
          %s9070 = scalar_lea.hbm %s10, %s9069
          %s9072 = sshll.u32 %s9033, 4
          %s9073 = int_to_ptr.vmem [resolvable:$true] %s9072
          %9075 = dma.vmem_to_hbm [thread:$0]  %s9073, 768, %s9070, %s9030
        $region60: #{mlm_model_forward.1} parent=47 // pred_fallthru
          _
      $region48: #{mlm_model_forward.1} parent=5 // pred_fallthru
        _
      %p9076 = scmp.le.s32.totalorder 2, %s29
      // Predicated region
      $region61: #{mlm_model_forward.1} parent=5 // pred_check
        %p9077 = pneg %p9076
      $region62: #{mlm_model_forward.1} parent=5 // pred_check_branch
        %9079 = sbr.rel (%p9077) target = $region64
      $region63: #{mlm_model_forward.1} parent=5 // pred_region
        %s9080 = ssub.s32 %s29, 2
        // Predicated region
        $region65: #{mlm_model_forward.1} parent=63 // pred_check
          %p9081 = pneg %p225
        $region66: #{mlm_model_forward.1} parent=63 // pred_check_branch
          %9083 = sbr.rel (%p9081) target = $region68
        $region67: #{mlm_model_forward.1} parent=63 // pred_region
          %s9084 = sand.u32 %s210, 1
          %s9085 = scalar_lea.sflag [#allocation5], %s9084
          %s9086 = sand.u32 %s210, 1
          %s9087 = smul.addr %s9086, 48
          %s9088 = scalar_lea.vmem [#allocation4], %s9087
          %9089 = dma.done %s9085, 768
        $region68: #{mlm_model_forward.1} parent=63 // pred_fallthru
          _
        // Predicated region
        $region69: #{mlm_model_forward.1} parent=63 // pred_check
          %p9090 = pneg %p251
        $region70: #{mlm_model_forward.1} parent=63 // pred_check_branch
          %9092 = sbr.rel (%p9090) target = $region72
        $region71: #{mlm_model_forward.1} parent=63 // pred_region
          %s9093 = sand.u32 %s35, 1
          %s9094 = scalar_lea.sflag [#allocation7], %s9093
          %s9095 = sand.u32 %s236, 1
          %s9096 = smul.addr %s9095, 48
          %s9097 = scalar_lea.vmem [#allocation6], %s9096
          %9098 = dma.done %s9094, 768
        $region72: #{mlm_model_forward.1} parent=63 // pred_fallthru
          _
        // Predicated region
        $region73: #{mlm_model_forward.1} parent=63 // pred_check
          %p9099 = pneg %p277
        $region74: #{mlm_model_forward.1} parent=63 // pred_check_branch
          %9101 = sbr.rel (%p9099) target = $region76
        $region75: #{mlm_model_forward.1} parent=63 // pred_region
          %s9102 = sand.u32 %s35, 1
          %s9103 = scalar_lea.sflag [#allocation7], %s9102
          %s9104 = sand.u32 %s262, 1
          %s9105 = smul.addr %s9104, 48
          %s9106 = scalar_lea.vmem [#allocation8], %s9105
          %9107 = dma.done %s9103, 768
        $region76: #{mlm_model_forward.1} parent=63 // pred_fallthru
          _
      $region64: #{mlm_model_forward.1} parent=5 // pred_fallthru
        _
    $region6: #{mlm_model_forward.1} parent=1 // loop_footer
      %s33 = sadd.s32 1, %s29
    $region7: #{mlm_model_forward.1} parent=1 // loop_footer_branch
      %28 = sbr.rel target = $region3
    $region8: #{mlm_model_forward.1} parent=1 // loop_exit
      _
    %9108 = vsyncpa [#allocation5], 1
    %s9109 = scalar_lea.sflag [#allocation5], 1
    %9110 = vsyncpa %s9109, 1
    %9111 = vsyncpa [#allocation7], 1
    %s9112 = scalar_lea.sflag [#allocation7], 1
    %9113 = vsyncpa %s9112, 1

</llo_original>
